<compile_context>
chip_gen: v6e
topology: v6e:2x2x1
jax: 0.10.0
libtpu: 0.0.40
codegen_flags: <defaults>
</compile_context>

<pallas_src>
import math

import numpy as np
import jax
import jax.numpy as jnp
from jax.experimental import pallas as pl
from jax.experimental.pallas import tpu as pltpu


# ----------------------------------------------------------------------------
# helpers shared by kernel and reference
# ----------------------------------------------------------------------------
ALPHA = 1.9
BETA = 1.9 * 4
GAMMA = 1.9 * 6


def _sign(x):
    # torch.sign semantics for finite values
    return jnp.where(x > 0, 1.0, jnp.where(x < 0, -1.0, 0.0))


def _piecewise_index(rp, shift):
    """Float re-implementation of piecewise_index (coords are integer-valued)."""
    rp = rp.astype(jnp.float32)
    rp_abs = jnp.abs(rp)
    mask = rp_abs <= 2.0 * ALPHA
    # maximum() only guards log(0) for elements the mask discards anyway
    y = _sign(rp) * jnp.minimum(
        jnp.round(
            jnp.log(jnp.maximum(rp_abs, ALPHA) / ALPHA)
            / math.log(GAMMA / ALPHA)
            * (BETA - 2.0 * ALPHA)
        ),
        float(shift),
    )
    return jnp.where(mask, _sign(rp), y)


def _erf_approx(x):
    # Abramowitz & Stegun 7.1.26, |error| <= 1.5e-7 — exact-erf GELU semantics
    # within fp32 tolerance using only VPU/EUP ops (safe Mosaic lowering).
    a1, a2, a3, a4, a5 = (0.254829592, -0.284496736, 1.421413741,
                          -1.453152027, 1.061405429)
    p = 0.3275911
    sgn = jnp.where(x >= 0.0, 1.0, -1.0)
    ax = jnp.abs(x)
    t = 1.0 / (1.0 + p * ax)
    poly = ((((a5 * t + a4) * t + a3) * t + a2) * t + a1) * t
    return sgn * (1.0 - poly * jnp.exp(-ax * ax))


def _gelu_exact(x):
    return 0.5 * x * (1.0 + _erf_approx(x * 0.7071067811865475))


# ----------------------------------------------------------------------------
# Pallas kernel: WB windows per grid step
# ----------------------------------------------------------------------------
def _make_kernel(wb, ws, dim, num_heads, shift, matmul_dtype):
    hd = dim // num_heads
    n_buckets = 2 * shift + 1
    rows = wb * ws
    mdt = matmul_dtype  # f32 by default; bf16 for v6e/v7x MXU if desired

    def kernel(x_ref, ccol_ref, crow_ref, lnw_ref, lnb_ref,
               wqkv_ref, bqkv_ref, wproj_ref, bproj_ref, table_ref, o_ref):
        x = x_ref[...]                                   # (WB*ws, dim), lane-dense

        # ---- LayerNorm (eps = 1e-5, torch default) ----
        mu = jnp.mean(x, axis=-1, keepdims=True)
        xc = x - mu
        var = jnp.mean(xc * xc, axis=-1, keepdims=True)
        xn = xc * jax.lax.rsqrt(var + 1e-5)
        xn = xn * lnw_ref[...] + lnb_ref[...]            # (WB*ws, dim)

        # ---- qkv projection over the whole slab (q-scale pre-folded into W/b) ----
        qkv = jnp.dot(xn.astype(mdt), wqkv_ref[...].astype(mdt),
                      preferred_element_type=jnp.float32) + bqkv_ref[...]
        qkv3 = qkv.reshape(wb, ws, 3 * dim)              # single windowed relayout

        # ---- piecewise relative-position bucket index (shared by all heads) ----
        c = ccol_ref[...]                                # (WB, ws, 2)
        ct = crow_ref[...]                               # (WB, 2, ws)
        d0 = c[:, :, 0:1] - ct[:, 0:1, :]                # (WB, ws, ws)
        d1 = c[:, :, 1:2] - ct[:, 1:2, :]
        idx = (jnp.abs(_piecewise_index(d0, shift)) +
               jnp.abs(_piecewise_index(d1, shift))).astype(jnp.int32)
        eqs = [idx == t for t in range(n_buckets)]       # bucket masks, once

        q3 = qkv3[..., 0 * dim:1 * dim]                  # (WB, ws, dim) — already scaled
        k3 = qkv3[..., 1 * dim:2 * dim]
        v3 = qkv3[..., 2 * dim:3 * dim]

        # ---- per-head attention, batched over all WB windows ----
        outs = []
        for h in range(num_heads):
            sl = slice(h * hd, (h + 1) * hd)
            qh, kh, vh = q3[..., sl], k3[..., sl], v3[..., sl]   # lane slices only

            s = jnp.einsum('bqd,bkd->bqk', qh.astype(mdt), kh.astype(mdt),
                           preferred_element_type=jnp.float32)   # (WB, ws, ws)

            bias = jnp.zeros(s.shape, jnp.float32)
            for t in range(n_buckets):
                bias = jnp.where(eqs[t], table_ref[t, h], bias)
            s = s + bias

            s = s - jnp.max(s, axis=-1, keepdims=True)
            p = jnp.exp(s)
            p = p * pl.reciprocal(jnp.sum(p, axis=-1, keepdims=True), approx=True)

            outs.append(jnp.einsum('bqk,bkd->bqd', p.astype(mdt), vh.astype(mdt),
                                   preferred_element_type=jnp.float32))  # (WB, ws, hd)

        attn_out = jnp.concatenate(outs, axis=-1).reshape(rows, dim)  # one relayout

        # ---- output projection + residual + fused GELU epilogue ----
        y = jnp.dot(attn_out.astype(mdt), wproj_ref[...].astype(mdt),
                    preferred_element_type=jnp.float32) + bproj_ref[...]
        o_ref[...] = _gelu_exact(x + y)                  # (WB*ws, dim), lane-dense store

    return kernel


# ----------------------------------------------------------------------------
# wrapper (glue in plain JAX)
# ----------------------------------------------------------------------------
def _choose_window_batch(nw, ws, dim):
    # rough per-window VMEM footprint (f32): activations + qkv (2 copies) +
    # scores/bias, with headroom for double-buffered I/O.  Budget kept well
    # under the 48 MiB scoped limit requested below (v7x-safe).
    bytes_per_window = 4 * (16 * ws * dim + 12 * ws * ws)
    budget = 20 * 1024 * 1024
    wb = max(1, budget // bytes_per_window)
    return int(min(wb, 256, nw))


def _legalize_wb(wb, ws, nw):
    # The 2-D x/out block is (wb*ws, C); its sublane extent must be a multiple
    # of 8 unless the block spans the whole array.
    wb = max(1, min(wb, nw))
    if wb >= nw:
        return nw
    if ws % 8 == 0:
        return wb
    m = 8 // math.gcd(ws, 8)
    wb = max(m, (wb // m) * m)
    return int(min(wb, nw))


def local_layer_forward(x, coords, params, window_size, num_heads=8,
                        matmul_dtype=jnp.float32, window_batch=None):
    x = x.astype(jnp.float32)
    coords = coords.astype(jnp.float32)
    B, N, C = x.shape
    ws = window_size
    shift = int(np.sqrt(ws))
    hd = C // num_heads
    scale = hd ** (-0.5)

    # F.pad(..., mode='reflect') with a *negative* amount is just a crop.
    add = N // ws * ws - N
    if add != 0:
        left = -(add // 2)
        right = -(add - add // 2)
        x = x[:, left:N - right, :]
        coords = coords[:, left:N - right, :]
        N = x.shape[1]

    W = N // ws
    NW = B * W
    xw = x.reshape(NW, ws, C)
    cw = coords.reshape(NW, ws, 2)
    # Row-layout coords kept as a (tiny) second input: deriving it in-kernel
    # would need a minor-dim transpose; its DMA cost is negligible once batched.
    cwT = jnp.swapaxes(cw, 1, 2)                          # (NW, 2, ws)

    WB = window_batch if window_batch is not None else _choose_window_batch(NW, ws, C)
    WB = _legalize_wb(WB, ws, NW)
    num_blocks = (NW + WB - 1) // WB
    NW_pad = num_blocks * WB
    if NW_pad != NW:                                      # tail block: zero-pad
        pad = NW_pad - NW
        xw = jnp.pad(xw, ((0, pad), (0, 0), (0, 0)))
        cw = jnp.pad(cw, ((0, pad), (0, 0), (0, 0)))
        cwT = jnp.pad(cwT, ((0, pad), (0, 0), (0, 0)))
    x2 = xw.reshape(NW_pad * ws, C)                       # free HBM view, lane-dense

    # Fold the attention q-scale into the qkv weights/bias (one-time O(C*3C));
    # removes a (rows, dim) VPU multiply from every kernel step.
    w_qkv = params["w_qkv"].at[:, :C].multiply(scale)
    b_qkv = params["b_qkv"].at[:, :C].multiply(scale)

    kernel = _make_kernel(WB, ws, C, num_heads, shift, matmul_dtype)
    rows = WB * ws

    out = pl.pallas_call(
        kernel,
        out_shape=jax.ShapeDtypeStruct((NW_pad * ws, C), jnp.float32),
        grid=(num_blocks,),
        in_specs=[
            pl.BlockSpec((rows, C), lambda i: (i, 0)),          # x slab (2-D, lane-dense)
            pl.BlockSpec((WB, ws, 2), lambda i: (i, 0, 0)),     # coords (col layout)
            pl.BlockSpec((WB, 2, ws), lambda i: (i, 0, 0)),     # coords (row layout)
            pl.BlockSpec((1, C), lambda i: (0, 0)),             # ln weight
            pl.BlockSpec((1, C), lambda i: (0, 0)),             # ln bias
            pl.BlockSpec((C, 3 * C), lambda i: (0, 0)),         # W_qkv (pre-scaled q)
            pl.BlockSpec((1, 3 * C), lambda i: (0, 0)),         # b_qkv (pre-scaled q)
            pl.BlockSpec((C, C), lambda i: (0, 0)),             # W_proj
            pl.BlockSpec((1, C), lambda i: (0, 0)),             # b_proj
            pl.BlockSpec(memory_space=pltpu.MemorySpace.SMEM),  # rel-pos table
        ],
        out_specs=pl.BlockSpec((rows, C), lambda i: (i, 0)),
        compiler_params=pltpu.CompilerParams(
            dimension_semantics=("parallel",),            # lets megacore shard blocks
            vmem_limit_bytes=48 * 1024 * 1024),
    )(x2, cw, cwT,
      params["ln_w"], params["ln_b"],
      w_qkv, b_qkv,
      params["w_proj"], params["b_proj"],
      params["table"])

    out = out[:NW * ws].reshape(B, N, C)
    # GELU + residual already fused into the kernel; dropouts are identity (eval).
    return out


# ----------------------------------------------------------------------------
# pure-JAX reference (mirrors the PyTorch module step by step)
# ----------------------------------------------------------------------------
def local_layer_reference(x, coords, p, window_size, num_heads=8):
    HI = jax.lax.Precision.HIGHEST
    x = x.astype(jnp.float32)
    coords = coords.astype(jnp.float32)
    ws = window_size
    B, N, C = x.shape
    add = N // ws * ws - N
    if add != 0:
        left = -(add // 2)
        right = -(add - add // 2)
        x = x[:, left:N - right, :]
        coords = coords[:, left:N - right, :]
    B, N, C = x.shape
    shift = int(np.sqrt(ws))
    H = num_heads
    hd = C // H
    scale = hd ** (-0.5)

    mu = x.mean(-1, keepdims=True)
    var = ((x - mu) ** 2).mean(-1, keepdims=True)
    xn = (x - mu) / jnp.sqrt(var + 1e-5) * p["ln_w"].reshape(C) + p["ln_b"].reshape(C)

    W = N // ws
    xw = xn.reshape(B * W, ws, C)
    cw = coords.reshape(B * W, ws, 2)

    qkv = jnp.einsum("nwc,cd->nwd", xw, p["w_qkv"], precision=HI) + p["b_qkv"].reshape(-1)
    qkv = qkv.reshape(B * W, ws, 3, H, hd).transpose(2, 0, 3, 1, 4)
    q, k, v = qkv[0] * scale, qkv[1], qkv[2]
    attn = jnp.einsum("bhqd,bhkd->bhqk", q, k, precision=HI)

    rel = cw[:, :, None, :] - cw[:, None, :, :]
    idx = (jnp.abs(_piecewise_index(rel[..., 0], shift)) +
           jnp.abs(_piecewise_index(rel[..., 1], shift))).astype(jnp.int32)
    bias = p["table"][idx]                               # (BW, ws, ws, H)
    attn = attn + bias.transpose(0, 3, 1, 2)
    attn = jax.nn.softmax(attn, axis=-1)

    out = jnp.einsum("bhqk,bhkd->bhqd", attn, v, precision=HI)
    out = out.transpose(0, 2, 1, 3).reshape(B * W, ws, C)
    out = jnp.einsum("nwc,cd->nwd", out, p["w_proj"], precision=HI) + p["b_proj"].reshape(-1)

    y = x + out.reshape(B, N, C)
    return jax.nn.gelu(y, approximate=False)


# ----------------------------------------------------------------------------
# deterministic parameter init (shapes follow the module __init__)
# ----------------------------------------------------------------------------
def init_params(key, dim, window_size, num_heads=8):
    shift = int(np.sqrt(window_size))
    k = jax.random.split(key, 7)
    s = dim ** (-0.5)
    return {
        "ln_w": 1.0 + 0.1 * jax.random.normal(k[0], (1, dim), jnp.float32),
        "ln_b": 0.1 * jax.random.normal(k[1], (1, dim), jnp.float32),
        "w_qkv": s * jax.random.normal(k[2], (dim, 3 * dim), jnp.float32),
        "b_qkv": 0.02 * jax.random.normal(k[3], (1, 3 * dim), jnp.float32),
        "w_proj": s * jax.random.normal(k[4], (dim, dim), jnp.float32),
        "b_proj": 0.02 * jax.random.normal(k[5], (1, dim), jnp.float32),
        "table": 0.02 * jax.random.normal(k[6], (2 * shift + 1, num_heads), jnp.float32),
    }


if __name__ == "__main__":
    B, N, C, ws = 2, 35, 64, 16          # N not a multiple of ws -> exercises crop + tail handling
    key = jax.random.PRNGKey(0)
    kx, kc, kp = jax.random.split(key, 3)

    x = jax.random.normal(kx, (B, N, C), jnp.float32)
    coords = jax.random.randint(kc, (B, N, 2), 0, 15).astype(jnp.float32)
    params = init_params(kp, C, ws)

    out = jax.block_until_ready(local_layer_forward(x, coords, params, ws))
    ref = jax.block_until_ready(local_layer_reference(x, coords, params, ws))

    assert out.shape == ref.shape
    np.testing.assert_allclose(np.asarray(out), np.asarray(ref), rtol=2e-3, atol=2e-3)
    print("KERNEL_OK")
</pallas_src>

<mosaic_0001>
module attributes {stable_mosaic.version = 11 : i64} {
  func.func @kernel(%arg0: i32, %arg1: memref<64x64xf32, #tpu.memory_space<vmem>>, %arg2: memref<4x16x2xf32, #tpu.memory_space<vmem>>, %arg3: memref<4x2x16xf32, #tpu.memory_space<vmem>>, %arg4: memref<1x64xf32, #tpu.memory_space<vmem>>, %arg5: memref<1x64xf32, #tpu.memory_space<vmem>>, %arg6: memref<64x192xf32, #tpu.memory_space<vmem>>, %arg7: memref<1x192xf32, #tpu.memory_space<vmem>>, %arg8: memref<64x64xf32, #tpu.memory_space<vmem>>, %arg9: memref<1x64xf32, #tpu.memory_space<vmem>>, %arg10: memref<9x8xf32, #tpu.memory_space<smem>>, %arg11: memref<64x64xf32, #tpu.memory_space<vmem>>) attributes {dimension_semantics = [#tpu.dimension_semantics<parallel>], iteration_bounds = array<i64: 1>, scalar_prefetch = 0 : i64, scratch_operands = 0 : i64, tpu.core_type = #tpu.core_type<tc>, window_params = [{transform_indices = @transform_0, window_bounds = array<i64: 64, 64>}, {transform_indices = @transform_1, window_bounds = array<i64: 4, 16, 2>}, {transform_indices = @transform_2, window_bounds = array<i64: 4, 2, 16>}, {pipeline_mode = #tpu.pipeline_mode<synchronous>, transform_indices = @transform_3, window_bounds = array<i64: 1, 64>}, {pipeline_mode = #tpu.pipeline_mode<synchronous>, transform_indices = @transform_4, window_bounds = array<i64: 1, 64>}, {pipeline_mode = #tpu.pipeline_mode<synchronous>, transform_indices = @transform_5, window_bounds = array<i64: 64, 192>}, {pipeline_mode = #tpu.pipeline_mode<synchronous>, transform_indices = @transform_6, window_bounds = array<i64: 1, 192>}, {pipeline_mode = #tpu.pipeline_mode<synchronous>, transform_indices = @transform_7, window_bounds = array<i64: 64, 64>}, {pipeline_mode = #tpu.pipeline_mode<synchronous>, transform_indices = @transform_8, window_bounds = array<i64: 1, 64>}, {transform_indices = @transform_9, window_bounds = array<i64: 9, 8>}, {transform_indices = @transform_10, window_bounds = array<i64: 64, 64>}]} {
    %c0 = arith.constant 0 : index
    %c0_0 = arith.constant 0 : index
    %0 = vector.load %arg1[%c0, %c0_0] : memref<64x64xf32, #tpu.memory_space<vmem>>, vector<64x64xf32>
    %cst = arith.constant dense<0.000000e+00> : vector<64xf32>
    %1 = vector.multi_reduction <add>, %0, %cst [1] : vector<64x64xf32> to vector<64xf32>
    %2 = vector.shape_cast %1 : vector<64xf32> to vector<64x1xf32>
    %cst_1 = arith.constant 6.400000e+01 : f32
    %3 = vector.broadcast %cst_1 : f32 to vector<64x1xf32>
    %4 = arith.divf %2, %3 : vector<64x1xf32>
    %5 = vector.broadcast %4 : vector<64x1xf32> to vector<64x64xf32>
    %6 = arith.subf %0, %5 : vector<64x64xf32>
    %7 = arith.mulf %6, %6 : vector<64x64xf32>
    %cst_2 = arith.constant dense<0.000000e+00> : vector<64xf32>
    %8 = vector.multi_reduction <add>, %7, %cst_2 [1] : vector<64x64xf32> to vector<64xf32>
    %9 = vector.shape_cast %8 : vector<64xf32> to vector<64x1xf32>
    %cst_3 = arith.constant 6.400000e+01 : f32
    %10 = vector.broadcast %cst_3 : f32 to vector<64x1xf32>
    %11 = arith.divf %9, %10 : vector<64x1xf32>
    %cst_4 = arith.constant 9.99999974E-6 : f32
    %12 = vector.broadcast %cst_4 : f32 to vector<64x1xf32>
    %13 = arith.addf %11, %12 : vector<64x1xf32>
    %14 = math.rsqrt %13 : vector<64x1xf32>
    %15 = vector.broadcast %14 : vector<64x1xf32> to vector<64x64xf32>
    %16 = arith.mulf %6, %15 : vector<64x64xf32>
    %c0_5 = arith.constant 0 : index
    %c0_6 = arith.constant 0 : index
    %17 = vector.load %arg4[%c0_5, %c0_6] : memref<1x64xf32, #tpu.memory_space<vmem>>, vector<1x64xf32>
    %18 = vector.broadcast %17 : vector<1x64xf32> to vector<64x64xf32>
    %19 = arith.mulf %16, %18 : vector<64x64xf32>
    %c0_7 = arith.constant 0 : index
    %c0_8 = arith.constant 0 : index
    %20 = vector.load %arg5[%c0_7, %c0_8] : memref<1x64xf32, #tpu.memory_space<vmem>>, vector<1x64xf32>
    %21 = vector.broadcast %20 : vector<1x64xf32> to vector<64x64xf32>
    %22 = arith.addf %19, %21 : vector<64x64xf32>
    %c0_9 = arith.constant 0 : index
    %c0_10 = arith.constant 0 : index
    %23 = vector.load %arg6[%c0_9, %c0_10] : memref<64x192xf32, #tpu.memory_space<vmem>>, vector<64x192xf32>
    %cst_11 = arith.constant dense<0.000000e+00> : vector<64x192xf32>
    %24 = tpu.matmul %22, %23, %cst_11 {dimension_numbers = #tpu.dot_dimension_numbers<[1], [0], [0], [1], [0, 0, 1, 1], [], []>} : vector<64x64xf32>, vector<64x192xf32>, vector<64x192xf32> -> vector<64x192xf32>
    %c0_12 = arith.constant 0 : index
    %c0_13 = arith.constant 0 : index
    %25 = vector.load %arg7[%c0_12, %c0_13] : memref<1x192xf32, #tpu.memory_space<vmem>>, vector<1x192xf32>
    %26 = vector.broadcast %25 : vector<1x192xf32> to vector<64x192xf32>
    %27 = arith.addf %24, %26 : vector<64x192xf32>
    %28 = vector.shape_cast %27 : vector<64x192xf32> to vector<4x16x192xf32>
    %c0_14 = arith.constant 0 : index
    %c0_15 = arith.constant 0 : index
    %c0_16 = arith.constant 0 : index
    %29 = vector.load %arg2[%c0_14, %c0_15, %c0_16] : memref<4x16x2xf32, #tpu.memory_space<vmem>>, vector<4x16x2xf32>
    %c0_17 = arith.constant 0 : index
    %c0_18 = arith.constant 0 : index
    %c0_19 = arith.constant 0 : index
    %30 = vector.load %arg3[%c0_17, %c0_18, %c0_19] : memref<4x2x16xf32, #tpu.memory_space<vmem>>, vector<4x2x16xf32>
    %31 = vector.extract_strided_slice %29 {offsets = [0, 0, 0], sizes = [4, 16, 1], strides = [1, 1, 1]} : vector<4x16x2xf32> to vector<4x16x1xf32>
    %32 = vector.extract_strided_slice %30 {offsets = [0, 0, 0], sizes = [4, 1, 16], strides = [1, 1, 1]} : vector<4x2x16xf32> to vector<4x1x16xf32>
    %33 = vector.broadcast %31 : vector<4x16x1xf32> to vector<4x16x16xf32>
    %34 = vector.broadcast %32 : vector<4x1x16xf32> to vector<4x16x16xf32>
    %35 = arith.subf %33, %34 : vector<4x16x16xf32>
    %36 = vector.extract_strided_slice %29 {offsets = [0, 0, 1], sizes = [4, 16, 1], strides = [1, 1, 1]} : vector<4x16x2xf32> to vector<4x16x1xf32>
    %37 = vector.extract_strided_slice %30 {offsets = [0, 1, 0], sizes = [4, 1, 16], strides = [1, 1, 1]} : vector<4x2x16xf32> to vector<4x1x16xf32>
    %38 = vector.broadcast %36 : vector<4x16x1xf32> to vector<4x16x16xf32>
    %39 = vector.broadcast %37 : vector<4x1x16xf32> to vector<4x16x16xf32>
    %40 = arith.subf %38, %39 : vector<4x16x16xf32>
    %41 = math.absf %35 : vector<4x16x16xf32>
    %cst_20 = arith.constant 3.800000e+00 : f32
    %42 = vector.broadcast %cst_20 : f32 to vector<4x16x16xf32>
    %43 = arith.cmpf ole, %41, %42 : vector<4x16x16xf32>
    %cst_21 = arith.constant 0.000000e+00 : f32
    %44 = vector.broadcast %cst_21 : f32 to vector<4x16x16xf32>
    %45 = arith.cmpf ogt, %35, %44 : vector<4x16x16xf32>
    %cst_22 = arith.constant 0.000000e+00 : f32
    %46 = vector.broadcast %cst_22 : f32 to vector<4x16x16xf32>
    %47 = arith.cmpf olt, %35, %46 : vector<4x16x16xf32>
    %cst_23 = arith.constant -1.000000e+00 : f32
    %cst_24 = arith.constant 0.000000e+00 : f32
    %48 = vector.broadcast %cst_23 : f32 to vector<4x16x16xf32>
    %49 = vector.broadcast %cst_24 : f32 to vector<4x16x16xf32>
    %50 = arith.select %47, %48, %49 : vector<4x16x16xi1>, vector<4x16x16xf32>
    %cst_25 = arith.constant 1.000000e+00 : f32
    %51 = vector.broadcast %cst_25 : f32 to vector<4x16x16xf32>
    %52 = arith.select %45, %51, %50 : vector<4x16x16xi1>, vector<4x16x16xf32>
    %cst_26 = arith.constant 1.900000e+00 : f32
    %53 = vector.broadcast %cst_26 : f32 to vector<4x16x16xf32>
    %54 = arith.maximumf %41, %53 : vector<4x16x16xf32>
    %cst_27 = arith.constant 1.900000e+00 : f32
    %55 = vector.broadcast %cst_27 : f32 to vector<4x16x16xf32>
    %56 = arith.divf %54, %55 : vector<4x16x16xf32>
    %57 = math.log %56 : vector<4x16x16xf32>
    %cst_28 = arith.constant 1.79175949 : f32
    %58 = vector.broadcast %cst_28 : f32 to vector<4x16x16xf32>
    %59 = arith.divf %57, %58 : vector<4x16x16xf32>
    %cst_29 = arith.constant 3.800000e+00 : f32
    %60 = vector.broadcast %cst_29 : f32 to vector<4x16x16xf32>
    %61 = arith.mulf %59, %60 : vector<4x16x16xf32>
    %62 = math.roundeven %61 : vector<4x16x16xf32>
    %cst_30 = arith.constant 4.000000e+00 : f32
    %63 = vector.broadcast %cst_30 : f32 to vector<4x16x16xf32>
    %64 = arith.minimumf %62, %63 : vector<4x16x16xf32>
    %65 = arith.mulf %52, %64 : vector<4x16x16xf32>
    %cst_31 = arith.constant 0.000000e+00 : f32
    %66 = vector.broadcast %cst_31 : f32 to vector<4x16x16xf32>
    %67 = arith.cmpf ogt, %35, %66 : vector<4x16x16xf32>
    %cst_32 = arith.constant 0.000000e+00 : f32
    %68 = vector.broadcast %cst_32 : f32 to vector<4x16x16xf32>
    %69 = arith.cmpf olt, %35, %68 : vector<4x16x16xf32>
    %cst_33 = arith.constant -1.000000e+00 : f32
    %cst_34 = arith.constant 0.000000e+00 : f32
    %70 = vector.broadcast %cst_33 : f32 to vector<4x16x16xf32>
    %71 = vector.broadcast %cst_34 : f32 to vector<4x16x16xf32>
    %72 = arith.select %69, %70, %71 : vector<4x16x16xi1>, vector<4x16x16xf32>
    %cst_35 = arith.constant 1.000000e+00 : f32
    %73 = vector.broadcast %cst_35 : f32 to vector<4x16x16xf32>
    %74 = arith.select %67, %73, %72 : vector<4x16x16xi1>, vector<4x16x16xf32>
    %75 = arith.select %43, %74, %65 : vector<4x16x16xi1>, vector<4x16x16xf32>
    %76 = math.absf %75 : vector<4x16x16xf32>
    %77 = math.absf %40 : vector<4x16x16xf32>
    %cst_36 = arith.constant 3.800000e+00 : f32
    %78 = vector.broadcast %cst_36 : f32 to vector<4x16x16xf32>
    %79 = arith.cmpf ole, %77, %78 : vector<4x16x16xf32>
    %cst_37 = arith.constant 0.000000e+00 : f32
    %80 = vector.broadcast %cst_37 : f32 to vector<4x16x16xf32>
    %81 = arith.cmpf ogt, %40, %80 : vector<4x16x16xf32>
    %cst_38 = arith.constant 0.000000e+00 : f32
    %82 = vector.broadcast %cst_38 : f32 to vector<4x16x16xf32>
    %83 = arith.cmpf olt, %40, %82 : vector<4x16x16xf32>
    %cst_39 = arith.constant -1.000000e+00 : f32
    %cst_40 = arith.constant 0.000000e+00 : f32
    %84 = vector.broadcast %cst_39 : f32 to vector<4x16x16xf32>
    %85 = vector.broadcast %cst_40 : f32 to vector<4x16x16xf32>
    %86 = arith.select %83, %84, %85 : vector<4x16x16xi1>, vector<4x16x16xf32>
    %cst_41 = arith.constant 1.000000e+00 : f32
    %87 = vector.broadcast %cst_41 : f32 to vector<4x16x16xf32>
    %88 = arith.select %81, %87, %86 : vector<4x16x16xi1>, vector<4x16x16xf32>
    %cst_42 = arith.constant 1.900000e+00 : f32
    %89 = vector.broadcast %cst_42 : f32 to vector<4x16x16xf32>
    %90 = arith.maximumf %77, %89 : vector<4x16x16xf32>
    %cst_43 = arith.constant 1.900000e+00 : f32
    %91 = vector.broadcast %cst_43 : f32 to vector<4x16x16xf32>
    %92 = arith.divf %90, %91 : vector<4x16x16xf32>
    %93 = math.log %92 : vector<4x16x16xf32>
    %cst_44 = arith.constant 1.79175949 : f32
    %94 = vector.broadcast %cst_44 : f32 to vector<4x16x16xf32>
    %95 = arith.divf %93, %94 : vector<4x16x16xf32>
    %cst_45 = arith.constant 3.800000e+00 : f32
    %96 = vector.broadcast %cst_45 : f32 to vector<4x16x16xf32>
    %97 = arith.mulf %95, %96 : vector<4x16x16xf32>
    %98 = math.roundeven %97 : vector<4x16x16xf32>
    %cst_46 = arith.constant 4.000000e+00 : f32
    %99 = vector.broadcast %cst_46 : f32 to vector<4x16x16xf32>
    %100 = arith.minimumf %98, %99 : vector<4x16x16xf32>
    %101 = arith.mulf %88, %100 : vector<4x16x16xf32>
    %cst_47 = arith.constant 0.000000e+00 : f32
    %102 = vector.broadcast %cst_47 : f32 to vector<4x16x16xf32>
    %103 = arith.cmpf ogt, %40, %102 : vector<4x16x16xf32>
    %cst_48 = arith.constant 0.000000e+00 : f32
    %104 = vector.broadcast %cst_48 : f32 to vector<4x16x16xf32>
    %105 = arith.cmpf olt, %40, %104 : vector<4x16x16xf32>
    %cst_49 = arith.constant -1.000000e+00 : f32
    %cst_50 = arith.constant 0.000000e+00 : f32
    %106 = vector.broadcast %cst_49 : f32 to vector<4x16x16xf32>
    %107 = vector.broadcast %cst_50 : f32 to vector<4x16x16xf32>
    %108 = arith.select %105, %106, %107 : vector<4x16x16xi1>, vector<4x16x16xf32>
    %cst_51 = arith.constant 1.000000e+00 : f32
    %109 = vector.broadcast %cst_51 : f32 to vector<4x16x16xf32>
    %110 = arith.select %103, %109, %108 : vector<4x16x16xi1>, vector<4x16x16xf32>
    %111 = arith.select %79, %110, %101 : vector<4x16x16xi1>, vector<4x16x16xf32>
    %112 = math.absf %111 : vector<4x16x16xf32>
    %113 = arith.addf %76, %112 : vector<4x16x16xf32>
    %114 = arith.fptosi %113 : vector<4x16x16xf32> to vector<4x16x16xi32>
    %c0_i32 = arith.constant 0 : i32
    %115 = vector.broadcast %c0_i32 : i32 to vector<4x16x16xi32>
    %116 = arith.cmpi eq, %114, %115 : vector<4x16x16xi32>
    %c1_i32 = arith.constant 1 : i32
    %117 = vector.broadcast %c1_i32 : i32 to vector<4x16x16xi32>
    %118 = arith.cmpi eq, %114, %117 : vector<4x16x16xi32>
    %c2_i32 = arith.constant 2 : i32
    %119 = vector.broadcast %c2_i32 : i32 to vector<4x16x16xi32>
    %120 = arith.cmpi eq, %114, %119 : vector<4x16x16xi32>
    %c3_i32 = arith.constant 3 : i32
    %121 = vector.broadcast %c3_i32 : i32 to vector<4x16x16xi32>
    %122 = arith.cmpi eq, %114, %121 : vector<4x16x16xi32>
    %c4_i32 = arith.constant 4 : i32
    %123 = vector.broadcast %c4_i32 : i32 to vector<4x16x16xi32>
    %124 = arith.cmpi eq, %114, %123 : vector<4x16x16xi32>
    %c5_i32 = arith.constant 5 : i32
    %125 = vector.broadcast %c5_i32 : i32 to vector<4x16x16xi32>
    %126 = arith.cmpi eq, %114, %125 : vector<4x16x16xi32>
    %c6_i32 = arith.constant 6 : i32
    %127 = vector.broadcast %c6_i32 : i32 to vector<4x16x16xi32>
    %128 = arith.cmpi eq, %114, %127 : vector<4x16x16xi32>
    %c7_i32 = arith.constant 7 : i32
    %129 = vector.broadcast %c7_i32 : i32 to vector<4x16x16xi32>
    %130 = arith.cmpi eq, %114, %129 : vector<4x16x16xi32>
    %c8_i32 = arith.constant 8 : i32
    %131 = vector.broadcast %c8_i32 : i32 to vector<4x16x16xi32>
    %132 = arith.cmpi eq, %114, %131 : vector<4x16x16xi32>
    %133 = vector.extract_strided_slice %28 {offsets = [0, 0, 0], sizes = [4, 16, 64], strides = [1, 1, 1]} : vector<4x16x192xf32> to vector<4x16x64xf32>
    %134 = vector.extract_strided_slice %28 {offsets = [0, 0, 64], sizes = [4, 16, 64], strides = [1, 1, 1]} : vector<4x16x192xf32> to vector<4x16x64xf32>
    %135 = vector.extract_strided_slice %28 {offsets = [0, 0, 128], sizes = [4, 16, 64], strides = [1, 1, 1]} : vector<4x16x192xf32> to vector<4x16x64xf32>
    %136 = vector.extract_strided_slice %133 {offsets = [0, 0, 0], sizes = [4, 16, 8], strides = [1, 1, 1]} : vector<4x16x64xf32> to vector<4x16x8xf32>
    %137 = vector.extract_strided_slice %134 {offsets = [0, 0, 0], sizes = [4, 16, 8], strides = [1, 1, 1]} : vector<4x16x64xf32> to vector<4x16x8xf32>
    %138 = vector.extract_strided_slice %135 {offsets = [0, 0, 0], sizes = [4, 16, 8], strides = [1, 1, 1]} : vector<4x16x64xf32> to vector<4x16x8xf32>
    "tpu.trace_start"() <{level = 10 : i32, message = "bqd,bkd->bqk"}> : () -> ()
    %cst_52 = arith.constant dense<0.000000e+00> : vector<4x16x16xf32>
    %139 = tpu.matmul %136, %137, %cst_52 {dimension_numbers = #tpu.dot_dimension_numbers<[2], [2], [1], [1], [0, 0, 0, 1, 1, 1], [0], [0]>} : vector<4x16x8xf32>, vector<4x16x8xf32>, vector<4x16x16xf32> -> vector<4x16x16xf32>
    %cst_53 = arith.constant 0.000000e+00 : f32
    "tpu.trace_stop"() : () -> ()
    %140 = vector.broadcast %cst_53 : f32 to vector<4x16x16xf32>
    %c0_54 = arith.constant 0 : index
    %c0_55 = arith.constant 0 : index
    %141 = memref.load %arg10[%c0_54, %c0_55] : memref<9x8xf32, #tpu.memory_space<smem>>
    %142 = vector.broadcast %141 : f32 to vector<4x16x16xf32>
    %143 = arith.select %116, %142, %140 : vector<4x16x16xi1>, vector<4x16x16xf32>
    %c1 = arith.constant 1 : index
    %c0_56 = arith.constant 0 : index
    %144 = memref.load %arg10[%c1, %c0_56] : memref<9x8xf32, #tpu.memory_space<smem>>
    %145 = vector.broadcast %144 : f32 to vector<4x16x16xf32>
    %146 = arith.select %118, %145, %143 : vector<4x16x16xi1>, vector<4x16x16xf32>
    %c2 = arith.constant 2 : index
    %c0_57 = arith.constant 0 : index
    %147 = memref.load %arg10[%c2, %c0_57] : memref<9x8xf32, #tpu.memory_space<smem>>
    %148 = vector.broadcast %147 : f32 to vector<4x16x16xf32>
    %149 = arith.select %120, %148, %146 : vector<4x16x16xi1>, vector<4x16x16xf32>
    %c3 = arith.constant 3 : index
    %c0_58 = arith.constant 0 : index
    %150 = memref.load %arg10[%c3, %c0_58] : memref<9x8xf32, #tpu.memory_space<smem>>
    %151 = vector.broadcast %150 : f32 to vector<4x16x16xf32>
    %152 = arith.select %122, %151, %149 : vector<4x16x16xi1>, vector<4x16x16xf32>
    %c4 = arith.constant 4 : index
    %c0_59 = arith.constant 0 : index
    %153 = memref.load %arg10[%c4, %c0_59] : memref<9x8xf32, #tpu.memory_space<smem>>
    %154 = vector.broadcast %153 : f32 to vector<4x16x16xf32>
    %155 = arith.select %124, %154, %152 : vector<4x16x16xi1>, vector<4x16x16xf32>
    %c5 = arith.constant 5 : index
    %c0_60 = arith.constant 0 : index
    %156 = memref.load %arg10[%c5, %c0_60] : memref<9x8xf32, #tpu.memory_space<smem>>
    %157 = vector.broadcast %156 : f32 to vector<4x16x16xf32>
    %158 = arith.select %126, %157, %155 : vector<4x16x16xi1>, vector<4x16x16xf32>
    %c6 = arith.constant 6 : index
    %c0_61 = arith.constant 0 : index
    %159 = memref.load %arg10[%c6, %c0_61] : memref<9x8xf32, #tpu.memory_space<smem>>
    %160 = vector.broadcast %159 : f32 to vector<4x16x16xf32>
    %161 = arith.select %128, %160, %158 : vector<4x16x16xi1>, vector<4x16x16xf32>
    %c7 = arith.constant 7 : index
    %c0_62 = arith.constant 0 : index
    %162 = memref.load %arg10[%c7, %c0_62] : memref<9x8xf32, #tpu.memory_space<smem>>
    %163 = vector.broadcast %162 : f32 to vector<4x16x16xf32>
    %164 = arith.select %130, %163, %161 : vector<4x16x16xi1>, vector<4x16x16xf32>
    %c8 = arith.constant 8 : index
    %c0_63 = arith.constant 0 : index
    %165 = memref.load %arg10[%c8, %c0_63] : memref<9x8xf32, #tpu.memory_space<smem>>
    %166 = vector.broadcast %165 : f32 to vector<4x16x16xf32>
    %167 = arith.select %132, %166, %164 : vector<4x16x16xi1>, vector<4x16x16xf32>
    %168 = arith.addf %139, %167 : vector<4x16x16xf32>
    %cst_64 = arith.constant dense<0xFF800000> : vector<4x16xf32>
    %169 = vector.multi_reduction <maximumf>, %168, %cst_64 [2] : vector<4x16x16xf32> to vector<4x16xf32>
    %170 = vector.shape_cast %169 : vector<4x16xf32> to vector<4x16x1xf32>
    %171 = vector.broadcast %170 : vector<4x16x1xf32> to vector<4x16x16xf32>
    %172 = arith.subf %168, %171 : vector<4x16x16xf32>
    %173 = math.exp %172 : vector<4x16x16xf32>
    %cst_65 = arith.constant dense<0.000000e+00> : vector<4x16xf32>
    %174 = vector.multi_reduction <add>, %173, %cst_65 [2] : vector<4x16x16xf32> to vector<4x16xf32>
    %175 = vector.shape_cast %174 : vector<4x16xf32> to vector<4x16x1xf32>
    %176 = tpu.reciprocal %175 {approx = true} : vector<4x16x1xf32> -> vector<4x16x1xf32>
    %177 = vector.broadcast %176 : vector<4x16x1xf32> to vector<4x16x16xf32>
    %178 = arith.mulf %173, %177 : vector<4x16x16xf32>
    "tpu.trace_start"() <{level = 10 : i32, message = "bqk,bkd->bqd"}> : () -> ()
    %cst_66 = arith.constant dense<0.000000e+00> : vector<4x16x8xf32>
    %179 = tpu.matmul %178, %138, %cst_66 {dimension_numbers = #tpu.dot_dimension_numbers<[2], [1], [1], [2], [0, 0, 0, 1, 1, 2], [0], [0]>} : vector<4x16x16xf32>, vector<4x16x8xf32>, vector<4x16x8xf32> -> vector<4x16x8xf32>
    "tpu.trace_stop"() : () -> ()
    %180 = vector.extract_strided_slice %133 {offsets = [0, 0, 8], sizes = [4, 16, 8], strides = [1, 1, 1]} : vector<4x16x64xf32> to vector<4x16x8xf32>
    %181 = vector.extract_strided_slice %134 {offsets = [0, 0, 8], sizes = [4, 16, 8], strides = [1, 1, 1]} : vector<4x16x64xf32> to vector<4x16x8xf32>
    %182 = vector.extract_strided_slice %135 {offsets = [0, 0, 8], sizes = [4, 16, 8], strides = [1, 1, 1]} : vector<4x16x64xf32> to vector<4x16x8xf32>
    "tpu.trace_start"() <{level = 10 : i32, message = "bqd,bkd->bqk"}> : () -> ()
    %cst_67 = arith.constant dense<0.000000e+00> : vector<4x16x16xf32>
    %183 = tpu.matmul %180, %181, %cst_67 {dimension_numbers = #tpu.dot_dimension_numbers<[2], [2], [1], [1], [0, 0, 0, 1, 1, 1], [0], [0]>} : vector<4x16x8xf32>, vector<4x16x8xf32>, vector<4x16x16xf32> -> vector<4x16x16xf32>
    %cst_68 = arith.constant 0.000000e+00 : f32
    "tpu.trace_stop"() : () -> ()
    %184 = vector.broadcast %cst_68 : f32 to vector<4x16x16xf32>
    %c0_69 = arith.constant 0 : index
    %c1_70 = arith.constant 1 : index
    %185 = memref.load %arg10[%c0_69, %c1_70] : memref<9x8xf32, #tpu.memory_space<smem>>
    %186 = vector.broadcast %185 : f32 to vector<4x16x16xf32>
    %187 = arith.select %116, %186, %184 : vector<4x16x16xi1>, vector<4x16x16xf32>
    %c1_71 = arith.constant 1 : index
    %c1_72 = arith.constant 1 : index
    %188 = memref.load %arg10[%c1_71, %c1_72] : memref<9x8xf32, #tpu.memory_space<smem>>
    %189 = vector.broadcast %188 : f32 to vector<4x16x16xf32>
    %190 = arith.select %118, %189, %187 : vector<4x16x16xi1>, vector<4x16x16xf32>
    %c2_73 = arith.constant 2 : index
    %c1_74 = arith.constant 1 : index
    %191 = memref.load %arg10[%c2_73, %c1_74] : memref<9x8xf32, #tpu.memory_space<smem>>
    %192 = vector.broadcast %191 : f32 to vector<4x16x16xf32>
    %193 = arith.select %120, %192, %190 : vector<4x16x16xi1>, vector<4x16x16xf32>
    %c3_75 = arith.constant 3 : index
    %c1_76 = arith.constant 1 : index
    %194 = memref.load %arg10[%c3_75, %c1_76] : memref<9x8xf32, #tpu.memory_space<smem>>
    %195 = vector.broadcast %194 : f32 to vector<4x16x16xf32>
    %196 = arith.select %122, %195, %193 : vector<4x16x16xi1>, vector<4x16x16xf32>
    %c4_77 = arith.constant 4 : index
    %c1_78 = arith.constant 1 : index
    %197 = memref.load %arg10[%c4_77, %c1_78] : memref<9x8xf32, #tpu.memory_space<smem>>
    %198 = vector.broadcast %197 : f32 to vector<4x16x16xf32>
    %199 = arith.select %124, %198, %196 : vector<4x16x16xi1>, vector<4x16x16xf32>
    %c5_79 = arith.constant 5 : index
    %c1_80 = arith.constant 1 : index
    %200 = memref.load %arg10[%c5_79, %c1_80] : memref<9x8xf32, #tpu.memory_space<smem>>
    %201 = vector.broadcast %200 : f32 to vector<4x16x16xf32>
    %202 = arith.select %126, %201, %199 : vector<4x16x16xi1>, vector<4x16x16xf32>
    %c6_81 = arith.constant 6 : index
    %c1_82 = arith.constant 1 : index
    %203 = memref.load %arg10[%c6_81, %c1_82] : memref<9x8xf32, #tpu.memory_space<smem>>
    %204 = vector.broadcast %203 : f32 to vector<4x16x16xf32>
    %205 = arith.select %128, %204, %202 : vector<4x16x16xi1>, vector<4x16x16xf32>
    %c7_83 = arith.constant 7 : index
    %c1_84 = arith.constant 1 : index
    %206 = memref.load %arg10[%c7_83, %c1_84] : memref<9x8xf32, #tpu.memory_space<smem>>
    %207 = vector.broadcast %206 : f32 to vector<4x16x16xf32>
    %208 = arith.select %130, %207, %205 : vector<4x16x16xi1>, vector<4x16x16xf32>
    %c8_85 = arith.constant 8 : index
    %c1_86 = arith.constant 1 : index
    %209 = memref.load %arg10[%c8_85, %c1_86] : memref<9x8xf32, #tpu.memory_space<smem>>
    %210 = vector.broadcast %209 : f32 to vector<4x16x16xf32>
    %211 = arith.select %132, %210, %208 : vector<4x16x16xi1>, vector<4x16x16xf32>
    %212 = arith.addf %183, %211 : vector<4x16x16xf32>
    %cst_87 = arith.constant dense<0xFF800000> : vector<4x16xf32>
    %213 = vector.multi_reduction <maximumf>, %212, %cst_87 [2] : vector<4x16x16xf32> to vector<4x16xf32>
    %214 = vector.shape_cast %213 : vector<4x16xf32> to vector<4x16x1xf32>
    %215 = vector.broadcast %214 : vector<4x16x1xf32> to vector<4x16x16xf32>
    %216 = arith.subf %212, %215 : vector<4x16x16xf32>
    %217 = math.exp %216 : vector<4x16x16xf32>
    %cst_88 = arith.constant dense<0.000000e+00> : vector<4x16xf32>
    %218 = vector.multi_reduction <add>, %217, %cst_88 [2] : vector<4x16x16xf32> to vector<4x16xf32>
    %219 = vector.shape_cast %218 : vector<4x16xf32> to vector<4x16x1xf32>
    %220 = tpu.reciprocal %219 {approx = true} : vector<4x16x1xf32> -> vector<4x16x1xf32>
    %221 = vector.broadcast %220 : vector<4x16x1xf32> to vector<4x16x16xf32>
    %222 = arith.mulf %217, %221 : vector<4x16x16xf32>
    "tpu.trace_start"() <{level = 10 : i32, message = "bqk,bkd->bqd"}> : () -> ()
    %cst_89 = arith.constant dense<0.000000e+00> : vector<4x16x8xf32>
    %223 = tpu.matmul %222, %182, %cst_89 {dimension_numbers = #tpu.dot_dimension_numbers<[2], [1], [1], [2], [0, 0, 0, 1, 1, 2], [0], [0]>} : vector<4x16x16xf32>, vector<4x16x8xf32>, vector<4x16x8xf32> -> vector<4x16x8xf32>
    "tpu.trace_stop"() : () -> ()
    %224 = vector.extract_strided_slice %133 {offsets = [0, 0, 16], sizes = [4, 16, 8], strides = [1, 1, 1]} : vector<4x16x64xf32> to vector<4x16x8xf32>
    %225 = vector.extract_strided_slice %134 {offsets = [0, 0, 16], sizes = [4, 16, 8], strides = [1, 1, 1]} : vector<4x16x64xf32> to vector<4x16x8xf32>
    %226 = vector.extract_strided_slice %135 {offsets = [0, 0, 16], sizes = [4, 16, 8], strides = [1, 1, 1]} : vector<4x16x64xf32> to vector<4x16x8xf32>
    "tpu.trace_start"() <{level = 10 : i32, message = "bqd,bkd->bqk"}> : () -> ()
    %cst_90 = arith.constant dense<0.000000e+00> : vector<4x16x16xf32>
    %227 = tpu.matmul %224, %225, %cst_90 {dimension_numbers = #tpu.dot_dimension_numbers<[2], [2], [1], [1], [0, 0, 0, 1, 1, 1], [0], [0]>} : vector<4x16x8xf32>, vector<4x16x8xf32>, vector<4x16x16xf32> -> vector<4x16x16xf32>
    %cst_91 = arith.constant 0.000000e+00 : f32
    "tpu.trace_stop"() : () -> ()
    %228 = vector.broadcast %cst_91 : f32 to vector<4x16x16xf32>
    %c0_92 = arith.constant 0 : index
    %c2_93 = arith.constant 2 : index
    %229 = memref.load %arg10[%c0_92, %c2_93] : memref<9x8xf32, #tpu.memory_space<smem>>
    %230 = vector.broadcast %229 : f32 to vector<4x16x16xf32>
    %231 = arith.select %116, %230, %228 : vector<4x16x16xi1>, vector<4x16x16xf32>
    %c1_94 = arith.constant 1 : index
    %c2_95 = arith.constant 2 : index
    %232 = memref.load %arg10[%c1_94, %c2_95] : memref<9x8xf32, #tpu.memory_space<smem>>
    %233 = vector.broadcast %232 : f32 to vector<4x16x16xf32>
    %234 = arith.select %118, %233, %231 : vector<4x16x16xi1>, vector<4x16x16xf32>
    %c2_96 = arith.constant 2 : index
    %c2_97 = arith.constant 2 : index
    %235 = memref.load %arg10[%c2_96, %c2_97] : memref<9x8xf32, #tpu.memory_space<smem>>
    %236 = vector.broadcast %235 : f32 to vector<4x16x16xf32>
    %237 = arith.select %120, %236, %234 : vector<4x16x16xi1>, vector<4x16x16xf32>
    %c3_98 = arith.constant 3 : index
    %c2_99 = arith.constant 2 : index
    %238 = memref.load %arg10[%c3_98, %c2_99] : memref<9x8xf32, #tpu.memory_space<smem>>
    %239 = vector.broadcast %238 : f32 to vector<4x16x16xf32>
    %240 = arith.select %122, %239, %237 : vector<4x16x16xi1>, vector<4x16x16xf32>
    %c4_100 = arith.constant 4 : index
    %c2_101 = arith.constant 2 : index
    %241 = memref.load %arg10[%c4_100, %c2_101] : memref<9x8xf32, #tpu.memory_space<smem>>
    %242 = vector.broadcast %241 : f32 to vector<4x16x16xf32>
    %243 = arith.select %124, %242, %240 : vector<4x16x16xi1>, vector<4x16x16xf32>
    %c5_102 = arith.constant 5 : index
    %c2_103 = arith.constant 2 : index
    %244 = memref.load %arg10[%c5_102, %c2_103] : memref<9x8xf32, #tpu.memory_space<smem>>
    %245 = vector.broadcast %244 : f32 to vector<4x16x16xf32>
    %246 = arith.select %126, %245, %243 : vector<4x16x16xi1>, vector<4x16x16xf32>
    %c6_104 = arith.constant 6 : index
    %c2_105 = arith.constant 2 : index
    %247 = memref.load %arg10[%c6_104, %c2_105] : memref<9x8xf32, #tpu.memory_space<smem>>
    %248 = vector.broadcast %247 : f32 to vector<4x16x16xf32>
    %249 = arith.select %128, %248, %246 : vector<4x16x16xi1>, vector<4x16x16xf32>
    %c7_106 = arith.constant 7 : index
    %c2_107 = arith.constant 2 : index
    %250 = memref.load %arg10[%c7_106, %c2_107] : memref<9x8xf32, #tpu.memory_space<smem>>
    %251 = vector.broadcast %250 : f32 to vector<4x16x16xf32>
    %252 = arith.select %130, %251, %249 : vector<4x16x16xi1>, vector<4x16x16xf32>
    %c8_108 = arith.constant 8 : index
    %c2_109 = arith.constant 2 : index
    %253 = memref.load %arg10[%c8_108, %c2_109] : memref<9x8xf32, #tpu.memory_space<smem>>
    %254 = vector.broadcast %253 : f32 to vector<4x16x16xf32>
    %255 = arith.select %132, %254, %252 : vector<4x16x16xi1>, vector<4x16x16xf32>
    %256 = arith.addf %227, %255 : vector<4x16x16xf32>
    %cst_110 = arith.constant dense<0xFF800000> : vector<4x16xf32>
    %257 = vector.multi_reduction <maximumf>, %256, %cst_110 [2] : vector<4x16x16xf32> to vector<4x16xf32>
    %258 = vector.shape_cast %257 : vector<4x16xf32> to vector<4x16x1xf32>
    %259 = vector.broadcast %258 : vector<4x16x1xf32> to vector<4x16x16xf32>
    %260 = arith.subf %256, %259 : vector<4x16x16xf32>
    %261 = math.exp %260 : vector<4x16x16xf32>
    %cst_111 = arith.constant dense<0.000000e+00> : vector<4x16xf32>
    %262 = vector.multi_reduction <add>, %261, %cst_111 [2] : vector<4x16x16xf32> to vector<4x16xf32>
    %263 = vector.shape_cast %262 : vector<4x16xf32> to vector<4x16x1xf32>
    %264 = tpu.reciprocal %263 {approx = true} : vector<4x16x1xf32> -> vector<4x16x1xf32>
    %265 = vector.broadcast %264 : vector<4x16x1xf32> to vector<4x16x16xf32>
    %266 = arith.mulf %261, %265 : vector<4x16x16xf32>
    "tpu.trace_start"() <{level = 10 : i32, message = "bqk,bkd->bqd"}> : () -> ()
    %cst_112 = arith.constant dense<0.000000e+00> : vector<4x16x8xf32>
    %267 = tpu.matmul %266, %226, %cst_112 {dimension_numbers = #tpu.dot_dimension_numbers<[2], [1], [1], [2], [0, 0, 0, 1, 1, 2], [0], [0]>} : vector<4x16x16xf32>, vector<4x16x8xf32>, vector<4x16x8xf32> -> vector<4x16x8xf32>
    "tpu.trace_stop"() : () -> ()
    %268 = vector.extract_strided_slice %133 {offsets = [0, 0, 24], sizes = [4, 16, 8], strides = [1, 1, 1]} : vector<4x16x64xf32> to vector<4x16x8xf32>
    %269 = vector.extract_strided_slice %134 {offsets = [0, 0, 24], sizes = [4, 16, 8], strides = [1, 1, 1]} : vector<4x16x64xf32> to vector<4x16x8xf32>
    %270 = vector.extract_strided_slice %135 {offsets = [0, 0, 24], sizes = [4, 16, 8], strides = [1, 1, 1]} : vector<4x16x64xf32> to vector<4x16x8xf32>
    "tpu.trace_start"() <{level = 10 : i32, message = "bqd,bkd->bqk"}> : () -> ()
    %cst_113 = arith.constant dense<0.000000e+00> : vector<4x16x16xf32>
    %271 = tpu.matmul %268, %269, %cst_113 {dimension_numbers = #tpu.dot_dimension_numbers<[2], [2], [1], [1], [0, 0, 0, 1, 1, 1], [0], [0]>} : vector<4x16x8xf32>, vector<4x16x8xf32>, vector<4x16x16xf32> -> vector<4x16x16xf32>
    %cst_114 = arith.constant 0.000000e+00 : f32
    "tpu.trace_stop"() : () -> ()
    %272 = vector.broadcast %cst_114 : f32 to vector<4x16x16xf32>
    %c0_115 = arith.constant 0 : index
    %c3_116 = arith.constant 3 : index
    %273 = memref.load %arg10[%c0_115, %c3_116] : memref<9x8xf32, #tpu.memory_space<smem>>
    %274 = vector.broadcast %273 : f32 to vector<4x16x16xf32>
    %275 = arith.select %116, %274, %272 : vector<4x16x16xi1>, vector<4x16x16xf32>
    %c1_117 = arith.constant 1 : index
    %c3_118 = arith.constant 3 : index
    %276 = memref.load %arg10[%c1_117, %c3_118] : memref<9x8xf32, #tpu.memory_space<smem>>
    %277 = vector.broadcast %276 : f32 to vector<4x16x16xf32>
    %278 = arith.select %118, %277, %275 : vector<4x16x16xi1>, vector<4x16x16xf32>
    %c2_119 = arith.constant 2 : index
    %c3_120 = arith.constant 3 : index
    %279 = memref.load %arg10[%c2_119, %c3_120] : memref<9x8xf32, #tpu.memory_space<smem>>
    %280 = vector.broadcast %279 : f32 to vector<4x16x16xf32>
    %281 = arith.select %120, %280, %278 : vector<4x16x16xi1>, vector<4x16x16xf32>
    %c3_121 = arith.constant 3 : index
    %c3_122 = arith.constant 3 : index
    %282 = memref.load %arg10[%c3_121, %c3_122] : memref<9x8xf32, #tpu.memory_space<smem>>
    %283 = vector.broadcast %282 : f32 to vector<4x16x16xf32>
    %284 = arith.select %122, %283, %281 : vector<4x16x16xi1>, vector<4x16x16xf32>
    %c4_123 = arith.constant 4 : index
    %c3_124 = arith.constant 3 : index
    %285 = memref.load %arg10[%c4_123, %c3_124] : memref<9x8xf32, #tpu.memory_space<smem>>
    %286 = vector.broadcast %285 : f32 to vector<4x16x16xf32>
    %287 = arith.select %124, %286, %284 : vector<4x16x16xi1>, vector<4x16x16xf32>
    %c5_125 = arith.constant 5 : index
    %c3_126 = arith.constant 3 : index
    %288 = memref.load %arg10[%c5_125, %c3_126] : memref<9x8xf32, #tpu.memory_space<smem>>
    %289 = vector.broadcast %288 : f32 to vector<4x16x16xf32>
    %290 = arith.select %126, %289, %287 : vector<4x16x16xi1>, vector<4x16x16xf32>
    %c6_127 = arith.constant 6 : index
    %c3_128 = arith.constant 3 : index
    %291 = memref.load %arg10[%c6_127, %c3_128] : memref<9x8xf32, #tpu.memory_space<smem>>
    %292 = vector.broadcast %291 : f32 to vector<4x16x16xf32>
    %293 = arith.select %128, %292, %290 : vector<4x16x16xi1>, vector<4x16x16xf32>
    %c7_129 = arith.constant 7 : index
    %c3_130 = arith.constant 3 : index
    %294 = memref.load %arg10[%c7_129, %c3_130] : memref<9x8xf32, #tpu.memory_space<smem>>
    %295 = vector.broadcast %294 : f32 to vector<4x16x16xf32>
    %296 = arith.select %130, %295, %293 : vector<4x16x16xi1>, vector<4x16x16xf32>
    %c8_131 = arith.constant 8 : index
    %c3_132 = arith.constant 3 : index
    %297 = memref.load %arg10[%c8_131, %c3_132] : memref<9x8xf32, #tpu.memory_space<smem>>
    %298 = vector.broadcast %297 : f32 to vector<4x16x16xf32>
    %299 = arith.select %132, %298, %296 : vector<4x16x16xi1>, vector<4x16x16xf32>
    %300 = arith.addf %271, %299 : vector<4x16x16xf32>
    %cst_133 = arith.constant dense<0xFF800000> : vector<4x16xf32>
    %301 = vector.multi_reduction <maximumf>, %300, %cst_133 [2] : vector<4x16x16xf32> to vector<4x16xf32>
    %302 = vector.shape_cast %301 : vector<4x16xf32> to vector<4x16x1xf32>
    %303 = vector.broadcast %302 : vector<4x16x1xf32> to vector<4x16x16xf32>
    %304 = arith.subf %300, %303 : vector<4x16x16xf32>
    %305 = math.exp %304 : vector<4x16x16xf32>
    %cst_134 = arith.constant dense<0.000000e+00> : vector<4x16xf32>
    %306 = vector.multi_reduction <add>, %305, %cst_134 [2] : vector<4x16x16xf32> to vector<4x16xf32>
    %307 = vector.shape_cast %306 : vector<4x16xf32> to vector<4x16x1xf32>
    %308 = tpu.reciprocal %307 {approx = true} : vector<4x16x1xf32> -> vector<4x16x1xf32>
    %309 = vector.broadcast %308 : vector<4x16x1xf32> to vector<4x16x16xf32>
    %310 = arith.mulf %305, %309 : vector<4x16x16xf32>
    "tpu.trace_start"() <{level = 10 : i32, message = "bqk,bkd->bqd"}> : () -> ()
    %cst_135 = arith.constant dense<0.000000e+00> : vector<4x16x8xf32>
    %311 = tpu.matmul %310, %270, %cst_135 {dimension_numbers = #tpu.dot_dimension_numbers<[2], [1], [1], [2], [0, 0, 0, 1, 1, 2], [0], [0]>} : vector<4x16x16xf32>, vector<4x16x8xf32>, vector<4x16x8xf32> -> vector<4x16x8xf32>
    "tpu.trace_stop"() : () -> ()
    %312 = vector.extract_strided_slice %133 {offsets = [0, 0, 32], sizes = [4, 16, 8], strides = [1, 1, 1]} : vector<4x16x64xf32> to vector<4x16x8xf32>
    %313 = vector.extract_strided_slice %134 {offsets = [0, 0, 32], sizes = [4, 16, 8], strides = [1, 1, 1]} : vector<4x16x64xf32> to vector<4x16x8xf32>
    %314 = vector.extract_strided_slice %135 {offsets = [0, 0, 32], sizes = [4, 16, 8], strides = [1, 1, 1]} : vector<4x16x64xf32> to vector<4x16x8xf32>
    "tpu.trace_start"() <{level = 10 : i32, message = "bqd,bkd->bqk"}> : () -> ()
    %cst_136 = arith.constant dense<0.000000e+00> : vector<4x16x16xf32>
    %315 = tpu.matmul %312, %313, %cst_136 {dimension_numbers = #tpu.dot_dimension_numbers<[2], [2], [1], [1], [0, 0, 0, 1, 1, 1], [0], [0]>} : vector<4x16x8xf32>, vector<4x16x8xf32>, vector<4x16x16xf32> -> vector<4x16x16xf32>
    %cst_137 = arith.constant 0.000000e+00 : f32
    "tpu.trace_stop"() : () -> ()
    %316 = vector.broadcast %cst_137 : f32 to vector<4x16x16xf32>
    %c0_138 = arith.constant 0 : index
    %c4_139 = arith.constant 4 : index
    %317 = memref.load %arg10[%c0_138, %c4_139] : memref<9x8xf32, #tpu.memory_space<smem>>
    %318 = vector.broadcast %317 : f32 to vector<4x16x16xf32>
    %319 = arith.select %116, %318, %316 : vector<4x16x16xi1>, vector<4x16x16xf32>
    %c1_140 = arith.constant 1 : index
    %c4_141 = arith.constant 4 : index
    %320 = memref.load %arg10[%c1_140, %c4_141] : memref<9x8xf32, #tpu.memory_space<smem>>
    %321 = vector.broadcast %320 : f32 to vector<4x16x16xf32>
    %322 = arith.select %118, %321, %319 : vector<4x16x16xi1>, vector<4x16x16xf32>
    %c2_142 = arith.constant 2 : index
    %c4_143 = arith.constant 4 : index
    %323 = memref.load %arg10[%c2_142, %c4_143] : memref<9x8xf32, #tpu.memory_space<smem>>
    %324 = vector.broadcast %323 : f32 to vector<4x16x16xf32>
    %325 = arith.select %120, %324, %322 : vector<4x16x16xi1>, vector<4x16x16xf32>
    %c3_144 = arith.constant 3 : index
    %c4_145 = arith.constant 4 : index
    %326 = memref.load %arg10[%c3_144, %c4_145] : memref<9x8xf32, #tpu.memory_space<smem>>
    %327 = vector.broadcast %326 : f32 to vector<4x16x16xf32>
    %328 = arith.select %122, %327, %325 : vector<4x16x16xi1>, vector<4x16x16xf32>
    %c4_146 = arith.constant 4 : index
    %c4_147 = arith.constant 4 : index
    %329 = memref.load %arg10[%c4_146, %c4_147] : memref<9x8xf32, #tpu.memory_space<smem>>
    %330 = vector.broadcast %329 : f32 to vector<4x16x16xf32>
    %331 = arith.select %124, %330, %328 : vector<4x16x16xi1>, vector<4x16x16xf32>
    %c5_148 = arith.constant 5 : index
    %c4_149 = arith.constant 4 : index
    %332 = memref.load %arg10[%c5_148, %c4_149] : memref<9x8xf32, #tpu.memory_space<smem>>
    %333 = vector.broadcast %332 : f32 to vector<4x16x16xf32>
    %334 = arith.select %126, %333, %331 : vector<4x16x16xi1>, vector<4x16x16xf32>
    %c6_150 = arith.constant 6 : index
    %c4_151 = arith.constant 4 : index
    %335 = memref.load %arg10[%c6_150, %c4_151] : memref<9x8xf32, #tpu.memory_space<smem>>
    %336 = vector.broadcast %335 : f32 to vector<4x16x16xf32>
    %337 = arith.select %128, %336, %334 : vector<4x16x16xi1>, vector<4x16x16xf32>
    %c7_152 = arith.constant 7 : index
    %c4_153 = arith.constant 4 : index
    %338 = memref.load %arg10[%c7_152, %c4_153] : memref<9x8xf32, #tpu.memory_space<smem>>
    %339 = vector.broadcast %338 : f32 to vector<4x16x16xf32>
    %340 = arith.select %130, %339, %337 : vector<4x16x16xi1>, vector<4x16x16xf32>
    %c8_154 = arith.constant 8 : index
    %c4_155 = arith.constant 4 : index
    %341 = memref.load %arg10[%c8_154, %c4_155] : memref<9x8xf32, #tpu.memory_space<smem>>
    %342 = vector.broadcast %341 : f32 to vector<4x16x16xf32>
    %343 = arith.select %132, %342, %340 : vector<4x16x16xi1>, vector<4x16x16xf32>
    %344 = arith.addf %315, %343 : vector<4x16x16xf32>
    %cst_156 = arith.constant dense<0xFF800000> : vector<4x16xf32>
    %345 = vector.multi_reduction <maximumf>, %344, %cst_156 [2] : vector<4x16x16xf32> to vector<4x16xf32>
    %346 = vector.shape_cast %345 : vector<4x16xf32> to vector<4x16x1xf32>
    %347 = vector.broadcast %346 : vector<4x16x1xf32> to vector<4x16x16xf32>
    %348 = arith.subf %344, %347 : vector<4x16x16xf32>
    %349 = math.exp %348 : vector<4x16x16xf32>
    %cst_157 = arith.constant dense<0.000000e+00> : vector<4x16xf32>
    %350 = vector.multi_reduction <add>, %349, %cst_157 [2] : vector<4x16x16xf32> to vector<4x16xf32>
    %351 = vector.shape_cast %350 : vector<4x16xf32> to vector<4x16x1xf32>
    %352 = tpu.reciprocal %351 {approx = true} : vector<4x16x1xf32> -> vector<4x16x1xf32>
    %353 = vector.broadcast %352 : vector<4x16x1xf32> to vector<4x16x16xf32>
    %354 = arith.mulf %349, %353 : vector<4x16x16xf32>
    "tpu.trace_start"() <{level = 10 : i32, message = "bqk,bkd->bqd"}> : () -> ()
    %cst_158 = arith.constant dense<0.000000e+00> : vector<4x16x8xf32>
    %355 = tpu.matmul %354, %314, %cst_158 {dimension_numbers = #tpu.dot_dimension_numbers<[2], [1], [1], [2], [0, 0, 0, 1, 1, 2], [0], [0]>} : vector<4x16x16xf32>, vector<4x16x8xf32>, vector<4x16x8xf32> -> vector<4x16x8xf32>
    "tpu.trace_stop"() : () -> ()
    %356 = vector.extract_strided_slice %133 {offsets = [0, 0, 40], sizes = [4, 16, 8], strides = [1, 1, 1]} : vector<4x16x64xf32> to vector<4x16x8xf32>
    %357 = vector.extract_strided_slice %134 {offsets = [0, 0, 40], sizes = [4, 16, 8], strides = [1, 1, 1]} : vector<4x16x64xf32> to vector<4x16x8xf32>
    %358 = vector.extract_strided_slice %135 {offsets = [0, 0, 40], sizes = [4, 16, 8], strides = [1, 1, 1]} : vector<4x16x64xf32> to vector<4x16x8xf32>
    "tpu.trace_start"() <{level = 10 : i32, message = "bqd,bkd->bqk"}> : () -> ()
    %cst_159 = arith.constant dense<0.000000e+00> : vector<4x16x16xf32>
    %359 = tpu.matmul %356, %357, %cst_159 {dimension_numbers = #tpu.dot_dimension_numbers<[2], [2], [1], [1], [0, 0, 0, 1, 1, 1], [0], [0]>} : vector<4x16x8xf32>, vector<4x16x8xf32>, vector<4x16x16xf32> -> vector<4x16x16xf32>
    %cst_160 = arith.constant 0.000000e+00 : f32
    "tpu.trace_stop"() : () -> ()
    %360 = vector.broadcast %cst_160 : f32 to vector<4x16x16xf32>
    %c0_161 = arith.constant 0 : index
    %c5_162 = arith.constant 5 : index
    %361 = memref.load %arg10[%c0_161, %c5_162] : memref<9x8xf32, #tpu.memory_space<smem>>
    %362 = vector.broadcast %361 : f32 to vector<4x16x16xf32>
    %363 = arith.select %116, %362, %360 : vector<4x16x16xi1>, vector<4x16x16xf32>
    %c1_163 = arith.constant 1 : index
    %c5_164 = arith.constant 5 : index
    %364 = memref.load %arg10[%c1_163, %c5_164] : memref<9x8xf32, #tpu.memory_space<smem>>
    %365 = vector.broadcast %364 : f32 to vector<4x16x16xf32>
    %366 = arith.select %118, %365, %363 : vector<4x16x16xi1>, vector<4x16x16xf32>
    %c2_165 = arith.constant 2 : index
    %c5_166 = arith.constant 5 : index
    %367 = memref.load %arg10[%c2_165, %c5_166] : memref<9x8xf32, #tpu.memory_space<smem>>
    %368 = vector.broadcast %367 : f32 to vector<4x16x16xf32>
    %369 = arith.select %120, %368, %366 : vector<4x16x16xi1>, vector<4x16x16xf32>
    %c3_167 = arith.constant 3 : index
    %c5_168 = arith.constant 5 : index
    %370 = memref.load %arg10[%c3_167, %c5_168] : memref<9x8xf32, #tpu.memory_space<smem>>
    %371 = vector.broadcast %370 : f32 to vector<4x16x16xf32>
    %372 = arith.select %122, %371, %369 : vector<4x16x16xi1>, vector<4x16x16xf32>
    %c4_169 = arith.constant 4 : index
    %c5_170 = arith.constant 5 : index
    %373 = memref.load %arg10[%c4_169, %c5_170] : memref<9x8xf32, #tpu.memory_space<smem>>
    %374 = vector.broadcast %373 : f32 to vector<4x16x16xf32>
    %375 = arith.select %124, %374, %372 : vector<4x16x16xi1>, vector<4x16x16xf32>
    %c5_171 = arith.constant 5 : index
    %c5_172 = arith.constant 5 : index
    %376 = memref.load %arg10[%c5_171, %c5_172] : memref<9x8xf32, #tpu.memory_space<smem>>
    %377 = vector.broadcast %376 : f32 to vector<4x16x16xf32>
    %378 = arith.select %126, %377, %375 : vector<4x16x16xi1>, vector<4x16x16xf32>
    %c6_173 = arith.constant 6 : index
    %c5_174 = arith.constant 5 : index
    %379 = memref.load %arg10[%c6_173, %c5_174] : memref<9x8xf32, #tpu.memory_space<smem>>
    %380 = vector.broadcast %379 : f32 to vector<4x16x16xf32>
    %381 = arith.select %128, %380, %378 : vector<4x16x16xi1>, vector<4x16x16xf32>
    %c7_175 = arith.constant 7 : index
    %c5_176 = arith.constant 5 : index
    %382 = memref.load %arg10[%c7_175, %c5_176] : memref<9x8xf32, #tpu.memory_space<smem>>
    %383 = vector.broadcast %382 : f32 to vector<4x16x16xf32>
    %384 = arith.select %130, %383, %381 : vector<4x16x16xi1>, vector<4x16x16xf32>
    %c8_177 = arith.constant 8 : index
    %c5_178 = arith.constant 5 : index
    %385 = memref.load %arg10[%c8_177, %c5_178] : memref<9x8xf32, #tpu.memory_space<smem>>
    %386 = vector.broadcast %385 : f32 to vector<4x16x16xf32>
    %387 = arith.select %132, %386, %384 : vector<4x16x16xi1>, vector<4x16x16xf32>
    %388 = arith.addf %359, %387 : vector<4x16x16xf32>
    %cst_179 = arith.constant dense<0xFF800000> : vector<4x16xf32>
    %389 = vector.multi_reduction <maximumf>, %388, %cst_179 [2] : vector<4x16x16xf32> to vector<4x16xf32>
    %390 = vector.shape_cast %389 : vector<4x16xf32> to vector<4x16x1xf32>
    %391 = vector.broadcast %390 : vector<4x16x1xf32> to vector<4x16x16xf32>
    %392 = arith.subf %388, %391 : vector<4x16x16xf32>
    %393 = math.exp %392 : vector<4x16x16xf32>
    %cst_180 = arith.constant dense<0.000000e+00> : vector<4x16xf32>
    %394 = vector.multi_reduction <add>, %393, %cst_180 [2] : vector<4x16x16xf32> to vector<4x16xf32>
    %395 = vector.shape_cast %394 : vector<4x16xf32> to vector<4x16x1xf32>
    %396 = tpu.reciprocal %395 {approx = true} : vector<4x16x1xf32> -> vector<4x16x1xf32>
    %397 = vector.broadcast %396 : vector<4x16x1xf32> to vector<4x16x16xf32>
    %398 = arith.mulf %393, %397 : vector<4x16x16xf32>
    "tpu.trace_start"() <{level = 10 : i32, message = "bqk,bkd->bqd"}> : () -> ()
    %cst_181 = arith.constant dense<0.000000e+00> : vector<4x16x8xf32>
    %399 = tpu.matmul %398, %358, %cst_181 {dimension_numbers = #tpu.dot_dimension_numbers<[2], [1], [1], [2], [0, 0, 0, 1, 1, 2], [0], [0]>} : vector<4x16x16xf32>, vector<4x16x8xf32>, vector<4x16x8xf32> -> vector<4x16x8xf32>
    "tpu.trace_stop"() : () -> ()
    %400 = vector.extract_strided_slice %133 {offsets = [0, 0, 48], sizes = [4, 16, 8], strides = [1, 1, 1]} : vector<4x16x64xf32> to vector<4x16x8xf32>
    %401 = vector.extract_strided_slice %134 {offsets = [0, 0, 48], sizes = [4, 16, 8], strides = [1, 1, 1]} : vector<4x16x64xf32> to vector<4x16x8xf32>
    %402 = vector.extract_strided_slice %135 {offsets = [0, 0, 48], sizes = [4, 16, 8], strides = [1, 1, 1]} : vector<4x16x64xf32> to vector<4x16x8xf32>
    "tpu.trace_start"() <{level = 10 : i32, message = "bqd,bkd->bqk"}> : () -> ()
    %cst_182 = arith.constant dense<0.000000e+00> : vector<4x16x16xf32>
    %403 = tpu.matmul %400, %401, %cst_182 {dimension_numbers = #tpu.dot_dimension_numbers<[2], [2], [1], [1], [0, 0, 0, 1, 1, 1], [0], [0]>} : vector<4x16x8xf32>, vector<4x16x8xf32>, vector<4x16x16xf32> -> vector<4x16x16xf32>
    %cst_183 = arith.constant 0.000000e+00 : f32
    "tpu.trace_stop"() : () -> ()
    %404 = vector.broadcast %cst_183 : f32 to vector<4x16x16xf32>
    %c0_184 = arith.constant 0 : index
    %c6_185 = arith.constant 6 : index
    %405 = memref.load %arg10[%c0_184, %c6_185] : memref<9x8xf32, #tpu.memory_space<smem>>
    %406 = vector.broadcast %405 : f32 to vector<4x16x16xf32>
    %407 = arith.select %116, %406, %404 : vector<4x16x16xi1>, vector<4x16x16xf32>
    %c1_186 = arith.constant 1 : index
    %c6_187 = arith.constant 6 : index
    %408 = memref.load %arg10[%c1_186, %c6_187] : memref<9x8xf32, #tpu.memory_space<smem>>
    %409 = vector.broadcast %408 : f32 to vector<4x16x16xf32>
    %410 = arith.select %118, %409, %407 : vector<4x16x16xi1>, vector<4x16x16xf32>
    %c2_188 = arith.constant 2 : index
    %c6_189 = arith.constant 6 : index
    %411 = memref.load %arg10[%c2_188, %c6_189] : memref<9x8xf32, #tpu.memory_space<smem>>
    %412 = vector.broadcast %411 : f32 to vector<4x16x16xf32>
    %413 = arith.select %120, %412, %410 : vector<4x16x16xi1>, vector<4x16x16xf32>
    %c3_190 = arith.constant 3 : index
    %c6_191 = arith.constant 6 : index
    %414 = memref.load %arg10[%c3_190, %c6_191] : memref<9x8xf32, #tpu.memory_space<smem>>
    %415 = vector.broadcast %414 : f32 to vector<4x16x16xf32>
    %416 = arith.select %122, %415, %413 : vector<4x16x16xi1>, vector<4x16x16xf32>
    %c4_192 = arith.constant 4 : index
    %c6_193 = arith.constant 6 : index
    %417 = memref.load %arg10[%c4_192, %c6_193] : memref<9x8xf32, #tpu.memory_space<smem>>
    %418 = vector.broadcast %417 : f32 to vector<4x16x16xf32>
    %419 = arith.select %124, %418, %416 : vector<4x16x16xi1>, vector<4x16x16xf32>
    %c5_194 = arith.constant 5 : index
    %c6_195 = arith.constant 6 : index
    %420 = memref.load %arg10[%c5_194, %c6_195] : memref<9x8xf32, #tpu.memory_space<smem>>
    %421 = vector.broadcast %420 : f32 to vector<4x16x16xf32>
    %422 = arith.select %126, %421, %419 : vector<4x16x16xi1>, vector<4x16x16xf32>
    %c6_196 = arith.constant 6 : index
    %c6_197 = arith.constant 6 : index
    %423 = memref.load %arg10[%c6_196, %c6_197] : memref<9x8xf32, #tpu.memory_space<smem>>
    %424 = vector.broadcast %423 : f32 to vector<4x16x16xf32>
    %425 = arith.select %128, %424, %422 : vector<4x16x16xi1>, vector<4x16x16xf32>
    %c7_198 = arith.constant 7 : index
    %c6_199 = arith.constant 6 : index
    %426 = memref.load %arg10[%c7_198, %c6_199] : memref<9x8xf32, #tpu.memory_space<smem>>
    %427 = vector.broadcast %426 : f32 to vector<4x16x16xf32>
    %428 = arith.select %130, %427, %425 : vector<4x16x16xi1>, vector<4x16x16xf32>
    %c8_200 = arith.constant 8 : index
    %c6_201 = arith.constant 6 : index
    %429 = memref.load %arg10[%c8_200, %c6_201] : memref<9x8xf32, #tpu.memory_space<smem>>
    %430 = vector.broadcast %429 : f32 to vector<4x16x16xf32>
    %431 = arith.select %132, %430, %428 : vector<4x16x16xi1>, vector<4x16x16xf32>
    %432 = arith.addf %403, %431 : vector<4x16x16xf32>
    %cst_202 = arith.constant dense<0xFF800000> : vector<4x16xf32>
    %433 = vector.multi_reduction <maximumf>, %432, %cst_202 [2] : vector<4x16x16xf32> to vector<4x16xf32>
    %434 = vector.shape_cast %433 : vector<4x16xf32> to vector<4x16x1xf32>
    %435 = vector.broadcast %434 : vector<4x16x1xf32> to vector<4x16x16xf32>
    %436 = arith.subf %432, %435 : vector<4x16x16xf32>
    %437 = math.exp %436 : vector<4x16x16xf32>
    %cst_203 = arith.constant dense<0.000000e+00> : vector<4x16xf32>
    %438 = vector.multi_reduction <add>, %437, %cst_203 [2] : vector<4x16x16xf32> to vector<4x16xf32>
    %439 = vector.shape_cast %438 : vector<4x16xf32> to vector<4x16x1xf32>
    %440 = tpu.reciprocal %439 {approx = true} : vector<4x16x1xf32> -> vector<4x16x1xf32>
    %441 = vector.broadcast %440 : vector<4x16x1xf32> to vector<4x16x16xf32>
    %442 = arith.mulf %437, %441 : vector<4x16x16xf32>
    "tpu.trace_start"() <{level = 10 : i32, message = "bqk,bkd->bqd"}> : () -> ()
    %cst_204 = arith.constant dense<0.000000e+00> : vector<4x16x8xf32>
    %443 = tpu.matmul %442, %402, %cst_204 {dimension_numbers = #tpu.dot_dimension_numbers<[2], [1], [1], [2], [0, 0, 0, 1, 1, 2], [0], [0]>} : vector<4x16x16xf32>, vector<4x16x8xf32>, vector<4x16x8xf32> -> vector<4x16x8xf32>
    "tpu.trace_stop"() : () -> ()
    %444 = vector.extract_strided_slice %133 {offsets = [0, 0, 56], sizes = [4, 16, 8], strides = [1, 1, 1]} : vector<4x16x64xf32> to vector<4x16x8xf32>
    %445 = vector.extract_strided_slice %134 {offsets = [0, 0, 56], sizes = [4, 16, 8], strides = [1, 1, 1]} : vector<4x16x64xf32> to vector<4x16x8xf32>
    %446 = vector.extract_strided_slice %135 {offsets = [0, 0, 56], sizes = [4, 16, 8], strides = [1, 1, 1]} : vector<4x16x64xf32> to vector<4x16x8xf32>
    "tpu.trace_start"() <{level = 10 : i32, message = "bqd,bkd->bqk"}> : () -> ()
    %cst_205 = arith.constant dense<0.000000e+00> : vector<4x16x16xf32>
    %447 = tpu.matmul %444, %445, %cst_205 {dimension_numbers = #tpu.dot_dimension_numbers<[2], [2], [1], [1], [0, 0, 0, 1, 1, 1], [0], [0]>} : vector<4x16x8xf32>, vector<4x16x8xf32>, vector<4x16x16xf32> -> vector<4x16x16xf32>
    %cst_206 = arith.constant 0.000000e+00 : f32
    "tpu.trace_stop"() : () -> ()
    %448 = vector.broadcast %cst_206 : f32 to vector<4x16x16xf32>
    %c0_207 = arith.constant 0 : index
    %c7_208 = arith.constant 7 : index
    %449 = memref.load %arg10[%c0_207, %c7_208] : memref<9x8xf32, #tpu.memory_space<smem>>
    %450 = vector.broadcast %449 : f32 to vector<4x16x16xf32>
    %451 = arith.select %116, %450, %448 : vector<4x16x16xi1>, vector<4x16x16xf32>
    %c1_209 = arith.constant 1 : index
    %c7_210 = arith.constant 7 : index
    %452 = memref.load %arg10[%c1_209, %c7_210] : memref<9x8xf32, #tpu.memory_space<smem>>
    %453 = vector.broadcast %452 : f32 to vector<4x16x16xf32>
    %454 = arith.select %118, %453, %451 : vector<4x16x16xi1>, vector<4x16x16xf32>
    %c2_211 = arith.constant 2 : index
    %c7_212 = arith.constant 7 : index
    %455 = memref.load %arg10[%c2_211, %c7_212] : memref<9x8xf32, #tpu.memory_space<smem>>
    %456 = vector.broadcast %455 : f32 to vector<4x16x16xf32>
    %457 = arith.select %120, %456, %454 : vector<4x16x16xi1>, vector<4x16x16xf32>
    %c3_213 = arith.constant 3 : index
    %c7_214 = arith.constant 7 : index
    %458 = memref.load %arg10[%c3_213, %c7_214] : memref<9x8xf32, #tpu.memory_space<smem>>
    %459 = vector.broadcast %458 : f32 to vector<4x16x16xf32>
    %460 = arith.select %122, %459, %457 : vector<4x16x16xi1>, vector<4x16x16xf32>
    %c4_215 = arith.constant 4 : index
    %c7_216 = arith.constant 7 : index
    %461 = memref.load %arg10[%c4_215, %c7_216] : memref<9x8xf32, #tpu.memory_space<smem>>
    %462 = vector.broadcast %461 : f32 to vector<4x16x16xf32>
    %463 = arith.select %124, %462, %460 : vector<4x16x16xi1>, vector<4x16x16xf32>
    %c5_217 = arith.constant 5 : index
    %c7_218 = arith.constant 7 : index
    %464 = memref.load %arg10[%c5_217, %c7_218] : memref<9x8xf32, #tpu.memory_space<smem>>
    %465 = vector.broadcast %464 : f32 to vector<4x16x16xf32>
    %466 = arith.select %126, %465, %463 : vector<4x16x16xi1>, vector<4x16x16xf32>
    %c6_219 = arith.constant 6 : index
    %c7_220 = arith.constant 7 : index
    %467 = memref.load %arg10[%c6_219, %c7_220] : memref<9x8xf32, #tpu.memory_space<smem>>
    %468 = vector.broadcast %467 : f32 to vector<4x16x16xf32>
    %469 = arith.select %128, %468, %466 : vector<4x16x16xi1>, vector<4x16x16xf32>
    %c7_221 = arith.constant 7 : index
    %c7_222 = arith.constant 7 : index
    %470 = memref.load %arg10[%c7_221, %c7_222] : memref<9x8xf32, #tpu.memory_space<smem>>
    %471 = vector.broadcast %470 : f32 to vector<4x16x16xf32>
    %472 = arith.select %130, %471, %469 : vector<4x16x16xi1>, vector<4x16x16xf32>
    %c8_223 = arith.constant 8 : index
    %c7_224 = arith.constant 7 : index
    %473 = memref.load %arg10[%c8_223, %c7_224] : memref<9x8xf32, #tpu.memory_space<smem>>
    %474 = vector.broadcast %473 : f32 to vector<4x16x16xf32>
    %475 = arith.select %132, %474, %472 : vector<4x16x16xi1>, vector<4x16x16xf32>
    %476 = arith.addf %447, %475 : vector<4x16x16xf32>
    %cst_225 = arith.constant dense<0xFF800000> : vector<4x16xf32>
    %477 = vector.multi_reduction <maximumf>, %476, %cst_225 [2] : vector<4x16x16xf32> to vector<4x16xf32>
    %478 = vector.shape_cast %477 : vector<4x16xf32> to vector<4x16x1xf32>
    %479 = vector.broadcast %478 : vector<4x16x1xf32> to vector<4x16x16xf32>
    %480 = arith.subf %476, %479 : vector<4x16x16xf32>
    %481 = math.exp %480 : vector<4x16x16xf32>
    %cst_226 = arith.constant dense<0.000000e+00> : vector<4x16xf32>
    %482 = vector.multi_reduction <add>, %481, %cst_226 [2] : vector<4x16x16xf32> to vector<4x16xf32>
    %483 = vector.shape_cast %482 : vector<4x16xf32> to vector<4x16x1xf32>
    %484 = tpu.reciprocal %483 {approx = true} : vector<4x16x1xf32> -> vector<4x16x1xf32>
    %485 = vector.broadcast %484 : vector<4x16x1xf32> to vector<4x16x16xf32>
    %486 = arith.mulf %481, %485 : vector<4x16x16xf32>
    "tpu.trace_start"() <{level = 10 : i32, message = "bqk,bkd->bqd"}> : () -> ()
    %cst_227 = arith.constant dense<0.000000e+00> : vector<4x16x8xf32>
    %487 = tpu.matmul %486, %446, %cst_227 {dimension_numbers = #tpu.dot_dimension_numbers<[2], [1], [1], [2], [0, 0, 0, 1, 1, 2], [0], [0]>} : vector<4x16x16xf32>, vector<4x16x8xf32>, vector<4x16x8xf32> -> vector<4x16x8xf32>
    "tpu.trace_stop"() : () -> ()
    %488 = tpu.concatenate %179, %223, %267, %311, %355, %399, %443, %487 in 2 : vector<4x16x8xf32>, vector<4x16x8xf32>, vector<4x16x8xf32>, vector<4x16x8xf32>, vector<4x16x8xf32>, vector<4x16x8xf32>, vector<4x16x8xf32>, vector<4x16x8xf32> -> vector<4x16x64xf32>
    %489 = vector.shape_cast %488 : vector<4x16x64xf32> to vector<64x64xf32>
    %c0_228 = arith.constant 0 : index
    %c0_229 = arith.constant 0 : index
    %490 = vector.load %arg8[%c0_228, %c0_229] : memref<64x64xf32, #tpu.memory_space<vmem>>, vector<64x64xf32>
    %cst_230 = arith.constant dense<0.000000e+00> : vector<64x64xf32>
    %491 = tpu.matmul %489, %490, %cst_230 {dimension_numbers = #tpu.dot_dimension_numbers<[1], [0], [0], [1], [0, 0, 1, 1], [], []>} : vector<64x64xf32>, vector<64x64xf32>, vector<64x64xf32> -> vector<64x64xf32>
    %c0_231 = arith.constant 0 : index
    %c0_232 = arith.constant 0 : index
    %492 = vector.load %arg9[%c0_231, %c0_232] : memref<1x64xf32, #tpu.memory_space<vmem>>, vector<1x64xf32>
    %493 = vector.broadcast %492 : vector<1x64xf32> to vector<64x64xf32>
    %494 = arith.addf %491, %493 : vector<64x64xf32>
    %495 = arith.addf %0, %494 : vector<64x64xf32>
    %cst_233 = arith.constant 5.000000e-01 : f32
    %496 = vector.broadcast %cst_233 : f32 to vector<64x64xf32>
    %497 = arith.mulf %496, %495 : vector<64x64xf32>
    %cst_234 = arith.constant 0.707106769 : f32
    %498 = vector.broadcast %cst_234 : f32 to vector<64x64xf32>
    %499 = arith.mulf %495, %498 : vector<64x64xf32>
    %cst_235 = arith.constant 0.000000e+00 : f32
    %500 = vector.broadcast %cst_235 : f32 to vector<64x64xf32>
    %501 = arith.cmpf oge, %499, %500 : vector<64x64xf32>
    %cst_236 = arith.constant 1.000000e+00 : f32
    %cst_237 = arith.constant -1.000000e+00 : f32
    %502 = vector.broadcast %cst_236 : f32 to vector<64x64xf32>
    %503 = vector.broadcast %cst_237 : f32 to vector<64x64xf32>
    %504 = arith.select %501, %502, %503 : vector<64x64xi1>, vector<64x64xf32>
    %505 = math.absf %499 : vector<64x64xf32>
    %cst_238 = arith.constant 0.327591091 : f32
    %506 = vector.broadcast %cst_238 : f32 to vector<64x64xf32>
    %507 = arith.mulf %506, %505 : vector<64x64xf32>
    %cst_239 = arith.constant 1.000000e+00 : f32
    %508 = vector.broadcast %cst_239 : f32 to vector<64x64xf32>
    %509 = arith.addf %508, %507 : vector<64x64xf32>
    %cst_240 = arith.constant 1.000000e+00 : f32
    %510 = vector.broadcast %cst_240 : f32 to vector<64x64xf32>
    %511 = arith.divf %510, %509 : vector<64x64xf32>
    %cst_241 = arith.constant 1.06140542 : f32
    %512 = vector.broadcast %cst_241 : f32 to vector<64x64xf32>
    %513 = arith.mulf %512, %511 : vector<64x64xf32>
    %cst_242 = arith.constant -1.45315206 : f32
    %514 = vector.broadcast %cst_242 : f32 to vector<64x64xf32>
    %515 = arith.addf %513, %514 : vector<64x64xf32>
    %516 = arith.mulf %515, %511 : vector<64x64xf32>
    %cst_243 = arith.constant 1.42141378 : f32
    %517 = vector.broadcast %cst_243 : f32 to vector<64x64xf32>
    %518 = arith.addf %516, %517 : vector<64x64xf32>
    %519 = arith.mulf %518, %511 : vector<64x64xf32>
    %cst_244 = arith.constant -0.284496725 : f32
    %520 = vector.broadcast %cst_244 : f32 to vector<64x64xf32>
    %521 = arith.addf %519, %520 : vector<64x64xf32>
    %522 = arith.mulf %521, %511 : vector<64x64xf32>
    %cst_245 = arith.constant 0.254829586 : f32
    %523 = vector.broadcast %cst_245 : f32 to vector<64x64xf32>
    %524 = arith.addf %522, %523 : vector<64x64xf32>
    %525 = arith.mulf %524, %511 : vector<64x64xf32>
    %cst_246 = arith.constant 0.000000e+00 : f32
    %526 = vector.broadcast %cst_246 : f32 to vector<64x64xf32>
    %527 = arith.subf %526, %505 : vector<64x64xf32>
    %528 = arith.mulf %527, %505 : vector<64x64xf32>
    %529 = math.exp %528 : vector<64x64xf32>
    %530 = arith.mulf %525, %529 : vector<64x64xf32>
    %cst_247 = arith.constant 1.000000e+00 : f32
    %531 = vector.broadcast %cst_247 : f32 to vector<64x64xf32>
    %532 = arith.subf %531, %530 : vector<64x64xf32>
    %533 = arith.mulf %504, %532 : vector<64x64xf32>
    %cst_248 = arith.constant 1.000000e+00 : f32
    %534 = vector.broadcast %cst_248 : f32 to vector<64x64xf32>
    %535 = arith.addf %534, %533 : vector<64x64xf32>
    %536 = arith.mulf %497, %535 : vector<64x64xf32>
    %c0_249 = arith.constant 0 : index
    %c0_250 = arith.constant 0 : index
    %537 = vector.load %arg11[%c0_249, %c0_250] : memref<64x64xf32, #tpu.memory_space<vmem>>, vector<64x64xf32>
    tpu.vector_store %arg11[%c0_249, %c0_250], %536 {strides = array<i32>} : memref<64x64xf32, #tpu.memory_space<vmem>>, vector<64x64xf32>,
    return
  }
  func.func @transform_0(%arg0: i32) -> (i32, i32) {
    %c0_i32 = arith.constant 0 : i32
    %c0_i32_0 = arith.constant 0 : i32
    return %arg0, %c0_i32 : i32, i32
  }
  func.func @transform_1(%arg0: i32) -> (i32, i32, i32) {
    %c0_i32 = arith.constant 0 : i32
    %c0_i32_0 = arith.constant 0 : i32
    %c0_i32_1 = arith.constant 0 : i32
    return %arg0, %c0_i32, %c0_i32_0 : i32, i32, i32
  }
  func.func @transform_2(%arg0: i32) -> (i32, i32, i32) {
    %c0_i32 = arith.constant 0 : i32
    %c0_i32_0 = arith.constant 0 : i32
    %c0_i32_1 = arith.constant 0 : i32
    return %arg0, %c0_i32, %c0_i32_0 : i32, i32, i32
  }
  func.func @transform_3(%arg0: i32) -> (i32, i32) {
    %c0_i32 = arith.constant 0 : i32
    %c0_i32_0 = arith.constant 0 : i32
    %c0_i32_1 = arith.constant 0 : i32
    return %c0_i32, %c0_i32_0 : i32, i32
  }
  func.func @transform_4(%arg0: i32) -> (i32, i32) {
    %c0_i32 = arith.constant 0 : i32
    %c0_i32_0 = arith.constant 0 : i32
    %c0_i32_1 = arith.constant 0 : i32
    return %c0_i32, %c0_i32_0 : i32, i32
  }
  func.func @transform_5(%arg0: i32) -> (i32, i32) {
    %c0_i32 = arith.constant 0 : i32
    %c0_i32_0 = arith.constant 0 : i32
    %c0_i32_1 = arith.constant 0 : i32
    return %c0_i32, %c0_i32_0 : i32, i32
  }
  func.func @transform_6(%arg0: i32) -> (i32, i32) {
    %c0_i32 = arith.constant 0 : i32
    %c0_i32_0 = arith.constant 0 : i32
    %c0_i32_1 = arith.constant 0 : i32
    return %c0_i32, %c0_i32_0 : i32, i32
  }
  func.func @transform_7(%arg0: i32) -> (i32, i32) {
    %c0_i32 = arith.constant 0 : i32
    %c0_i32_0 = arith.constant 0 : i32
    %c0_i32_1 = arith.constant 0 : i32
    return %c0_i32, %c0_i32_0 : i32, i32
  }
  func.func @transform_8(%arg0: i32) -> (i32, i32) {
    %c0_i32 = arith.constant 0 : i32
    %c0_i32_0 = arith.constant 0 : i32
    %c0_i32_1 = arith.constant 0 : i32
    return %c0_i32, %c0_i32_0 : i32, i32
  }
  func.func @transform_9(%arg0: i32) -> (i32, i32) {
    %c0_i32 = arith.constant 0 : i32
    %c0_i32_0 = arith.constant 0 : i32
    %c0_i32_1 = arith.constant 0 : i32
    return %c0_i32, %c0_i32_0 : i32, i32
  }
  func.func @transform_10(%arg0: i32) -> (i32, i32) {
    %c0_i32 = arith.constant 0 : i32
    %c0_i32_0 = arith.constant 0 : i32
    return %arg0, %c0_i32 : i32, i32
  }
}

</mosaic_0001>

<llo_original>
// kernel: tpu_custom_call.1
$region0: #{tpu_custom_call.1}
  #allocation0 [shape = 'u32[]', space=smem, size = 0x4, offset = 0x4, fixed_abs, tag = 'smem constant byte address 0x4 - core index']
  #allocation1 [shape = 'u32[144,128]{1,0:T(1,128)}', space=vmem, size = 0x12000, scoped, tag = 'internal scratch']
  %s0 = inlined_call_operand.vmem [shape: f32[64,64], index: 0, kind: input, shape index: {}]
  %s1 = inlined_call_operand.vmem [shape: f32[4,16,2], index: 1, kind: input, shape index: {}]
  %s2 = inlined_call_operand.vmem [shape: f32[4,2,16], index: 2, kind: input, shape index: {}]
  %s3 = inlined_call_operand.vmem [shape: f32[1,64], index: 3, kind: input, shape index: {}]
  %s4 = inlined_call_operand.vmem [shape: f32[1,64], index: 4, kind: input, shape index: {}]
  %s5 = inlined_call_operand.hbm [shape: f32[64,192], index: 5, kind: input, shape index: {}]
  %s6 = inlined_call_operand.vmem [shape: f32[1,192], index: 6, kind: input, shape index: {}]
  %s7 = inlined_call_operand.hbm [shape: f32[64,64], index: 7, kind: input, shape index: {}]
  %s8 = inlined_call_operand.vmem [shape: f32[1,64], index: 8, kind: input, shape index: {}]
  %s9 = inlined_call_operand.vmem [shape: f32[9,8], index: 9, kind: input, shape index: {}]
  %s10 = inlined_call_operand.hbm [shape: f32[64,64], index: 10, kind: output, shape index: {}]
  %s11 = sld [smem:[#allocation0]]
  $region62: #{tpu_custom_call.1} parent=0
    _
  %s13 = ssub.s32 1, %s11
  %s14 = scalar_select 0, %s13, %s11
  $region1: #{tpu_custom_call.1} parent=0
    #allocation2 [shape = 'u8[65536]{0}', space=vmem, size = 0x10000, scoped, tag = 'input window, operand 5, single buffered']
    #allocation3 [shape = 's32[1]{0}', space=sflag, size = 0x4, scoped, tag = 'scoped memory for tpu_custom_call.1']
    #allocation4 [shape = 's32[1]{0}', space=sflag, size = 0x4, scoped, tag = 'scoped memory for tpu_custom_call.1']
    #allocation5 [shape = 's32[1]{0}', space=sflag, size = 0x4, scoped, tag = 'scoped memory for tpu_custom_call.1']
    #allocation6 [shape = 'u8[32768]{0}', space=vmem, size = 0x8000, scoped, tag = 'input window, operand 7, single buffered']
    #allocation7 [shape = 's32[1]{0}', space=sflag, size = 0x4, scoped, tag = 'scoped memory for tpu_custom_call.1']
    #allocation8 [shape = 'u8[8192]{0}', space=smem, size = 0x2000, scoped, tag = 'input window, operand 9, single buffered']
    #allocation9 [shape = 'u8[32768]{0}', space=vmem, size = 0x8000, scoped, tag = 'output window, operand 0, single buffered']
    %15 = vsyncpa [#allocation3], 0
    %16 = vsyncpa [#allocation7], 0
    %17 = vsyncpa [#allocation5], 0
    %18 = vsyncpa [#allocation4], 0
    // Predicated region
    $region2: #{tpu_custom_call.1} parent=1 // pred_check
      _
    $region3: #{tpu_custom_call.1} parent=1 // pred_check_branch
      %20 = sbr.rel (0) target = $region5
    $region4: #{tpu_custom_call.1} parent=1 // pred_region
      _
    $region5: #{tpu_custom_call.1} parent=1 // pred_fallthru
      _
    // Predicated region
    $region6: #{tpu_custom_call.1} parent=1 // pred_check
      _
    $region7: #{tpu_custom_call.1} parent=1 // pred_check_branch
      %22 = sbr.rel (0) target = $region9
    $region8: #{tpu_custom_call.1} parent=1 // pred_region
      _
    $region9: #{tpu_custom_call.1} parent=1 // pred_fallthru
      _
    // Predicated region
    $region10: #{tpu_custom_call.1} parent=1 // pred_check
      _
    $region11: #{tpu_custom_call.1} parent=1 // pred_check_branch
      %24 = sbr.rel (0) target = $region13
    $region12: #{tpu_custom_call.1} parent=1 // pred_region
      _
    $region13: #{tpu_custom_call.1} parent=1 // pred_fallthru
      _
    // Predicated region
    $region14: #{tpu_custom_call.1} parent=1 // pred_check
      _
    $region15: #{tpu_custom_call.1} parent=1 // pred_check_branch
      %26 = sbr.rel (0) target = $region17
    $region16: #{tpu_custom_call.1} parent=1 // pred_region
      _
    $region17: #{tpu_custom_call.1} parent=1 // pred_fallthru
      _
    // Predicated region
    $region18: #{tpu_custom_call.1} parent=1 // pred_check
      _
    $region19: #{tpu_custom_call.1} parent=1 // pred_check_branch
      %28 = sbr.rel (0) target = $region21
    $region20: #{tpu_custom_call.1} parent=1 // pred_region
      _
    $region21: #{tpu_custom_call.1} parent=1 // pred_fallthru
      _
    // Predicated region
    $region22: #{tpu_custom_call.1} parent=1 // pred_check
      _
    $region23: #{tpu_custom_call.1} parent=1 // pred_check_branch
      %30 = sbr.rel (0) target = $region25
    $region24: #{tpu_custom_call.1} parent=1 // pred_region
      %s32 = ssub.s32 2048, 2048
      %33 = vsyncadd [#allocation3], %s32
      %s34 = sshll.u32 [#allocation2], 4
      %s35 = int_to_ptr.vmem [resolvable:$true] %s34
      %40 = dma.hbm_to_vmem [thread:$0]  %s5, 2048, %s35, [#allocation3], 256, 256, 16
    $region25: #{tpu_custom_call.1} parent=1 // pred_fallthru
      _
    // Predicated region
    $region26: #{tpu_custom_call.1} parent=1 // pred_check
      _
    $region27: #{tpu_custom_call.1} parent=1 // pred_check_branch
      %42 = sbr.rel (0) target = $region29
    $region28: #{tpu_custom_call.1} parent=1 // pred_region
      _
    $region29: #{tpu_custom_call.1} parent=1 // pred_fallthru
      _
    // Predicated region
    $region30: #{tpu_custom_call.1} parent=1 // pred_check
      _
    $region31: #{tpu_custom_call.1} parent=1 // pred_check_branch
      %44 = sbr.rel (0) target = $region33
    $region32: #{tpu_custom_call.1} parent=1 // pred_region
      %s46 = ssub.s32 1024, 1024
      %47 = vsyncadd [#allocation7], %s46
      %s48 = sshll.u32 [#allocation6], 4
      %s49 = int_to_ptr.vmem [resolvable:$true] %s48
      %54 = dma.hbm_to_vmem [thread:$0]  %s7, 1024, %s49, [#allocation7], 128, 128, 8
    $region33: #{tpu_custom_call.1} parent=1 // pred_fallthru
      _
    // Predicated region
    $region34: #{tpu_custom_call.1} parent=1 // pred_check
      _
    $region35: #{tpu_custom_call.1} parent=1 // pred_check_branch
      %56 = sbr.rel (0) target = $region37
    $region36: #{tpu_custom_call.1} parent=1 // pred_region
      _
    $region37: #{tpu_custom_call.1} parent=1 // pred_fallthru
      _
    // Predicated region
    $region38: #{tpu_custom_call.1} parent=1 // pred_check
      _
    $region39: #{tpu_custom_call.1} parent=1 // pred_check_branch
      %58 = sbr.rel (0) target = $region41
    $region40: #{tpu_custom_call.1} parent=1 // pred_region
      %s60 = ssub.s32 256, 256
      %61 = vsyncadd [#allocation5], %s60
      %s62 = sshll.u32 %s9, 4
      %s63 = int_to_ptr.vmem [resolvable:$true] %s62
      %68 = dma.vmem_to_smem %s63, 256, [#allocation8], [#allocation5], 128, 128, 8
    $region41: #{tpu_custom_call.1} parent=1 // pred_fallthru
      _
    // Predicated region
    $region42: #{tpu_custom_call.1} parent=1 // pred_check
      _
    $region43: #{tpu_custom_call.1} parent=1 // pred_check_branch
      %70 = sbr.rel (0) target = $region45
    $region44: #{tpu_custom_call.1} parent=1 // pred_region
      %71 = dma.done [#allocation3], 2048
    $region45: #{tpu_custom_call.1} parent=1 // pred_fallthru
      _
    // Predicated region
    $region46: #{tpu_custom_call.1} parent=1 // pred_check
      _
    $region47: #{tpu_custom_call.1} parent=1 // pred_check_branch
      %73 = sbr.rel (0) target = $region49
    $region48: #{tpu_custom_call.1} parent=1 // pred_region
      %74 = dma.done [#allocation7], 1024
    $region49: #{tpu_custom_call.1} parent=1 // pred_fallthru
      _
    // Predicated region
    $region50: #{tpu_custom_call.1} parent=1 // pred_check
      _
    $region51: #{tpu_custom_call.1} parent=1 // pred_check_branch
      %76 = sbr.rel (0) target = $region53
    $region52: #{tpu_custom_call.1} parent=1 // pred_region
      %77 = dma.done [#allocation5], 256
    $region53: #{tpu_custom_call.1} parent=1 // pred_fallthru
      _
    %78 = sfence
    %v79 = vld [vmem:[%s0] sm:$0xff]
    %v80 = vld [vmem:[%s0 + $0x8] sm:$0xff]
    %v81 = vld [vmem:[%s0 + $0x10] sm:$0xff]
    %v82 = vld [vmem:[%s0 + $0x18] sm:$0xff]
    %v83 = vld [vmem:[%s0 + $0x20] sm:$0xff]
    %v84 = vld [vmem:[%s0 + $0x28] sm:$0xff]
    %v85 = vld [vmem:[%s0 + $0x30] sm:$0xff]
    %v86 = vld [vmem:[%s0 + $0x38] sm:$0xff]
    %vm87 = vcmask 523264
    %v88 = vsel %vm87, %v79, 0.0
    %89 = vadd.xlane.f32.xlu0 %v88
    %v90 = vpop.xlane.xlu0 %89
    %v91 = vsel %vm87, %v80, 0.0
    %92 = vadd.xlane.f32.xlu0 %v91
    %v93 = vpop.xlane.xlu0 %92
    %v94 = vsel %vm87, %v81, 0.0
    %95 = vadd.xlane.f32.xlu0 %v94
    %v96 = vpop.xlane.xlu0 %95
    %v97 = vsel %vm87, %v82, 0.0
    %98 = vadd.xlane.f32.xlu0 %v97
    %v99 = vpop.xlane.xlu0 %98
    %v100 = vsel %vm87, %v83, 0.0
    %101 = vadd.xlane.f32.xlu0 %v100
    %v102 = vpop.xlane.xlu0 %101
    %v103 = vsel %vm87, %v84, 0.0
    %104 = vadd.xlane.f32.xlu0 %v103
    %v105 = vpop.xlane.xlu0 %104
    %v106 = vsel %vm87, %v85, 0.0
    %107 = vadd.xlane.f32.xlu0 %v106
    %v108 = vpop.xlane.xlu0 %107
    %v109 = vsel %vm87, %v86, 0.0
    %110 = vadd.xlane.f32.xlu0 %v109
    %v111 = vpop.xlane.xlu0 %110
    %v112 = vrcp.pop 64.0
    %v113 = vmul.f32 %v90, %v112
    %v114 = vmul.f32 %v93, %v112
    %v115 = vmul.f32 %v96, %v112
    %v116 = vmul.f32 %v99, %v112
    %v117 = vmul.f32 %v102, %v112
    %v118 = vmul.f32 %v105, %v112
    %v119 = vmul.f32 %v108, %v112
    %v120 = vmul.f32 %v111, %v112
    %v121 = vsub.f32 %v79, %v113
    %v122 = vsub.f32 %v80, %v114
    %v123 = vsub.f32 %v81, %v115
    %v124 = vsub.f32 %v82, %v116
    %v125 = vsub.f32 %v83, %v117
    %v126 = vsub.f32 %v84, %v118
    %v127 = vsub.f32 %v85, %v119
    %v128 = vsub.f32 %v86, %v120
    %v129 = vmul.f32 %v121, %v121
    %v130 = vmul.f32 %v122, %v122
    %v131 = vmul.f32 %v123, %v123
    %v132 = vmul.f32 %v124, %v124
    %v133 = vmul.f32 %v125, %v125
    %v134 = vmul.f32 %v126, %v126
    %v135 = vmul.f32 %v127, %v127
    %v136 = vmul.f32 %v128, %v128
    %v137 = vsel %vm87, %v129, 0.0
    %138 = vadd.xlane.f32.xlu0 %v137
    %v139 = vpop.xlane.xlu0 %138
    %v140 = vsel %vm87, %v130, 0.0
    %141 = vadd.xlane.f32.xlu0 %v140
    %v142 = vpop.xlane.xlu0 %141
    %v143 = vsel %vm87, %v131, 0.0
    %144 = vadd.xlane.f32.xlu0 %v143
    %v145 = vpop.xlane.xlu0 %144
    %v146 = vsel %vm87, %v132, 0.0
    %147 = vadd.xlane.f32.xlu0 %v146
    %v148 = vpop.xlane.xlu0 %147
    %v149 = vsel %vm87, %v133, 0.0
    %150 = vadd.xlane.f32.xlu0 %v149
    %v151 = vpop.xlane.xlu0 %150
    %v152 = vsel %vm87, %v134, 0.0
    %153 = vadd.xlane.f32.xlu0 %v152
    %v154 = vpop.xlane.xlu0 %153
    %v155 = vsel %vm87, %v135, 0.0
    %156 = vadd.xlane.f32.xlu0 %v155
    %v157 = vpop.xlane.xlu0 %156
    %v158 = vsel %vm87, %v136, 0.0
    %159 = vadd.xlane.f32.xlu0 %v158
    %v160 = vpop.xlane.xlu0 %159
    %v161 = vmul.f32 %v139, %v112
    %v162 = vmul.f32 %v142, %v112
    %v163 = vmul.f32 %v145, %v112
    %v164 = vmul.f32 %v148, %v112
    %v165 = vmul.f32 %v151, %v112
    %v166 = vmul.f32 %v154, %v112
    %v167 = vmul.f32 %v157, %v112
    %v168 = vmul.f32 %v160, %v112
    %v169 = vadd.f32 %v161, 1e-05
    %v170 = vadd.f32 %v162, 1e-05
    %v171 = vadd.f32 %v163, 1e-05
    %v172 = vadd.f32 %v164, 1e-05
    %v173 = vadd.f32 %v165, 1e-05
    %v174 = vadd.f32 %v166, 1e-05
    %v175 = vadd.f32 %v167, 1e-05
    %v176 = vadd.f32 %v168, 1e-05
    %v177 = vrsqrt.pop %v169
    %v178 = vrsqrt.pop %v170
    %v179 = vrsqrt.pop %v171
    %v180 = vrsqrt.pop %v172
    %v181 = vrsqrt.pop %v173
    %v182 = vrsqrt.pop %v174
    %v183 = vrsqrt.pop %v175
    %v184 = vrsqrt.pop %v176
    %v185 = vmul.f32 %v121, %v177
    %v186 = vmul.f32 %v122, %v178
    %v187 = vmul.f32 %v123, %v179
    %v188 = vmul.f32 %v124, %v180
    %v189 = vmul.f32 %v125, %v181
    %v190 = vmul.f32 %v126, %v182
    %v191 = vmul.f32 %v127, %v183
    %v192 = vmul.f32 %v128, %v184
    %v193 = vld [vmem:[%s3] sm:$0x1]
    %v195 = vlaneseq
    %v196 = vshrl.u32 %v195, 7
    %v197 = vsub.s32 0, %v196
    %v198 = vrot.slane %v193, %v197
    %v200 = vmul.f32 %v185, %v198
    %v201 = vmul.f32 %v186, %v198
    %v202 = vmul.f32 %v187, %v198
    %v203 = vmul.f32 %v188, %v198
    %v204 = vmul.f32 %v189, %v198
    %v205 = vmul.f32 %v190, %v198
    %v206 = vmul.f32 %v191, %v198
    %v207 = vmul.f32 %v192, %v198
    %v208 = vld [vmem:[%s4] sm:$0x1]
    %v210 = vlaneseq
    %v211 = vshrl.u32 %v210, 7
    %v212 = vsub.s32 0, %v211
    %v213 = vrot.slane %v208, %v212
    %v215 = vadd.f32 %v200, %v213
    %v216 = vadd.f32 %v201, %v213
    %v217 = vadd.f32 %v202, %v213
    %v218 = vadd.f32 %v203, %v213
    %v219 = vadd.f32 %v204, %v213
    %v220 = vadd.f32 %v205, %v213
    %v221 = vadd.f32 %v206, %v213
    %v222 = vadd.f32 %v207, %v213
    %v223 = vld [vmem:[#allocation2] sm:$0xff]
    %v224 = vld [vmem:[#allocation2 + $0x8] sm:$0xff]
    %v225 = vld [vmem:[#allocation2 + $0x10] sm:$0xff]
    %v226 = vld [vmem:[#allocation2 + $0x18] sm:$0xff]
    %v227 = vld [vmem:[#allocation2 + $0x20] sm:$0xff]
    %v228 = vld [vmem:[#allocation2 + $0x28] sm:$0xff]
    %v229 = vld [vmem:[#allocation2 + $0x30] sm:$0xff]
    %v230 = vld [vmem:[#allocation2 + $0x38] sm:$0xff]
    %v231 = vld [vmem:[#allocation2 + $0x40] sm:$0xff]
    %v232 = vld [vmem:[#allocation2 + $0x48] sm:$0xff]
    %v233 = vld [vmem:[#allocation2 + $0x50] sm:$0xff]
    %v234 = vld [vmem:[#allocation2 + $0x58] sm:$0xff]
    %v235 = vld [vmem:[#allocation2 + $0x60] sm:$0xff]
    %v236 = vld [vmem:[#allocation2 + $0x68] sm:$0xff]
    %v237 = vld [vmem:[#allocation2 + $0x70] sm:$0xff]
    %v238 = vld [vmem:[#allocation2 + $0x78] sm:$0xff]
    %v239 = vld [vmem:[%s6] sm:$0x3]
    %v241 = vlaneseq
    %v242 = vshrl.u32 %v241, 7
    %v243 = vsub.s32 0, %v242
    %v244 = vrot.slane %v239, %v243
    %v245 = vlaneseq
    %v246 = vshrl.u32 %v245, 7
    %v247 = vsub.s32 1, %v246
    %v248 = vrot.slane %v239, %v247
    %v252 = vsel %vm87, %v215, 0
    %v255 = vsel %vm87, %v216, 0
    %v258 = vsel %vm87, %v217, 0
    %v261 = vsel %vm87, %v218, 0
    %v264 = vsel %vm87, %v219, 0
    %v267 = vsel %vm87, %v220, 0
    %v270 = vsel %vm87, %v221, 0
    %v273 = vsel %vm87, %v222, 0
    %275 = vmatprep.subr.mxu0 0.0
    %276 = vmatpush1.msra.mxu0 0.0
    %277 = vmatprep.subr.mxu0 0.0
    %278 = vmatpush1.msra.mxu0 0.0
    %279 = vmatprep.subr.mxu0 0.0
    %280 = vmatpush1.msra.mxu0 0.0
    %281 = vmatprep.subr.mxu0 0.0
    %282 = vmatpush1.msra.mxu0 0.0
    %283 = vmatprep.subr.mxu0 0.0
    %284 = vmatpush1.msra.mxu0 0.0
    %285 = vmatprep.subr.mxu0 0.0
    %286 = vmatpush1.msra.mxu0 0.0
    %287 = vmatprep.subr.mxu0 0.0
    %288 = vmatpush1.msra.mxu0 0.0
    %289 = vmatprep.subr.mxu0 0.0
    %290 = vmatpush1.msra.mxu0 0.0
    %291 = vmatprep.subr.mxu0 %v238
    %292 = vmatpush1.msra.mxu0 %v237
    %293 = vmatprep.subr.mxu0 %v236
    %294 = vmatpush1.msra.mxu0 %v235
    %295 = vmatprep.subr.mxu0 %v234
    %296 = vmatpush1.msra.mxu0 %v233
    %297 = vmatprep.subr.mxu0 %v232
    %298 = vmatpush1.msra.mxu0 %v231
    %299 = vmatprep.subr.mxu0 %v230
    %300 = vmatpush1.msra.mxu0 %v229
    %301 = vmatprep.subr.mxu0 %v228
    %302 = vmatpush1.msra.mxu0 %v227
    %303 = vmatprep.subr.mxu0 %v226
    %304 = vmatpush1.msra.mxu0 %v225
    %305 = vmatprep.subr.mxu0 %v224
    %306 = vmatpush1.msra.mxu0 %v223
    %307 = vmatprep.subr.mxu0 0.0
    %308 = vmatpush2.msra.mxu0 0.0
    %309 = vmatprep.subr.mxu0 0.0
    %310 = vmatpush2.msra.mxu0 0.0
    %311 = vmatprep.subr.mxu0 0.0
    %312 = vmatpush2.msra.mxu0 0.0
    %313 = vmatprep.subr.mxu0 0.0
    %314 = vmatpush2.msra.mxu0 0.0
    %315 = vmatprep.subr.mxu0 0.0
    %316 = vmatpush2.msra.mxu0 0.0
    %317 = vmatprep.subr.mxu0 0.0
    %318 = vmatpush2.msra.mxu0 0.0
    %319 = vmatprep.subr.mxu0 0.0
    %320 = vmatpush2.msra.mxu0 0.0
    %321 = vmatprep.subr.mxu0 0.0
    %322 = vmatpush2.msra.mxu0 0.0
    %323 = vmatprep.subr.mxu0 0.0
    %324 = vmatpush2.msra.mxu0 0.0
    %325 = vmatprep.subr.mxu0 0.0
    %326 = vmatpush2.msra.mxu0 0.0
    %327 = vmatprep.subr.mxu0 0.0
    %328 = vmatpush2.msra.mxu0 0.0
    %329 = vmatprep.subr.mxu0 0.0
    %330 = vmatpush2.msra.mxu0 0.0
    %331 = vmatprep.subr.mxu0 0.0
    %332 = vmatpush2.msra.mxu0 0.0
    %333 = vmatprep.subr.mxu0 0.0
    %334 = vmatpush2.msra.mxu0 0.0
    %335 = vmatprep.subr.mxu0 0.0
    %336 = vmatpush2.msra.mxu0 0.0
    %337 = vmatprep.subr.mxu0 0.0
    %338 = vmatpush2.msra.mxu0 0.0
    %339 = vmatprep.mubr.f32.mxu0 0.0
    %340 = vmatmul.mubr.f32.gmra.mxu0 %v252
    %v341 = vpop.f32.mrf.mxu0
    %v342 = vadd.f32 %v244, %v341
    %v343 = vpop.f32.mrf.mxu0
    %v344 = vadd.f32 %v248, %v343
    %345 = vmatprep.mubr.f32.mxu0 0.0
    %346 = vmatmul.mubr.f32.gmra.mxu0 %v255
    %v347 = vpop.f32.mrf.mxu0
    %v348 = vadd.f32 %v244, %v347
    %v349 = vpop.f32.mrf.mxu0
    %v350 = vadd.f32 %v248, %v349
    %351 = vmatprep.mubr.f32.mxu0 0.0
    %352 = vmatmul.mubr.f32.gmra.mxu0 %v258
    %v353 = vpop.f32.mrf.mxu0
    %v354 = vadd.f32 %v244, %v353
    %v355 = vpop.f32.mrf.mxu0
    %v356 = vadd.f32 %v248, %v355
    %357 = vmatprep.mubr.f32.mxu0 0.0
    %358 = vmatmul.mubr.f32.gmra.mxu0 %v261
    %v359 = vpop.f32.mrf.mxu0
    %v360 = vadd.f32 %v244, %v359
    %v361 = vpop.f32.mrf.mxu0
    %v362 = vadd.f32 %v248, %v361
    %363 = vmatprep.mubr.f32.mxu0 0.0
    %364 = vmatmul.mubr.f32.gmra.mxu0 %v264
    %v365 = vpop.f32.mrf.mxu0
    %v366 = vadd.f32 %v244, %v365
    %v367 = vpop.f32.mrf.mxu0
    %v368 = vadd.f32 %v248, %v367
    %369 = vmatprep.mubr.f32.mxu0 0.0
    %370 = vmatmul.mubr.f32.gmra.mxu0 %v267
    %v371 = vpop.f32.mrf.mxu0
    %v372 = vadd.f32 %v244, %v371
    %v373 = vpop.f32.mrf.mxu0
    %v374 = vadd.f32 %v248, %v373
    %375 = vmatprep.mubr.f32.mxu0 0.0
    %376 = vmatmul.mubr.f32.gmra.mxu0 %v270
    %v377 = vpop.f32.mrf.mxu0
    %v378 = vadd.f32 %v244, %v377
    %v379 = vpop.f32.mrf.mxu0
    %v380 = vadd.f32 %v248, %v379
    %381 = vmatprep.mubr.f32.mxu0 0.0
    %382 = vmatmul.mubr.f32.gmra.mxu0 %v273
    %v383 = vpop.f32.mrf.mxu0
    %v384 = vadd.f32 %v244, %v383
    %v385 = vpop.f32.mrf.mxu0
    %v386 = vadd.f32 %v248, %v385
    %387 = vdwg.mxu0
    %v388 = vld [vmem:[%s1] sm:$0xff]
    %v389 = vld [vmem:[%s1 + $0x8] sm:$0xff]
    %v390 = vld [vmem:[%s1 + $0x10] sm:$0xff]
    %v391 = vld [vmem:[%s1 + $0x18] sm:$0xff]
    %v392 = vld [vmem:[%s1 + $0x20] sm:$0xff]
    %v393 = vld [vmem:[%s1 + $0x28] sm:$0xff]
    %v394 = vld [vmem:[%s1 + $0x30] sm:$0xff]
    %v395 = vld [vmem:[%s1 + $0x38] sm:$0xff]
    %v396 = vld [vmem:[%s2] sm:$0x3]
    %v397 = vld [vmem:[%s2 + $0x2] sm:$0x3]
    %v398 = vld [vmem:[%s2 + $0x4] sm:$0x3]
    %v399 = vld [vmem:[%s2 + $0x6] sm:$0x3]
    %401 = vset.pattern.permute.xlu0 0
    %402 = vperm.xlu0 %401, %v388
    %v403 = vpop.permute.xlu0 %402
    %406 = vset.pattern.permute.xlu0 0
    %407 = vperm.xlu0 %406, %v389
    %v408 = vpop.permute.xlu0 %407
    %411 = vset.pattern.permute.xlu0 0
    %412 = vperm.xlu0 %411, %v390
    %v413 = vpop.permute.xlu0 %412
    %416 = vset.pattern.permute.xlu0 0
    %417 = vperm.xlu0 %416, %v391
    %v418 = vpop.permute.xlu0 %417
    %421 = vset.pattern.permute.xlu0 0
    %422 = vperm.xlu0 %421, %v392
    %v423 = vpop.permute.xlu0 %422
    %426 = vset.pattern.permute.xlu0 0
    %427 = vperm.xlu0 %426, %v393
    %v428 = vpop.permute.xlu0 %427
    %431 = vset.pattern.permute.xlu0 0
    %432 = vperm.xlu0 %431, %v394
    %v433 = vpop.permute.xlu0 %432
    %436 = vset.pattern.permute.xlu0 0
    %437 = vperm.xlu0 %436, %v395
    %v438 = vpop.permute.xlu0 %437
    %v440 = vlaneseq
    %v441 = vshrl.u32 %v440, 7
    %v442 = vsub.s32 0, %v441
    %v443 = vrot.slane %v396, %v442
    %v444 = vlaneseq
    %v445 = vshrl.u32 %v444, 7
    %v446 = vsub.s32 0, %v445
    %v447 = vrot.slane %v397, %v446
    %v448 = vlaneseq
    %v449 = vshrl.u32 %v448, 7
    %v450 = vsub.s32 0, %v449
    %v451 = vrot.slane %v398, %v450
    %v452 = vlaneseq
    %v453 = vshrl.u32 %v452, 7
    %v454 = vsub.s32 0, %v453
    %v455 = vrot.slane %v399, %v454
    %v456 = vsub.f32 %v403, %v443
    %v457 = vsub.f32 %v408, %v443
    %v458 = vsub.f32 %v413, %v447
    %v459 = vsub.f32 %v418, %v447
    %v460 = vsub.f32 %v423, %v451
    %v461 = vsub.f32 %v428, %v451
    %v462 = vsub.f32 %v433, %v455
    %v463 = vsub.f32 %v438, %v455
    %464 = vset.pattern.permute.xlu0 1
    %465 = vperm.xlu0 %464, %v388
    %v466 = vpop.permute.xlu0 %465
    %468 = vset.pattern.permute.xlu0 1
    %469 = vperm.xlu0 %468, %v389
    %v470 = vpop.permute.xlu0 %469
    %472 = vset.pattern.permute.xlu0 1
    %473 = vperm.xlu0 %472, %v390
    %v474 = vpop.permute.xlu0 %473
    %476 = vset.pattern.permute.xlu0 1
    %477 = vperm.xlu0 %476, %v391
    %v478 = vpop.permute.xlu0 %477
    %480 = vset.pattern.permute.xlu0 1
    %481 = vperm.xlu0 %480, %v392
    %v482 = vpop.permute.xlu0 %481
    %484 = vset.pattern.permute.xlu0 1
    %485 = vperm.xlu0 %484, %v393
    %v486 = vpop.permute.xlu0 %485
    %488 = vset.pattern.permute.xlu0 1
    %489 = vperm.xlu0 %488, %v394
    %v490 = vpop.permute.xlu0 %489
    %492 = vset.pattern.permute.xlu0 1
    %493 = vperm.xlu0 %492, %v395
    %v494 = vpop.permute.xlu0 %493
    %v496 = vlaneseq
    %v497 = vshrl.u32 %v496, 7
    %v498 = vsub.s32 1, %v497
    %v499 = vrot.slane %v396, %v498
    %v500 = vlaneseq
    %v501 = vshrl.u32 %v500, 7
    %v502 = vsub.s32 1, %v501
    %v503 = vrot.slane %v397, %v502
    %v504 = vlaneseq
    %v505 = vshrl.u32 %v504, 7
    %v506 = vsub.s32 1, %v505
    %v507 = vrot.slane %v398, %v506
    %v508 = vlaneseq
    %v509 = vshrl.u32 %v508, 7
    %v510 = vsub.s32 1, %v509
    %v511 = vrot.slane %v399, %v510
    %v512 = vsub.f32 %v466, %v499
    %v513 = vsub.f32 %v470, %v499
    %v514 = vsub.f32 %v474, %v503
    %v515 = vsub.f32 %v478, %v503
    %v516 = vsub.f32 %v482, %v507
    %v517 = vsub.f32 %v486, %v507
    %v518 = vsub.f32 %v490, %v511
    %v519 = vsub.f32 %v494, %v511
    %v520 = vand.u32 2147483647, %v456
    %v521 = vand.u32 2147483647, %v457
    %v522 = vand.u32 2147483647, %v458
    %v523 = vand.u32 2147483647, %v459
    %v524 = vand.u32 2147483647, %v460
    %v525 = vand.u32 2147483647, %v461
    %v526 = vand.u32 2147483647, %v462
    %v527 = vand.u32 2147483647, %v463
    %vm528 = vcmp.le.f32.partialorder %v520, 3.8
    %vm529 = vcmp.le.f32.partialorder %v521, 3.8
    %vm530 = vcmp.le.f32.partialorder %v522, 3.8
    %vm531 = vcmp.le.f32.partialorder %v523, 3.8
    %vm532 = vcmp.le.f32.partialorder %v524, 3.8
    %vm533 = vcmp.le.f32.partialorder %v525, 3.8
    %vm534 = vcmp.le.f32.partialorder %v526, 3.8
    %vm535 = vcmp.le.f32.partialorder %v527, 3.8
    %vm536 = vcmp.gt.f32.partialorder %v456, 0.0
    %vm537 = vcmp.gt.f32.partialorder %v457, 0.0
    %vm538 = vcmp.gt.f32.partialorder %v458, 0.0
    %vm539 = vcmp.gt.f32.partialorder %v459, 0.0
    %vm540 = vcmp.gt.f32.partialorder %v460, 0.0
    %vm541 = vcmp.gt.f32.partialorder %v461, 0.0
    %vm542 = vcmp.gt.f32.partialorder %v462, 0.0
    %vm543 = vcmp.gt.f32.partialorder %v463, 0.0
    %vm544 = vcmp.lt.f32.partialorder %v456, 0.0
    %vm545 = vcmp.lt.f32.partialorder %v457, 0.0
    %vm546 = vcmp.lt.f32.partialorder %v458, 0.0
    %vm547 = vcmp.lt.f32.partialorder %v459, 0.0
    %vm548 = vcmp.lt.f32.partialorder %v460, 0.0
    %vm549 = vcmp.lt.f32.partialorder %v461, 0.0
    %vm550 = vcmp.lt.f32.partialorder %v462, 0.0
    %vm551 = vcmp.lt.f32.partialorder %v463, 0.0
    %v552 = vsel %vm544, -1.0, 0.0
    %v553 = vsel %vm545, -1.0, 0.0
    %v554 = vsel %vm546, -1.0, 0.0
    %v555 = vsel %vm547, -1.0, 0.0
    %v556 = vsel %vm548, -1.0, 0.0
    %v557 = vsel %vm549, -1.0, 0.0
    %v558 = vsel %vm550, -1.0, 0.0
    %v559 = vsel %vm551, -1.0, 0.0
    %v560 = vsel %vm536, 1.0, %v552
    %v561 = vsel %vm537, 1.0, %v553
    %v562 = vsel %vm538, 1.0, %v554
    %v563 = vsel %vm539, 1.0, %v555
    %v564 = vsel %vm540, 1.0, %v556
    %v565 = vsel %vm541, 1.0, %v557
    %v566 = vsel %vm542, 1.0, %v558
    %v567 = vsel %vm543, 1.0, %v559
    %v568 = vmax.f32 %v520, 1.9
    %v569 = vmax.f32 %v521, 1.9
    %v570 = vmax.f32 %v522, 1.9
    %v571 = vmax.f32 %v523, 1.9
    %v572 = vmax.f32 %v524, 1.9
    %v573 = vmax.f32 %v525, 1.9
    %v574 = vmax.f32 %v526, 1.9
    %v575 = vmax.f32 %v527, 1.9
    %v576 = vrcp.pop 1.9
    %v577 = vmul.f32 %v568, %v576
    %v578 = vmul.f32 %v569, %v576
    %v579 = vmul.f32 %v570, %v576
    %v580 = vmul.f32 %v571, %v576
    %v581 = vmul.f32 %v572, %v576
    %v582 = vmul.f32 %v573, %v576
    %v583 = vmul.f32 %v574, %v576
    %v584 = vmul.f32 %v575, %v576
    %v585 = vlog2.pop %v577
    %v586 = vmul.f32 %v585, 0.6931472
    %v587 = vlog2.pop %v578
    %v588 = vmul.f32 %v587, 0.6931472
    %v589 = vlog2.pop %v579
    %v590 = vmul.f32 %v589, 0.6931472
    %v591 = vlog2.pop %v580
    %v592 = vmul.f32 %v591, 0.6931472
    %v593 = vlog2.pop %v581
    %v594 = vmul.f32 %v593, 0.6931472
    %v595 = vlog2.pop %v582
    %v596 = vmul.f32 %v595, 0.6931472
    %v597 = vlog2.pop %v583
    %v598 = vmul.f32 %v597, 0.6931472
    %v599 = vlog2.pop %v584
    %v600 = vmul.f32 %v599, 0.6931472
    %v601 = vrcp.pop 1.7917595
    %v602 = vmul.f32 %v586, %v601
    %v603 = vmul.f32 %v588, %v601
    %v604 = vmul.f32 %v590, %v601
    %v605 = vmul.f32 %v592, %v601
    %v606 = vmul.f32 %v594, %v601
    %v607 = vmul.f32 %v596, %v601
    %v608 = vmul.f32 %v598, %v601
    %v609 = vmul.f32 %v600, %v601
    %v610 = vmul.f32 %v602, 3.8
    %v611 = vmul.f32 %v603, 3.8
    %v612 = vmul.f32 %v604, 3.8
    %v613 = vmul.f32 %v605, 3.8
    %v614 = vmul.f32 %v606, 3.8
    %v615 = vmul.f32 %v607, 3.8
    %v616 = vmul.f32 %v608, 3.8
    %v617 = vmul.f32 %v609, 3.8
    %v618 = vround.ne.pseudo %v610
    %v619 = vround.ne.pseudo %v611
    %v620 = vround.ne.pseudo %v612
    %v621 = vround.ne.pseudo %v613
    %v622 = vround.ne.pseudo %v614
    %v623 = vround.ne.pseudo %v615
    %v624 = vround.ne.pseudo %v616
    %v625 = vround.ne.pseudo %v617
    %v626 = vmin.f32 %v618, 4.0
    %v627 = vmin.f32 %v619, 4.0
    %v628 = vmin.f32 %v620, 4.0
    %v629 = vmin.f32 %v621, 4.0
    %v630 = vmin.f32 %v622, 4.0
    %v631 = vmin.f32 %v623, 4.0
    %v632 = vmin.f32 %v624, 4.0
    %v633 = vmin.f32 %v625, 4.0
    %v634 = vmul.f32 %v560, %v626
    %v635 = vmul.f32 %v561, %v627
    %v636 = vmul.f32 %v562, %v628
    %v637 = vmul.f32 %v563, %v629
    %v638 = vmul.f32 %v564, %v630
    %v639 = vmul.f32 %v565, %v631
    %v640 = vmul.f32 %v566, %v632
    %v641 = vmul.f32 %v567, %v633
    %v642 = vsel %vm528, %v560, %v634
    %v643 = vsel %vm529, %v561, %v635
    %v644 = vsel %vm530, %v562, %v636
    %v645 = vsel %vm531, %v563, %v637
    %v646 = vsel %vm532, %v564, %v638
    %v647 = vsel %vm533, %v565, %v639
    %v648 = vsel %vm534, %v566, %v640
    %v649 = vsel %vm535, %v567, %v641
    %v650 = vand.u32 2147483647, %v642
    %v651 = vand.u32 2147483647, %v643
    %v652 = vand.u32 2147483647, %v644
    %v653 = vand.u32 2147483647, %v645
    %v654 = vand.u32 2147483647, %v646
    %v655 = vand.u32 2147483647, %v647
    %v656 = vand.u32 2147483647, %v648
    %v657 = vand.u32 2147483647, %v649
    %v658 = vand.u32 2147483647, %v512
    %v659 = vand.u32 2147483647, %v513
    %v660 = vand.u32 2147483647, %v514
    %v661 = vand.u32 2147483647, %v515
    %v662 = vand.u32 2147483647, %v516
    %v663 = vand.u32 2147483647, %v517
    %v664 = vand.u32 2147483647, %v518
    %v665 = vand.u32 2147483647, %v519
    %vm666 = vcmp.le.f32.partialorder %v658, 3.8
    %vm667 = vcmp.le.f32.partialorder %v659, 3.8
    %vm668 = vcmp.le.f32.partialorder %v660, 3.8
    %vm669 = vcmp.le.f32.partialorder %v661, 3.8
    %vm670 = vcmp.le.f32.partialorder %v662, 3.8
    %vm671 = vcmp.le.f32.partialorder %v663, 3.8
    %vm672 = vcmp.le.f32.partialorder %v664, 3.8
    %vm673 = vcmp.le.f32.partialorder %v665, 3.8
    %vm674 = vcmp.gt.f32.partialorder %v512, 0.0
    %vm675 = vcmp.gt.f32.partialorder %v513, 0.0
    %vm676 = vcmp.gt.f32.partialorder %v514, 0.0
    %vm677 = vcmp.gt.f32.partialorder %v515, 0.0
    %vm678 = vcmp.gt.f32.partialorder %v516, 0.0
    %vm679 = vcmp.gt.f32.partialorder %v517, 0.0
    %vm680 = vcmp.gt.f32.partialorder %v518, 0.0
    %vm681 = vcmp.gt.f32.partialorder %v519, 0.0
    %vm682 = vcmp.lt.f32.partialorder %v512, 0.0
    %vm683 = vcmp.lt.f32.partialorder %v513, 0.0
    %vm684 = vcmp.lt.f32.partialorder %v514, 0.0
    %vm685 = vcmp.lt.f32.partialorder %v515, 0.0
    %vm686 = vcmp.lt.f32.partialorder %v516, 0.0
    %vm687 = vcmp.lt.f32.partialorder %v517, 0.0
    %vm688 = vcmp.lt.f32.partialorder %v518, 0.0
    %vm689 = vcmp.lt.f32.partialorder %v519, 0.0
    %v690 = vsel %vm682, -1.0, 0.0
    %v691 = vsel %vm683, -1.0, 0.0
    %v692 = vsel %vm684, -1.0, 0.0
    %v693 = vsel %vm685, -1.0, 0.0
    %v694 = vsel %vm686, -1.0, 0.0
    %v695 = vsel %vm687, -1.0, 0.0
    %v696 = vsel %vm688, -1.0, 0.0
    %v697 = vsel %vm689, -1.0, 0.0
    %v698 = vsel %vm674, 1.0, %v690
    %v699 = vsel %vm675, 1.0, %v691
    %v700 = vsel %vm676, 1.0, %v692
    %v701 = vsel %vm677, 1.0, %v693
    %v702 = vsel %vm678, 1.0, %v694
    %v703 = vsel %vm679, 1.0, %v695
    %v704 = vsel %vm680, 1.0, %v696
    %v705 = vsel %vm681, 1.0, %v697
    %v706 = vmax.f32 %v658, 1.9
    %v707 = vmax.f32 %v659, 1.9
    %v708 = vmax.f32 %v660, 1.9
    %v709 = vmax.f32 %v661, 1.9
    %v710 = vmax.f32 %v662, 1.9
    %v711 = vmax.f32 %v663, 1.9
    %v712 = vmax.f32 %v664, 1.9
    %v713 = vmax.f32 %v665, 1.9
    %v714 = vmul.f32 %v706, %v576
    %v715 = vmul.f32 %v707, %v576
    %v716 = vmul.f32 %v708, %v576
    %v717 = vmul.f32 %v709, %v576
    %v718 = vmul.f32 %v710, %v576
    %v719 = vmul.f32 %v711, %v576
    %v720 = vmul.f32 %v712, %v576
    %v721 = vmul.f32 %v713, %v576
    %v722 = vlog2.pop %v714
    %v723 = vmul.f32 %v722, 0.6931472
    %v724 = vlog2.pop %v715
    %v725 = vmul.f32 %v724, 0.6931472
    %v726 = vlog2.pop %v716
    %v727 = vmul.f32 %v726, 0.6931472
    %v728 = vlog2.pop %v717
    %v729 = vmul.f32 %v728, 0.6931472
    %v730 = vlog2.pop %v718
    %v731 = vmul.f32 %v730, 0.6931472
    %v732 = vlog2.pop %v719
    %v733 = vmul.f32 %v732, 0.6931472
    %v734 = vlog2.pop %v720
    %v735 = vmul.f32 %v734, 0.6931472
    %v736 = vlog2.pop %v721
    %v737 = vmul.f32 %v736, 0.6931472
    %v738 = vmul.f32 %v723, %v601
    %v739 = vmul.f32 %v725, %v601
    %v740 = vmul.f32 %v727, %v601
    %v741 = vmul.f32 %v729, %v601
    %v742 = vmul.f32 %v731, %v601
    %v743 = vmul.f32 %v733, %v601
    %v744 = vmul.f32 %v735, %v601
    %v745 = vmul.f32 %v737, %v601
    %v746 = vmul.f32 %v738, 3.8
    %v747 = vmul.f32 %v739, 3.8
    %v748 = vmul.f32 %v740, 3.8
    %v749 = vmul.f32 %v741, 3.8
    %v750 = vmul.f32 %v742, 3.8
    %v751 = vmul.f32 %v743, 3.8
    %v752 = vmul.f32 %v744, 3.8
    %v753 = vmul.f32 %v745, 3.8
    %v754 = vround.ne.pseudo %v746
    %v755 = vround.ne.pseudo %v747
    %v756 = vround.ne.pseudo %v748
    %v757 = vround.ne.pseudo %v749
    %v758 = vround.ne.pseudo %v750
    %v759 = vround.ne.pseudo %v751
    %v760 = vround.ne.pseudo %v752
    %v761 = vround.ne.pseudo %v753
    %v762 = vmin.f32 %v754, 4.0
    %v763 = vmin.f32 %v755, 4.0
    %v764 = vmin.f32 %v756, 4.0
    %v765 = vmin.f32 %v757, 4.0
    %v766 = vmin.f32 %v758, 4.0
    %v767 = vmin.f32 %v759, 4.0
    %v768 = vmin.f32 %v760, 4.0
    %v769 = vmin.f32 %v761, 4.0
    %v770 = vmul.f32 %v698, %v762
    %v771 = vmul.f32 %v699, %v763
    %v772 = vmul.f32 %v700, %v764
    %v773 = vmul.f32 %v701, %v765
    %v774 = vmul.f32 %v702, %v766
    %v775 = vmul.f32 %v703, %v767
    %v776 = vmul.f32 %v704, %v768
    %v777 = vmul.f32 %v705, %v769
    %v778 = vsel %vm666, %v698, %v770
    %v779 = vsel %vm667, %v699, %v771
    %v780 = vsel %vm668, %v700, %v772
    %v781 = vsel %vm669, %v701, %v773
    %v782 = vsel %vm670, %v702, %v774
    %v783 = vsel %vm671, %v703, %v775
    %v784 = vsel %vm672, %v704, %v776
    %v785 = vsel %vm673, %v705, %v777
    %v786 = vand.u32 2147483647, %v778
    %v787 = vand.u32 2147483647, %v779
    %v788 = vand.u32 2147483647, %v780
    %v789 = vand.u32 2147483647, %v781
    %v790 = vand.u32 2147483647, %v782
    %v791 = vand.u32 2147483647, %v783
    %v792 = vand.u32 2147483647, %v784
    %v793 = vand.u32 2147483647, %v785
    %v794 = vadd.f32 %v650, %v786
    %v795 = vadd.f32 %v651, %v787
    %v796 = vadd.f32 %v652, %v788
    %v797 = vadd.f32 %v653, %v789
    %v798 = vadd.f32 %v654, %v790
    %v799 = vadd.f32 %v655, %v791
    %v800 = vadd.f32 %v656, %v792
    %v801 = vadd.f32 %v657, %v793
    %v802 = vcvt.f32.s32.to.zero.pseudo %v794
    %v803 = vcvt.f32.s32.to.zero.pseudo %v795
    %v804 = vcvt.f32.s32.to.zero.pseudo %v796
    %v805 = vcvt.f32.s32.to.zero.pseudo %v797
    %v806 = vcvt.f32.s32.to.zero.pseudo %v798
    %v807 = vcvt.f32.s32.to.zero.pseudo %v799
    %v808 = vcvt.f32.s32.to.zero.pseudo %v800
    %v809 = vcvt.f32.s32.to.zero.pseudo %v801
    %vm810 = vcmp.eq.s32.totalorder %v802, 0
    %vm811 = vcmp.eq.s32.totalorder %v803, 0
    %vm812 = vcmp.eq.s32.totalorder %v804, 0
    %vm813 = vcmp.eq.s32.totalorder %v805, 0
    %vm814 = vcmp.eq.s32.totalorder %v806, 0
    %vm815 = vcmp.eq.s32.totalorder %v807, 0
    %vm816 = vcmp.eq.s32.totalorder %v808, 0
    %vm817 = vcmp.eq.s32.totalorder %v809, 0
    %vm818 = vcmp.eq.s32.totalorder %v802, 1
    %vm819 = vcmp.eq.s32.totalorder %v803, 1
    %vm820 = vcmp.eq.s32.totalorder %v804, 1
    %vm821 = vcmp.eq.s32.totalorder %v805, 1
    %vm822 = vcmp.eq.s32.totalorder %v806, 1
    %vm823 = vcmp.eq.s32.totalorder %v807, 1
    %vm824 = vcmp.eq.s32.totalorder %v808, 1
    %vm825 = vcmp.eq.s32.totalorder %v809, 1
    %vm826 = vcmp.eq.s32.totalorder %v802, 2
    %vm827 = vcmp.eq.s32.totalorder %v803, 2
    %vm828 = vcmp.eq.s32.totalorder %v804, 2
    %vm829 = vcmp.eq.s32.totalorder %v805, 2
    %vm830 = vcmp.eq.s32.totalorder %v806, 2
    %vm831 = vcmp.eq.s32.totalorder %v807, 2
    %vm832 = vcmp.eq.s32.totalorder %v808, 2
    %vm833 = vcmp.eq.s32.totalorder %v809, 2
    %vm834 = vcmp.eq.s32.totalorder %v802, 3
    %vm835 = vcmp.eq.s32.totalorder %v803, 3
    %vm836 = vcmp.eq.s32.totalorder %v804, 3
    %vm837 = vcmp.eq.s32.totalorder %v805, 3
    %vm838 = vcmp.eq.s32.totalorder %v806, 3
    %vm839 = vcmp.eq.s32.totalorder %v807, 3
    %vm840 = vcmp.eq.s32.totalorder %v808, 3
    %vm841 = vcmp.eq.s32.totalorder %v809, 3
    %vm842 = vcmp.eq.s32.totalorder %v802, 4
    %vm843 = vcmp.eq.s32.totalorder %v803, 4
    %vm844 = vcmp.eq.s32.totalorder %v804, 4
    %vm845 = vcmp.eq.s32.totalorder %v805, 4
    %vm846 = vcmp.eq.s32.totalorder %v806, 4
    %vm847 = vcmp.eq.s32.totalorder %v807, 4
    %vm848 = vcmp.eq.s32.totalorder %v808, 4
    %vm849 = vcmp.eq.s32.totalorder %v809, 4
    %vm850 = vcmp.eq.s32.totalorder %v802, 5
    %vm851 = vcmp.eq.s32.totalorder %v803, 5
    %vm852 = vcmp.eq.s32.totalorder %v804, 5
    %vm853 = vcmp.eq.s32.totalorder %v805, 5
    %vm854 = vcmp.eq.s32.totalorder %v806, 5
    %vm855 = vcmp.eq.s32.totalorder %v807, 5
    %vm856 = vcmp.eq.s32.totalorder %v808, 5
    %vm857 = vcmp.eq.s32.totalorder %v809, 5
    %vm858 = vcmp.eq.s32.totalorder %v802, 6
    %vm859 = vcmp.eq.s32.totalorder %v803, 6
    %vm860 = vcmp.eq.s32.totalorder %v804, 6
    %vm861 = vcmp.eq.s32.totalorder %v805, 6
    %vm862 = vcmp.eq.s32.totalorder %v806, 6
    %vm863 = vcmp.eq.s32.totalorder %v807, 6
    %vm864 = vcmp.eq.s32.totalorder %v808, 6
    %vm865 = vcmp.eq.s32.totalorder %v809, 6
    %vm866 = vcmp.eq.s32.totalorder %v802, 7
    %vm867 = vcmp.eq.s32.totalorder %v803, 7
    %vm868 = vcmp.eq.s32.totalorder %v804, 7
    %vm869 = vcmp.eq.s32.totalorder %v805, 7
    %vm870 = vcmp.eq.s32.totalorder %v806, 7
    %vm871 = vcmp.eq.s32.totalorder %v807, 7
    %vm872 = vcmp.eq.s32.totalorder %v808, 7
    %vm873 = vcmp.eq.s32.totalorder %v809, 7
    %vm874 = vcmp.eq.s32.totalorder %v802, 8
    %vm875 = vcmp.eq.s32.totalorder %v803, 8
    %vm876 = vcmp.eq.s32.totalorder %v804, 8
    %vm877 = vcmp.eq.s32.totalorder %v805, 8
    %vm878 = vcmp.eq.s32.totalorder %v806, 8
    %vm879 = vcmp.eq.s32.totalorder %v807, 8
    %vm880 = vcmp.eq.s32.totalorder %v808, 8
    %vm881 = vcmp.eq.s32.totalorder %v809, 8
    %s882 = sld [smem:[#allocation8]]
    %v883 = vstv %s882
    %v884 = vsel %vm810, %v883, 0.0
    %v885 = vsel %vm811, %v883, 0.0
    %v886 = vsel %vm812, %v883, 0.0
    %v887 = vsel %vm813, %v883, 0.0
    %v888 = vsel %vm814, %v883, 0.0
    %v889 = vsel %vm815, %v883, 0.0
    %v890 = vsel %vm816, %v883, 0.0
    %v891 = vsel %vm817, %v883, 0.0
    %s892 = sld [smem:[#allocation8 + $0x80]]
    %v893 = vstv %s892
    %v894 = vsel %vm818, %v893, %v884
    %v895 = vsel %vm819, %v893, %v885
    %v896 = vsel %vm820, %v893, %v886
    %v897 = vsel %vm821, %v893, %v887
    %v898 = vsel %vm822, %v893, %v888
    %v899 = vsel %vm823, %v893, %v889
    %v900 = vsel %vm824, %v893, %v890
    %v901 = vsel %vm825, %v893, %v891
    %s902 = sld [smem:[#allocation8 + $0x100]]
    %v903 = vstv %s902
    %v904 = vsel %vm826, %v903, %v894
    %v905 = vsel %vm827, %v903, %v895
    %v906 = vsel %vm828, %v903, %v896
    %v907 = vsel %vm829, %v903, %v897
    %v908 = vsel %vm830, %v903, %v898
    %v909 = vsel %vm831, %v903, %v899
    %v910 = vsel %vm832, %v903, %v900
    %v911 = vsel %vm833, %v903, %v901
    %s912 = sld [smem:[#allocation8 + $0x180]]
    %v913 = vstv %s912
    %v914 = vsel %vm834, %v913, %v904
    %v915 = vsel %vm835, %v913, %v905
    %v916 = vsel %vm836, %v913, %v906
    %v917 = vsel %vm837, %v913, %v907
    %v918 = vsel %vm838, %v913, %v908
    %v919 = vsel %vm839, %v913, %v909
    %v920 = vsel %vm840, %v913, %v910
    %v921 = vsel %vm841, %v913, %v911
    %s922 = sld [smem:[#allocation8 + $0x200]]
    %v923 = vstv %s922
    %v924 = vsel %vm842, %v923, %v914
    %v925 = vsel %vm843, %v923, %v915
    %v926 = vsel %vm844, %v923, %v916
    %v927 = vsel %vm845, %v923, %v917
    %v928 = vsel %vm846, %v923, %v918
    %v929 = vsel %vm847, %v923, %v919
    %v930 = vsel %vm848, %v923, %v920
    %v931 = vsel %vm849, %v923, %v921
    %s932 = sld [smem:[#allocation8 + $0x280]]
    %v933 = vstv %s932
    %v934 = vsel %vm850, %v933, %v924
    %v935 = vsel %vm851, %v933, %v925
    %v936 = vsel %vm852, %v933, %v926
    %v937 = vsel %vm853, %v933, %v927
    %v938 = vsel %vm854, %v933, %v928
    %v939 = vsel %vm855, %v933, %v929
    %v940 = vsel %vm856, %v933, %v930
    %v941 = vsel %vm857, %v933, %v931
    %s942 = sld [smem:[#allocation8 + $0x300]]
    %v943 = vstv %s942
    %v944 = vsel %vm858, %v943, %v934
    %v945 = vsel %vm859, %v943, %v935
    %v946 = vsel %vm860, %v943, %v936
    %v947 = vsel %vm861, %v943, %v937
    %v948 = vsel %vm862, %v943, %v938
    %v949 = vsel %vm863, %v943, %v939
    %v950 = vsel %vm864, %v943, %v940
    %v951 = vsel %vm865, %v943, %v941
    %s952 = sld [smem:[#allocation8 + $0x380]]
    %v953 = vstv %s952
    %v954 = vsel %vm866, %v953, %v944
    %v955 = vsel %vm867, %v953, %v945
    %v956 = vsel %vm868, %v953, %v946
    %v957 = vsel %vm869, %v953, %v947
    %v958 = vsel %vm870, %v953, %v948
    %v959 = vsel %vm871, %v953, %v949
    %v960 = vsel %vm872, %v953, %v950
    %v961 = vsel %vm873, %v953, %v951
    %s962 = sld [smem:[#allocation8 + $0x400]]
    %v963 = vstv %s962
    %v964 = vsel %vm874, %v963, %v954
    %v965 = vsel %vm875, %v963, %v955
    %v966 = vsel %vm876, %v963, %v956
    %v967 = vsel %vm877, %v963, %v957
    %v968 = vsel %vm878, %v963, %v958
    %v969 = vsel %vm879, %v963, %v959
    %v970 = vsel %vm880, %v963, %v960
    %v971 = vsel %vm881, %v963, %v961
    %974 = vrot.lane.b32.xlu0 %v342, 64
    %v975 = vpop.permute.xlu0 %974
    %976 = vrot.lane.b32.xlu0 %v348, 64
    %v977 = vpop.permute.xlu0 %976
    %vm978 = vcmask 64512
    %v979 = vsel %vm978, %v342, 0
    %v981 = vsel %vm978, %v348, 0
    %v983 = vsel %vm978, %v975, 0
    %v985 = vsel %vm978, %v977, 0
    %987 = vmatprep.subr.mxu0 0.0
    %988 = vmatpush1.xpose.msra.mxu0 0.0
    %989 = vmatprep.subr.mxu0 0.0
    %990 = vmatpush1.xpose.msra.mxu0 0.0
    %991 = vmatprep.subr.mxu0 0.0
    %992 = vmatpush1.xpose.msra.mxu0 0.0
    %993 = vmatprep.subr.mxu0 0.0
    %994 = vmatpush1.xpose.msra.mxu0 0.0
    %995 = vmatprep.subr.mxu0 0.0
    %996 = vmatpush1.xpose.msra.mxu0 0.0
    %997 = vmatprep.subr.mxu0 0.0
    %998 = vmatpush1.xpose.msra.mxu0 0.0
    %999 = vmatprep.subr.mxu0 0.0
    %1000 = vmatpush1.xpose.msra.mxu0 0.0
    %1001 = vmatprep.subr.mxu0 0.0
    %1002 = vmatpush1.xpose.msra.mxu0 0.0
    %1003 = vmatprep.subr.mxu0 0.0
    %1004 = vmatpush1.xpose.msra.mxu0 0.0
    %1005 = vmatprep.subr.mxu0 0.0
    %1006 = vmatpush1.xpose.msra.mxu0 0.0
    %1007 = vmatprep.subr.mxu0 0.0
    %1008 = vmatpush1.xpose.msra.mxu0 0.0
    %1009 = vmatprep.subr.mxu0 0.0
    %1010 = vmatpush1.xpose.msra.mxu0 0.0
    %1011 = vmatprep.subr.mxu0 0.0
    %1012 = vmatpush1.xpose.msra.mxu0 0.0
    %1013 = vmatprep.subr.mxu0 0.0
    %1014 = vmatpush1.xpose.msra.mxu0 0.0
    %1015 = vmatprep.subr.mxu0 0.0
    %1016 = vmatpush1.xpose.msra.mxu0 %v985
    %1017 = vmatprep.subr.mxu0 0.0
    %1018 = vmatpush1.xpose.msra.mxu0 %v983
    %1019 = vmatprep.subr.mxu0 0.0
    %1020 = vmatpush2.xpose.msra.mxu0 0.0
    %1021 = vmatprep.subr.mxu0 0.0
    %1022 = vmatpush2.xpose.msra.mxu0 0.0
    %1023 = vmatprep.subr.mxu0 0.0
    %1024 = vmatpush2.xpose.msra.mxu0 0.0
    %1025 = vmatprep.subr.mxu0 0.0
    %1026 = vmatpush2.xpose.msra.mxu0 0.0
    %1027 = vmatprep.subr.mxu0 0.0
    %1028 = vmatpush2.xpose.msra.mxu0 0.0
    %1029 = vmatprep.subr.mxu0 0.0
    %1030 = vmatpush2.xpose.msra.mxu0 0.0
    %1031 = vmatprep.subr.mxu0 0.0
    %1032 = vmatpush2.xpose.msra.mxu0 0.0
    %1033 = vmatprep.subr.mxu0 0.0
    %1034 = vmatpush2.xpose.msra.mxu0 0.0
    %1035 = vmatprep.subr.mxu0 0.0
    %1036 = vmatpush2.xpose.msra.mxu0 0.0
    %1037 = vmatprep.subr.mxu0 0.0
    %1038 = vmatpush2.xpose.msra.mxu0 0.0
    %1039 = vmatprep.subr.mxu0 0.0
    %1040 = vmatpush2.xpose.msra.mxu0 0.0
    %1041 = vmatprep.subr.mxu0 0.0
    %1042 = vmatpush2.xpose.msra.mxu0 0.0
    %1043 = vmatprep.subr.mxu0 0.0
    %1044 = vmatpush2.xpose.msra.mxu0 0.0
    %1045 = vmatprep.subr.mxu0 0.0
    %1046 = vmatpush2.xpose.msra.mxu0 0.0
    %1047 = vmatprep.subr.mxu0 0.0
    %1048 = vmatpush2.xpose.msra.mxu0 0.0
    %1049 = vmatprep.subr.mxu0 0.0
    %1050 = vmatpush2.xpose.msra.mxu0 0.0
    %1051 = vmatprep.mubr.f32.mxu0 0.0
    %1052 = vmatmul.mubr.f32.gmra.mxu0 %v979
    %v1053 = vpop.f32.mrf.mxu0
    %v1054 = vadd.f32 %v964, %v1053
    %v1055 = vpop.f32.mrf.mxu0
    %1056 = vmatprep.mubr.f32.mxu0 0.0
    %1057 = vmatmul.mubr.f32.gmra.mxu0 %v981
    %v1058 = vpop.f32.mrf.mxu0
    %v1059 = vadd.f32 %v965, %v1058
    %v1060 = vpop.f32.mrf.mxu0
    %1061 = vdwg.mxu0
    %1064 = vrot.lane.b32.xlu0 %v354, 64
    %v1065 = vpop.permute.xlu0 %1064
    %1066 = vrot.lane.b32.xlu0 %v360, 64
    %v1067 = vpop.permute.xlu0 %1066
    %v1068 = vsel %vm978, %v354, 0
    %v1070 = vsel %vm978, %v360, 0
    %v1072 = vsel %vm978, %v1065, 0
    %v1074 = vsel %vm978, %v1067, 0
    %1076 = vmatprep.subr.mxu0 0.0
    %1077 = vmatpush1.xpose.msra.mxu0 0.0
    %1078 = vmatprep.subr.mxu0 0.0
    %1079 = vmatpush1.xpose.msra.mxu0 0.0
    %1080 = vmatprep.subr.mxu0 0.0
    %1081 = vmatpush1.xpose.msra.mxu0 0.0
    %1082 = vmatprep.subr.mxu0 0.0
    %1083 = vmatpush1.xpose.msra.mxu0 0.0
    %1084 = vmatprep.subr.mxu0 0.0
    %1085 = vmatpush1.xpose.msra.mxu0 0.0
    %1086 = vmatprep.subr.mxu0 0.0
    %1087 = vmatpush1.xpose.msra.mxu0 0.0
    %1088 = vmatprep.subr.mxu0 0.0
    %1089 = vmatpush1.xpose.msra.mxu0 0.0
    %1090 = vmatprep.subr.mxu0 0.0
    %1091 = vmatpush1.xpose.msra.mxu0 0.0
    %1092 = vmatprep.subr.mxu0 0.0
    %1093 = vmatpush1.xpose.msra.mxu0 0.0
    %1094 = vmatprep.subr.mxu0 0.0
    %1095 = vmatpush1.xpose.msra.mxu0 0.0
    %1096 = vmatprep.subr.mxu0 0.0
    %1097 = vmatpush1.xpose.msra.mxu0 0.0
    %1098 = vmatprep.subr.mxu0 0.0
    %1099 = vmatpush1.xpose.msra.mxu0 0.0
    %1100 = vmatprep.subr.mxu0 0.0
    %1101 = vmatpush1.xpose.msra.mxu0 0.0
    %1102 = vmatprep.subr.mxu0 0.0
    %1103 = vmatpush1.xpose.msra.mxu0 0.0
    %1104 = vmatprep.subr.mxu0 0.0
    %1105 = vmatpush1.xpose.msra.mxu0 %v1074
    %1106 = vmatprep.subr.mxu0 0.0
    %1107 = vmatpush1.xpose.msra.mxu0 %v1072
    %1108 = vmatprep.subr.mxu0 0.0
    %1109 = vmatpush2.xpose.msra.mxu0 0.0
    %1110 = vmatprep.subr.mxu0 0.0
    %1111 = vmatpush2.xpose.msra.mxu0 0.0
    %1112 = vmatprep.subr.mxu0 0.0
    %1113 = vmatpush2.xpose.msra.mxu0 0.0
    %1114 = vmatprep.subr.mxu0 0.0
    %1115 = vmatpush2.xpose.msra.mxu0 0.0
    %1116 = vmatprep.subr.mxu0 0.0
    %1117 = vmatpush2.xpose.msra.mxu0 0.0
    %1118 = vmatprep.subr.mxu0 0.0
    %1119 = vmatpush2.xpose.msra.mxu0 0.0
    %1120 = vmatprep.subr.mxu0 0.0
    %1121 = vmatpush2.xpose.msra.mxu0 0.0
    %1122 = vmatprep.subr.mxu0 0.0
    %1123 = vmatpush2.xpose.msra.mxu0 0.0
    %1124 = vmatprep.subr.mxu0 0.0
    %1125 = vmatpush2.xpose.msra.mxu0 0.0
    %1126 = vmatprep.subr.mxu0 0.0
    %1127 = vmatpush2.xpose.msra.mxu0 0.0
    %1128 = vmatprep.subr.mxu0 0.0
    %1129 = vmatpush2.xpose.msra.mxu0 0.0
    %1130 = vmatprep.subr.mxu0 0.0
    %1131 = vmatpush2.xpose.msra.mxu0 0.0
    %1132 = vmatprep.subr.mxu0 0.0
    %1133 = vmatpush2.xpose.msra.mxu0 0.0
    %1134 = vmatprep.subr.mxu0 0.0
    %1135 = vmatpush2.xpose.msra.mxu0 0.0
    %1136 = vmatprep.subr.mxu0 0.0
    %1137 = vmatpush2.xpose.msra.mxu0 0.0
    %1138 = vmatprep.subr.mxu0 0.0
    %1139 = vmatpush2.xpose.msra.mxu0 0.0
    %1140 = vmatprep.mubr.f32.mxu0 0.0
    %1141 = vmatmul.mubr.f32.gmra.mxu0 %v1068
    %v1142 = vpop.f32.mrf.mxu0
    %v1143 = vadd.f32 %v966, %v1142
    %v1144 = vpop.f32.mrf.mxu0
    %1145 = vmatprep.mubr.f32.mxu0 0.0
    %1146 = vmatmul.mubr.f32.gmra.mxu0 %v1070
    %v1147 = vpop.f32.mrf.mxu0
    %v1148 = vadd.f32 %v967, %v1147
    %v1149 = vpop.f32.mrf.mxu0
    %1150 = vdwg.mxu0
    %1153 = vrot.lane.b32.xlu0 %v366, 64
    %v1154 = vpop.permute.xlu0 %1153
    %1155 = vrot.lane.b32.xlu0 %v372, 64
    %v1156 = vpop.permute.xlu0 %1155
    %v1157 = vsel %vm978, %v366, 0
    %v1159 = vsel %vm978, %v372, 0
    %v1161 = vsel %vm978, %v1154, 0
    %v1163 = vsel %vm978, %v1156, 0
    %1165 = vmatprep.subr.mxu0 0.0
    %1166 = vmatpush1.xpose.msra.mxu0 0.0
    %1167 = vmatprep.subr.mxu0 0.0
    %1168 = vmatpush1.xpose.msra.mxu0 0.0
    %1169 = vmatprep.subr.mxu0 0.0
    %1170 = vmatpush1.xpose.msra.mxu0 0.0
    %1171 = vmatprep.subr.mxu0 0.0
    %1172 = vmatpush1.xpose.msra.mxu0 0.0
    %1173 = vmatprep.subr.mxu0 0.0
    %1174 = vmatpush1.xpose.msra.mxu0 0.0
    %1175 = vmatprep.subr.mxu0 0.0
    %1176 = vmatpush1.xpose.msra.mxu0 0.0
    %1177 = vmatprep.subr.mxu0 0.0
    %1178 = vmatpush1.xpose.msra.mxu0 0.0
    %1179 = vmatprep.subr.mxu0 0.0
    %1180 = vmatpush1.xpose.msra.mxu0 0.0
    %1181 = vmatprep.subr.mxu0 0.0
    %1182 = vmatpush1.xpose.msra.mxu0 0.0
    %1183 = vmatprep.subr.mxu0 0.0
    %1184 = vmatpush1.xpose.msra.mxu0 0.0
    %1185 = vmatprep.subr.mxu0 0.0
    %1186 = vmatpush1.xpose.msra.mxu0 0.0
    %1187 = vmatprep.subr.mxu0 0.0
    %1188 = vmatpush1.xpose.msra.mxu0 0.0
    %1189 = vmatprep.subr.mxu0 0.0
    %1190 = vmatpush1.xpose.msra.mxu0 0.0
    %1191 = vmatprep.subr.mxu0 0.0
    %1192 = vmatpush1.xpose.msra.mxu0 0.0
    %1193 = vmatprep.subr.mxu0 0.0
    %1194 = vmatpush1.xpose.msra.mxu0 %v1163
    %1195 = vmatprep.subr.mxu0 0.0
    %1196 = vmatpush1.xpose.msra.mxu0 %v1161
    %1197 = vmatprep.subr.mxu0 0.0
    %1198 = vmatpush2.xpose.msra.mxu0 0.0
    %1199 = vmatprep.subr.mxu0 0.0
    %1200 = vmatpush2.xpose.msra.mxu0 0.0
    %1201 = vmatprep.subr.mxu0 0.0
    %1202 = vmatpush2.xpose.msra.mxu0 0.0
    %1203 = vmatprep.subr.mxu0 0.0
    %1204 = vmatpush2.xpose.msra.mxu0 0.0
    %1205 = vmatprep.subr.mxu0 0.0
    %1206 = vmatpush2.xpose.msra.mxu0 0.0
    %1207 = vmatprep.subr.mxu0 0.0
    %1208 = vmatpush2.xpose.msra.mxu0 0.0
    %1209 = vmatprep.subr.mxu0 0.0
    %1210 = vmatpush2.xpose.msra.mxu0 0.0
    %1211 = vmatprep.subr.mxu0 0.0
    %1212 = vmatpush2.xpose.msra.mxu0 0.0
    %1213 = vmatprep.subr.mxu0 0.0
    %1214 = vmatpush2.xpose.msra.mxu0 0.0
    %1215 = vmatprep.subr.mxu0 0.0
    %1216 = vmatpush2.xpose.msra.mxu0 0.0
    %1217 = vmatprep.subr.mxu0 0.0
    %1218 = vmatpush2.xpose.msra.mxu0 0.0
    %1219 = vmatprep.subr.mxu0 0.0
    %1220 = vmatpush2.xpose.msra.mxu0 0.0
    %1221 = vmatprep.subr.mxu0 0.0
    %1222 = vmatpush2.xpose.msra.mxu0 0.0
    %1223 = vmatprep.subr.mxu0 0.0
    %1224 = vmatpush2.xpose.msra.mxu0 0.0
    %1225 = vmatprep.subr.mxu0 0.0
    %1226 = vmatpush2.xpose.msra.mxu0 0.0
    %1227 = vmatprep.subr.mxu0 0.0
    %1228 = vmatpush2.xpose.msra.mxu0 0.0
    %1229 = vmatprep.mubr.f32.mxu0 0.0
    %1230 = vmatmul.mubr.f32.gmra.mxu0 %v1157
    %v1231 = vpop.f32.mrf.mxu0
    %v1232 = vadd.f32 %v968, %v1231
    %v1233 = vpop.f32.mrf.mxu0
    %1234 = vmatprep.mubr.f32.mxu0 0.0
    %1235 = vmatmul.mubr.f32.gmra.mxu0 %v1159
    %v1236 = vpop.f32.mrf.mxu0
    %v1237 = vadd.f32 %v969, %v1236
    %v1238 = vpop.f32.mrf.mxu0
    %1239 = vdwg.mxu0
    %1242 = vrot.lane.b32.xlu0 %v378, 64
    %v1243 = vpop.permute.xlu0 %1242
    %1244 = vrot.lane.b32.xlu0 %v384, 64
    %v1245 = vpop.permute.xlu0 %1244
    %v1246 = vsel %vm978, %v378, 0
    %v1248 = vsel %vm978, %v384, 0
    %v1250 = vsel %vm978, %v1243, 0
    %v1252 = vsel %vm978, %v1245, 0
    %1254 = vmatprep.subr.mxu0 0.0
    %1255 = vmatpush1.xpose.msra.mxu0 0.0
    %1256 = vmatprep.subr.mxu0 0.0
    %1257 = vmatpush1.xpose.msra.mxu0 0.0
    %1258 = vmatprep.subr.mxu0 0.0
    %1259 = vmatpush1.xpose.msra.mxu0 0.0
    %1260 = vmatprep.subr.mxu0 0.0
    %1261 = vmatpush1.xpose.msra.mxu0 0.0
    %1262 = vmatprep.subr.mxu0 0.0
    %1263 = vmatpush1.xpose.msra.mxu0 0.0
    %1264 = vmatprep.subr.mxu0 0.0
    %1265 = vmatpush1.xpose.msra.mxu0 0.0
    %1266 = vmatprep.subr.mxu0 0.0
    %1267 = vmatpush1.xpose.msra.mxu0 0.0
    %1268 = vmatprep.subr.mxu0 0.0
    %1269 = vmatpush1.xpose.msra.mxu0 0.0
    %1270 = vmatprep.subr.mxu0 0.0
    %1271 = vmatpush1.xpose.msra.mxu0 0.0
    %1272 = vmatprep.subr.mxu0 0.0
    %1273 = vmatpush1.xpose.msra.mxu0 0.0
    %1274 = vmatprep.subr.mxu0 0.0
    %1275 = vmatpush1.xpose.msra.mxu0 0.0
    %1276 = vmatprep.subr.mxu0 0.0
    %1277 = vmatpush1.xpose.msra.mxu0 0.0
    %1278 = vmatprep.subr.mxu0 0.0
    %1279 = vmatpush1.xpose.msra.mxu0 0.0
    %1280 = vmatprep.subr.mxu0 0.0
    %1281 = vmatpush1.xpose.msra.mxu0 0.0
    %1282 = vmatprep.subr.mxu0 0.0
    %1283 = vmatpush1.xpose.msra.mxu0 %v1252
    %1284 = vmatprep.subr.mxu0 0.0
    %1285 = vmatpush1.xpose.msra.mxu0 %v1250
    %1286 = vmatprep.subr.mxu0 0.0
    %1287 = vmatpush2.xpose.msra.mxu0 0.0
    %1288 = vmatprep.subr.mxu0 0.0
    %1289 = vmatpush2.xpose.msra.mxu0 0.0
    %1290 = vmatprep.subr.mxu0 0.0
    %1291 = vmatpush2.xpose.msra.mxu0 0.0
    %1292 = vmatprep.subr.mxu0 0.0
    %1293 = vmatpush2.xpose.msra.mxu0 0.0
    %1294 = vmatprep.subr.mxu0 0.0
    %1295 = vmatpush2.xpose.msra.mxu0 0.0
    %1296 = vmatprep.subr.mxu0 0.0
    %1297 = vmatpush2.xpose.msra.mxu0 0.0
    %1298 = vmatprep.subr.mxu0 0.0
    %1299 = vmatpush2.xpose.msra.mxu0 0.0
    %1300 = vmatprep.subr.mxu0 0.0
    %1301 = vmatpush2.xpose.msra.mxu0 0.0
    %1302 = vmatprep.subr.mxu0 0.0
    %1303 = vmatpush2.xpose.msra.mxu0 0.0
    %1304 = vmatprep.subr.mxu0 0.0
    %1305 = vmatpush2.xpose.msra.mxu0 0.0
    %1306 = vmatprep.subr.mxu0 0.0
    %1307 = vmatpush2.xpose.msra.mxu0 0.0
    %1308 = vmatprep.subr.mxu0 0.0
    %1309 = vmatpush2.xpose.msra.mxu0 0.0
    %1310 = vmatprep.subr.mxu0 0.0
    %1311 = vmatpush2.xpose.msra.mxu0 0.0
    %1312 = vmatprep.subr.mxu0 0.0
    %1313 = vmatpush2.xpose.msra.mxu0 0.0
    %1314 = vmatprep.subr.mxu0 0.0
    %1315 = vmatpush2.xpose.msra.mxu0 0.0
    %1316 = vmatprep.subr.mxu0 0.0
    %1317 = vmatpush2.xpose.msra.mxu0 0.0
    %1318 = vmatprep.mubr.f32.mxu0 0.0
    %1319 = vmatmul.mubr.f32.gmra.mxu0 %v1246
    %v1320 = vpop.f32.mrf.mxu0
    %v1321 = vadd.f32 %v970, %v1320
    %v1322 = vpop.f32.mrf.mxu0
    %1323 = vmatprep.mubr.f32.mxu0 0.0
    %1324 = vmatmul.mubr.f32.gmra.mxu0 %v1248
    %v1325 = vpop.f32.mrf.mxu0
    %v1326 = vadd.f32 %v971, %v1325
    %v1327 = vpop.f32.mrf.mxu0
    %1328 = vdwg.mxu0
    %vm1329 = vcmask 130048
    %v1330 = vsel %vm1329, %v1054, -inf
    %1331 = vmax.xlane.f32.xlu0 %v1330
    %v1332 = vpop.xlane.xlu0 %1331
    %v1333 = vsel %vm1329, %v1059, -inf
    %1334 = vmax.xlane.f32.xlu0 %v1333
    %v1335 = vpop.xlane.xlu0 %1334
    %v1336 = vsel %vm1329, %v1143, -inf
    %1337 = vmax.xlane.f32.xlu0 %v1336
    %v1338 = vpop.xlane.xlu0 %1337
    %v1339 = vsel %vm1329, %v1148, -inf
    %1340 = vmax.xlane.f32.xlu0 %v1339
    %v1341 = vpop.xlane.xlu0 %1340
    %v1342 = vsel %vm1329, %v1232, -inf
    %1343 = vmax.xlane.f32.xlu0 %v1342
    %v1344 = vpop.xlane.xlu0 %1343
    %v1345 = vsel %vm1329, %v1237, -inf
    %1346 = vmax.xlane.f32.xlu0 %v1345
    %v1347 = vpop.xlane.xlu0 %1346
    %v1348 = vsel %vm1329, %v1321, -inf
    %1349 = vmax.xlane.f32.xlu0 %v1348
    %v1350 = vpop.xlane.xlu0 %1349
    %v1351 = vsel %vm1329, %v1326, -inf
    %1352 = vmax.xlane.f32.xlu0 %v1351
    %v1353 = vpop.xlane.xlu0 %1352
    %v1354 = vsub.f32 %v1054, %v1332
    %v1355 = vsub.f32 %v1059, %v1335
    %v1356 = vsub.f32 %v1143, %v1338
    %v1357 = vsub.f32 %v1148, %v1341
    %v1358 = vsub.f32 %v1232, %v1344
    %v1359 = vsub.f32 %v1237, %v1347
    %v1360 = vsub.f32 %v1321, %v1350
    %v1361 = vsub.f32 %v1326, %v1353
    %v1362 = vmul.f32 %v1354, 1.442695
    %v1363 = vpow.pop %v1362
    %v1364 = vmul.f32 %v1355, 1.442695
    %v1365 = vpow.pop %v1364
    %v1366 = vmul.f32 %v1356, 1.442695
    %v1367 = vpow.pop %v1366
    %v1368 = vmul.f32 %v1357, 1.442695
    %v1369 = vpow.pop %v1368
    %v1370 = vmul.f32 %v1358, 1.442695
    %v1371 = vpow.pop %v1370
    %v1372 = vmul.f32 %v1359, 1.442695
    %v1373 = vpow.pop %v1372
    %v1374 = vmul.f32 %v1360, 1.442695
    %v1375 = vpow.pop %v1374
    %v1376 = vmul.f32 %v1361, 1.442695
    %v1377 = vpow.pop %v1376
    %v1378 = vsel %vm1329, %v1363, 0.0
    %1379 = vadd.xlane.f32.xlu0 %v1378
    %v1380 = vpop.xlane.xlu0 %1379
    %v1381 = vsel %vm1329, %v1365, 0.0
    %1382 = vadd.xlane.f32.xlu0 %v1381
    %v1383 = vpop.xlane.xlu0 %1382
    %v1384 = vsel %vm1329, %v1367, 0.0
    %1385 = vadd.xlane.f32.xlu0 %v1384
    %v1386 = vpop.xlane.xlu0 %1385
    %v1387 = vsel %vm1329, %v1369, 0.0
    %1388 = vadd.xlane.f32.xlu0 %v1387
    %v1389 = vpop.xlane.xlu0 %1388
    %v1390 = vsel %vm1329, %v1371, 0.0
    %1391 = vadd.xlane.f32.xlu0 %v1390
    %v1392 = vpop.xlane.xlu0 %1391
    %v1393 = vsel %vm1329, %v1373, 0.0
    %1394 = vadd.xlane.f32.xlu0 %v1393
    %v1395 = vpop.xlane.xlu0 %1394
    %v1396 = vsel %vm1329, %v1375, 0.0
    %1397 = vadd.xlane.f32.xlu0 %v1396
    %v1398 = vpop.xlane.xlu0 %1397
    %v1399 = vsel %vm1329, %v1377, 0.0
    %1400 = vadd.xlane.f32.xlu0 %v1399
    %v1401 = vpop.xlane.xlu0 %1400
    %v1402 = vrcp.pop %v1380
    %v1403 = vrcp.pop %v1383
    %v1404 = vrcp.pop %v1386
    %v1405 = vrcp.pop %v1389
    %v1406 = vrcp.pop %v1392
    %v1407 = vrcp.pop %v1395
    %v1408 = vrcp.pop %v1398
    %v1409 = vrcp.pop %v1401
    %v1410 = vmul.f32 %v1363, %v1402
    %v1411 = vmul.f32 %v1365, %v1403
    %v1412 = vmul.f32 %v1367, %v1404
    %v1413 = vmul.f32 %v1369, %v1405
    %v1414 = vmul.f32 %v1371, %v1406
    %v1415 = vmul.f32 %v1373, %v1407
    %v1416 = vmul.f32 %v1375, %v1408
    %v1417 = vmul.f32 %v1377, %v1409
    %v1419 = vsel %vm1329, %v1410, 0
    %v1422 = vsel %vm1329, %v1411, 0
    %1424 = vmatprep.subr.mxu0 0.0
    %1425 = vmatpush1.msra.mxu0 0.0
    %1426 = vmatprep.subr.mxu0 0.0
    %1427 = vmatpush1.msra.mxu0 0.0
    %1428 = vmatprep.subr.mxu0 0.0
    %1429 = vmatpush1.msra.mxu0 0.0
    %1430 = vmatprep.subr.mxu0 0.0
    %1431 = vmatpush1.msra.mxu0 0.0
    %1432 = vmatprep.subr.mxu0 0.0
    %1433 = vmatpush1.msra.mxu0 0.0
    %1434 = vmatprep.subr.mxu0 0.0
    %1435 = vmatpush1.msra.mxu0 0.0
    %1436 = vmatprep.subr.mxu0 0.0
    %1437 = vmatpush1.msra.mxu0 0.0
    %1438 = vmatprep.subr.mxu0 0.0
    %1439 = vmatpush1.msra.mxu0 0.0
    %1440 = vmatprep.subr.mxu0 0.0
    %1441 = vmatpush1.msra.mxu0 0.0
    %1442 = vmatprep.subr.mxu0 0.0
    %1443 = vmatpush1.msra.mxu0 0.0
    %1444 = vmatprep.subr.mxu0 0.0
    %1445 = vmatpush1.msra.mxu0 0.0
    %1446 = vmatprep.subr.mxu0 0.0
    %1447 = vmatpush1.msra.mxu0 0.0
    %1448 = vmatprep.subr.mxu0 0.0
    %1449 = vmatpush1.msra.mxu0 0.0
    %1450 = vmatprep.subr.mxu0 0.0
    %1451 = vmatpush1.msra.mxu0 0.0
    %1452 = vmatprep.subr.mxu0 0.0
    %1453 = vmatpush1.msra.mxu0 %v350
    %1454 = vmatprep.subr.mxu0 0.0
    %1455 = vmatpush1.msra.mxu0 %v344
    %1456 = vmatprep.subr.mxu0 0.0
    %1457 = vmatpush2.msra.mxu0 0.0
    %1458 = vmatprep.subr.mxu0 0.0
    %1459 = vmatpush2.msra.mxu0 0.0
    %1460 = vmatprep.subr.mxu0 0.0
    %1461 = vmatpush2.msra.mxu0 0.0
    %1462 = vmatprep.subr.mxu0 0.0
    %1463 = vmatpush2.msra.mxu0 0.0
    %1464 = vmatprep.subr.mxu0 0.0
    %1465 = vmatpush2.msra.mxu0 0.0
    %1466 = vmatprep.subr.mxu0 0.0
    %1467 = vmatpush2.msra.mxu0 0.0
    %1468 = vmatprep.subr.mxu0 0.0
    %1469 = vmatpush2.msra.mxu0 0.0
    %1470 = vmatprep.subr.mxu0 0.0
    %1471 = vmatpush2.msra.mxu0 0.0
    %1472 = vmatprep.subr.mxu0 0.0
    %1473 = vmatpush2.msra.mxu0 0.0
    %1474 = vmatprep.subr.mxu0 0.0
    %1475 = vmatpush2.msra.mxu0 0.0
    %1476 = vmatprep.subr.mxu0 0.0
    %1477 = vmatpush2.msra.mxu0 0.0
    %1478 = vmatprep.subr.mxu0 0.0
    %1479 = vmatpush2.msra.mxu0 0.0
    %1480 = vmatprep.subr.mxu0 0.0
    %1481 = vmatpush2.msra.mxu0 0.0
    %1482 = vmatprep.subr.mxu0 0.0
    %1483 = vmatpush2.msra.mxu0 0.0
    %1484 = vmatprep.subr.mxu0 0.0
    %1485 = vmatpush2.msra.mxu0 0.0
    %1486 = vmatprep.subr.mxu0 0.0
    %1487 = vmatpush2.msra.mxu0 0.0
    %1488 = vmatprep.mubr.f32.mxu0 0.0
    %1489 = vmatmul.mubr.f32.gmra.mxu0 %v1419
    %v1490 = vpop.f32.mrf.mxu0
    %v1491 = vadd.f32 0.0, %v1490
    %v1492 = vpop.f32.mrf.mxu0
    %1493 = vmatprep.mubr.f32.mxu0 0.0
    %1494 = vmatmul.mubr.f32.gmra.mxu0 %v1422
    %v1495 = vpop.f32.mrf.mxu0
    %v1496 = vadd.f32 0.0, %v1495
    %v1497 = vpop.f32.mrf.mxu0
    %1498 = vdwg.mxu0
    %v1500 = vsel %vm1329, %v1412, 0
    %v1503 = vsel %vm1329, %v1413, 0
    %1505 = vmatprep.subr.mxu0 0.0
    %1506 = vmatpush1.msra.mxu0 0.0
    %1507 = vmatprep.subr.mxu0 0.0
    %1508 = vmatpush1.msra.mxu0 0.0
    %1509 = vmatprep.subr.mxu0 0.0
    %1510 = vmatpush1.msra.mxu0 0.0
    %1511 = vmatprep.subr.mxu0 0.0
    %1512 = vmatpush1.msra.mxu0 0.0
    %1513 = vmatprep.subr.mxu0 0.0
    %1514 = vmatpush1.msra.mxu0 0.0
    %1515 = vmatprep.subr.mxu0 0.0
    %1516 = vmatpush1.msra.mxu0 0.0
    %1517 = vmatprep.subr.mxu0 0.0
    %1518 = vmatpush1.msra.mxu0 0.0
    %1519 = vmatprep.subr.mxu0 0.0
    %1520 = vmatpush1.msra.mxu0 0.0
    %1521 = vmatprep.subr.mxu0 0.0
    %1522 = vmatpush1.msra.mxu0 0.0
    %1523 = vmatprep.subr.mxu0 0.0
    %1524 = vmatpush1.msra.mxu0 0.0
    %1525 = vmatprep.subr.mxu0 0.0
    %1526 = vmatpush1.msra.mxu0 0.0
    %1527 = vmatprep.subr.mxu0 0.0
    %1528 = vmatpush1.msra.mxu0 0.0
    %1529 = vmatprep.subr.mxu0 0.0
    %1530 = vmatpush1.msra.mxu0 0.0
    %1531 = vmatprep.subr.mxu0 0.0
    %1532 = vmatpush1.msra.mxu0 0.0
    %1533 = vmatprep.subr.mxu0 0.0
    %1534 = vmatpush1.msra.mxu0 %v362
    %1535 = vmatprep.subr.mxu0 0.0
    %1536 = vmatpush1.msra.mxu0 %v356
    %1537 = vmatprep.subr.mxu0 0.0
    %1538 = vmatpush2.msra.mxu0 0.0
    %1539 = vmatprep.subr.mxu0 0.0
    %1540 = vmatpush2.msra.mxu0 0.0
    %1541 = vmatprep.subr.mxu0 0.0
    %1542 = vmatpush2.msra.mxu0 0.0
    %1543 = vmatprep.subr.mxu0 0.0
    %1544 = vmatpush2.msra.mxu0 0.0
    %1545 = vmatprep.subr.mxu0 0.0
    %1546 = vmatpush2.msra.mxu0 0.0
    %1547 = vmatprep.subr.mxu0 0.0
    %1548 = vmatpush2.msra.mxu0 0.0
    %1549 = vmatprep.subr.mxu0 0.0
    %1550 = vmatpush2.msra.mxu0 0.0
    %1551 = vmatprep.subr.mxu0 0.0
    %1552 = vmatpush2.msra.mxu0 0.0
    %1553 = vmatprep.subr.mxu0 0.0
    %1554 = vmatpush2.msra.mxu0 0.0
    %1555 = vmatprep.subr.mxu0 0.0
    %1556 = vmatpush2.msra.mxu0 0.0
    %1557 = vmatprep.subr.mxu0 0.0
    %1558 = vmatpush2.msra.mxu0 0.0
    %1559 = vmatprep.subr.mxu0 0.0
    %1560 = vmatpush2.msra.mxu0 0.0
    %1561 = vmatprep.subr.mxu0 0.0
    %1562 = vmatpush2.msra.mxu0 0.0
    %1563 = vmatprep.subr.mxu0 0.0
    %1564 = vmatpush2.msra.mxu0 0.0
    %1565 = vmatprep.subr.mxu0 0.0
    %1566 = vmatpush2.msra.mxu0 0.0
    %1567 = vmatprep.subr.mxu0 0.0
    %1568 = vmatpush2.msra.mxu0 0.0
    %1569 = vmatprep.mubr.f32.mxu0 0.0
    %1570 = vmatmul.mubr.f32.gmra.mxu0 %v1500
    %v1571 = vpop.f32.mrf.mxu0
    %v1572 = vadd.f32 0.0, %v1571
    %v1573 = vpop.f32.mrf.mxu0
    %1574 = vmatprep.mubr.f32.mxu0 0.0
    %1575 = vmatmul.mubr.f32.gmra.mxu0 %v1503
    %v1576 = vpop.f32.mrf.mxu0
    %v1577 = vadd.f32 0.0, %v1576
    %v1578 = vpop.f32.mrf.mxu0
    %1579 = vdwg.mxu0
    %v1581 = vsel %vm1329, %v1414, 0
    %v1584 = vsel %vm1329, %v1415, 0
    %1586 = vmatprep.subr.mxu0 0.0
    %1587 = vmatpush1.msra.mxu0 0.0
    %1588 = vmatprep.subr.mxu0 0.0
    %1589 = vmatpush1.msra.mxu0 0.0
    %1590 = vmatprep.subr.mxu0 0.0
    %1591 = vmatpush1.msra.mxu0 0.0
    %1592 = vmatprep.subr.mxu0 0.0
    %1593 = vmatpush1.msra.mxu0 0.0
    %1594 = vmatprep.subr.mxu0 0.0
    %1595 = vmatpush1.msra.mxu0 0.0
    %1596 = vmatprep.subr.mxu0 0.0
    %1597 = vmatpush1.msra.mxu0 0.0
    %1598 = vmatprep.subr.mxu0 0.0
    %1599 = vmatpush1.msra.mxu0 0.0
    %1600 = vmatprep.subr.mxu0 0.0
    %1601 = vmatpush1.msra.mxu0 0.0
    %1602 = vmatprep.subr.mxu0 0.0
    %1603 = vmatpush1.msra.mxu0 0.0
    %1604 = vmatprep.subr.mxu0 0.0
    %1605 = vmatpush1.msra.mxu0 0.0
    %1606 = vmatprep.subr.mxu0 0.0
    %1607 = vmatpush1.msra.mxu0 0.0
    %1608 = vmatprep.subr.mxu0 0.0
    %1609 = vmatpush1.msra.mxu0 0.0
    %1610 = vmatprep.subr.mxu0 0.0
    %1611 = vmatpush1.msra.mxu0 0.0
    %1612 = vmatprep.subr.mxu0 0.0
    %1613 = vmatpush1.msra.mxu0 0.0
    %1614 = vmatprep.subr.mxu0 0.0
    %1615 = vmatpush1.msra.mxu0 %v374
    %1616 = vmatprep.subr.mxu0 0.0
    %1617 = vmatpush1.msra.mxu0 %v368
    %1618 = vmatprep.subr.mxu0 0.0
    %1619 = vmatpush2.msra.mxu0 0.0
    %1620 = vmatprep.subr.mxu0 0.0
    %1621 = vmatpush2.msra.mxu0 0.0
    %1622 = vmatprep.subr.mxu0 0.0
    %1623 = vmatpush2.msra.mxu0 0.0
    %1624 = vmatprep.subr.mxu0 0.0
    %1625 = vmatpush2.msra.mxu0 0.0
    %1626 = vmatprep.subr.mxu0 0.0
    %1627 = vmatpush2.msra.mxu0 0.0
    %1628 = vmatprep.subr.mxu0 0.0
    %1629 = vmatpush2.msra.mxu0 0.0
    %1630 = vmatprep.subr.mxu0 0.0
    %1631 = vmatpush2.msra.mxu0 0.0
    %1632 = vmatprep.subr.mxu0 0.0
    %1633 = vmatpush2.msra.mxu0 0.0
    %1634 = vmatprep.subr.mxu0 0.0
    %1635 = vmatpush2.msra.mxu0 0.0
    %1636 = vmatprep.subr.mxu0 0.0
    %1637 = vmatpush2.msra.mxu0 0.0
    %1638 = vmatprep.subr.mxu0 0.0
    %1639 = vmatpush2.msra.mxu0 0.0
    %1640 = vmatprep.subr.mxu0 0.0
    %1641 = vmatpush2.msra.mxu0 0.0
    %1642 = vmatprep.subr.mxu0 0.0
    %1643 = vmatpush2.msra.mxu0 0.0
    %1644 = vmatprep.subr.mxu0 0.0
    %1645 = vmatpush2.msra.mxu0 0.0
    %1646 = vmatprep.subr.mxu0 0.0
    %1647 = vmatpush2.msra.mxu0 0.0
    %1648 = vmatprep.subr.mxu0 0.0
    %1649 = vmatpush2.msra.mxu0 0.0
    %1650 = vmatprep.mubr.f32.mxu0 0.0
    %1651 = vmatmul.mubr.f32.gmra.mxu0 %v1581
    %v1652 = vpop.f32.mrf.mxu0
    %v1653 = vadd.f32 0.0, %v1652
    %v1654 = vpop.f32.mrf.mxu0
    %1655 = vmatprep.mubr.f32.mxu0 0.0
    %1656 = vmatmul.mubr.f32.gmra.mxu0 %v1584
    %v1657 = vpop.f32.mrf.mxu0
    %v1658 = vadd.f32 0.0, %v1657
    %v1659 = vpop.f32.mrf.mxu0
    %1660 = vdwg.mxu0
    %v1662 = vsel %vm1329, %v1416, 0
    %v1665 = vsel %vm1329, %v1417, 0
    %1667 = vmatprep.subr.mxu0 0.0
    %1668 = vmatpush1.msra.mxu0 0.0
    %1669 = vmatprep.subr.mxu0 0.0
    %1670 = vmatpush1.msra.mxu0 0.0
    %1671 = vmatprep.subr.mxu0 0.0
    %1672 = vmatpush1.msra.mxu0 0.0
    %1673 = vmatprep.subr.mxu0 0.0
    %1674 = vmatpush1.msra.mxu0 0.0
    %1675 = vmatprep.subr.mxu0 0.0
    %1676 = vmatpush1.msra.mxu0 0.0
    %1677 = vmatprep.subr.mxu0 0.0
    %1678 = vmatpush1.msra.mxu0 0.0
    %1679 = vmatprep.subr.mxu0 0.0
    %1680 = vmatpush1.msra.mxu0 0.0
    %1681 = vmatprep.subr.mxu0 0.0
    %1682 = vmatpush1.msra.mxu0 0.0
    %1683 = vmatprep.subr.mxu0 0.0
    %1684 = vmatpush1.msra.mxu0 0.0
    %1685 = vmatprep.subr.mxu0 0.0
    %1686 = vmatpush1.msra.mxu0 0.0
    %1687 = vmatprep.subr.mxu0 0.0
    %1688 = vmatpush1.msra.mxu0 0.0
    %1689 = vmatprep.subr.mxu0 0.0
    %1690 = vmatpush1.msra.mxu0 0.0
    %1691 = vmatprep.subr.mxu0 0.0
    %1692 = vmatpush1.msra.mxu0 0.0
    %1693 = vmatprep.subr.mxu0 0.0
    %1694 = vmatpush1.msra.mxu0 0.0
    %1695 = vmatprep.subr.mxu0 0.0
    %1696 = vmatpush1.msra.mxu0 %v386
    %1697 = vmatprep.subr.mxu0 0.0
    %1698 = vmatpush1.msra.mxu0 %v380
    %1699 = vmatprep.subr.mxu0 0.0
    %1700 = vmatpush2.msra.mxu0 0.0
    %1701 = vmatprep.subr.mxu0 0.0
    %1702 = vmatpush2.msra.mxu0 0.0
    %1703 = vmatprep.subr.mxu0 0.0
    %1704 = vmatpush2.msra.mxu0 0.0
    %1705 = vmatprep.subr.mxu0 0.0
    %1706 = vmatpush2.msra.mxu0 0.0
    %1707 = vmatprep.subr.mxu0 0.0
    %1708 = vmatpush2.msra.mxu0 0.0
    %1709 = vmatprep.subr.mxu0 0.0
    %1710 = vmatpush2.msra.mxu0 0.0
    %1711 = vmatprep.subr.mxu0 0.0
    %1712 = vmatpush2.msra.mxu0 0.0
    %1713 = vmatprep.subr.mxu0 0.0
    %1714 = vmatpush2.msra.mxu0 0.0
    %1715 = vmatprep.subr.mxu0 0.0
    %1716 = vmatpush2.msra.mxu0 0.0
    %1717 = vmatprep.subr.mxu0 0.0
    %1718 = vmatpush2.msra.mxu0 0.0
    %1719 = vmatprep.subr.mxu0 0.0
    %1720 = vmatpush2.msra.mxu0 0.0
    %1721 = vmatprep.subr.mxu0 0.0
    %1722 = vmatpush2.msra.mxu0 0.0
    %1723 = vmatprep.subr.mxu0 0.0
    %1724 = vmatpush2.msra.mxu0 0.0
    %1725 = vmatprep.subr.mxu0 0.0
    %1726 = vmatpush2.msra.mxu0 0.0
    %1727 = vmatprep.subr.mxu0 0.0
    %1728 = vmatpush2.msra.mxu0 0.0
    %1729 = vmatprep.subr.mxu0 0.0
    %1730 = vmatpush2.msra.mxu0 0.0
    %1731 = vmatprep.mubr.f32.mxu0 0.0
    %1732 = vmatmul.mubr.f32.gmra.mxu0 %v1662
    %v1733 = vpop.f32.mrf.mxu0
    %v1734 = vadd.f32 0.0, %v1733
    %v1735 = vpop.f32.mrf.mxu0
    %1736 = vmatprep.mubr.f32.mxu0 0.0
    %1737 = vmatmul.mubr.f32.gmra.mxu0 %v1665
    %v1738 = vpop.f32.mrf.mxu0
    %v1739 = vadd.f32 0.0, %v1738
    %v1740 = vpop.f32.mrf.mxu0
    %1741 = vdwg.mxu0
    %s1742 = sld [smem:[#allocation8 + $0x1]]
    %v1743 = vstv %s1742
    %v1744 = vsel %vm810, %v1743, 0.0
    %v1745 = vsel %vm811, %v1743, 0.0
    %v1746 = vsel %vm812, %v1743, 0.0
    %v1747 = vsel %vm813, %v1743, 0.0
    %v1748 = vsel %vm814, %v1743, 0.0
    %v1749 = vsel %vm815, %v1743, 0.0
    %v1750 = vsel %vm816, %v1743, 0.0
    %v1751 = vsel %vm817, %v1743, 0.0
    %s1752 = sld [smem:[#allocation8 + $0x81]]
    %v1753 = vstv %s1752
    %v1754 = vsel %vm818, %v1753, %v1744
    %v1755 = vsel %vm819, %v1753, %v1745
    %v1756 = vsel %vm820, %v1753, %v1746
    %v1757 = vsel %vm821, %v1753, %v1747
    %v1758 = vsel %vm822, %v1753, %v1748
    %v1759 = vsel %vm823, %v1753, %v1749
    %v1760 = vsel %vm824, %v1753, %v1750
    %v1761 = vsel %vm825, %v1753, %v1751
    %s1762 = sld [smem:[#allocation8 + $0x101]]
    %v1763 = vstv %s1762
    %v1764 = vsel %vm826, %v1763, %v1754
    %v1765 = vsel %vm827, %v1763, %v1755
    %v1766 = vsel %vm828, %v1763, %v1756
    %v1767 = vsel %vm829, %v1763, %v1757
    %v1768 = vsel %vm830, %v1763, %v1758
    %v1769 = vsel %vm831, %v1763, %v1759
    %v1770 = vsel %vm832, %v1763, %v1760
    %v1771 = vsel %vm833, %v1763, %v1761
    %s1772 = sld [smem:[#allocation8 + $0x181]]
    %v1773 = vstv %s1772
    %v1774 = vsel %vm834, %v1773, %v1764
    %v1775 = vsel %vm835, %v1773, %v1765
    %v1776 = vsel %vm836, %v1773, %v1766
    %v1777 = vsel %vm837, %v1773, %v1767
    %v1778 = vsel %vm838, %v1773, %v1768
    %v1779 = vsel %vm839, %v1773, %v1769
    %v1780 = vsel %vm840, %v1773, %v1770
    %v1781 = vsel %vm841, %v1773, %v1771
    %s1782 = sld [smem:[#allocation8 + $0x201]]
    %v1783 = vstv %s1782
    %v1784 = vsel %vm842, %v1783, %v1774
    %v1785 = vsel %vm843, %v1783, %v1775
    %v1786 = vsel %vm844, %v1783, %v1776
    %v1787 = vsel %vm845, %v1783, %v1777
    %v1788 = vsel %vm846, %v1783, %v1778
    %v1789 = vsel %vm847, %v1783, %v1779
    %v1790 = vsel %vm848, %v1783, %v1780
    %v1791 = vsel %vm849, %v1783, %v1781
    %s1792 = sld [smem:[#allocation8 + $0x281]]
    %v1793 = vstv %s1792
    %v1794 = vsel %vm850, %v1793, %v1784
    %v1795 = vsel %vm851, %v1793, %v1785
    %v1796 = vsel %vm852, %v1793, %v1786
    %v1797 = vsel %vm853, %v1793, %v1787
    %v1798 = vsel %vm854, %v1793, %v1788
    %v1799 = vsel %vm855, %v1793, %v1789
    %v1800 = vsel %vm856, %v1793, %v1790
    %v1801 = vsel %vm857, %v1793, %v1791
    %s1802 = sld [smem:[#allocation8 + $0x301]]
    %v1803 = vstv %s1802
    %v1804 = vsel %vm858, %v1803, %v1794
    %v1805 = vsel %vm859, %v1803, %v1795
    %v1806 = vsel %vm860, %v1803, %v1796
    %v1807 = vsel %vm861, %v1803, %v1797
    %v1808 = vsel %vm862, %v1803, %v1798
    %v1809 = vsel %vm863, %v1803, %v1799
    %v1810 = vsel %vm864, %v1803, %v1800
    %v1811 = vsel %vm865, %v1803, %v1801
    %s1812 = sld [smem:[#allocation8 + $0x381]]
    %v1813 = vstv %s1812
    %v1814 = vsel %vm866, %v1813, %v1804
    %v1815 = vsel %vm867, %v1813, %v1805
    %v1816 = vsel %vm868, %v1813, %v1806
    %v1817 = vsel %vm869, %v1813, %v1807
    %v1818 = vsel %vm870, %v1813, %v1808
    %v1819 = vsel %vm871, %v1813, %v1809
    %v1820 = vsel %vm872, %v1813, %v1810
    %v1821 = vsel %vm873, %v1813, %v1811
    %s1822 = sld [smem:[#allocation8 + $0x401]]
    %v1823 = vstv %s1822
    %v1824 = vsel %vm874, %v1823, %v1814
    %v1825 = vsel %vm875, %v1823, %v1815
    %v1826 = vsel %vm876, %v1823, %v1816
    %v1827 = vsel %vm877, %v1823, %v1817
    %v1828 = vsel %vm878, %v1823, %v1818
    %v1829 = vsel %vm879, %v1823, %v1819
    %v1830 = vsel %vm880, %v1823, %v1820
    %v1831 = vsel %vm881, %v1823, %v1821
    %1832 = vrot.lane.b32.xlu0 %v342, 120
    %v1833 = vpop.permute.xlu0 %1832
    %1834 = vrot.lane.b32.xlu0 %v348, 120
    %v1835 = vpop.permute.xlu0 %1834
    %1836 = vrot.lane.b32.xlu0 %v342, 56
    %v1837 = vpop.permute.xlu0 %1836
    %1838 = vrot.lane.b32.xlu0 %v348, 56
    %v1839 = vpop.permute.xlu0 %1838
    %v1840 = vsel %vm978, %v1833, 0
    %v1842 = vsel %vm978, %v1835, 0
    %v1844 = vsel %vm978, %v1837, 0
    %v1846 = vsel %vm978, %v1839, 0
    %1848 = vmatprep.subr.mxu0 0.0
    %1849 = vmatpush1.xpose.msra.mxu0 0.0
    %1850 = vmatprep.subr.mxu0 0.0
    %1851 = vmatpush1.xpose.msra.mxu0 0.0
    %1852 = vmatprep.subr.mxu0 0.0
    %1853 = vmatpush1.xpose.msra.mxu0 0.0
    %1854 = vmatprep.subr.mxu0 0.0
    %1855 = vmatpush1.xpose.msra.mxu0 0.0
    %1856 = vmatprep.subr.mxu0 0.0
    %1857 = vmatpush1.xpose.msra.mxu0 0.0
    %1858 = vmatprep.subr.mxu0 0.0
    %1859 = vmatpush1.xpose.msra.mxu0 0.0
    %1860 = vmatprep.subr.mxu0 0.0
    %1861 = vmatpush1.xpose.msra.mxu0 0.0
    %1862 = vmatprep.subr.mxu0 0.0
    %1863 = vmatpush1.xpose.msra.mxu0 0.0
    %1864 = vmatprep.subr.mxu0 0.0
    %1865 = vmatpush1.xpose.msra.mxu0 0.0
    %1866 = vmatprep.subr.mxu0 0.0
    %1867 = vmatpush1.xpose.msra.mxu0 0.0
    %1868 = vmatprep.subr.mxu0 0.0
    %1869 = vmatpush1.xpose.msra.mxu0 0.0
    %1870 = vmatprep.subr.mxu0 0.0
    %1871 = vmatpush1.xpose.msra.mxu0 0.0
    %1872 = vmatprep.subr.mxu0 0.0
    %1873 = vmatpush1.xpose.msra.mxu0 0.0
    %1874 = vmatprep.subr.mxu0 0.0
    %1875 = vmatpush1.xpose.msra.mxu0 0.0
    %1876 = vmatprep.subr.mxu0 0.0
    %1877 = vmatpush1.xpose.msra.mxu0 %v1846
    %1878 = vmatprep.subr.mxu0 0.0
    %1879 = vmatpush1.xpose.msra.mxu0 %v1844
    %1880 = vmatprep.subr.mxu0 0.0
    %1881 = vmatpush2.xpose.msra.mxu0 0.0
    %1882 = vmatprep.subr.mxu0 0.0
    %1883 = vmatpush2.xpose.msra.mxu0 0.0
    %1884 = vmatprep.subr.mxu0 0.0
    %1885 = vmatpush2.xpose.msra.mxu0 0.0
    %1886 = vmatprep.subr.mxu0 0.0
    %1887 = vmatpush2.xpose.msra.mxu0 0.0
    %1888 = vmatprep.subr.mxu0 0.0
    %1889 = vmatpush2.xpose.msra.mxu0 0.0
    %1890 = vmatprep.subr.mxu0 0.0
    %1891 = vmatpush2.xpose.msra.mxu0 0.0
    %1892 = vmatprep.subr.mxu0 0.0
    %1893 = vmatpush2.xpose.msra.mxu0 0.0
    %1894 = vmatprep.subr.mxu0 0.0
    %1895 = vmatpush2.xpose.msra.mxu0 0.0
    %1896 = vmatprep.subr.mxu0 0.0
    %1897 = vmatpush2.xpose.msra.mxu0 0.0
    %1898 = vmatprep.subr.mxu0 0.0
    %1899 = vmatpush2.xpose.msra.mxu0 0.0
    %1900 = vmatprep.subr.mxu0 0.0
    %1901 = vmatpush2.xpose.msra.mxu0 0.0
    %1902 = vmatprep.subr.mxu0 0.0
    %1903 = vmatpush2.xpose.msra.mxu0 0.0
    %1904 = vmatprep.subr.mxu0 0.0
    %1905 = vmatpush2.xpose.msra.mxu0 0.0
    %1906 = vmatprep.subr.mxu0 0.0
    %1907 = vmatpush2.xpose.msra.mxu0 0.0
    %1908 = vmatprep.subr.mxu0 0.0
    %1909 = vmatpush2.xpose.msra.mxu0 0.0
    %1910 = vmatprep.subr.mxu0 0.0
    %1911 = vmatpush2.xpose.msra.mxu0 0.0
    %1912 = vmatprep.mubr.f32.mxu0 0.0
    %1913 = vmatmul.mubr.f32.gmra.mxu0 %v1840
    %v1914 = vpop.f32.mrf.mxu0
    %v1915 = vadd.f32 %v1824, %v1914
    %v1916 = vpop.f32.mrf.mxu0
    %1917 = vmatprep.mubr.f32.mxu0 0.0
    %1918 = vmatmul.mubr.f32.gmra.mxu0 %v1842
    %v1919 = vpop.f32.mrf.mxu0
    %v1920 = vadd.f32 %v1825, %v1919
    %v1921 = vpop.f32.mrf.mxu0
    %1922 = vdwg.mxu0
    %1923 = vrot.lane.b32.xlu0 %v354, 120
    %v1924 = vpop.permute.xlu0 %1923
    %1925 = vrot.lane.b32.xlu0 %v360, 120
    %v1926 = vpop.permute.xlu0 %1925
    %1927 = vrot.lane.b32.xlu0 %v354, 56
    %v1928 = vpop.permute.xlu0 %1927
    %1929 = vrot.lane.b32.xlu0 %v360, 56
    %v1930 = vpop.permute.xlu0 %1929
    %v1931 = vsel %vm978, %v1924, 0
    %v1933 = vsel %vm978, %v1926, 0
    %v1935 = vsel %vm978, %v1928, 0
    %v1937 = vsel %vm978, %v1930, 0
    %1939 = vmatprep.subr.mxu0 0.0
    %1940 = vmatpush1.xpose.msra.mxu0 0.0
    %1941 = vmatprep.subr.mxu0 0.0
    %1942 = vmatpush1.xpose.msra.mxu0 0.0
    %1943 = vmatprep.subr.mxu0 0.0
    %1944 = vmatpush1.xpose.msra.mxu0 0.0
    %1945 = vmatprep.subr.mxu0 0.0
    %1946 = vmatpush1.xpose.msra.mxu0 0.0
    %1947 = vmatprep.subr.mxu0 0.0
    %1948 = vmatpush1.xpose.msra.mxu0 0.0
    %1949 = vmatprep.subr.mxu0 0.0
    %1950 = vmatpush1.xpose.msra.mxu0 0.0
    %1951 = vmatprep.subr.mxu0 0.0
    %1952 = vmatpush1.xpose.msra.mxu0 0.0
    %1953 = vmatprep.subr.mxu0 0.0
    %1954 = vmatpush1.xpose.msra.mxu0 0.0
    %1955 = vmatprep.subr.mxu0 0.0
    %1956 = vmatpush1.xpose.msra.mxu0 0.0
    %1957 = vmatprep.subr.mxu0 0.0
    %1958 = vmatpush1.xpose.msra.mxu0 0.0
    %1959 = vmatprep.subr.mxu0 0.0
    %1960 = vmatpush1.xpose.msra.mxu0 0.0
    %1961 = vmatprep.subr.mxu0 0.0
    %1962 = vmatpush1.xpose.msra.mxu0 0.0
    %1963 = vmatprep.subr.mxu0 0.0
    %1964 = vmatpush1.xpose.msra.mxu0 0.0
    %1965 = vmatprep.subr.mxu0 0.0
    %1966 = vmatpush1.xpose.msra.mxu0 0.0
    %1967 = vmatprep.subr.mxu0 0.0
    %1968 = vmatpush1.xpose.msra.mxu0 %v1937
    %1969 = vmatprep.subr.mxu0 0.0
    %1970 = vmatpush1.xpose.msra.mxu0 %v1935
    %1971 = vmatprep.subr.mxu0 0.0
    %1972 = vmatpush2.xpose.msra.mxu0 0.0
    %1973 = vmatprep.subr.mxu0 0.0
    %1974 = vmatpush2.xpose.msra.mxu0 0.0
    %1975 = vmatprep.subr.mxu0 0.0
    %1976 = vmatpush2.xpose.msra.mxu0 0.0
    %1977 = vmatprep.subr.mxu0 0.0
    %1978 = vmatpush2.xpose.msra.mxu0 0.0
    %1979 = vmatprep.subr.mxu0 0.0
    %1980 = vmatpush2.xpose.msra.mxu0 0.0
    %1981 = vmatprep.subr.mxu0 0.0
    %1982 = vmatpush2.xpose.msra.mxu0 0.0
    %1983 = vmatprep.subr.mxu0 0.0
    %1984 = vmatpush2.xpose.msra.mxu0 0.0
    %1985 = vmatprep.subr.mxu0 0.0
    %1986 = vmatpush2.xpose.msra.mxu0 0.0
    %1987 = vmatprep.subr.mxu0 0.0
    %1988 = vmatpush2.xpose.msra.mxu0 0.0
    %1989 = vmatprep.subr.mxu0 0.0
    %1990 = vmatpush2.xpose.msra.mxu0 0.0
    %1991 = vmatprep.subr.mxu0 0.0
    %1992 = vmatpush2.xpose.msra.mxu0 0.0
    %1993 = vmatprep.subr.mxu0 0.0
    %1994 = vmatpush2.xpose.msra.mxu0 0.0
    %1995 = vmatprep.subr.mxu0 0.0
    %1996 = vmatpush2.xpose.msra.mxu0 0.0
    %1997 = vmatprep.subr.mxu0 0.0
    %1998 = vmatpush2.xpose.msra.mxu0 0.0
    %1999 = vmatprep.subr.mxu0 0.0
    %2000 = vmatpush2.xpose.msra.mxu0 0.0
    %2001 = vmatprep.subr.mxu0 0.0
    %2002 = vmatpush2.xpose.msra.mxu0 0.0
    %2003 = vmatprep.mubr.f32.mxu0 0.0
    %2004 = vmatmul.mubr.f32.gmra.mxu0 %v1931
    %v2005 = vpop.f32.mrf.mxu0
    %v2006 = vadd.f32 %v1826, %v2005
    %v2007 = vpop.f32.mrf.mxu0
    %2008 = vmatprep.mubr.f32.mxu0 0.0
    %2009 = vmatmul.mubr.f32.gmra.mxu0 %v1933
    %v2010 = vpop.f32.mrf.mxu0
    %v2011 = vadd.f32 %v1827, %v2010
    %v2012 = vpop.f32.mrf.mxu0
    %2013 = vdwg.mxu0
    %2014 = vrot.lane.b32.xlu0 %v366, 120
    %v2015 = vpop.permute.xlu0 %2014
    %2016 = vrot.lane.b32.xlu0 %v372, 120
    %v2017 = vpop.permute.xlu0 %2016
    %2018 = vrot.lane.b32.xlu0 %v366, 56
    %v2019 = vpop.permute.xlu0 %2018
    %2020 = vrot.lane.b32.xlu0 %v372, 56
    %v2021 = vpop.permute.xlu0 %2020
    %v2022 = vsel %vm978, %v2015, 0
    %v2024 = vsel %vm978, %v2017, 0
    %v2026 = vsel %vm978, %v2019, 0
    %v2028 = vsel %vm978, %v2021, 0
    %2030 = vmatprep.subr.mxu0 0.0
    %2031 = vmatpush1.xpose.msra.mxu0 0.0
    %2032 = vmatprep.subr.mxu0 0.0
    %2033 = vmatpush1.xpose.msra.mxu0 0.0
    %2034 = vmatprep.subr.mxu0 0.0
    %2035 = vmatpush1.xpose.msra.mxu0 0.0
    %2036 = vmatprep.subr.mxu0 0.0
    %2037 = vmatpush1.xpose.msra.mxu0 0.0
    %2038 = vmatprep.subr.mxu0 0.0
    %2039 = vmatpush1.xpose.msra.mxu0 0.0
    %2040 = vmatprep.subr.mxu0 0.0
    %2041 = vmatpush1.xpose.msra.mxu0 0.0
    %2042 = vmatprep.subr.mxu0 0.0
    %2043 = vmatpush1.xpose.msra.mxu0 0.0
    %2044 = vmatprep.subr.mxu0 0.0
    %2045 = vmatpush1.xpose.msra.mxu0 0.0
    %2046 = vmatprep.subr.mxu0 0.0
    %2047 = vmatpush1.xpose.msra.mxu0 0.0
    %2048 = vmatprep.subr.mxu0 0.0
    %2049 = vmatpush1.xpose.msra.mxu0 0.0
    %2050 = vmatprep.subr.mxu0 0.0
    %2051 = vmatpush1.xpose.msra.mxu0 0.0
    %2052 = vmatprep.subr.mxu0 0.0
    %2053 = vmatpush1.xpose.msra.mxu0 0.0
    %2054 = vmatprep.subr.mxu0 0.0
    %2055 = vmatpush1.xpose.msra.mxu0 0.0
    %2056 = vmatprep.subr.mxu0 0.0
    %2057 = vmatpush1.xpose.msra.mxu0 0.0
    %2058 = vmatprep.subr.mxu0 0.0
    %2059 = vmatpush1.xpose.msra.mxu0 %v2028
    %2060 = vmatprep.subr.mxu0 0.0
    %2061 = vmatpush1.xpose.msra.mxu0 %v2026
    %2062 = vmatprep.subr.mxu0 0.0
    %2063 = vmatpush2.xpose.msra.mxu0 0.0
    %2064 = vmatprep.subr.mxu0 0.0
    %2065 = vmatpush2.xpose.msra.mxu0 0.0
    %2066 = vmatprep.subr.mxu0 0.0
    %2067 = vmatpush2.xpose.msra.mxu0 0.0
    %2068 = vmatprep.subr.mxu0 0.0
    %2069 = vmatpush2.xpose.msra.mxu0 0.0
    %2070 = vmatprep.subr.mxu0 0.0
    %2071 = vmatpush2.xpose.msra.mxu0 0.0
    %2072 = vmatprep.subr.mxu0 0.0
    %2073 = vmatpush2.xpose.msra.mxu0 0.0
    %2074 = vmatprep.subr.mxu0 0.0
    %2075 = vmatpush2.xpose.msra.mxu0 0.0
    %2076 = vmatprep.subr.mxu0 0.0
    %2077 = vmatpush2.xpose.msra.mxu0 0.0
    %2078 = vmatprep.subr.mxu0 0.0
    %2079 = vmatpush2.xpose.msra.mxu0 0.0
    %2080 = vmatprep.subr.mxu0 0.0
    %2081 = vmatpush2.xpose.msra.mxu0 0.0
    %2082 = vmatprep.subr.mxu0 0.0
    %2083 = vmatpush2.xpose.msra.mxu0 0.0
    %2084 = vmatprep.subr.mxu0 0.0
    %2085 = vmatpush2.xpose.msra.mxu0 0.0
    %2086 = vmatprep.subr.mxu0 0.0
    %2087 = vmatpush2.xpose.msra.mxu0 0.0
    %2088 = vmatprep.subr.mxu0 0.0
    %2089 = vmatpush2.xpose.msra.mxu0 0.0
    %2090 = vmatprep.subr.mxu0 0.0
    %2091 = vmatpush2.xpose.msra.mxu0 0.0
    %2092 = vmatprep.subr.mxu0 0.0
    %2093 = vmatpush2.xpose.msra.mxu0 0.0
    %2094 = vmatprep.mubr.f32.mxu0 0.0
    %2095 = vmatmul.mubr.f32.gmra.mxu0 %v2022
    %v2096 = vpop.f32.mrf.mxu0
    %v2097 = vadd.f32 %v1828, %v2096
    %v2098 = vpop.f32.mrf.mxu0
    %2099 = vmatprep.mubr.f32.mxu0 0.0
    %2100 = vmatmul.mubr.f32.gmra.mxu0 %v2024
    %v2101 = vpop.f32.mrf.mxu0
    %v2102 = vadd.f32 %v1829, %v2101
    %v2103 = vpop.f32.mrf.mxu0
    %2104 = vdwg.mxu0
    %2105 = vrot.lane.b32.xlu0 %v378, 120
    %v2106 = vpop.permute.xlu0 %2105
    %2107 = vrot.lane.b32.xlu0 %v384, 120
    %v2108 = vpop.permute.xlu0 %2107
    %2109 = vrot.lane.b32.xlu0 %v378, 56
    %v2110 = vpop.permute.xlu0 %2109
    %2111 = vrot.lane.b32.xlu0 %v384, 56
    %v2112 = vpop.permute.xlu0 %2111
    %v2113 = vsel %vm978, %v2106, 0
    %v2115 = vsel %vm978, %v2108, 0
    %v2117 = vsel %vm978, %v2110, 0
    %v2119 = vsel %vm978, %v2112, 0
    %2121 = vmatprep.subr.mxu0 0.0
    %2122 = vmatpush1.xpose.msra.mxu0 0.0
    %2123 = vmatprep.subr.mxu0 0.0
    %2124 = vmatpush1.xpose.msra.mxu0 0.0
    %2125 = vmatprep.subr.mxu0 0.0
    %2126 = vmatpush1.xpose.msra.mxu0 0.0
    %2127 = vmatprep.subr.mxu0 0.0
    %2128 = vmatpush1.xpose.msra.mxu0 0.0
    %2129 = vmatprep.subr.mxu0 0.0
    %2130 = vmatpush1.xpose.msra.mxu0 0.0
    %2131 = vmatprep.subr.mxu0 0.0
    %2132 = vmatpush1.xpose.msra.mxu0 0.0
    %2133 = vmatprep.subr.mxu0 0.0
    %2134 = vmatpush1.xpose.msra.mxu0 0.0
    %2135 = vmatprep.subr.mxu0 0.0
    %2136 = vmatpush1.xpose.msra.mxu0 0.0
    %2137 = vmatprep.subr.mxu0 0.0
    %2138 = vmatpush1.xpose.msra.mxu0 0.0
    %2139 = vmatprep.subr.mxu0 0.0
    %2140 = vmatpush1.xpose.msra.mxu0 0.0
    %2141 = vmatprep.subr.mxu0 0.0
    %2142 = vmatpush1.xpose.msra.mxu0 0.0
    %2143 = vmatprep.subr.mxu0 0.0
    %2144 = vmatpush1.xpose.msra.mxu0 0.0
    %2145 = vmatprep.subr.mxu0 0.0
    %2146 = vmatpush1.xpose.msra.mxu0 0.0
    %2147 = vmatprep.subr.mxu0 0.0
    %2148 = vmatpush1.xpose.msra.mxu0 0.0
    %2149 = vmatprep.subr.mxu0 0.0
    %2150 = vmatpush1.xpose.msra.mxu0 %v2119
    %2151 = vmatprep.subr.mxu0 0.0
    %2152 = vmatpush1.xpose.msra.mxu0 %v2117
    %2153 = vmatprep.subr.mxu0 0.0
    %2154 = vmatpush2.xpose.msra.mxu0 0.0
    %2155 = vmatprep.subr.mxu0 0.0
    %2156 = vmatpush2.xpose.msra.mxu0 0.0
    %2157 = vmatprep.subr.mxu0 0.0
    %2158 = vmatpush2.xpose.msra.mxu0 0.0
    %2159 = vmatprep.subr.mxu0 0.0
    %2160 = vmatpush2.xpose.msra.mxu0 0.0
    %2161 = vmatprep.subr.mxu0 0.0
    %2162 = vmatpush2.xpose.msra.mxu0 0.0
    %2163 = vmatprep.subr.mxu0 0.0
    %2164 = vmatpush2.xpose.msra.mxu0 0.0
    %2165 = vmatprep.subr.mxu0 0.0
    %2166 = vmatpush2.xpose.msra.mxu0 0.0
    %2167 = vmatprep.subr.mxu0 0.0
    %2168 = vmatpush2.xpose.msra.mxu0 0.0
    %2169 = vmatprep.subr.mxu0 0.0
    %2170 = vmatpush2.xpose.msra.mxu0 0.0
    %2171 = vmatprep.subr.mxu0 0.0
    %2172 = vmatpush2.xpose.msra.mxu0 0.0
    %2173 = vmatprep.subr.mxu0 0.0
    %2174 = vmatpush2.xpose.msra.mxu0 0.0
    %2175 = vmatprep.subr.mxu0 0.0
    %2176 = vmatpush2.xpose.msra.mxu0 0.0
    %2177 = vmatprep.subr.mxu0 0.0
    %2178 = vmatpush2.xpose.msra.mxu0 0.0
    %2179 = vmatprep.subr.mxu0 0.0
    %2180 = vmatpush2.xpose.msra.mxu0 0.0
    %2181 = vmatprep.subr.mxu0 0.0
    %2182 = vmatpush2.xpose.msra.mxu0 0.0
    %2183 = vmatprep.subr.mxu0 0.0
    %2184 = vmatpush2.xpose.msra.mxu0 0.0
    %2185 = vmatprep.mubr.f32.mxu0 0.0
    %2186 = vmatmul.mubr.f32.gmra.mxu0 %v2113
    %v2187 = vpop.f32.mrf.mxu0
    %v2188 = vadd.f32 %v1830, %v2187
    %v2189 = vpop.f32.mrf.mxu0
    %2190 = vmatprep.mubr.f32.mxu0 0.0
    %2191 = vmatmul.mubr.f32.gmra.mxu0 %v2115
    %v2192 = vpop.f32.mrf.mxu0
    %v2193 = vadd.f32 %v1831, %v2192
    %v2194 = vpop.f32.mrf.mxu0
    %2195 = vdwg.mxu0
    %v2196 = vsel %vm1329, %v1915, -inf
    %2197 = vmax.xlane.f32.xlu0 %v2196
    %v2198 = vpop.xlane.xlu0 %2197
    %v2199 = vsel %vm1329, %v1920, -inf
    %2200 = vmax.xlane.f32.xlu0 %v2199
    %v2201 = vpop.xlane.xlu0 %2200
    %v2202 = vsel %vm1329, %v2006, -inf
    %2203 = vmax.xlane.f32.xlu0 %v2202
    %v2204 = vpop.xlane.xlu0 %2203
    %v2205 = vsel %vm1329, %v2011, -inf
    %2206 = vmax.xlane.f32.xlu0 %v2205
    %v2207 = vpop.xlane.xlu0 %2206
    %v2208 = vsel %vm1329, %v2097, -inf
    %2209 = vmax.xlane.f32.xlu0 %v2208
    %v2210 = vpop.xlane.xlu0 %2209
    %v2211 = vsel %vm1329, %v2102, -inf
    %2212 = vmax.xlane.f32.xlu0 %v2211
    %v2213 = vpop.xlane.xlu0 %2212
    %v2214 = vsel %vm1329, %v2188, -inf
    %2215 = vmax.xlane.f32.xlu0 %v2214
    %v2216 = vpop.xlane.xlu0 %2215
    %v2217 = vsel %vm1329, %v2193, -inf
    %2218 = vmax.xlane.f32.xlu0 %v2217
    %v2219 = vpop.xlane.xlu0 %2218
    %v2220 = vsub.f32 %v1915, %v2198
    %v2221 = vsub.f32 %v1920, %v2201
    %v2222 = vsub.f32 %v2006, %v2204
    %v2223 = vsub.f32 %v2011, %v2207
    %v2224 = vsub.f32 %v2097, %v2210
    %v2225 = vsub.f32 %v2102, %v2213
    %v2226 = vsub.f32 %v2188, %v2216
    %v2227 = vsub.f32 %v2193, %v2219
    %v2228 = vmul.f32 %v2220, 1.442695
    %v2229 = vpow.pop %v2228
    %v2230 = vmul.f32 %v2221, 1.442695
    %v2231 = vpow.pop %v2230
    %v2232 = vmul.f32 %v2222, 1.442695
    %v2233 = vpow.pop %v2232
    %v2234 = vmul.f32 %v2223, 1.442695
    %v2235 = vpow.pop %v2234
    %v2236 = vmul.f32 %v2224, 1.442695
    %v2237 = vpow.pop %v2236
    %v2238 = vmul.f32 %v2225, 1.442695
    %v2239 = vpow.pop %v2238
    %v2240 = vmul.f32 %v2226, 1.442695
    %v2241 = vpow.pop %v2240
    %v2242 = vmul.f32 %v2227, 1.442695
    %v2243 = vpow.pop %v2242
    %v2244 = vsel %vm1329, %v2229, 0.0
    %2245 = vadd.xlane.f32.xlu0 %v2244
    %v2246 = vpop.xlane.xlu0 %2245
    %v2247 = vsel %vm1329, %v2231, 0.0
    %2248 = vadd.xlane.f32.xlu0 %v2247
    %v2249 = vpop.xlane.xlu0 %2248
    %v2250 = vsel %vm1329, %v2233, 0.0
    %2251 = vadd.xlane.f32.xlu0 %v2250
    %v2252 = vpop.xlane.xlu0 %2251
    %v2253 = vsel %vm1329, %v2235, 0.0
    %2254 = vadd.xlane.f32.xlu0 %v2253
    %v2255 = vpop.xlane.xlu0 %2254
    %v2256 = vsel %vm1329, %v2237, 0.0
    %2257 = vadd.xlane.f32.xlu0 %v2256
    %v2258 = vpop.xlane.xlu0 %2257
    %v2259 = vsel %vm1329, %v2239, 0.0
    %2260 = vadd.xlane.f32.xlu0 %v2259
    %v2261 = vpop.xlane.xlu0 %2260
    %v2262 = vsel %vm1329, %v2241, 0.0
    %2263 = vadd.xlane.f32.xlu0 %v2262
    %v2264 = vpop.xlane.xlu0 %2263
    %v2265 = vsel %vm1329, %v2243, 0.0
    %2266 = vadd.xlane.f32.xlu0 %v2265
    %v2267 = vpop.xlane.xlu0 %2266
    %v2268 = vrcp.pop %v2246
    %v2269 = vrcp.pop %v2249
    %v2270 = vrcp.pop %v2252
    %v2271 = vrcp.pop %v2255
    %v2272 = vrcp.pop %v2258
    %v2273 = vrcp.pop %v2261
    %v2274 = vrcp.pop %v2264
    %v2275 = vrcp.pop %v2267
    %v2276 = vmul.f32 %v2229, %v2268
    %v2277 = vmul.f32 %v2231, %v2269
    %v2278 = vmul.f32 %v2233, %v2270
    %v2279 = vmul.f32 %v2235, %v2271
    %v2280 = vmul.f32 %v2237, %v2272
    %v2281 = vmul.f32 %v2239, %v2273
    %v2282 = vmul.f32 %v2241, %v2274
    %v2283 = vmul.f32 %v2243, %v2275
    %2286 = vrot.lane.b32.xlu0 %v344, 120
    %v2287 = vpop.permute.xlu0 %2286
    %2288 = vrot.lane.b32.xlu0 %v350, 120
    %v2289 = vpop.permute.xlu0 %2288
    %v2293 = vsel %vm1329, %v2276, 0
    %v2296 = vsel %vm1329, %v2277, 0
    %2298 = vmatprep.subr.mxu0 0.0
    %2299 = vmatpush1.msra.mxu0 0.0
    %2300 = vmatprep.subr.mxu0 0.0
    %2301 = vmatpush1.msra.mxu0 0.0
    %2302 = vmatprep.subr.mxu0 0.0
    %2303 = vmatpush1.msra.mxu0 0.0
    %2304 = vmatprep.subr.mxu0 0.0
    %2305 = vmatpush1.msra.mxu0 0.0
    %2306 = vmatprep.subr.mxu0 0.0
    %2307 = vmatpush1.msra.mxu0 0.0
    %2308 = vmatprep.subr.mxu0 0.0
    %2309 = vmatpush1.msra.mxu0 0.0
    %2310 = vmatprep.subr.mxu0 0.0
    %2311 = vmatpush1.msra.mxu0 0.0
    %2312 = vmatprep.subr.mxu0 0.0
    %2313 = vmatpush1.msra.mxu0 0.0
    %2314 = vmatprep.subr.mxu0 0.0
    %2315 = vmatpush1.msra.mxu0 0.0
    %2316 = vmatprep.subr.mxu0 0.0
    %2317 = vmatpush1.msra.mxu0 0.0
    %2318 = vmatprep.subr.mxu0 0.0
    %2319 = vmatpush1.msra.mxu0 0.0
    %2320 = vmatprep.subr.mxu0 0.0
    %2321 = vmatpush1.msra.mxu0 0.0
    %2322 = vmatprep.subr.mxu0 0.0
    %2323 = vmatpush1.msra.mxu0 0.0
    %2324 = vmatprep.subr.mxu0 0.0
    %2325 = vmatpush1.msra.mxu0 0.0
    %2326 = vmatprep.subr.mxu0 0.0
    %2327 = vmatpush1.msra.mxu0 %v2289
    %2328 = vmatprep.subr.mxu0 0.0
    %2329 = vmatpush1.msra.mxu0 %v2287
    %2330 = vmatprep.subr.mxu0 0.0
    %2331 = vmatpush2.msra.mxu0 0.0
    %2332 = vmatprep.subr.mxu0 0.0
    %2333 = vmatpush2.msra.mxu0 0.0
    %2334 = vmatprep.subr.mxu0 0.0
    %2335 = vmatpush2.msra.mxu0 0.0
    %2336 = vmatprep.subr.mxu0 0.0
    %2337 = vmatpush2.msra.mxu0 0.0
    %2338 = vmatprep.subr.mxu0 0.0
    %2339 = vmatpush2.msra.mxu0 0.0
    %2340 = vmatprep.subr.mxu0 0.0
    %2341 = vmatpush2.msra.mxu0 0.0
    %2342 = vmatprep.subr.mxu0 0.0
    %2343 = vmatpush2.msra.mxu0 0.0
    %2344 = vmatprep.subr.mxu0 0.0
    %2345 = vmatpush2.msra.mxu0 0.0
    %2346 = vmatprep.subr.mxu0 0.0
    %2347 = vmatpush2.msra.mxu0 0.0
    %2348 = vmatprep.subr.mxu0 0.0
    %2349 = vmatpush2.msra.mxu0 0.0
    %2350 = vmatprep.subr.mxu0 0.0
    %2351 = vmatpush2.msra.mxu0 0.0
    %2352 = vmatprep.subr.mxu0 0.0
    %2353 = vmatpush2.msra.mxu0 0.0
    %2354 = vmatprep.subr.mxu0 0.0
    %2355 = vmatpush2.msra.mxu0 0.0
    %2356 = vmatprep.subr.mxu0 0.0
    %2357 = vmatpush2.msra.mxu0 0.0
    %2358 = vmatprep.subr.mxu0 0.0
    %2359 = vmatpush2.msra.mxu0 0.0
    %2360 = vmatprep.subr.mxu0 0.0
    %2361 = vmatpush2.msra.mxu0 0.0
    %2362 = vmatprep.mubr.f32.mxu0 0.0
    %2363 = vmatmul.mubr.f32.gmra.mxu0 %v2293
    %v2364 = vpop.f32.mrf.mxu0
    %v2365 = vadd.f32 0.0, %v2364
    %v2366 = vpop.f32.mrf.mxu0
    %2367 = vmatprep.mubr.f32.mxu0 0.0
    %2368 = vmatmul.mubr.f32.gmra.mxu0 %v2296
    %v2369 = vpop.f32.mrf.mxu0
    %v2370 = vadd.f32 0.0, %v2369
    %v2371 = vpop.f32.mrf.mxu0
    %2372 = vdwg.mxu0
    %2375 = vrot.lane.b32.xlu0 %v356, 120
    %v2376 = vpop.permute.xlu0 %2375
    %2377 = vrot.lane.b32.xlu0 %v362, 120
    %v2378 = vpop.permute.xlu0 %2377
    %v2382 = vsel %vm1329, %v2278, 0
    %v2385 = vsel %vm1329, %v2279, 0
    %2387 = vmatprep.subr.mxu0 0.0
    %2388 = vmatpush1.msra.mxu0 0.0
    %2389 = vmatprep.subr.mxu0 0.0
    %2390 = vmatpush1.msra.mxu0 0.0
    %2391 = vmatprep.subr.mxu0 0.0
    %2392 = vmatpush1.msra.mxu0 0.0
    %2393 = vmatprep.subr.mxu0 0.0
    %2394 = vmatpush1.msra.mxu0 0.0
    %2395 = vmatprep.subr.mxu0 0.0
    %2396 = vmatpush1.msra.mxu0 0.0
    %2397 = vmatprep.subr.mxu0 0.0
    %2398 = vmatpush1.msra.mxu0 0.0
    %2399 = vmatprep.subr.mxu0 0.0
    %2400 = vmatpush1.msra.mxu0 0.0
    %2401 = vmatprep.subr.mxu0 0.0
    %2402 = vmatpush1.msra.mxu0 0.0
    %2403 = vmatprep.subr.mxu0 0.0
    %2404 = vmatpush1.msra.mxu0 0.0
    %2405 = vmatprep.subr.mxu0 0.0
    %2406 = vmatpush1.msra.mxu0 0.0
    %2407 = vmatprep.subr.mxu0 0.0
    %2408 = vmatpush1.msra.mxu0 0.0
    %2409 = vmatprep.subr.mxu0 0.0
    %2410 = vmatpush1.msra.mxu0 0.0
    %2411 = vmatprep.subr.mxu0 0.0
    %2412 = vmatpush1.msra.mxu0 0.0
    %2413 = vmatprep.subr.mxu0 0.0
    %2414 = vmatpush1.msra.mxu0 0.0
    %2415 = vmatprep.subr.mxu0 0.0
    %2416 = vmatpush1.msra.mxu0 %v2378
    %2417 = vmatprep.subr.mxu0 0.0
    %2418 = vmatpush1.msra.mxu0 %v2376
    %2419 = vmatprep.subr.mxu0 0.0
    %2420 = vmatpush2.msra.mxu0 0.0
    %2421 = vmatprep.subr.mxu0 0.0
    %2422 = vmatpush2.msra.mxu0 0.0
    %2423 = vmatprep.subr.mxu0 0.0
    %2424 = vmatpush2.msra.mxu0 0.0
    %2425 = vmatprep.subr.mxu0 0.0
    %2426 = vmatpush2.msra.mxu0 0.0
    %2427 = vmatprep.subr.mxu0 0.0
    %2428 = vmatpush2.msra.mxu0 0.0
    %2429 = vmatprep.subr.mxu0 0.0
    %2430 = vmatpush2.msra.mxu0 0.0
    %2431 = vmatprep.subr.mxu0 0.0
    %2432 = vmatpush2.msra.mxu0 0.0
    %2433 = vmatprep.subr.mxu0 0.0
    %2434 = vmatpush2.msra.mxu0 0.0
    %2435 = vmatprep.subr.mxu0 0.0
    %2436 = vmatpush2.msra.mxu0 0.0
    %2437 = vmatprep.subr.mxu0 0.0
    %2438 = vmatpush2.msra.mxu0 0.0
    %2439 = vmatprep.subr.mxu0 0.0
    %2440 = vmatpush2.msra.mxu0 0.0
    %2441 = vmatprep.subr.mxu0 0.0
    %2442 = vmatpush2.msra.mxu0 0.0
    %2443 = vmatprep.subr.mxu0 0.0
    %2444 = vmatpush2.msra.mxu0 0.0
    %2445 = vmatprep.subr.mxu0 0.0
    %2446 = vmatpush2.msra.mxu0 0.0
    %2447 = vmatprep.subr.mxu0 0.0
    %2448 = vmatpush2.msra.mxu0 0.0
    %2449 = vmatprep.subr.mxu0 0.0
    %2450 = vmatpush2.msra.mxu0 0.0
    %2451 = vmatprep.mubr.f32.mxu0 0.0
    %2452 = vmatmul.mubr.f32.gmra.mxu0 %v2382
    %v2453 = vpop.f32.mrf.mxu0
    %v2454 = vadd.f32 0.0, %v2453
    %v2455 = vpop.f32.mrf.mxu0
    %2456 = vmatprep.mubr.f32.mxu0 0.0
    %2457 = vmatmul.mubr.f32.gmra.mxu0 %v2385
    %v2458 = vpop.f32.mrf.mxu0
    %v2459 = vadd.f32 0.0, %v2458
    %v2460 = vpop.f32.mrf.mxu0
    %2461 = vdwg.mxu0
    %2464 = vrot.lane.b32.xlu0 %v368, 120
    %v2465 = vpop.permute.xlu0 %2464
    %2466 = vrot.lane.b32.xlu0 %v374, 120
    %v2467 = vpop.permute.xlu0 %2466
    %v2471 = vsel %vm1329, %v2280, 0
    %v2474 = vsel %vm1329, %v2281, 0
    %2476 = vmatprep.subr.mxu0 0.0
    %2477 = vmatpush1.msra.mxu0 0.0
    %2478 = vmatprep.subr.mxu0 0.0
    %2479 = vmatpush1.msra.mxu0 0.0
    %2480 = vmatprep.subr.mxu0 0.0
    %2481 = vmatpush1.msra.mxu0 0.0
    %2482 = vmatprep.subr.mxu0 0.0
    %2483 = vmatpush1.msra.mxu0 0.0
    %2484 = vmatprep.subr.mxu0 0.0
    %2485 = vmatpush1.msra.mxu0 0.0
    %2486 = vmatprep.subr.mxu0 0.0
    %2487 = vmatpush1.msra.mxu0 0.0
    %2488 = vmatprep.subr.mxu0 0.0
    %2489 = vmatpush1.msra.mxu0 0.0
    %2490 = vmatprep.subr.mxu0 0.0
    %2491 = vmatpush1.msra.mxu0 0.0
    %2492 = vmatprep.subr.mxu0 0.0
    %2493 = vmatpush1.msra.mxu0 0.0
    %2494 = vmatprep.subr.mxu0 0.0
    %2495 = vmatpush1.msra.mxu0 0.0
    %2496 = vmatprep.subr.mxu0 0.0
    %2497 = vmatpush1.msra.mxu0 0.0
    %2498 = vmatprep.subr.mxu0 0.0
    %2499 = vmatpush1.msra.mxu0 0.0
    %2500 = vmatprep.subr.mxu0 0.0
    %2501 = vmatpush1.msra.mxu0 0.0
    %2502 = vmatprep.subr.mxu0 0.0
    %2503 = vmatpush1.msra.mxu0 0.0
    %2504 = vmatprep.subr.mxu0 0.0
    %2505 = vmatpush1.msra.mxu0 %v2467
    %2506 = vmatprep.subr.mxu0 0.0
    %2507 = vmatpush1.msra.mxu0 %v2465
    %2508 = vmatprep.subr.mxu0 0.0
    %2509 = vmatpush2.msra.mxu0 0.0
    %2510 = vmatprep.subr.mxu0 0.0
    %2511 = vmatpush2.msra.mxu0 0.0
    %2512 = vmatprep.subr.mxu0 0.0
    %2513 = vmatpush2.msra.mxu0 0.0
    %2514 = vmatprep.subr.mxu0 0.0
    %2515 = vmatpush2.msra.mxu0 0.0
    %2516 = vmatprep.subr.mxu0 0.0
    %2517 = vmatpush2.msra.mxu0 0.0
    %2518 = vmatprep.subr.mxu0 0.0
    %2519 = vmatpush2.msra.mxu0 0.0
    %2520 = vmatprep.subr.mxu0 0.0
    %2521 = vmatpush2.msra.mxu0 0.0
    %2522 = vmatprep.subr.mxu0 0.0
    %2523 = vmatpush2.msra.mxu0 0.0
    %2524 = vmatprep.subr.mxu0 0.0
    %2525 = vmatpush2.msra.mxu0 0.0
    %2526 = vmatprep.subr.mxu0 0.0
    %2527 = vmatpush2.msra.mxu0 0.0
    %2528 = vmatprep.subr.mxu0 0.0
    %2529 = vmatpush2.msra.mxu0 0.0
    %2530 = vmatprep.subr.mxu0 0.0
    %2531 = vmatpush2.msra.mxu0 0.0
    %2532 = vmatprep.subr.mxu0 0.0
    %2533 = vmatpush2.msra.mxu0 0.0
    %2534 = vmatprep.subr.mxu0 0.0
    %2535 = vmatpush2.msra.mxu0 0.0
    %2536 = vmatprep.subr.mxu0 0.0
    %2537 = vmatpush2.msra.mxu0 0.0
    %2538 = vmatprep.subr.mxu0 0.0
    %2539 = vmatpush2.msra.mxu0 0.0
    %2540 = vmatprep.mubr.f32.mxu0 0.0
    %2541 = vmatmul.mubr.f32.gmra.mxu0 %v2471
    %v2542 = vpop.f32.mrf.mxu0
    %v2543 = vadd.f32 0.0, %v2542
    %v2544 = vpop.f32.mrf.mxu0
    %2545 = vmatprep.mubr.f32.mxu0 0.0
    %2546 = vmatmul.mubr.f32.gmra.mxu0 %v2474
    %v2547 = vpop.f32.mrf.mxu0
    %v2548 = vadd.f32 0.0, %v2547
    %v2549 = vpop.f32.mrf.mxu0
    %2550 = vdwg.mxu0
    %2553 = vrot.lane.b32.xlu0 %v380, 120
    %v2554 = vpop.permute.xlu0 %2553
    %2555 = vrot.lane.b32.xlu0 %v386, 120
    %v2556 = vpop.permute.xlu0 %2555
    %v2560 = vsel %vm1329, %v2282, 0
    %v2563 = vsel %vm1329, %v2283, 0
    %2565 = vmatprep.subr.mxu0 0.0
    %2566 = vmatpush1.msra.mxu0 0.0
    %2567 = vmatprep.subr.mxu0 0.0
    %2568 = vmatpush1.msra.mxu0 0.0
    %2569 = vmatprep.subr.mxu0 0.0
    %2570 = vmatpush1.msra.mxu0 0.0
    %2571 = vmatprep.subr.mxu0 0.0
    %2572 = vmatpush1.msra.mxu0 0.0
    %2573 = vmatprep.subr.mxu0 0.0
    %2574 = vmatpush1.msra.mxu0 0.0
    %2575 = vmatprep.subr.mxu0 0.0
    %2576 = vmatpush1.msra.mxu0 0.0
    %2577 = vmatprep.subr.mxu0 0.0
    %2578 = vmatpush1.msra.mxu0 0.0
    %2579 = vmatprep.subr.mxu0 0.0
    %2580 = vmatpush1.msra.mxu0 0.0
    %2581 = vmatprep.subr.mxu0 0.0
    %2582 = vmatpush1.msra.mxu0 0.0
    %2583 = vmatprep.subr.mxu0 0.0
    %2584 = vmatpush1.msra.mxu0 0.0
    %2585 = vmatprep.subr.mxu0 0.0
    %2586 = vmatpush1.msra.mxu0 0.0
    %2587 = vmatprep.subr.mxu0 0.0
    %2588 = vmatpush1.msra.mxu0 0.0
    %2589 = vmatprep.subr.mxu0 0.0
    %2590 = vmatpush1.msra.mxu0 0.0
    %2591 = vmatprep.subr.mxu0 0.0
    %2592 = vmatpush1.msra.mxu0 0.0
    %2593 = vmatprep.subr.mxu0 0.0
    %2594 = vmatpush1.msra.mxu0 %v2556
    %2595 = vmatprep.subr.mxu0 0.0
    %2596 = vmatpush1.msra.mxu0 %v2554
    %2597 = vmatprep.subr.mxu0 0.0
    %2598 = vmatpush2.msra.mxu0 0.0
    %2599 = vmatprep.subr.mxu0 0.0
    %2600 = vmatpush2.msra.mxu0 0.0
    %2601 = vmatprep.subr.mxu0 0.0
    %2602 = vmatpush2.msra.mxu0 0.0
    %2603 = vmatprep.subr.mxu0 0.0
    %2604 = vmatpush2.msra.mxu0 0.0
    %2605 = vmatprep.subr.mxu0 0.0
    %2606 = vmatpush2.msra.mxu0 0.0
    %2607 = vmatprep.subr.mxu0 0.0
    %2608 = vmatpush2.msra.mxu0 0.0
    %2609 = vmatprep.subr.mxu0 0.0
    %2610 = vmatpush2.msra.mxu0 0.0
    %2611 = vmatprep.subr.mxu0 0.0
    %2612 = vmatpush2.msra.mxu0 0.0
    %2613 = vmatprep.subr.mxu0 0.0
    %2614 = vmatpush2.msra.mxu0 0.0
    %2615 = vmatprep.subr.mxu0 0.0
    %2616 = vmatpush2.msra.mxu0 0.0
    %2617 = vmatprep.subr.mxu0 0.0
    %2618 = vmatpush2.msra.mxu0 0.0
    %2619 = vmatprep.subr.mxu0 0.0
    %2620 = vmatpush2.msra.mxu0 0.0
    %2621 = vmatprep.subr.mxu0 0.0
    %2622 = vmatpush2.msra.mxu0 0.0
    %2623 = vmatprep.subr.mxu0 0.0
    %2624 = vmatpush2.msra.mxu0 0.0
    %2625 = vmatprep.subr.mxu0 0.0
    %2626 = vmatpush2.msra.mxu0 0.0
    %2627 = vmatprep.subr.mxu0 0.0
    %2628 = vmatpush2.msra.mxu0 0.0
    %2629 = vmatprep.mubr.f32.mxu0 0.0
    %2630 = vmatmul.mubr.f32.gmra.mxu0 %v2560
    %v2631 = vpop.f32.mrf.mxu0
    %v2632 = vadd.f32 0.0, %v2631
    %v2633 = vpop.f32.mrf.mxu0
    %2634 = vmatprep.mubr.f32.mxu0 0.0
    %2635 = vmatmul.mubr.f32.gmra.mxu0 %v2563
    %v2636 = vpop.f32.mrf.mxu0
    %v2637 = vadd.f32 0.0, %v2636
    %v2638 = vpop.f32.mrf.mxu0
    %2639 = vdwg.mxu0
    %s2640 = sld [smem:[#allocation8 + $0x2]]
    %v2641 = vstv %s2640
    %v2642 = vsel %vm810, %v2641, 0.0
    %v2643 = vsel %vm811, %v2641, 0.0
    %v2644 = vsel %vm812, %v2641, 0.0
    %v2645 = vsel %vm813, %v2641, 0.0
    %v2646 = vsel %vm814, %v2641, 0.0
    %v2647 = vsel %vm815, %v2641, 0.0
    %v2648 = vsel %vm816, %v2641, 0.0
    %v2649 = vsel %vm817, %v2641, 0.0
    %s2650 = sld [smem:[#allocation8 + $0x82]]
    %v2651 = vstv %s2650
    %v2652 = vsel %vm818, %v2651, %v2642
    %v2653 = vsel %vm819, %v2651, %v2643
    %v2654 = vsel %vm820, %v2651, %v2644
    %v2655 = vsel %vm821, %v2651, %v2645
    %v2656 = vsel %vm822, %v2651, %v2646
    %v2657 = vsel %vm823, %v2651, %v2647
    %v2658 = vsel %vm824, %v2651, %v2648
    %v2659 = vsel %vm825, %v2651, %v2649
    %s2660 = sld [smem:[#allocation8 + $0x102]]
    %v2661 = vstv %s2660
    %v2662 = vsel %vm826, %v2661, %v2652
    %v2663 = vsel %vm827, %v2661, %v2653
    %v2664 = vsel %vm828, %v2661, %v2654
    %v2665 = vsel %vm829, %v2661, %v2655
    %v2666 = vsel %vm830, %v2661, %v2656
    %v2667 = vsel %vm831, %v2661, %v2657
    %v2668 = vsel %vm832, %v2661, %v2658
    %v2669 = vsel %vm833, %v2661, %v2659
    %s2670 = sld [smem:[#allocation8 + $0x182]]
    %v2671 = vstv %s2670
    %v2672 = vsel %vm834, %v2671, %v2662
    %v2673 = vsel %vm835, %v2671, %v2663
    %v2674 = vsel %vm836, %v2671, %v2664
    %v2675 = vsel %vm837, %v2671, %v2665
    %v2676 = vsel %vm838, %v2671, %v2666
    %v2677 = vsel %vm839, %v2671, %v2667
    %v2678 = vsel %vm840, %v2671, %v2668
    %v2679 = vsel %vm841, %v2671, %v2669
    %s2680 = sld [smem:[#allocation8 + $0x202]]
    %v2681 = vstv %s2680
    %v2682 = vsel %vm842, %v2681, %v2672
    %v2683 = vsel %vm843, %v2681, %v2673
    %v2684 = vsel %vm844, %v2681, %v2674
    %v2685 = vsel %vm845, %v2681, %v2675
    %v2686 = vsel %vm846, %v2681, %v2676
    %v2687 = vsel %vm847, %v2681, %v2677
    %v2688 = vsel %vm848, %v2681, %v2678
    %v2689 = vsel %vm849, %v2681, %v2679
    %s2690 = sld [smem:[#allocation8 + $0x282]]
    %v2691 = vstv %s2690
    %v2692 = vsel %vm850, %v2691, %v2682
    %v2693 = vsel %vm851, %v2691, %v2683
    %v2694 = vsel %vm852, %v2691, %v2684
    %v2695 = vsel %vm853, %v2691, %v2685
    %v2696 = vsel %vm854, %v2691, %v2686
    %v2697 = vsel %vm855, %v2691, %v2687
    %v2698 = vsel %vm856, %v2691, %v2688
    %v2699 = vsel %vm857, %v2691, %v2689
    %s2700 = sld [smem:[#allocation8 + $0x302]]
    %v2701 = vstv %s2700
    %v2702 = vsel %vm858, %v2701, %v2692
    %v2703 = vsel %vm859, %v2701, %v2693
    %v2704 = vsel %vm860, %v2701, %v2694
    %v2705 = vsel %vm861, %v2701, %v2695
    %v2706 = vsel %vm862, %v2701, %v2696
    %v2707 = vsel %vm863, %v2701, %v2697
    %v2708 = vsel %vm864, %v2701, %v2698
    %v2709 = vsel %vm865, %v2701, %v2699
    %s2710 = sld [smem:[#allocation8 + $0x382]]
    %v2711 = vstv %s2710
    %v2712 = vsel %vm866, %v2711, %v2702
    %v2713 = vsel %vm867, %v2711, %v2703
    %v2714 = vsel %vm868, %v2711, %v2704
    %v2715 = vsel %vm869, %v2711, %v2705
    %v2716 = vsel %vm870, %v2711, %v2706
    %v2717 = vsel %vm871, %v2711, %v2707
    %v2718 = vsel %vm872, %v2711, %v2708
    %v2719 = vsel %vm873, %v2711, %v2709
    %s2720 = sld [smem:[#allocation8 + $0x402]]
    %v2721 = vstv %s2720
    %v2722 = vsel %vm874, %v2721, %v2712
    %v2723 = vsel %vm875, %v2721, %v2713
    %v2724 = vsel %vm876, %v2721, %v2714
    %v2725 = vsel %vm877, %v2721, %v2715
    %v2726 = vsel %vm878, %v2721, %v2716
    %v2727 = vsel %vm879, %v2721, %v2717
    %v2728 = vsel %vm880, %v2721, %v2718
    %v2729 = vsel %vm881, %v2721, %v2719
    %2730 = vrot.lane.b32.xlu0 %v342, 112
    %v2731 = vpop.permute.xlu0 %2730
    %2732 = vrot.lane.b32.xlu0 %v348, 112
    %v2733 = vpop.permute.xlu0 %2732
    %2734 = vrot.lane.b32.xlu0 %v342, 48
    %v2735 = vpop.permute.xlu0 %2734
    %2736 = vrot.lane.b32.xlu0 %v348, 48
    %v2737 = vpop.permute.xlu0 %2736
    %v2738 = vsel %vm978, %v2731, 0
    %v2740 = vsel %vm978, %v2733, 0
    %v2742 = vsel %vm978, %v2735, 0
    %v2744 = vsel %vm978, %v2737, 0
    %2746 = vmatprep.subr.mxu0 0.0
    %2747 = vmatpush1.xpose.msra.mxu0 0.0
    %2748 = vmatprep.subr.mxu0 0.0
    %2749 = vmatpush1.xpose.msra.mxu0 0.0
    %2750 = vmatprep.subr.mxu0 0.0
    %2751 = vmatpush1.xpose.msra.mxu0 0.0
    %2752 = vmatprep.subr.mxu0 0.0
    %2753 = vmatpush1.xpose.msra.mxu0 0.0
    %2754 = vmatprep.subr.mxu0 0.0
    %2755 = vmatpush1.xpose.msra.mxu0 0.0
    %2756 = vmatprep.subr.mxu0 0.0
    %2757 = vmatpush1.xpose.msra.mxu0 0.0
    %2758 = vmatprep.subr.mxu0 0.0
    %2759 = vmatpush1.xpose.msra.mxu0 0.0
    %2760 = vmatprep.subr.mxu0 0.0
    %2761 = vmatpush1.xpose.msra.mxu0 0.0
    %2762 = vmatprep.subr.mxu0 0.0
    %2763 = vmatpush1.xpose.msra.mxu0 0.0
    %2764 = vmatprep.subr.mxu0 0.0
    %2765 = vmatpush1.xpose.msra.mxu0 0.0
    %2766 = vmatprep.subr.mxu0 0.0
    %2767 = vmatpush1.xpose.msra.mxu0 0.0
    %2768 = vmatprep.subr.mxu0 0.0
    %2769 = vmatpush1.xpose.msra.mxu0 0.0
    %2770 = vmatprep.subr.mxu0 0.0
    %2771 = vmatpush1.xpose.msra.mxu0 0.0
    %2772 = vmatprep.subr.mxu0 0.0
    %2773 = vmatpush1.xpose.msra.mxu0 0.0
    %2774 = vmatprep.subr.mxu0 0.0
    %2775 = vmatpush1.xpose.msra.mxu0 %v2744
    %2776 = vmatprep.subr.mxu0 0.0
    %2777 = vmatpush1.xpose.msra.mxu0 %v2742
    %2778 = vmatprep.subr.mxu0 0.0
    %2779 = vmatpush2.xpose.msra.mxu0 0.0
    %2780 = vmatprep.subr.mxu0 0.0
    %2781 = vmatpush2.xpose.msra.mxu0 0.0
    %2782 = vmatprep.subr.mxu0 0.0
    %2783 = vmatpush2.xpose.msra.mxu0 0.0
    %2784 = vmatprep.subr.mxu0 0.0
    %2785 = vmatpush2.xpose.msra.mxu0 0.0
    %2786 = vmatprep.subr.mxu0 0.0
    %2787 = vmatpush2.xpose.msra.mxu0 0.0
    %2788 = vmatprep.subr.mxu0 0.0
    %2789 = vmatpush2.xpose.msra.mxu0 0.0
    %2790 = vmatprep.subr.mxu0 0.0
    %2791 = vmatpush2.xpose.msra.mxu0 0.0
    %2792 = vmatprep.subr.mxu0 0.0
    %2793 = vmatpush2.xpose.msra.mxu0 0.0
    %2794 = vmatprep.subr.mxu0 0.0
    %2795 = vmatpush2.xpose.msra.mxu0 0.0
    %2796 = vmatprep.subr.mxu0 0.0
    %2797 = vmatpush2.xpose.msra.mxu0 0.0
    %2798 = vmatprep.subr.mxu0 0.0
    %2799 = vmatpush2.xpose.msra.mxu0 0.0
    %2800 = vmatprep.subr.mxu0 0.0
    %2801 = vmatpush2.xpose.msra.mxu0 0.0
    %2802 = vmatprep.subr.mxu0 0.0
    %2803 = vmatpush2.xpose.msra.mxu0 0.0
    %2804 = vmatprep.subr.mxu0 0.0
    %2805 = vmatpush2.xpose.msra.mxu0 0.0
    %2806 = vmatprep.subr.mxu0 0.0
    %2807 = vmatpush2.xpose.msra.mxu0 0.0
    %2808 = vmatprep.subr.mxu0 0.0
    %2809 = vmatpush2.xpose.msra.mxu0 0.0
    %2810 = vmatprep.mubr.f32.mxu0 0.0
    %2811 = vmatmul.mubr.f32.gmra.mxu0 %v2738
    %v2812 = vpop.f32.mrf.mxu0
    %v2813 = vadd.f32 %v2722, %v2812
    %v2814 = vpop.f32.mrf.mxu0
    %2815 = vmatprep.mubr.f32.mxu0 0.0
    %2816 = vmatmul.mubr.f32.gmra.mxu0 %v2740
    %v2817 = vpop.f32.mrf.mxu0
    %v2818 = vadd.f32 %v2723, %v2817
    %v2819 = vpop.f32.mrf.mxu0
    %2820 = vdwg.mxu0
    %2821 = vrot.lane.b32.xlu0 %v354, 112
    %v2822 = vpop.permute.xlu0 %2821
    %2823 = vrot.lane.b32.xlu0 %v360, 112
    %v2824 = vpop.permute.xlu0 %2823
    %2825 = vrot.lane.b32.xlu0 %v354, 48
    %v2826 = vpop.permute.xlu0 %2825
    %2827 = vrot.lane.b32.xlu0 %v360, 48
    %v2828 = vpop.permute.xlu0 %2827
    %v2829 = vsel %vm978, %v2822, 0
    %v2831 = vsel %vm978, %v2824, 0
    %v2833 = vsel %vm978, %v2826, 0
    %v2835 = vsel %vm978, %v2828, 0
    %2837 = vmatprep.subr.mxu0 0.0
    %2838 = vmatpush1.xpose.msra.mxu0 0.0
    %2839 = vmatprep.subr.mxu0 0.0
    %2840 = vmatpush1.xpose.msra.mxu0 0.0
    %2841 = vmatprep.subr.mxu0 0.0
    %2842 = vmatpush1.xpose.msra.mxu0 0.0
    %2843 = vmatprep.subr.mxu0 0.0
    %2844 = vmatpush1.xpose.msra.mxu0 0.0
    %2845 = vmatprep.subr.mxu0 0.0
    %2846 = vmatpush1.xpose.msra.mxu0 0.0
    %2847 = vmatprep.subr.mxu0 0.0
    %2848 = vmatpush1.xpose.msra.mxu0 0.0
    %2849 = vmatprep.subr.mxu0 0.0
    %2850 = vmatpush1.xpose.msra.mxu0 0.0
    %2851 = vmatprep.subr.mxu0 0.0
    %2852 = vmatpush1.xpose.msra.mxu0 0.0
    %2853 = vmatprep.subr.mxu0 0.0
    %2854 = vmatpush1.xpose.msra.mxu0 0.0
    %2855 = vmatprep.subr.mxu0 0.0
    %2856 = vmatpush1.xpose.msra.mxu0 0.0
    %2857 = vmatprep.subr.mxu0 0.0
    %2858 = vmatpush1.xpose.msra.mxu0 0.0
    %2859 = vmatprep.subr.mxu0 0.0
    %2860 = vmatpush1.xpose.msra.mxu0 0.0
    %2861 = vmatprep.subr.mxu0 0.0
    %2862 = vmatpush1.xpose.msra.mxu0 0.0
    %2863 = vmatprep.subr.mxu0 0.0
    %2864 = vmatpush1.xpose.msra.mxu0 0.0
    %2865 = vmatprep.subr.mxu0 0.0
    %2866 = vmatpush1.xpose.msra.mxu0 %v2835
    %2867 = vmatprep.subr.mxu0 0.0
    %2868 = vmatpush1.xpose.msra.mxu0 %v2833
    %2869 = vmatprep.subr.mxu0 0.0
    %2870 = vmatpush2.xpose.msra.mxu0 0.0
    %2871 = vmatprep.subr.mxu0 0.0
    %2872 = vmatpush2.xpose.msra.mxu0 0.0
    %2873 = vmatprep.subr.mxu0 0.0
    %2874 = vmatpush2.xpose.msra.mxu0 0.0
    %2875 = vmatprep.subr.mxu0 0.0
    %2876 = vmatpush2.xpose.msra.mxu0 0.0
    %2877 = vmatprep.subr.mxu0 0.0
    %2878 = vmatpush2.xpose.msra.mxu0 0.0
    %2879 = vmatprep.subr.mxu0 0.0
    %2880 = vmatpush2.xpose.msra.mxu0 0.0
    %2881 = vmatprep.subr.mxu0 0.0
    %2882 = vmatpush2.xpose.msra.mxu0 0.0
    %2883 = vmatprep.subr.mxu0 0.0
    %2884 = vmatpush2.xpose.msra.mxu0 0.0
    %2885 = vmatprep.subr.mxu0 0.0
    %2886 = vmatpush2.xpose.msra.mxu0 0.0
    %2887 = vmatprep.subr.mxu0 0.0
    %2888 = vmatpush2.xpose.msra.mxu0 0.0
    %2889 = vmatprep.subr.mxu0 0.0
    %2890 = vmatpush2.xpose.msra.mxu0 0.0
    %2891 = vmatprep.subr.mxu0 0.0
    %2892 = vmatpush2.xpose.msra.mxu0 0.0
    %2893 = vmatprep.subr.mxu0 0.0
    %2894 = vmatpush2.xpose.msra.mxu0 0.0
    %2895 = vmatprep.subr.mxu0 0.0
    %2896 = vmatpush2.xpose.msra.mxu0 0.0
    %2897 = vmatprep.subr.mxu0 0.0
    %2898 = vmatpush2.xpose.msra.mxu0 0.0
    %2899 = vmatprep.subr.mxu0 0.0
    %2900 = vmatpush2.xpose.msra.mxu0 0.0
    %2901 = vmatprep.mubr.f32.mxu0 0.0
    %2902 = vmatmul.mubr.f32.gmra.mxu0 %v2829
    %v2903 = vpop.f32.mrf.mxu0
    %v2904 = vadd.f32 %v2724, %v2903
    %v2905 = vpop.f32.mrf.mxu0
    %2906 = vmatprep.mubr.f32.mxu0 0.0
    %2907 = vmatmul.mubr.f32.gmra.mxu0 %v2831
    %v2908 = vpop.f32.mrf.mxu0
    %v2909 = vadd.f32 %v2725, %v2908
    %v2910 = vpop.f32.mrf.mxu0
    %2911 = vdwg.mxu0
    %2912 = vrot.lane.b32.xlu0 %v366, 112
    %v2913 = vpop.permute.xlu0 %2912
    %2914 = vrot.lane.b32.xlu0 %v372, 112
    %v2915 = vpop.permute.xlu0 %2914
    %2916 = vrot.lane.b32.xlu0 %v366, 48
    %v2917 = vpop.permute.xlu0 %2916
    %2918 = vrot.lane.b32.xlu0 %v372, 48
    %v2919 = vpop.permute.xlu0 %2918
    %v2920 = vsel %vm978, %v2913, 0
    %v2922 = vsel %vm978, %v2915, 0
    %v2924 = vsel %vm978, %v2917, 0
    %v2926 = vsel %vm978, %v2919, 0
    %2928 = vmatprep.subr.mxu0 0.0
    %2929 = vmatpush1.xpose.msra.mxu0 0.0
    %2930 = vmatprep.subr.mxu0 0.0
    %2931 = vmatpush1.xpose.msra.mxu0 0.0
    %2932 = vmatprep.subr.mxu0 0.0
    %2933 = vmatpush1.xpose.msra.mxu0 0.0
    %2934 = vmatprep.subr.mxu0 0.0
    %2935 = vmatpush1.xpose.msra.mxu0 0.0
    %2936 = vmatprep.subr.mxu0 0.0
    %2937 = vmatpush1.xpose.msra.mxu0 0.0
    %2938 = vmatprep.subr.mxu0 0.0
    %2939 = vmatpush1.xpose.msra.mxu0 0.0
    %2940 = vmatprep.subr.mxu0 0.0
    %2941 = vmatpush1.xpose.msra.mxu0 0.0
    %2942 = vmatprep.subr.mxu0 0.0
    %2943 = vmatpush1.xpose.msra.mxu0 0.0
    %2944 = vmatprep.subr.mxu0 0.0
    %2945 = vmatpush1.xpose.msra.mxu0 0.0
    %2946 = vmatprep.subr.mxu0 0.0
    %2947 = vmatpush1.xpose.msra.mxu0 0.0
    %2948 = vmatprep.subr.mxu0 0.0
    %2949 = vmatpush1.xpose.msra.mxu0 0.0
    %2950 = vmatprep.subr.mxu0 0.0
    %2951 = vmatpush1.xpose.msra.mxu0 0.0
    %2952 = vmatprep.subr.mxu0 0.0
    %2953 = vmatpush1.xpose.msra.mxu0 0.0
    %2954 = vmatprep.subr.mxu0 0.0
    %2955 = vmatpush1.xpose.msra.mxu0 0.0
    %2956 = vmatprep.subr.mxu0 0.0
    %2957 = vmatpush1.xpose.msra.mxu0 %v2926
    %2958 = vmatprep.subr.mxu0 0.0
    %2959 = vmatpush1.xpose.msra.mxu0 %v2924
    %2960 = vmatprep.subr.mxu0 0.0
    %2961 = vmatpush2.xpose.msra.mxu0 0.0
    %2962 = vmatprep.subr.mxu0 0.0
    %2963 = vmatpush2.xpose.msra.mxu0 0.0
    %2964 = vmatprep.subr.mxu0 0.0
    %2965 = vmatpush2.xpose.msra.mxu0 0.0
    %2966 = vmatprep.subr.mxu0 0.0
    %2967 = vmatpush2.xpose.msra.mxu0 0.0
    %2968 = vmatprep.subr.mxu0 0.0
    %2969 = vmatpush2.xpose.msra.mxu0 0.0
    %2970 = vmatprep.subr.mxu0 0.0
    %2971 = vmatpush2.xpose.msra.mxu0 0.0
    %2972 = vmatprep.subr.mxu0 0.0
    %2973 = vmatpush2.xpose.msra.mxu0 0.0
    %2974 = vmatprep.subr.mxu0 0.0
    %2975 = vmatpush2.xpose.msra.mxu0 0.0
    %2976 = vmatprep.subr.mxu0 0.0
    %2977 = vmatpush2.xpose.msra.mxu0 0.0
    %2978 = vmatprep.subr.mxu0 0.0
    %2979 = vmatpush2.xpose.msra.mxu0 0.0
    %2980 = vmatprep.subr.mxu0 0.0
    %2981 = vmatpush2.xpose.msra.mxu0 0.0
    %2982 = vmatprep.subr.mxu0 0.0
    %2983 = vmatpush2.xpose.msra.mxu0 0.0
    %2984 = vmatprep.subr.mxu0 0.0
    %2985 = vmatpush2.xpose.msra.mxu0 0.0
    %2986 = vmatprep.subr.mxu0 0.0
    %2987 = vmatpush2.xpose.msra.mxu0 0.0
    %2988 = vmatprep.subr.mxu0 0.0
    %2989 = vmatpush2.xpose.msra.mxu0 0.0
    %2990 = vmatprep.subr.mxu0 0.0
    %2991 = vmatpush2.xpose.msra.mxu0 0.0
    %2992 = vmatprep.mubr.f32.mxu0 0.0
    %2993 = vmatmul.mubr.f32.gmra.mxu0 %v2920
    %v2994 = vpop.f32.mrf.mxu0
    %v2995 = vadd.f32 %v2726, %v2994
    %v2996 = vpop.f32.mrf.mxu0
    %2997 = vmatprep.mubr.f32.mxu0 0.0
    %2998 = vmatmul.mubr.f32.gmra.mxu0 %v2922
    %v2999 = vpop.f32.mrf.mxu0
    %v3000 = vadd.f32 %v2727, %v2999
    %v3001 = vpop.f32.mrf.mxu0
    %3002 = vdwg.mxu0
    %3003 = vrot.lane.b32.xlu0 %v378, 112
    %v3004 = vpop.permute.xlu0 %3003
    %3005 = vrot.lane.b32.xlu0 %v384, 112
    %v3006 = vpop.permute.xlu0 %3005
    %3007 = vrot.lane.b32.xlu0 %v378, 48
    %v3008 = vpop.permute.xlu0 %3007
    %3009 = vrot.lane.b32.xlu0 %v384, 48
    %v3010 = vpop.permute.xlu0 %3009
    %v3011 = vsel %vm978, %v3004, 0
    %v3013 = vsel %vm978, %v3006, 0
    %v3015 = vsel %vm978, %v3008, 0
    %v3017 = vsel %vm978, %v3010, 0
    %3019 = vmatprep.subr.mxu0 0.0
    %3020 = vmatpush1.xpose.msra.mxu0 0.0
    %3021 = vmatprep.subr.mxu0 0.0
    %3022 = vmatpush1.xpose.msra.mxu0 0.0
    %3023 = vmatprep.subr.mxu0 0.0
    %3024 = vmatpush1.xpose.msra.mxu0 0.0
    %3025 = vmatprep.subr.mxu0 0.0
    %3026 = vmatpush1.xpose.msra.mxu0 0.0
    %3027 = vmatprep.subr.mxu0 0.0
    %3028 = vmatpush1.xpose.msra.mxu0 0.0
    %3029 = vmatprep.subr.mxu0 0.0
    %3030 = vmatpush1.xpose.msra.mxu0 0.0
    %3031 = vmatprep.subr.mxu0 0.0
    %3032 = vmatpush1.xpose.msra.mxu0 0.0
    %3033 = vmatprep.subr.mxu0 0.0
    %3034 = vmatpush1.xpose.msra.mxu0 0.0
    %3035 = vmatprep.subr.mxu0 0.0
    %3036 = vmatpush1.xpose.msra.mxu0 0.0
    %3037 = vmatprep.subr.mxu0 0.0
    %3038 = vmatpush1.xpose.msra.mxu0 0.0
    %3039 = vmatprep.subr.mxu0 0.0
    %3040 = vmatpush1.xpose.msra.mxu0 0.0
    %3041 = vmatprep.subr.mxu0 0.0
    %3042 = vmatpush1.xpose.msra.mxu0 0.0
    %3043 = vmatprep.subr.mxu0 0.0
    %3044 = vmatpush1.xpose.msra.mxu0 0.0
    %3045 = vmatprep.subr.mxu0 0.0
    %3046 = vmatpush1.xpose.msra.mxu0 0.0
    %3047 = vmatprep.subr.mxu0 0.0
    %3048 = vmatpush1.xpose.msra.mxu0 %v3017
    %3049 = vmatprep.subr.mxu0 0.0
    %3050 = vmatpush1.xpose.msra.mxu0 %v3015
    %3051 = vmatprep.subr.mxu0 0.0
    %3052 = vmatpush2.xpose.msra.mxu0 0.0
    %3053 = vmatprep.subr.mxu0 0.0
    %3054 = vmatpush2.xpose.msra.mxu0 0.0
    %3055 = vmatprep.subr.mxu0 0.0
    %3056 = vmatpush2.xpose.msra.mxu0 0.0
    %3057 = vmatprep.subr.mxu0 0.0
    %3058 = vmatpush2.xpose.msra.mxu0 0.0
    %3059 = vmatprep.subr.mxu0 0.0
    %3060 = vmatpush2.xpose.msra.mxu0 0.0
    %3061 = vmatprep.subr.mxu0 0.0
    %3062 = vmatpush2.xpose.msra.mxu0 0.0
    %3063 = vmatprep.subr.mxu0 0.0
    %3064 = vmatpush2.xpose.msra.mxu0 0.0
    %3065 = vmatprep.subr.mxu0 0.0
    %3066 = vmatpush2.xpose.msra.mxu0 0.0
    %3067 = vmatprep.subr.mxu0 0.0
    %3068 = vmatpush2.xpose.msra.mxu0 0.0
    %3069 = vmatprep.subr.mxu0 0.0
    %3070 = vmatpush2.xpose.msra.mxu0 0.0
    %3071 = vmatprep.subr.mxu0 0.0
    %3072 = vmatpush2.xpose.msra.mxu0 0.0
    %3073 = vmatprep.subr.mxu0 0.0
    %3074 = vmatpush2.xpose.msra.mxu0 0.0
    %3075 = vmatprep.subr.mxu0 0.0
    %3076 = vmatpush2.xpose.msra.mxu0 0.0
    %3077 = vmatprep.subr.mxu0 0.0
    %3078 = vmatpush2.xpose.msra.mxu0 0.0
    %3079 = vmatprep.subr.mxu0 0.0
    %3080 = vmatpush2.xpose.msra.mxu0 0.0
    %3081 = vmatprep.subr.mxu0 0.0
    %3082 = vmatpush2.xpose.msra.mxu0 0.0
    %3083 = vmatprep.mubr.f32.mxu0 0.0
    %3084 = vmatmul.mubr.f32.gmra.mxu0 %v3011
    %v3085 = vpop.f32.mrf.mxu0
    %v3086 = vadd.f32 %v2728, %v3085
    %v3087 = vpop.f32.mrf.mxu0
    %3088 = vmatprep.mubr.f32.mxu0 0.0
    %3089 = vmatmul.mubr.f32.gmra.mxu0 %v3013
    %v3090 = vpop.f32.mrf.mxu0
    %v3091 = vadd.f32 %v2729, %v3090
    %v3092 = vpop.f32.mrf.mxu0
    %3093 = vdwg.mxu0
    %v3094 = vsel %vm1329, %v2813, -inf
    %3095 = vmax.xlane.f32.xlu0 %v3094
    %v3096 = vpop.xlane.xlu0 %3095
    %v3097 = vsel %vm1329, %v2818, -inf
    %3098 = vmax.xlane.f32.xlu0 %v3097
    %v3099 = vpop.xlane.xlu0 %3098
    %v3100 = vsel %vm1329, %v2904, -inf
    %3101 = vmax.xlane.f32.xlu0 %v3100
    %v3102 = vpop.xlane.xlu0 %3101
    %v3103 = vsel %vm1329, %v2909, -inf
    %3104 = vmax.xlane.f32.xlu0 %v3103
    %v3105 = vpop.xlane.xlu0 %3104
    %v3106 = vsel %vm1329, %v2995, -inf
    %3107 = vmax.xlane.f32.xlu0 %v3106
    %v3108 = vpop.xlane.xlu0 %3107
    %v3109 = vsel %vm1329, %v3000, -inf
    %3110 = vmax.xlane.f32.xlu0 %v3109
    %v3111 = vpop.xlane.xlu0 %3110
    %v3112 = vsel %vm1329, %v3086, -inf
    %3113 = vmax.xlane.f32.xlu0 %v3112
    %v3114 = vpop.xlane.xlu0 %3113
    %v3115 = vsel %vm1329, %v3091, -inf
    %3116 = vmax.xlane.f32.xlu0 %v3115
    %v3117 = vpop.xlane.xlu0 %3116
    %v3118 = vsub.f32 %v2813, %v3096
    %v3119 = vsub.f32 %v2818, %v3099
    %v3120 = vsub.f32 %v2904, %v3102
    %v3121 = vsub.f32 %v2909, %v3105
    %v3122 = vsub.f32 %v2995, %v3108
    %v3123 = vsub.f32 %v3000, %v3111
    %v3124 = vsub.f32 %v3086, %v3114
    %v3125 = vsub.f32 %v3091, %v3117
    %v3126 = vmul.f32 %v3118, 1.442695
    %v3127 = vpow.pop %v3126
    %v3128 = vmul.f32 %v3119, 1.442695
    %v3129 = vpow.pop %v3128
    %v3130 = vmul.f32 %v3120, 1.442695
    %v3131 = vpow.pop %v3130
    %v3132 = vmul.f32 %v3121, 1.442695
    %v3133 = vpow.pop %v3132
    %v3134 = vmul.f32 %v3122, 1.442695
    %v3135 = vpow.pop %v3134
    %v3136 = vmul.f32 %v3123, 1.442695
    %v3137 = vpow.pop %v3136
    %v3138 = vmul.f32 %v3124, 1.442695
    %v3139 = vpow.pop %v3138
    %v3140 = vmul.f32 %v3125, 1.442695
    %v3141 = vpow.pop %v3140
    %v3142 = vsel %vm1329, %v3127, 0.0
    %3143 = vadd.xlane.f32.xlu0 %v3142
    %v3144 = vpop.xlane.xlu0 %3143
    %v3145 = vsel %vm1329, %v3129, 0.0
    %3146 = vadd.xlane.f32.xlu0 %v3145
    %v3147 = vpop.xlane.xlu0 %3146
    %v3148 = vsel %vm1329, %v3131, 0.0
    %3149 = vadd.xlane.f32.xlu0 %v3148
    %v3150 = vpop.xlane.xlu0 %3149
    %v3151 = vsel %vm1329, %v3133, 0.0
    %3152 = vadd.xlane.f32.xlu0 %v3151
    %v3153 = vpop.xlane.xlu0 %3152
    %v3154 = vsel %vm1329, %v3135, 0.0
    %3155 = vadd.xlane.f32.xlu0 %v3154
    %v3156 = vpop.xlane.xlu0 %3155
    %v3157 = vsel %vm1329, %v3137, 0.0
    %3158 = vadd.xlane.f32.xlu0 %v3157
    %v3159 = vpop.xlane.xlu0 %3158
    %v3160 = vsel %vm1329, %v3139, 0.0
    %3161 = vadd.xlane.f32.xlu0 %v3160
    %v3162 = vpop.xlane.xlu0 %3161
    %v3163 = vsel %vm1329, %v3141, 0.0
    %3164 = vadd.xlane.f32.xlu0 %v3163
    %v3165 = vpop.xlane.xlu0 %3164
    %v3166 = vrcp.pop %v3144
    %v3167 = vrcp.pop %v3147
    %v3168 = vrcp.pop %v3150
    %v3169 = vrcp.pop %v3153
    %v3170 = vrcp.pop %v3156
    %v3171 = vrcp.pop %v3159
    %v3172 = vrcp.pop %v3162
    %v3173 = vrcp.pop %v3165
    %v3174 = vmul.f32 %v3127, %v3166
    %v3175 = vmul.f32 %v3129, %v3167
    %v3176 = vmul.f32 %v3131, %v3168
    %v3177 = vmul.f32 %v3133, %v3169
    %v3178 = vmul.f32 %v3135, %v3170
    %v3179 = vmul.f32 %v3137, %v3171
    %v3180 = vmul.f32 %v3139, %v3172
    %v3181 = vmul.f32 %v3141, %v3173
    %3182 = vrot.lane.b32.xlu0 %v344, 112
    %v3183 = vpop.permute.xlu0 %3182
    %3184 = vrot.lane.b32.xlu0 %v350, 112
    %v3185 = vpop.permute.xlu0 %3184
    %v3189 = vsel %vm1329, %v3174, 0
    %v3192 = vsel %vm1329, %v3175, 0
    %3194 = vmatprep.subr.mxu0 0.0
    %3195 = vmatpush1.msra.mxu0 0.0
    %3196 = vmatprep.subr.mxu0 0.0
    %3197 = vmatpush1.msra.mxu0 0.0
    %3198 = vmatprep.subr.mxu0 0.0
    %3199 = vmatpush1.msra.mxu0 0.0
    %3200 = vmatprep.subr.mxu0 0.0
    %3201 = vmatpush1.msra.mxu0 0.0
    %3202 = vmatprep.subr.mxu0 0.0
    %3203 = vmatpush1.msra.mxu0 0.0
    %3204 = vmatprep.subr.mxu0 0.0
    %3205 = vmatpush1.msra.mxu0 0.0
    %3206 = vmatprep.subr.mxu0 0.0
    %3207 = vmatpush1.msra.mxu0 0.0
    %3208 = vmatprep.subr.mxu0 0.0
    %3209 = vmatpush1.msra.mxu0 0.0
    %3210 = vmatprep.subr.mxu0 0.0
    %3211 = vmatpush1.msra.mxu0 0.0
    %3212 = vmatprep.subr.mxu0 0.0
    %3213 = vmatpush1.msra.mxu0 0.0
    %3214 = vmatprep.subr.mxu0 0.0
    %3215 = vmatpush1.msra.mxu0 0.0
    %3216 = vmatprep.subr.mxu0 0.0
    %3217 = vmatpush1.msra.mxu0 0.0
    %3218 = vmatprep.subr.mxu0 0.0
    %3219 = vmatpush1.msra.mxu0 0.0
    %3220 = vmatprep.subr.mxu0 0.0
    %3221 = vmatpush1.msra.mxu0 0.0
    %3222 = vmatprep.subr.mxu0 0.0
    %3223 = vmatpush1.msra.mxu0 %v3185
    %3224 = vmatprep.subr.mxu0 0.0
    %3225 = vmatpush1.msra.mxu0 %v3183
    %3226 = vmatprep.subr.mxu0 0.0
    %3227 = vmatpush2.msra.mxu0 0.0
    %3228 = vmatprep.subr.mxu0 0.0
    %3229 = vmatpush2.msra.mxu0 0.0
    %3230 = vmatprep.subr.mxu0 0.0
    %3231 = vmatpush2.msra.mxu0 0.0
    %3232 = vmatprep.subr.mxu0 0.0
    %3233 = vmatpush2.msra.mxu0 0.0
    %3234 = vmatprep.subr.mxu0 0.0
    %3235 = vmatpush2.msra.mxu0 0.0
    %3236 = vmatprep.subr.mxu0 0.0
    %3237 = vmatpush2.msra.mxu0 0.0
    %3238 = vmatprep.subr.mxu0 0.0
    %3239 = vmatpush2.msra.mxu0 0.0
    %3240 = vmatprep.subr.mxu0 0.0
    %3241 = vmatpush2.msra.mxu0 0.0
    %3242 = vmatprep.subr.mxu0 0.0
    %3243 = vmatpush2.msra.mxu0 0.0
    %3244 = vmatprep.subr.mxu0 0.0
    %3245 = vmatpush2.msra.mxu0 0.0
    %3246 = vmatprep.subr.mxu0 0.0
    %3247 = vmatpush2.msra.mxu0 0.0
    %3248 = vmatprep.subr.mxu0 0.0
    %3249 = vmatpush2.msra.mxu0 0.0
    %3250 = vmatprep.subr.mxu0 0.0
    %3251 = vmatpush2.msra.mxu0 0.0
    %3252 = vmatprep.subr.mxu0 0.0
    %3253 = vmatpush2.msra.mxu0 0.0
    %3254 = vmatprep.subr.mxu0 0.0
    %3255 = vmatpush2.msra.mxu0 0.0
    %3256 = vmatprep.subr.mxu0 0.0
    %3257 = vmatpush2.msra.mxu0 0.0
    %3258 = vmatprep.mubr.f32.mxu0 0.0
    %3259 = vmatmul.mubr.f32.gmra.mxu0 %v3189
    %v3260 = vpop.f32.mrf.mxu0
    %v3261 = vadd.f32 0.0, %v3260
    %v3262 = vpop.f32.mrf.mxu0
    %3263 = vmatprep.mubr.f32.mxu0 0.0
    %3264 = vmatmul.mubr.f32.gmra.mxu0 %v3192
    %v3265 = vpop.f32.mrf.mxu0
    %v3266 = vadd.f32 0.0, %v3265
    %v3267 = vpop.f32.mrf.mxu0
    %3268 = vdwg.mxu0
    %3269 = vrot.lane.b32.xlu0 %v356, 112
    %v3270 = vpop.permute.xlu0 %3269
    %3271 = vrot.lane.b32.xlu0 %v362, 112
    %v3272 = vpop.permute.xlu0 %3271
    %v3276 = vsel %vm1329, %v3176, 0
    %v3279 = vsel %vm1329, %v3177, 0
    %3281 = vmatprep.subr.mxu0 0.0
    %3282 = vmatpush1.msra.mxu0 0.0
    %3283 = vmatprep.subr.mxu0 0.0
    %3284 = vmatpush1.msra.mxu0 0.0
    %3285 = vmatprep.subr.mxu0 0.0
    %3286 = vmatpush1.msra.mxu0 0.0
    %3287 = vmatprep.subr.mxu0 0.0
    %3288 = vmatpush1.msra.mxu0 0.0
    %3289 = vmatprep.subr.mxu0 0.0
    %3290 = vmatpush1.msra.mxu0 0.0
    %3291 = vmatprep.subr.mxu0 0.0
    %3292 = vmatpush1.msra.mxu0 0.0
    %3293 = vmatprep.subr.mxu0 0.0
    %3294 = vmatpush1.msra.mxu0 0.0
    %3295 = vmatprep.subr.mxu0 0.0
    %3296 = vmatpush1.msra.mxu0 0.0
    %3297 = vmatprep.subr.mxu0 0.0
    %3298 = vmatpush1.msra.mxu0 0.0
    %3299 = vmatprep.subr.mxu0 0.0
    %3300 = vmatpush1.msra.mxu0 0.0
    %3301 = vmatprep.subr.mxu0 0.0
    %3302 = vmatpush1.msra.mxu0 0.0
    %3303 = vmatprep.subr.mxu0 0.0
    %3304 = vmatpush1.msra.mxu0 0.0
    %3305 = vmatprep.subr.mxu0 0.0
    %3306 = vmatpush1.msra.mxu0 0.0
    %3307 = vmatprep.subr.mxu0 0.0
    %3308 = vmatpush1.msra.mxu0 0.0
    %3309 = vmatprep.subr.mxu0 0.0
    %3310 = vmatpush1.msra.mxu0 %v3272
    %3311 = vmatprep.subr.mxu0 0.0
    %3312 = vmatpush1.msra.mxu0 %v3270
    %3313 = vmatprep.subr.mxu0 0.0
    %3314 = vmatpush2.msra.mxu0 0.0
    %3315 = vmatprep.subr.mxu0 0.0
    %3316 = vmatpush2.msra.mxu0 0.0
    %3317 = vmatprep.subr.mxu0 0.0
    %3318 = vmatpush2.msra.mxu0 0.0
    %3319 = vmatprep.subr.mxu0 0.0
    %3320 = vmatpush2.msra.mxu0 0.0
    %3321 = vmatprep.subr.mxu0 0.0
    %3322 = vmatpush2.msra.mxu0 0.0
    %3323 = vmatprep.subr.mxu0 0.0
    %3324 = vmatpush2.msra.mxu0 0.0
    %3325 = vmatprep.subr.mxu0 0.0
    %3326 = vmatpush2.msra.mxu0 0.0
    %3327 = vmatprep.subr.mxu0 0.0
    %3328 = vmatpush2.msra.mxu0 0.0
    %3329 = vmatprep.subr.mxu0 0.0
    %3330 = vmatpush2.msra.mxu0 0.0
    %3331 = vmatprep.subr.mxu0 0.0
    %3332 = vmatpush2.msra.mxu0 0.0
    %3333 = vmatprep.subr.mxu0 0.0
    %3334 = vmatpush2.msra.mxu0 0.0
    %3335 = vmatprep.subr.mxu0 0.0
    %3336 = vmatpush2.msra.mxu0 0.0
    %3337 = vmatprep.subr.mxu0 0.0
    %3338 = vmatpush2.msra.mxu0 0.0
    %3339 = vmatprep.subr.mxu0 0.0
    %3340 = vmatpush2.msra.mxu0 0.0
    %3341 = vmatprep.subr.mxu0 0.0
    %3342 = vmatpush2.msra.mxu0 0.0
    %3343 = vmatprep.subr.mxu0 0.0
    %3344 = vmatpush2.msra.mxu0 0.0
    %3345 = vmatprep.mubr.f32.mxu0 0.0
    %3346 = vmatmul.mubr.f32.gmra.mxu0 %v3276
    %v3347 = vpop.f32.mrf.mxu0
    %v3348 = vadd.f32 0.0, %v3347
    %v3349 = vpop.f32.mrf.mxu0
    %3350 = vmatprep.mubr.f32.mxu0 0.0
    %3351 = vmatmul.mubr.f32.gmra.mxu0 %v3279
    %v3352 = vpop.f32.mrf.mxu0
    %v3353 = vadd.f32 0.0, %v3352
    %v3354 = vpop.f32.mrf.mxu0
    %3355 = vdwg.mxu0
    %3356 = vrot.lane.b32.xlu0 %v368, 112
    %v3357 = vpop.permute.xlu0 %3356
    %3358 = vrot.lane.b32.xlu0 %v374, 112
    %v3359 = vpop.permute.xlu0 %3358
    %v3363 = vsel %vm1329, %v3178, 0
    %v3366 = vsel %vm1329, %v3179, 0
    %3368 = vmatprep.subr.mxu0 0.0
    %3369 = vmatpush1.msra.mxu0 0.0
    %3370 = vmatprep.subr.mxu0 0.0
    %3371 = vmatpush1.msra.mxu0 0.0
    %3372 = vmatprep.subr.mxu0 0.0
    %3373 = vmatpush1.msra.mxu0 0.0
    %3374 = vmatprep.subr.mxu0 0.0
    %3375 = vmatpush1.msra.mxu0 0.0
    %3376 = vmatprep.subr.mxu0 0.0
    %3377 = vmatpush1.msra.mxu0 0.0
    %3378 = vmatprep.subr.mxu0 0.0
    %3379 = vmatpush1.msra.mxu0 0.0
    %3380 = vmatprep.subr.mxu0 0.0
    %3381 = vmatpush1.msra.mxu0 0.0
    %3382 = vmatprep.subr.mxu0 0.0
    %3383 = vmatpush1.msra.mxu0 0.0
    %3384 = vmatprep.subr.mxu0 0.0
    %3385 = vmatpush1.msra.mxu0 0.0
    %3386 = vmatprep.subr.mxu0 0.0
    %3387 = vmatpush1.msra.mxu0 0.0
    %3388 = vmatprep.subr.mxu0 0.0
    %3389 = vmatpush1.msra.mxu0 0.0
    %3390 = vmatprep.subr.mxu0 0.0
    %3391 = vmatpush1.msra.mxu0 0.0
    %3392 = vmatprep.subr.mxu0 0.0
    %3393 = vmatpush1.msra.mxu0 0.0
    %3394 = vmatprep.subr.mxu0 0.0
    %3395 = vmatpush1.msra.mxu0 0.0
    %3396 = vmatprep.subr.mxu0 0.0
    %3397 = vmatpush1.msra.mxu0 %v3359
    %3398 = vmatprep.subr.mxu0 0.0
    %3399 = vmatpush1.msra.mxu0 %v3357
    %3400 = vmatprep.subr.mxu0 0.0
    %3401 = vmatpush2.msra.mxu0 0.0
    %3402 = vmatprep.subr.mxu0 0.0
    %3403 = vmatpush2.msra.mxu0 0.0
    %3404 = vmatprep.subr.mxu0 0.0
    %3405 = vmatpush2.msra.mxu0 0.0
    %3406 = vmatprep.subr.mxu0 0.0
    %3407 = vmatpush2.msra.mxu0 0.0
    %3408 = vmatprep.subr.mxu0 0.0
    %3409 = vmatpush2.msra.mxu0 0.0
    %3410 = vmatprep.subr.mxu0 0.0
    %3411 = vmatpush2.msra.mxu0 0.0
    %3412 = vmatprep.subr.mxu0 0.0
    %3413 = vmatpush2.msra.mxu0 0.0
    %3414 = vmatprep.subr.mxu0 0.0
    %3415 = vmatpush2.msra.mxu0 0.0
    %3416 = vmatprep.subr.mxu0 0.0
    %3417 = vmatpush2.msra.mxu0 0.0
    %3418 = vmatprep.subr.mxu0 0.0
    %3419 = vmatpush2.msra.mxu0 0.0
    %3420 = vmatprep.subr.mxu0 0.0
    %3421 = vmatpush2.msra.mxu0 0.0
    %3422 = vmatprep.subr.mxu0 0.0
    %3423 = vmatpush2.msra.mxu0 0.0
    %3424 = vmatprep.subr.mxu0 0.0
    %3425 = vmatpush2.msra.mxu0 0.0
    %3426 = vmatprep.subr.mxu0 0.0
    %3427 = vmatpush2.msra.mxu0 0.0
    %3428 = vmatprep.subr.mxu0 0.0
    %3429 = vmatpush2.msra.mxu0 0.0
    %3430 = vmatprep.subr.mxu0 0.0
    %3431 = vmatpush2.msra.mxu0 0.0
    %3432 = vmatprep.mubr.f32.mxu0 0.0
    %3433 = vmatmul.mubr.f32.gmra.mxu0 %v3363
    %v3434 = vpop.f32.mrf.mxu0
    %v3435 = vadd.f32 0.0, %v3434
    %v3436 = vpop.f32.mrf.mxu0
    %3437 = vmatprep.mubr.f32.mxu0 0.0
    %3438 = vmatmul.mubr.f32.gmra.mxu0 %v3366
    %v3439 = vpop.f32.mrf.mxu0
    %v3440 = vadd.f32 0.0, %v3439
    %v3441 = vpop.f32.mrf.mxu0
    %3442 = vdwg.mxu0
    %3443 = vrot.lane.b32.xlu0 %v380, 112
    %v3444 = vpop.permute.xlu0 %3443
    %3445 = vrot.lane.b32.xlu0 %v386, 112
    %v3446 = vpop.permute.xlu0 %3445
    %v3450 = vsel %vm1329, %v3180, 0
    %v3453 = vsel %vm1329, %v3181, 0
    %3455 = vmatprep.subr.mxu0 0.0
    %3456 = vmatpush1.msra.mxu0 0.0
    %3457 = vmatprep.subr.mxu0 0.0
    %3458 = vmatpush1.msra.mxu0 0.0
    %3459 = vmatprep.subr.mxu0 0.0
    %3460 = vmatpush1.msra.mxu0 0.0
    %3461 = vmatprep.subr.mxu0 0.0
    %3462 = vmatpush1.msra.mxu0 0.0
    %3463 = vmatprep.subr.mxu0 0.0
    %3464 = vmatpush1.msra.mxu0 0.0
    %3465 = vmatprep.subr.mxu0 0.0
    %3466 = vmatpush1.msra.mxu0 0.0
    %3467 = vmatprep.subr.mxu0 0.0
    %3468 = vmatpush1.msra.mxu0 0.0
    %3469 = vmatprep.subr.mxu0 0.0
    %3470 = vmatpush1.msra.mxu0 0.0
    %3471 = vmatprep.subr.mxu0 0.0
    %3472 = vmatpush1.msra.mxu0 0.0
    %3473 = vmatprep.subr.mxu0 0.0
    %3474 = vmatpush1.msra.mxu0 0.0
    %3475 = vmatprep.subr.mxu0 0.0
    %3476 = vmatpush1.msra.mxu0 0.0
    %3477 = vmatprep.subr.mxu0 0.0
    %3478 = vmatpush1.msra.mxu0 0.0
    %3479 = vmatprep.subr.mxu0 0.0
    %3480 = vmatpush1.msra.mxu0 0.0
    %3481 = vmatprep.subr.mxu0 0.0
    %3482 = vmatpush1.msra.mxu0 0.0
    %3483 = vmatprep.subr.mxu0 0.0
    %3484 = vmatpush1.msra.mxu0 %v3446
    %3485 = vmatprep.subr.mxu0 0.0
    %3486 = vmatpush1.msra.mxu0 %v3444
    %3487 = vmatprep.subr.mxu0 0.0
    %3488 = vmatpush2.msra.mxu0 0.0
    %3489 = vmatprep.subr.mxu0 0.0
    %3490 = vmatpush2.msra.mxu0 0.0
    %3491 = vmatprep.subr.mxu0 0.0
    %3492 = vmatpush2.msra.mxu0 0.0
    %3493 = vmatprep.subr.mxu0 0.0
    %3494 = vmatpush2.msra.mxu0 0.0
    %3495 = vmatprep.subr.mxu0 0.0
    %3496 = vmatpush2.msra.mxu0 0.0
    %3497 = vmatprep.subr.mxu0 0.0
    %3498 = vmatpush2.msra.mxu0 0.0
    %3499 = vmatprep.subr.mxu0 0.0
    %3500 = vmatpush2.msra.mxu0 0.0
    %3501 = vmatprep.subr.mxu0 0.0
    %3502 = vmatpush2.msra.mxu0 0.0
    %3503 = vmatprep.subr.mxu0 0.0
    %3504 = vmatpush2.msra.mxu0 0.0
    %3505 = vmatprep.subr.mxu0 0.0
    %3506 = vmatpush2.msra.mxu0 0.0
    %3507 = vmatprep.subr.mxu0 0.0
    %3508 = vmatpush2.msra.mxu0 0.0
    %3509 = vmatprep.subr.mxu0 0.0
    %3510 = vmatpush2.msra.mxu0 0.0
    %3511 = vmatprep.subr.mxu0 0.0
    %3512 = vmatpush2.msra.mxu0 0.0
    %3513 = vmatprep.subr.mxu0 0.0
    %3514 = vmatpush2.msra.mxu0 0.0
    %3515 = vmatprep.subr.mxu0 0.0
    %3516 = vmatpush2.msra.mxu0 0.0
    %3517 = vmatprep.subr.mxu0 0.0
    %3518 = vmatpush2.msra.mxu0 0.0
    %3519 = vmatprep.mubr.f32.mxu0 0.0
    %3520 = vmatmul.mubr.f32.gmra.mxu0 %v3450
    %v3521 = vpop.f32.mrf.mxu0
    %v3522 = vadd.f32 0.0, %v3521
    %v3523 = vpop.f32.mrf.mxu0
    %3524 = vmatprep.mubr.f32.mxu0 0.0
    %3525 = vmatmul.mubr.f32.gmra.mxu0 %v3453
    %v3526 = vpop.f32.mrf.mxu0
    %v3527 = vadd.f32 0.0, %v3526
    %v3528 = vpop.f32.mrf.mxu0
    %3529 = vdwg.mxu0
    %s3530 = sld [smem:[#allocation8 + $0x3]]
    %v3531 = vstv %s3530
    %v3532 = vsel %vm810, %v3531, 0.0
    %v3533 = vsel %vm811, %v3531, 0.0
    %v3534 = vsel %vm812, %v3531, 0.0
    %v3535 = vsel %vm813, %v3531, 0.0
    %v3536 = vsel %vm814, %v3531, 0.0
    %v3537 = vsel %vm815, %v3531, 0.0
    %v3538 = vsel %vm816, %v3531, 0.0
    %v3539 = vsel %vm817, %v3531, 0.0
    %s3540 = sld [smem:[#allocation8 + $0x83]]
    %v3541 = vstv %s3540
    %v3542 = vsel %vm818, %v3541, %v3532
    %v3543 = vsel %vm819, %v3541, %v3533
    %v3544 = vsel %vm820, %v3541, %v3534
    %v3545 = vsel %vm821, %v3541, %v3535
    %v3546 = vsel %vm822, %v3541, %v3536
    %v3547 = vsel %vm823, %v3541, %v3537
    %v3548 = vsel %vm824, %v3541, %v3538
    %v3549 = vsel %vm825, %v3541, %v3539
    %s3550 = sld [smem:[#allocation8 + $0x103]]
    %v3551 = vstv %s3550
    %v3552 = vsel %vm826, %v3551, %v3542
    %v3553 = vsel %vm827, %v3551, %v3543
    %v3554 = vsel %vm828, %v3551, %v3544
    %v3555 = vsel %vm829, %v3551, %v3545
    %v3556 = vsel %vm830, %v3551, %v3546
    %v3557 = vsel %vm831, %v3551, %v3547
    %v3558 = vsel %vm832, %v3551, %v3548
    %v3559 = vsel %vm833, %v3551, %v3549
    %s3560 = sld [smem:[#allocation8 + $0x183]]
    %v3561 = vstv %s3560
    %v3562 = vsel %vm834, %v3561, %v3552
    %v3563 = vsel %vm835, %v3561, %v3553
    %v3564 = vsel %vm836, %v3561, %v3554
    %v3565 = vsel %vm837, %v3561, %v3555
    %v3566 = vsel %vm838, %v3561, %v3556
    %v3567 = vsel %vm839, %v3561, %v3557
    %v3568 = vsel %vm840, %v3561, %v3558
    %v3569 = vsel %vm841, %v3561, %v3559
    %s3570 = sld [smem:[#allocation8 + $0x203]]
    %v3571 = vstv %s3570
    %v3572 = vsel %vm842, %v3571, %v3562
    %v3573 = vsel %vm843, %v3571, %v3563
    %v3574 = vsel %vm844, %v3571, %v3564
    %v3575 = vsel %vm845, %v3571, %v3565
    %v3576 = vsel %vm846, %v3571, %v3566
    %v3577 = vsel %vm847, %v3571, %v3567
    %v3578 = vsel %vm848, %v3571, %v3568
    %v3579 = vsel %vm849, %v3571, %v3569
    %s3580 = sld [smem:[#allocation8 + $0x283]]
    %v3581 = vstv %s3580
    %v3582 = vsel %vm850, %v3581, %v3572
    %v3583 = vsel %vm851, %v3581, %v3573
    %v3584 = vsel %vm852, %v3581, %v3574
    %v3585 = vsel %vm853, %v3581, %v3575
    %v3586 = vsel %vm854, %v3581, %v3576
    %v3587 = vsel %vm855, %v3581, %v3577
    %v3588 = vsel %vm856, %v3581, %v3578
    %v3589 = vsel %vm857, %v3581, %v3579
    %s3590 = sld [smem:[#allocation8 + $0x303]]
    %v3591 = vstv %s3590
    %v3592 = vsel %vm858, %v3591, %v3582
    %v3593 = vsel %vm859, %v3591, %v3583
    %v3594 = vsel %vm860, %v3591, %v3584
    %v3595 = vsel %vm861, %v3591, %v3585
    %v3596 = vsel %vm862, %v3591, %v3586
    %v3597 = vsel %vm863, %v3591, %v3587
    %v3598 = vsel %vm864, %v3591, %v3588
    %v3599 = vsel %vm865, %v3591, %v3589
    %s3600 = sld [smem:[#allocation8 + $0x383]]
    %v3601 = vstv %s3600
    %v3602 = vsel %vm866, %v3601, %v3592
    %v3603 = vsel %vm867, %v3601, %v3593
    %v3604 = vsel %vm868, %v3601, %v3594
    %v3605 = vsel %vm869, %v3601, %v3595
    %v3606 = vsel %vm870, %v3601, %v3596
    %v3607 = vsel %vm871, %v3601, %v3597
    %v3608 = vsel %vm872, %v3601, %v3598
    %v3609 = vsel %vm873, %v3601, %v3599
    %s3610 = sld [smem:[#allocation8 + $0x403]]
    %v3611 = vstv %s3610
    %v3612 = vsel %vm874, %v3611, %v3602
    %v3613 = vsel %vm875, %v3611, %v3603
    %v3614 = vsel %vm876, %v3611, %v3604
    %v3615 = vsel %vm877, %v3611, %v3605
    %v3616 = vsel %vm878, %v3611, %v3606
    %v3617 = vsel %vm879, %v3611, %v3607
    %v3618 = vsel %vm880, %v3611, %v3608
    %v3619 = vsel %vm881, %v3611, %v3609
    %3620 = vrot.lane.b32.xlu0 %v342, 104
    %v3621 = vpop.permute.xlu0 %3620
    %3622 = vrot.lane.b32.xlu0 %v348, 104
    %v3623 = vpop.permute.xlu0 %3622
    %3624 = vrot.lane.b32.xlu0 %v342, 40
    %v3625 = vpop.permute.xlu0 %3624
    %3626 = vrot.lane.b32.xlu0 %v348, 40
    %v3627 = vpop.permute.xlu0 %3626
    %v3628 = vsel %vm978, %v3621, 0
    %v3630 = vsel %vm978, %v3623, 0
    %v3632 = vsel %vm978, %v3625, 0
    %v3634 = vsel %vm978, %v3627, 0
    %3636 = vmatprep.subr.mxu0 0.0
    %3637 = vmatpush1.xpose.msra.mxu0 0.0
    %3638 = vmatprep.subr.mxu0 0.0
    %3639 = vmatpush1.xpose.msra.mxu0 0.0
    %3640 = vmatprep.subr.mxu0 0.0
    %3641 = vmatpush1.xpose.msra.mxu0 0.0
    %3642 = vmatprep.subr.mxu0 0.0
    %3643 = vmatpush1.xpose.msra.mxu0 0.0
    %3644 = vmatprep.subr.mxu0 0.0
    %3645 = vmatpush1.xpose.msra.mxu0 0.0
    %3646 = vmatprep.subr.mxu0 0.0
    %3647 = vmatpush1.xpose.msra.mxu0 0.0
    %3648 = vmatprep.subr.mxu0 0.0
    %3649 = vmatpush1.xpose.msra.mxu0 0.0
    %3650 = vmatprep.subr.mxu0 0.0
    %3651 = vmatpush1.xpose.msra.mxu0 0.0
    %3652 = vmatprep.subr.mxu0 0.0
    %3653 = vmatpush1.xpose.msra.mxu0 0.0
    %3654 = vmatprep.subr.mxu0 0.0
    %3655 = vmatpush1.xpose.msra.mxu0 0.0
    %3656 = vmatprep.subr.mxu0 0.0
    %3657 = vmatpush1.xpose.msra.mxu0 0.0
    %3658 = vmatprep.subr.mxu0 0.0
    %3659 = vmatpush1.xpose.msra.mxu0 0.0
    %3660 = vmatprep.subr.mxu0 0.0
    %3661 = vmatpush1.xpose.msra.mxu0 0.0
    %3662 = vmatprep.subr.mxu0 0.0
    %3663 = vmatpush1.xpose.msra.mxu0 0.0
    %3664 = vmatprep.subr.mxu0 0.0
    %3665 = vmatpush1.xpose.msra.mxu0 %v3634
    %3666 = vmatprep.subr.mxu0 0.0
    %3667 = vmatpush1.xpose.msra.mxu0 %v3632
    %3668 = vmatprep.subr.mxu0 0.0
    %3669 = vmatpush2.xpose.msra.mxu0 0.0
    %3670 = vmatprep.subr.mxu0 0.0
    %3671 = vmatpush2.xpose.msra.mxu0 0.0
    %3672 = vmatprep.subr.mxu0 0.0
    %3673 = vmatpush2.xpose.msra.mxu0 0.0
    %3674 = vmatprep.subr.mxu0 0.0
    %3675 = vmatpush2.xpose.msra.mxu0 0.0
    %3676 = vmatprep.subr.mxu0 0.0
    %3677 = vmatpush2.xpose.msra.mxu0 0.0
    %3678 = vmatprep.subr.mxu0 0.0
    %3679 = vmatpush2.xpose.msra.mxu0 0.0
    %3680 = vmatprep.subr.mxu0 0.0
    %3681 = vmatpush2.xpose.msra.mxu0 0.0
    %3682 = vmatprep.subr.mxu0 0.0
    %3683 = vmatpush2.xpose.msra.mxu0 0.0
    %3684 = vmatprep.subr.mxu0 0.0
    %3685 = vmatpush2.xpose.msra.mxu0 0.0
    %3686 = vmatprep.subr.mxu0 0.0
    %3687 = vmatpush2.xpose.msra.mxu0 0.0
    %3688 = vmatprep.subr.mxu0 0.0
    %3689 = vmatpush2.xpose.msra.mxu0 0.0
    %3690 = vmatprep.subr.mxu0 0.0
    %3691 = vmatpush2.xpose.msra.mxu0 0.0
    %3692 = vmatprep.subr.mxu0 0.0
    %3693 = vmatpush2.xpose.msra.mxu0 0.0
    %3694 = vmatprep.subr.mxu0 0.0
    %3695 = vmatpush2.xpose.msra.mxu0 0.0
    %3696 = vmatprep.subr.mxu0 0.0
    %3697 = vmatpush2.xpose.msra.mxu0 0.0
    %3698 = vmatprep.subr.mxu0 0.0
    %3699 = vmatpush2.xpose.msra.mxu0 0.0
    %3700 = vmatprep.mubr.f32.mxu0 0.0
    %3701 = vmatmul.mubr.f32.gmra.mxu0 %v3628
    %v3702 = vpop.f32.mrf.mxu0
    %v3703 = vadd.f32 %v3612, %v3702
    %v3704 = vpop.f32.mrf.mxu0
    %3705 = vmatprep.mubr.f32.mxu0 0.0
    %3706 = vmatmul.mubr.f32.gmra.mxu0 %v3630
    %v3707 = vpop.f32.mrf.mxu0
    %v3708 = vadd.f32 %v3613, %v3707
    %v3709 = vpop.f32.mrf.mxu0
    %3710 = vdwg.mxu0
    %3711 = vrot.lane.b32.xlu0 %v354, 104
    %v3712 = vpop.permute.xlu0 %3711
    %3713 = vrot.lane.b32.xlu0 %v360, 104
    %v3714 = vpop.permute.xlu0 %3713
    %3715 = vrot.lane.b32.xlu0 %v354, 40
    %v3716 = vpop.permute.xlu0 %3715
    %3717 = vrot.lane.b32.xlu0 %v360, 40
    %v3718 = vpop.permute.xlu0 %3717
    %v3719 = vsel %vm978, %v3712, 0
    %v3721 = vsel %vm978, %v3714, 0
    %v3723 = vsel %vm978, %v3716, 0
    %v3725 = vsel %vm978, %v3718, 0
    %3727 = vmatprep.subr.mxu0 0.0
    %3728 = vmatpush1.xpose.msra.mxu0 0.0
    %3729 = vmatprep.subr.mxu0 0.0
    %3730 = vmatpush1.xpose.msra.mxu0 0.0
    %3731 = vmatprep.subr.mxu0 0.0
    %3732 = vmatpush1.xpose.msra.mxu0 0.0
    %3733 = vmatprep.subr.mxu0 0.0
    %3734 = vmatpush1.xpose.msra.mxu0 0.0
    %3735 = vmatprep.subr.mxu0 0.0
    %3736 = vmatpush1.xpose.msra.mxu0 0.0
    %3737 = vmatprep.subr.mxu0 0.0
    %3738 = vmatpush1.xpose.msra.mxu0 0.0
    %3739 = vmatprep.subr.mxu0 0.0
    %3740 = vmatpush1.xpose.msra.mxu0 0.0
    %3741 = vmatprep.subr.mxu0 0.0
    %3742 = vmatpush1.xpose.msra.mxu0 0.0
    %3743 = vmatprep.subr.mxu0 0.0
    %3744 = vmatpush1.xpose.msra.mxu0 0.0
    %3745 = vmatprep.subr.mxu0 0.0
    %3746 = vmatpush1.xpose.msra.mxu0 0.0
    %3747 = vmatprep.subr.mxu0 0.0
    %3748 = vmatpush1.xpose.msra.mxu0 0.0
    %3749 = vmatprep.subr.mxu0 0.0
    %3750 = vmatpush1.xpose.msra.mxu0 0.0
    %3751 = vmatprep.subr.mxu0 0.0
    %3752 = vmatpush1.xpose.msra.mxu0 0.0
    %3753 = vmatprep.subr.mxu0 0.0
    %3754 = vmatpush1.xpose.msra.mxu0 0.0
    %3755 = vmatprep.subr.mxu0 0.0
    %3756 = vmatpush1.xpose.msra.mxu0 %v3725
    %3757 = vmatprep.subr.mxu0 0.0
    %3758 = vmatpush1.xpose.msra.mxu0 %v3723
    %3759 = vmatprep.subr.mxu0 0.0
    %3760 = vmatpush2.xpose.msra.mxu0 0.0
    %3761 = vmatprep.subr.mxu0 0.0
    %3762 = vmatpush2.xpose.msra.mxu0 0.0
    %3763 = vmatprep.subr.mxu0 0.0
    %3764 = vmatpush2.xpose.msra.mxu0 0.0
    %3765 = vmatprep.subr.mxu0 0.0
    %3766 = vmatpush2.xpose.msra.mxu0 0.0
    %3767 = vmatprep.subr.mxu0 0.0
    %3768 = vmatpush2.xpose.msra.mxu0 0.0
    %3769 = vmatprep.subr.mxu0 0.0
    %3770 = vmatpush2.xpose.msra.mxu0 0.0
    %3771 = vmatprep.subr.mxu0 0.0
    %3772 = vmatpush2.xpose.msra.mxu0 0.0
    %3773 = vmatprep.subr.mxu0 0.0
    %3774 = vmatpush2.xpose.msra.mxu0 0.0
    %3775 = vmatprep.subr.mxu0 0.0
    %3776 = vmatpush2.xpose.msra.mxu0 0.0
    %3777 = vmatprep.subr.mxu0 0.0
    %3778 = vmatpush2.xpose.msra.mxu0 0.0
    %3779 = vmatprep.subr.mxu0 0.0
    %3780 = vmatpush2.xpose.msra.mxu0 0.0
    %3781 = vmatprep.subr.mxu0 0.0
    %3782 = vmatpush2.xpose.msra.mxu0 0.0
    %3783 = vmatprep.subr.mxu0 0.0
    %3784 = vmatpush2.xpose.msra.mxu0 0.0
    %3785 = vmatprep.subr.mxu0 0.0
    %3786 = vmatpush2.xpose.msra.mxu0 0.0
    %3787 = vmatprep.subr.mxu0 0.0
    %3788 = vmatpush2.xpose.msra.mxu0 0.0
    %3789 = vmatprep.subr.mxu0 0.0
    %3790 = vmatpush2.xpose.msra.mxu0 0.0
    %3791 = vmatprep.mubr.f32.mxu0 0.0
    %3792 = vmatmul.mubr.f32.gmra.mxu0 %v3719
    %v3793 = vpop.f32.mrf.mxu0
    %v3794 = vadd.f32 %v3614, %v3793
    %v3795 = vpop.f32.mrf.mxu0
    %3796 = vmatprep.mubr.f32.mxu0 0.0
    %3797 = vmatmul.mubr.f32.gmra.mxu0 %v3721
    %v3798 = vpop.f32.mrf.mxu0
    %v3799 = vadd.f32 %v3615, %v3798
    %v3800 = vpop.f32.mrf.mxu0
    %3801 = vdwg.mxu0
    %3802 = vrot.lane.b32.xlu0 %v366, 104
    %v3803 = vpop.permute.xlu0 %3802
    %3804 = vrot.lane.b32.xlu0 %v372, 104
    %v3805 = vpop.permute.xlu0 %3804
    %3806 = vrot.lane.b32.xlu0 %v366, 40
    %v3807 = vpop.permute.xlu0 %3806
    %3808 = vrot.lane.b32.xlu0 %v372, 40
    %v3809 = vpop.permute.xlu0 %3808
    %v3810 = vsel %vm978, %v3803, 0
    %v3812 = vsel %vm978, %v3805, 0
    %v3814 = vsel %vm978, %v3807, 0
    %v3816 = vsel %vm978, %v3809, 0
    %3818 = vmatprep.subr.mxu0 0.0
    %3819 = vmatpush1.xpose.msra.mxu0 0.0
    %3820 = vmatprep.subr.mxu0 0.0
    %3821 = vmatpush1.xpose.msra.mxu0 0.0
    %3822 = vmatprep.subr.mxu0 0.0
    %3823 = vmatpush1.xpose.msra.mxu0 0.0
    %3824 = vmatprep.subr.mxu0 0.0
    %3825 = vmatpush1.xpose.msra.mxu0 0.0
    %3826 = vmatprep.subr.mxu0 0.0
    %3827 = vmatpush1.xpose.msra.mxu0 0.0
    %3828 = vmatprep.subr.mxu0 0.0
    %3829 = vmatpush1.xpose.msra.mxu0 0.0
    %3830 = vmatprep.subr.mxu0 0.0
    %3831 = vmatpush1.xpose.msra.mxu0 0.0
    %3832 = vmatprep.subr.mxu0 0.0
    %3833 = vmatpush1.xpose.msra.mxu0 0.0
    %3834 = vmatprep.subr.mxu0 0.0
    %3835 = vmatpush1.xpose.msra.mxu0 0.0
    %3836 = vmatprep.subr.mxu0 0.0
    %3837 = vmatpush1.xpose.msra.mxu0 0.0
    %3838 = vmatprep.subr.mxu0 0.0
    %3839 = vmatpush1.xpose.msra.mxu0 0.0
    %3840 = vmatprep.subr.mxu0 0.0
    %3841 = vmatpush1.xpose.msra.mxu0 0.0
    %3842 = vmatprep.subr.mxu0 0.0
    %3843 = vmatpush1.xpose.msra.mxu0 0.0
    %3844 = vmatprep.subr.mxu0 0.0
    %3845 = vmatpush1.xpose.msra.mxu0 0.0
    %3846 = vmatprep.subr.mxu0 0.0
    %3847 = vmatpush1.xpose.msra.mxu0 %v3816
    %3848 = vmatprep.subr.mxu0 0.0
    %3849 = vmatpush1.xpose.msra.mxu0 %v3814
    %3850 = vmatprep.subr.mxu0 0.0
    %3851 = vmatpush2.xpose.msra.mxu0 0.0
    %3852 = vmatprep.subr.mxu0 0.0
    %3853 = vmatpush2.xpose.msra.mxu0 0.0
    %3854 = vmatprep.subr.mxu0 0.0
    %3855 = vmatpush2.xpose.msra.mxu0 0.0
    %3856 = vmatprep.subr.mxu0 0.0
    %3857 = vmatpush2.xpose.msra.mxu0 0.0
    %3858 = vmatprep.subr.mxu0 0.0
    %3859 = vmatpush2.xpose.msra.mxu0 0.0
    %3860 = vmatprep.subr.mxu0 0.0
    %3861 = vmatpush2.xpose.msra.mxu0 0.0
    %3862 = vmatprep.subr.mxu0 0.0
    %3863 = vmatpush2.xpose.msra.mxu0 0.0
    %3864 = vmatprep.subr.mxu0 0.0
    %3865 = vmatpush2.xpose.msra.mxu0 0.0
    %3866 = vmatprep.subr.mxu0 0.0
    %3867 = vmatpush2.xpose.msra.mxu0 0.0
    %3868 = vmatprep.subr.mxu0 0.0
    %3869 = vmatpush2.xpose.msra.mxu0 0.0
    %3870 = vmatprep.subr.mxu0 0.0
    %3871 = vmatpush2.xpose.msra.mxu0 0.0
    %3872 = vmatprep.subr.mxu0 0.0
    %3873 = vmatpush2.xpose.msra.mxu0 0.0
    %3874 = vmatprep.subr.mxu0 0.0
    %3875 = vmatpush2.xpose.msra.mxu0 0.0
    %3876 = vmatprep.subr.mxu0 0.0
    %3877 = vmatpush2.xpose.msra.mxu0 0.0
    %3878 = vmatprep.subr.mxu0 0.0
    %3879 = vmatpush2.xpose.msra.mxu0 0.0
    %3880 = vmatprep.subr.mxu0 0.0
    %3881 = vmatpush2.xpose.msra.mxu0 0.0
    %3882 = vmatprep.mubr.f32.mxu0 0.0
    %3883 = vmatmul.mubr.f32.gmra.mxu0 %v3810
    %v3884 = vpop.f32.mrf.mxu0
    %v3885 = vadd.f32 %v3616, %v3884
    %v3886 = vpop.f32.mrf.mxu0
    %3887 = vmatprep.mubr.f32.mxu0 0.0
    %3888 = vmatmul.mubr.f32.gmra.mxu0 %v3812
    %v3889 = vpop.f32.mrf.mxu0
    %v3890 = vadd.f32 %v3617, %v3889
    %v3891 = vpop.f32.mrf.mxu0
    %3892 = vdwg.mxu0
    %3893 = vrot.lane.b32.xlu0 %v378, 104
    %v3894 = vpop.permute.xlu0 %3893
    %3895 = vrot.lane.b32.xlu0 %v384, 104
    %v3896 = vpop.permute.xlu0 %3895
    %3897 = vrot.lane.b32.xlu0 %v378, 40
    %v3898 = vpop.permute.xlu0 %3897
    %3899 = vrot.lane.b32.xlu0 %v384, 40
    %v3900 = vpop.permute.xlu0 %3899
    %v3901 = vsel %vm978, %v3894, 0
    %v3903 = vsel %vm978, %v3896, 0
    %v3905 = vsel %vm978, %v3898, 0
    %v3907 = vsel %vm978, %v3900, 0
    %3909 = vmatprep.subr.mxu0 0.0
    %3910 = vmatpush1.xpose.msra.mxu0 0.0
    %3911 = vmatprep.subr.mxu0 0.0
    %3912 = vmatpush1.xpose.msra.mxu0 0.0
    %3913 = vmatprep.subr.mxu0 0.0
    %3914 = vmatpush1.xpose.msra.mxu0 0.0
    %3915 = vmatprep.subr.mxu0 0.0
    %3916 = vmatpush1.xpose.msra.mxu0 0.0
    %3917 = vmatprep.subr.mxu0 0.0
    %3918 = vmatpush1.xpose.msra.mxu0 0.0
    %3919 = vmatprep.subr.mxu0 0.0
    %3920 = vmatpush1.xpose.msra.mxu0 0.0
    %3921 = vmatprep.subr.mxu0 0.0
    %3922 = vmatpush1.xpose.msra.mxu0 0.0
    %3923 = vmatprep.subr.mxu0 0.0
    %3924 = vmatpush1.xpose.msra.mxu0 0.0
    %3925 = vmatprep.subr.mxu0 0.0
    %3926 = vmatpush1.xpose.msra.mxu0 0.0
    %3927 = vmatprep.subr.mxu0 0.0
    %3928 = vmatpush1.xpose.msra.mxu0 0.0
    %3929 = vmatprep.subr.mxu0 0.0
    %3930 = vmatpush1.xpose.msra.mxu0 0.0
    %3931 = vmatprep.subr.mxu0 0.0
    %3932 = vmatpush1.xpose.msra.mxu0 0.0
    %3933 = vmatprep.subr.mxu0 0.0
    %3934 = vmatpush1.xpose.msra.mxu0 0.0
    %3935 = vmatprep.subr.mxu0 0.0
    %3936 = vmatpush1.xpose.msra.mxu0 0.0
    %3937 = vmatprep.subr.mxu0 0.0
    %3938 = vmatpush1.xpose.msra.mxu0 %v3907
    %3939 = vmatprep.subr.mxu0 0.0
    %3940 = vmatpush1.xpose.msra.mxu0 %v3905
    %3941 = vmatprep.subr.mxu0 0.0
    %3942 = vmatpush2.xpose.msra.mxu0 0.0
    %3943 = vmatprep.subr.mxu0 0.0
    %3944 = vmatpush2.xpose.msra.mxu0 0.0
    %3945 = vmatprep.subr.mxu0 0.0
    %3946 = vmatpush2.xpose.msra.mxu0 0.0
    %3947 = vmatprep.subr.mxu0 0.0
    %3948 = vmatpush2.xpose.msra.mxu0 0.0
    %3949 = vmatprep.subr.mxu0 0.0
    %3950 = vmatpush2.xpose.msra.mxu0 0.0
    %3951 = vmatprep.subr.mxu0 0.0
    %3952 = vmatpush2.xpose.msra.mxu0 0.0
    %3953 = vmatprep.subr.mxu0 0.0
    %3954 = vmatpush2.xpose.msra.mxu0 0.0
    %3955 = vmatprep.subr.mxu0 0.0
    %3956 = vmatpush2.xpose.msra.mxu0 0.0
    %3957 = vmatprep.subr.mxu0 0.0
    %3958 = vmatpush2.xpose.msra.mxu0 0.0
    %3959 = vmatprep.subr.mxu0 0.0
    %3960 = vmatpush2.xpose.msra.mxu0 0.0
    %3961 = vmatprep.subr.mxu0 0.0
    %3962 = vmatpush2.xpose.msra.mxu0 0.0
    %3963 = vmatprep.subr.mxu0 0.0
    %3964 = vmatpush2.xpose.msra.mxu0 0.0
    %3965 = vmatprep.subr.mxu0 0.0
    %3966 = vmatpush2.xpose.msra.mxu0 0.0
    %3967 = vmatprep.subr.mxu0 0.0
    %3968 = vmatpush2.xpose.msra.mxu0 0.0
    %3969 = vmatprep.subr.mxu0 0.0
    %3970 = vmatpush2.xpose.msra.mxu0 0.0
    %3971 = vmatprep.subr.mxu0 0.0
    %3972 = vmatpush2.xpose.msra.mxu0 0.0
    %3973 = vmatprep.mubr.f32.mxu0 0.0
    %3974 = vmatmul.mubr.f32.gmra.mxu0 %v3901
    %v3975 = vpop.f32.mrf.mxu0
    %v3976 = vadd.f32 %v3618, %v3975
    %v3977 = vpop.f32.mrf.mxu0
    %3978 = vmatprep.mubr.f32.mxu0 0.0
    %3979 = vmatmul.mubr.f32.gmra.mxu0 %v3903
    %v3980 = vpop.f32.mrf.mxu0
    %v3981 = vadd.f32 %v3619, %v3980
    %v3982 = vpop.f32.mrf.mxu0
    %3983 = vdwg.mxu0
    %v3984 = vsel %vm1329, %v3703, -inf
    %3985 = vmax.xlane.f32.xlu0 %v3984
    %v3986 = vpop.xlane.xlu0 %3985
    %v3987 = vsel %vm1329, %v3708, -inf
    %3988 = vmax.xlane.f32.xlu0 %v3987
    %v3989 = vpop.xlane.xlu0 %3988
    %v3990 = vsel %vm1329, %v3794, -inf
    %3991 = vmax.xlane.f32.xlu0 %v3990
    %v3992 = vpop.xlane.xlu0 %3991
    %v3993 = vsel %vm1329, %v3799, -inf
    %3994 = vmax.xlane.f32.xlu0 %v3993
    %v3995 = vpop.xlane.xlu0 %3994
    %v3996 = vsel %vm1329, %v3885, -inf
    %3997 = vmax.xlane.f32.xlu0 %v3996
    %v3998 = vpop.xlane.xlu0 %3997
    %v3999 = vsel %vm1329, %v3890, -inf
    %4000 = vmax.xlane.f32.xlu0 %v3999
    %v4001 = vpop.xlane.xlu0 %4000
    %v4002 = vsel %vm1329, %v3976, -inf
    %4003 = vmax.xlane.f32.xlu0 %v4002
    %v4004 = vpop.xlane.xlu0 %4003
    %v4005 = vsel %vm1329, %v3981, -inf
    %4006 = vmax.xlane.f32.xlu0 %v4005
    %v4007 = vpop.xlane.xlu0 %4006
    %v4008 = vsub.f32 %v3703, %v3986
    %v4009 = vsub.f32 %v3708, %v3989
    %v4010 = vsub.f32 %v3794, %v3992
    %v4011 = vsub.f32 %v3799, %v3995
    %v4012 = vsub.f32 %v3885, %v3998
    %v4013 = vsub.f32 %v3890, %v4001
    %v4014 = vsub.f32 %v3976, %v4004
    %v4015 = vsub.f32 %v3981, %v4007
    %v4016 = vmul.f32 %v4008, 1.442695
    %v4017 = vpow.pop %v4016
    %v4018 = vmul.f32 %v4009, 1.442695
    %v4019 = vpow.pop %v4018
    %v4020 = vmul.f32 %v4010, 1.442695
    %v4021 = vpow.pop %v4020
    %v4022 = vmul.f32 %v4011, 1.442695
    %v4023 = vpow.pop %v4022
    %v4024 = vmul.f32 %v4012, 1.442695
    %v4025 = vpow.pop %v4024
    %v4026 = vmul.f32 %v4013, 1.442695
    %v4027 = vpow.pop %v4026
    %v4028 = vmul.f32 %v4014, 1.442695
    %v4029 = vpow.pop %v4028
    %v4030 = vmul.f32 %v4015, 1.442695
    %v4031 = vpow.pop %v4030
    %v4032 = vsel %vm1329, %v4017, 0.0
    %4033 = vadd.xlane.f32.xlu0 %v4032
    %v4034 = vpop.xlane.xlu0 %4033
    %v4035 = vsel %vm1329, %v4019, 0.0
    %4036 = vadd.xlane.f32.xlu0 %v4035
    %v4037 = vpop.xlane.xlu0 %4036
    %v4038 = vsel %vm1329, %v4021, 0.0
    %4039 = vadd.xlane.f32.xlu0 %v4038
    %v4040 = vpop.xlane.xlu0 %4039
    %v4041 = vsel %vm1329, %v4023, 0.0
    %4042 = vadd.xlane.f32.xlu0 %v4041
    %v4043 = vpop.xlane.xlu0 %4042
    %v4044 = vsel %vm1329, %v4025, 0.0
    %4045 = vadd.xlane.f32.xlu0 %v4044
    %v4046 = vpop.xlane.xlu0 %4045
    %v4047 = vsel %vm1329, %v4027, 0.0
    %4048 = vadd.xlane.f32.xlu0 %v4047
    %v4049 = vpop.xlane.xlu0 %4048
    %v4050 = vsel %vm1329, %v4029, 0.0
    %4051 = vadd.xlane.f32.xlu0 %v4050
    %v4052 = vpop.xlane.xlu0 %4051
    %v4053 = vsel %vm1329, %v4031, 0.0
    %4054 = vadd.xlane.f32.xlu0 %v4053
    %v4055 = vpop.xlane.xlu0 %4054
    %v4056 = vrcp.pop %v4034
    %v4057 = vrcp.pop %v4037
    %v4058 = vrcp.pop %v4040
    %v4059 = vrcp.pop %v4043
    %v4060 = vrcp.pop %v4046
    %v4061 = vrcp.pop %v4049
    %v4062 = vrcp.pop %v4052
    %v4063 = vrcp.pop %v4055
    %v4064 = vmul.f32 %v4017, %v4056
    %v4065 = vmul.f32 %v4019, %v4057
    %v4066 = vmul.f32 %v4021, %v4058
    %v4067 = vmul.f32 %v4023, %v4059
    %v4068 = vmul.f32 %v4025, %v4060
    %v4069 = vmul.f32 %v4027, %v4061
    %v4070 = vmul.f32 %v4029, %v4062
    %v4071 = vmul.f32 %v4031, %v4063
    %4072 = vrot.lane.b32.xlu0 %v344, 104
    %v4073 = vpop.permute.xlu0 %4072
    %4074 = vrot.lane.b32.xlu0 %v350, 104
    %v4075 = vpop.permute.xlu0 %4074
    %v4079 = vsel %vm1329, %v4064, 0
    %v4082 = vsel %vm1329, %v4065, 0
    %4084 = vmatprep.subr.mxu0 0.0
    %4085 = vmatpush1.msra.mxu0 0.0
    %4086 = vmatprep.subr.mxu0 0.0
    %4087 = vmatpush1.msra.mxu0 0.0
    %4088 = vmatprep.subr.mxu0 0.0
    %4089 = vmatpush1.msra.mxu0 0.0
    %4090 = vmatprep.subr.mxu0 0.0
    %4091 = vmatpush1.msra.mxu0 0.0
    %4092 = vmatprep.subr.mxu0 0.0
    %4093 = vmatpush1.msra.mxu0 0.0
    %4094 = vmatprep.subr.mxu0 0.0
    %4095 = vmatpush1.msra.mxu0 0.0
    %4096 = vmatprep.subr.mxu0 0.0
    %4097 = vmatpush1.msra.mxu0 0.0
    %4098 = vmatprep.subr.mxu0 0.0
    %4099 = vmatpush1.msra.mxu0 0.0
    %4100 = vmatprep.subr.mxu0 0.0
    %4101 = vmatpush1.msra.mxu0 0.0
    %4102 = vmatprep.subr.mxu0 0.0
    %4103 = vmatpush1.msra.mxu0 0.0
    %4104 = vmatprep.subr.mxu0 0.0
    %4105 = vmatpush1.msra.mxu0 0.0
    %4106 = vmatprep.subr.mxu0 0.0
    %4107 = vmatpush1.msra.mxu0 0.0
    %4108 = vmatprep.subr.mxu0 0.0
    %4109 = vmatpush1.msra.mxu0 0.0
    %4110 = vmatprep.subr.mxu0 0.0
    %4111 = vmatpush1.msra.mxu0 0.0
    %4112 = vmatprep.subr.mxu0 0.0
    %4113 = vmatpush1.msra.mxu0 %v4075
    %4114 = vmatprep.subr.mxu0 0.0
    %4115 = vmatpush1.msra.mxu0 %v4073
    %4116 = vmatprep.subr.mxu0 0.0
    %4117 = vmatpush2.msra.mxu0 0.0
    %4118 = vmatprep.subr.mxu0 0.0
    %4119 = vmatpush2.msra.mxu0 0.0
    %4120 = vmatprep.subr.mxu0 0.0
    %4121 = vmatpush2.msra.mxu0 0.0
    %4122 = vmatprep.subr.mxu0 0.0
    %4123 = vmatpush2.msra.mxu0 0.0
    %4124 = vmatprep.subr.mxu0 0.0
    %4125 = vmatpush2.msra.mxu0 0.0
    %4126 = vmatprep.subr.mxu0 0.0
    %4127 = vmatpush2.msra.mxu0 0.0
    %4128 = vmatprep.subr.mxu0 0.0
    %4129 = vmatpush2.msra.mxu0 0.0
    %4130 = vmatprep.subr.mxu0 0.0
    %4131 = vmatpush2.msra.mxu0 0.0
    %4132 = vmatprep.subr.mxu0 0.0
    %4133 = vmatpush2.msra.mxu0 0.0
    %4134 = vmatprep.subr.mxu0 0.0
    %4135 = vmatpush2.msra.mxu0 0.0
    %4136 = vmatprep.subr.mxu0 0.0
    %4137 = vmatpush2.msra.mxu0 0.0
    %4138 = vmatprep.subr.mxu0 0.0
    %4139 = vmatpush2.msra.mxu0 0.0
    %4140 = vmatprep.subr.mxu0 0.0
    %4141 = vmatpush2.msra.mxu0 0.0
    %4142 = vmatprep.subr.mxu0 0.0
    %4143 = vmatpush2.msra.mxu0 0.0
    %4144 = vmatprep.subr.mxu0 0.0
    %4145 = vmatpush2.msra.mxu0 0.0
    %4146 = vmatprep.subr.mxu0 0.0
    %4147 = vmatpush2.msra.mxu0 0.0
    %4148 = vmatprep.mubr.f32.mxu0 0.0
    %4149 = vmatmul.mubr.f32.gmra.mxu0 %v4079
    %v4150 = vpop.f32.mrf.mxu0
    %v4151 = vadd.f32 0.0, %v4150
    %v4152 = vpop.f32.mrf.mxu0
    %4153 = vmatprep.mubr.f32.mxu0 0.0
    %4154 = vmatmul.mubr.f32.gmra.mxu0 %v4082
    %v4155 = vpop.f32.mrf.mxu0
    %v4156 = vadd.f32 0.0, %v4155
    %v4157 = vpop.f32.mrf.mxu0
    %4158 = vdwg.mxu0
    %4159 = vrot.lane.b32.xlu0 %v356, 104
    %v4160 = vpop.permute.xlu0 %4159
    %4161 = vrot.lane.b32.xlu0 %v362, 104
    %v4162 = vpop.permute.xlu0 %4161
    %v4166 = vsel %vm1329, %v4066, 0
    %v4169 = vsel %vm1329, %v4067, 0
    %4171 = vmatprep.subr.mxu0 0.0
    %4172 = vmatpush1.msra.mxu0 0.0
    %4173 = vmatprep.subr.mxu0 0.0
    %4174 = vmatpush1.msra.mxu0 0.0
    %4175 = vmatprep.subr.mxu0 0.0
    %4176 = vmatpush1.msra.mxu0 0.0
    %4177 = vmatprep.subr.mxu0 0.0
    %4178 = vmatpush1.msra.mxu0 0.0
    %4179 = vmatprep.subr.mxu0 0.0
    %4180 = vmatpush1.msra.mxu0 0.0
    %4181 = vmatprep.subr.mxu0 0.0
    %4182 = vmatpush1.msra.mxu0 0.0
    %4183 = vmatprep.subr.mxu0 0.0
    %4184 = vmatpush1.msra.mxu0 0.0
    %4185 = vmatprep.subr.mxu0 0.0
    %4186 = vmatpush1.msra.mxu0 0.0
    %4187 = vmatprep.subr.mxu0 0.0
    %4188 = vmatpush1.msra.mxu0 0.0
    %4189 = vmatprep.subr.mxu0 0.0
    %4190 = vmatpush1.msra.mxu0 0.0
    %4191 = vmatprep.subr.mxu0 0.0
    %4192 = vmatpush1.msra.mxu0 0.0
    %4193 = vmatprep.subr.mxu0 0.0
    %4194 = vmatpush1.msra.mxu0 0.0
    %4195 = vmatprep.subr.mxu0 0.0
    %4196 = vmatpush1.msra.mxu0 0.0
    %4197 = vmatprep.subr.mxu0 0.0
    %4198 = vmatpush1.msra.mxu0 0.0
    %4199 = vmatprep.subr.mxu0 0.0
    %4200 = vmatpush1.msra.mxu0 %v4162
    %4201 = vmatprep.subr.mxu0 0.0
    %4202 = vmatpush1.msra.mxu0 %v4160
    %4203 = vmatprep.subr.mxu0 0.0
    %4204 = vmatpush2.msra.mxu0 0.0
    %4205 = vmatprep.subr.mxu0 0.0
    %4206 = vmatpush2.msra.mxu0 0.0
    %4207 = vmatprep.subr.mxu0 0.0
    %4208 = vmatpush2.msra.mxu0 0.0
    %4209 = vmatprep.subr.mxu0 0.0
    %4210 = vmatpush2.msra.mxu0 0.0
    %4211 = vmatprep.subr.mxu0 0.0
    %4212 = vmatpush2.msra.mxu0 0.0
    %4213 = vmatprep.subr.mxu0 0.0
    %4214 = vmatpush2.msra.mxu0 0.0
    %4215 = vmatprep.subr.mxu0 0.0
    %4216 = vmatpush2.msra.mxu0 0.0
    %4217 = vmatprep.subr.mxu0 0.0
    %4218 = vmatpush2.msra.mxu0 0.0
    %4219 = vmatprep.subr.mxu0 0.0
    %4220 = vmatpush2.msra.mxu0 0.0
    %4221 = vmatprep.subr.mxu0 0.0
    %4222 = vmatpush2.msra.mxu0 0.0
    %4223 = vmatprep.subr.mxu0 0.0
    %4224 = vmatpush2.msra.mxu0 0.0
    %4225 = vmatprep.subr.mxu0 0.0
    %4226 = vmatpush2.msra.mxu0 0.0
    %4227 = vmatprep.subr.mxu0 0.0
    %4228 = vmatpush2.msra.mxu0 0.0
    %4229 = vmatprep.subr.mxu0 0.0
    %4230 = vmatpush2.msra.mxu0 0.0
    %4231 = vmatprep.subr.mxu0 0.0
    %4232 = vmatpush2.msra.mxu0 0.0
    %4233 = vmatprep.subr.mxu0 0.0
    %4234 = vmatpush2.msra.mxu0 0.0
    %4235 = vmatprep.mubr.f32.mxu0 0.0
    %4236 = vmatmul.mubr.f32.gmra.mxu0 %v4166
    %v4237 = vpop.f32.mrf.mxu0
    %v4238 = vadd.f32 0.0, %v4237
    %v4239 = vpop.f32.mrf.mxu0
    %4240 = vmatprep.mubr.f32.mxu0 0.0
    %4241 = vmatmul.mubr.f32.gmra.mxu0 %v4169
    %v4242 = vpop.f32.mrf.mxu0
    %v4243 = vadd.f32 0.0, %v4242
    %v4244 = vpop.f32.mrf.mxu0
    %4245 = vdwg.mxu0
    %4246 = vrot.lane.b32.xlu0 %v368, 104
    %v4247 = vpop.permute.xlu0 %4246
    %4248 = vrot.lane.b32.xlu0 %v374, 104
    %v4249 = vpop.permute.xlu0 %4248
    %v4253 = vsel %vm1329, %v4068, 0
    %v4256 = vsel %vm1329, %v4069, 0
    %4258 = vmatprep.subr.mxu0 0.0
    %4259 = vmatpush1.msra.mxu0 0.0
    %4260 = vmatprep.subr.mxu0 0.0
    %4261 = vmatpush1.msra.mxu0 0.0
    %4262 = vmatprep.subr.mxu0 0.0
    %4263 = vmatpush1.msra.mxu0 0.0
    %4264 = vmatprep.subr.mxu0 0.0
    %4265 = vmatpush1.msra.mxu0 0.0
    %4266 = vmatprep.subr.mxu0 0.0
    %4267 = vmatpush1.msra.mxu0 0.0
    %4268 = vmatprep.subr.mxu0 0.0
    %4269 = vmatpush1.msra.mxu0 0.0
    %4270 = vmatprep.subr.mxu0 0.0
    %4271 = vmatpush1.msra.mxu0 0.0
    %4272 = vmatprep.subr.mxu0 0.0
    %4273 = vmatpush1.msra.mxu0 0.0
    %4274 = vmatprep.subr.mxu0 0.0
    %4275 = vmatpush1.msra.mxu0 0.0
    %4276 = vmatprep.subr.mxu0 0.0
    %4277 = vmatpush1.msra.mxu0 0.0
    %4278 = vmatprep.subr.mxu0 0.0
    %4279 = vmatpush1.msra.mxu0 0.0
    %4280 = vmatprep.subr.mxu0 0.0
    %4281 = vmatpush1.msra.mxu0 0.0
    %4282 = vmatprep.subr.mxu0 0.0
    %4283 = vmatpush1.msra.mxu0 0.0
    %4284 = vmatprep.subr.mxu0 0.0
    %4285 = vmatpush1.msra.mxu0 0.0
    %4286 = vmatprep.subr.mxu0 0.0
    %4287 = vmatpush1.msra.mxu0 %v4249
    %4288 = vmatprep.subr.mxu0 0.0
    %4289 = vmatpush1.msra.mxu0 %v4247
    %4290 = vmatprep.subr.mxu0 0.0
    %4291 = vmatpush2.msra.mxu0 0.0
    %4292 = vmatprep.subr.mxu0 0.0
    %4293 = vmatpush2.msra.mxu0 0.0
    %4294 = vmatprep.subr.mxu0 0.0
    %4295 = vmatpush2.msra.mxu0 0.0
    %4296 = vmatprep.subr.mxu0 0.0
    %4297 = vmatpush2.msra.mxu0 0.0
    %4298 = vmatprep.subr.mxu0 0.0
    %4299 = vmatpush2.msra.mxu0 0.0
    %4300 = vmatprep.subr.mxu0 0.0
    %4301 = vmatpush2.msra.mxu0 0.0
    %4302 = vmatprep.subr.mxu0 0.0
    %4303 = vmatpush2.msra.mxu0 0.0
    %4304 = vmatprep.subr.mxu0 0.0
    %4305 = vmatpush2.msra.mxu0 0.0
    %4306 = vmatprep.subr.mxu0 0.0
    %4307 = vmatpush2.msra.mxu0 0.0
    %4308 = vmatprep.subr.mxu0 0.0
    %4309 = vmatpush2.msra.mxu0 0.0
    %4310 = vmatprep.subr.mxu0 0.0
    %4311 = vmatpush2.msra.mxu0 0.0
    %4312 = vmatprep.subr.mxu0 0.0
    %4313 = vmatpush2.msra.mxu0 0.0
    %4314 = vmatprep.subr.mxu0 0.0
    %4315 = vmatpush2.msra.mxu0 0.0
    %4316 = vmatprep.subr.mxu0 0.0
    %4317 = vmatpush2.msra.mxu0 0.0
    %4318 = vmatprep.subr.mxu0 0.0
    %4319 = vmatpush2.msra.mxu0 0.0
    %4320 = vmatprep.subr.mxu0 0.0
    %4321 = vmatpush2.msra.mxu0 0.0
    %4322 = vmatprep.mubr.f32.mxu0 0.0
    %4323 = vmatmul.mubr.f32.gmra.mxu0 %v4253
    %v4324 = vpop.f32.mrf.mxu0
    %v4325 = vadd.f32 0.0, %v4324
    %v4326 = vpop.f32.mrf.mxu0
    %4327 = vmatprep.mubr.f32.mxu0 0.0
    %4328 = vmatmul.mubr.f32.gmra.mxu0 %v4256
    %v4329 = vpop.f32.mrf.mxu0
    %v4330 = vadd.f32 0.0, %v4329
    %v4331 = vpop.f32.mrf.mxu0
    %4332 = vdwg.mxu0
    %4333 = vrot.lane.b32.xlu0 %v380, 104
    %v4334 = vpop.permute.xlu0 %4333
    %4335 = vrot.lane.b32.xlu0 %v386, 104
    %v4336 = vpop.permute.xlu0 %4335
    %v4340 = vsel %vm1329, %v4070, 0
    %v4343 = vsel %vm1329, %v4071, 0
    %4345 = vmatprep.subr.mxu0 0.0
    %4346 = vmatpush1.msra.mxu0 0.0
    %4347 = vmatprep.subr.mxu0 0.0
    %4348 = vmatpush1.msra.mxu0 0.0
    %4349 = vmatprep.subr.mxu0 0.0
    %4350 = vmatpush1.msra.mxu0 0.0
    %4351 = vmatprep.subr.mxu0 0.0
    %4352 = vmatpush1.msra.mxu0 0.0
    %4353 = vmatprep.subr.mxu0 0.0
    %4354 = vmatpush1.msra.mxu0 0.0
    %4355 = vmatprep.subr.mxu0 0.0
    %4356 = vmatpush1.msra.mxu0 0.0
    %4357 = vmatprep.subr.mxu0 0.0
    %4358 = vmatpush1.msra.mxu0 0.0
    %4359 = vmatprep.subr.mxu0 0.0
    %4360 = vmatpush1.msra.mxu0 0.0
    %4361 = vmatprep.subr.mxu0 0.0
    %4362 = vmatpush1.msra.mxu0 0.0
    %4363 = vmatprep.subr.mxu0 0.0
    %4364 = vmatpush1.msra.mxu0 0.0
    %4365 = vmatprep.subr.mxu0 0.0
    %4366 = vmatpush1.msra.mxu0 0.0
    %4367 = vmatprep.subr.mxu0 0.0
    %4368 = vmatpush1.msra.mxu0 0.0
    %4369 = vmatprep.subr.mxu0 0.0
    %4370 = vmatpush1.msra.mxu0 0.0
    %4371 = vmatprep.subr.mxu0 0.0
    %4372 = vmatpush1.msra.mxu0 0.0
    %4373 = vmatprep.subr.mxu0 0.0
    %4374 = vmatpush1.msra.mxu0 %v4336
    %4375 = vmatprep.subr.mxu0 0.0
    %4376 = vmatpush1.msra.mxu0 %v4334
    %4377 = vmatprep.subr.mxu0 0.0
    %4378 = vmatpush2.msra.mxu0 0.0
    %4379 = vmatprep.subr.mxu0 0.0
    %4380 = vmatpush2.msra.mxu0 0.0
    %4381 = vmatprep.subr.mxu0 0.0
    %4382 = vmatpush2.msra.mxu0 0.0
    %4383 = vmatprep.subr.mxu0 0.0
    %4384 = vmatpush2.msra.mxu0 0.0
    %4385 = vmatprep.subr.mxu0 0.0
    %4386 = vmatpush2.msra.mxu0 0.0
    %4387 = vmatprep.subr.mxu0 0.0
    %4388 = vmatpush2.msra.mxu0 0.0
    %4389 = vmatprep.subr.mxu0 0.0
    %4390 = vmatpush2.msra.mxu0 0.0
    %4391 = vmatprep.subr.mxu0 0.0
    %4392 = vmatpush2.msra.mxu0 0.0
    %4393 = vmatprep.subr.mxu0 0.0
    %4394 = vmatpush2.msra.mxu0 0.0
    %4395 = vmatprep.subr.mxu0 0.0
    %4396 = vmatpush2.msra.mxu0 0.0
    %4397 = vmatprep.subr.mxu0 0.0
    %4398 = vmatpush2.msra.mxu0 0.0
    %4399 = vmatprep.subr.mxu0 0.0
    %4400 = vmatpush2.msra.mxu0 0.0
    %4401 = vmatprep.subr.mxu0 0.0
    %4402 = vmatpush2.msra.mxu0 0.0
    %4403 = vmatprep.subr.mxu0 0.0
    %4404 = vmatpush2.msra.mxu0 0.0
    %4405 = vmatprep.subr.mxu0 0.0
    %4406 = vmatpush2.msra.mxu0 0.0
    %4407 = vmatprep.subr.mxu0 0.0
    %4408 = vmatpush2.msra.mxu0 0.0
    %4409 = vmatprep.mubr.f32.mxu0 0.0
    %4410 = vmatmul.mubr.f32.gmra.mxu0 %v4340
    %v4411 = vpop.f32.mrf.mxu0
    %v4412 = vadd.f32 0.0, %v4411
    %v4413 = vpop.f32.mrf.mxu0
    %4414 = vmatprep.mubr.f32.mxu0 0.0
    %4415 = vmatmul.mubr.f32.gmra.mxu0 %v4343
    %v4416 = vpop.f32.mrf.mxu0
    %v4417 = vadd.f32 0.0, %v4416
    %v4418 = vpop.f32.mrf.mxu0
    %4419 = vdwg.mxu0
    %s4420 = sld [smem:[#allocation8 + $0x4]]
    %v4421 = vstv %s4420
    %v4422 = vsel %vm810, %v4421, 0.0
    %v4423 = vsel %vm811, %v4421, 0.0
    %v4424 = vsel %vm812, %v4421, 0.0
    %v4425 = vsel %vm813, %v4421, 0.0
    %v4426 = vsel %vm814, %v4421, 0.0
    %v4427 = vsel %vm815, %v4421, 0.0
    %v4428 = vsel %vm816, %v4421, 0.0
    %v4429 = vsel %vm817, %v4421, 0.0
    %s4430 = sld [smem:[#allocation8 + $0x84]]
    %v4431 = vstv %s4430
    %v4432 = vsel %vm818, %v4431, %v4422
    %v4433 = vsel %vm819, %v4431, %v4423
    %v4434 = vsel %vm820, %v4431, %v4424
    %v4435 = vsel %vm821, %v4431, %v4425
    %v4436 = vsel %vm822, %v4431, %v4426
    %v4437 = vsel %vm823, %v4431, %v4427
    %v4438 = vsel %vm824, %v4431, %v4428
    %v4439 = vsel %vm825, %v4431, %v4429
    %s4440 = sld [smem:[#allocation8 + $0x104]]
    %v4441 = vstv %s4440
    %v4442 = vsel %vm826, %v4441, %v4432
    %v4443 = vsel %vm827, %v4441, %v4433
    %v4444 = vsel %vm828, %v4441, %v4434
    %v4445 = vsel %vm829, %v4441, %v4435
    %v4446 = vsel %vm830, %v4441, %v4436
    %v4447 = vsel %vm831, %v4441, %v4437
    %v4448 = vsel %vm832, %v4441, %v4438
    %v4449 = vsel %vm833, %v4441, %v4439
    %s4450 = sld [smem:[#allocation8 + $0x184]]
    %v4451 = vstv %s4450
    %v4452 = vsel %vm834, %v4451, %v4442
    %v4453 = vsel %vm835, %v4451, %v4443
    %v4454 = vsel %vm836, %v4451, %v4444
    %v4455 = vsel %vm837, %v4451, %v4445
    %v4456 = vsel %vm838, %v4451, %v4446
    %v4457 = vsel %vm839, %v4451, %v4447
    %v4458 = vsel %vm840, %v4451, %v4448
    %v4459 = vsel %vm841, %v4451, %v4449
    %s4460 = sld [smem:[#allocation8 + $0x204]]
    %v4461 = vstv %s4460
    %v4462 = vsel %vm842, %v4461, %v4452
    %v4463 = vsel %vm843, %v4461, %v4453
    %v4464 = vsel %vm844, %v4461, %v4454
    %v4465 = vsel %vm845, %v4461, %v4455
    %v4466 = vsel %vm846, %v4461, %v4456
    %v4467 = vsel %vm847, %v4461, %v4457
    %v4468 = vsel %vm848, %v4461, %v4458
    %v4469 = vsel %vm849, %v4461, %v4459
    %s4470 = sld [smem:[#allocation8 + $0x284]]
    %v4471 = vstv %s4470
    %v4472 = vsel %vm850, %v4471, %v4462
    %v4473 = vsel %vm851, %v4471, %v4463
    %v4474 = vsel %vm852, %v4471, %v4464
    %v4475 = vsel %vm853, %v4471, %v4465
    %v4476 = vsel %vm854, %v4471, %v4466
    %v4477 = vsel %vm855, %v4471, %v4467
    %v4478 = vsel %vm856, %v4471, %v4468
    %v4479 = vsel %vm857, %v4471, %v4469
    %s4480 = sld [smem:[#allocation8 + $0x304]]
    %v4481 = vstv %s4480
    %v4482 = vsel %vm858, %v4481, %v4472
    %v4483 = vsel %vm859, %v4481, %v4473
    %v4484 = vsel %vm860, %v4481, %v4474
    %v4485 = vsel %vm861, %v4481, %v4475
    %v4486 = vsel %vm862, %v4481, %v4476
    %v4487 = vsel %vm863, %v4481, %v4477
    %v4488 = vsel %vm864, %v4481, %v4478
    %v4489 = vsel %vm865, %v4481, %v4479
    %s4490 = sld [smem:[#allocation8 + $0x384]]
    %v4491 = vstv %s4490
    %v4492 = vsel %vm866, %v4491, %v4482
    %v4493 = vsel %vm867, %v4491, %v4483
    %v4494 = vsel %vm868, %v4491, %v4484
    %v4495 = vsel %vm869, %v4491, %v4485
    %v4496 = vsel %vm870, %v4491, %v4486
    %v4497 = vsel %vm871, %v4491, %v4487
    %v4498 = vsel %vm872, %v4491, %v4488
    %v4499 = vsel %vm873, %v4491, %v4489
    %s4500 = sld [smem:[#allocation8 + $0x404]]
    %v4501 = vstv %s4500
    %v4502 = vsel %vm874, %v4501, %v4492
    %v4503 = vsel %vm875, %v4501, %v4493
    %v4504 = vsel %vm876, %v4501, %v4494
    %v4505 = vsel %vm877, %v4501, %v4495
    %v4506 = vsel %vm878, %v4501, %v4496
    %v4507 = vsel %vm879, %v4501, %v4497
    %v4508 = vsel %vm880, %v4501, %v4498
    %v4509 = vsel %vm881, %v4501, %v4499
    %4510 = vrot.lane.b32.xlu0 %v342, 96
    %v4511 = vpop.permute.xlu0 %4510
    %4512 = vrot.lane.b32.xlu0 %v348, 96
    %v4513 = vpop.permute.xlu0 %4512
    %4514 = vrot.lane.b32.xlu0 %v342, 32
    %v4515 = vpop.permute.xlu0 %4514
    %4516 = vrot.lane.b32.xlu0 %v348, 32
    %v4517 = vpop.permute.xlu0 %4516
    %v4518 = vsel %vm978, %v4511, 0
    %v4520 = vsel %vm978, %v4513, 0
    %v4522 = vsel %vm978, %v4515, 0
    %v4524 = vsel %vm978, %v4517, 0
    %4526 = vmatprep.subr.mxu0 0.0
    %4527 = vmatpush1.xpose.msra.mxu0 0.0
    %4528 = vmatprep.subr.mxu0 0.0
    %4529 = vmatpush1.xpose.msra.mxu0 0.0
    %4530 = vmatprep.subr.mxu0 0.0
    %4531 = vmatpush1.xpose.msra.mxu0 0.0
    %4532 = vmatprep.subr.mxu0 0.0
    %4533 = vmatpush1.xpose.msra.mxu0 0.0
    %4534 = vmatprep.subr.mxu0 0.0
    %4535 = vmatpush1.xpose.msra.mxu0 0.0
    %4536 = vmatprep.subr.mxu0 0.0
    %4537 = vmatpush1.xpose.msra.mxu0 0.0
    %4538 = vmatprep.subr.mxu0 0.0
    %4539 = vmatpush1.xpose.msra.mxu0 0.0
    %4540 = vmatprep.subr.mxu0 0.0
    %4541 = vmatpush1.xpose.msra.mxu0 0.0
    %4542 = vmatprep.subr.mxu0 0.0
    %4543 = vmatpush1.xpose.msra.mxu0 0.0
    %4544 = vmatprep.subr.mxu0 0.0
    %4545 = vmatpush1.xpose.msra.mxu0 0.0
    %4546 = vmatprep.subr.mxu0 0.0
    %4547 = vmatpush1.xpose.msra.mxu0 0.0
    %4548 = vmatprep.subr.mxu0 0.0
    %4549 = vmatpush1.xpose.msra.mxu0 0.0
    %4550 = vmatprep.subr.mxu0 0.0
    %4551 = vmatpush1.xpose.msra.mxu0 0.0
    %4552 = vmatprep.subr.mxu0 0.0
    %4553 = vmatpush1.xpose.msra.mxu0 0.0
    %4554 = vmatprep.subr.mxu0 0.0
    %4555 = vmatpush1.xpose.msra.mxu0 %v4524
    %4556 = vmatprep.subr.mxu0 0.0
    %4557 = vmatpush1.xpose.msra.mxu0 %v4522
    %4558 = vmatprep.subr.mxu0 0.0
    %4559 = vmatpush2.xpose.msra.mxu0 0.0
    %4560 = vmatprep.subr.mxu0 0.0
    %4561 = vmatpush2.xpose.msra.mxu0 0.0
    %4562 = vmatprep.subr.mxu0 0.0
    %4563 = vmatpush2.xpose.msra.mxu0 0.0
    %4564 = vmatprep.subr.mxu0 0.0
    %4565 = vmatpush2.xpose.msra.mxu0 0.0
    %4566 = vmatprep.subr.mxu0 0.0
    %4567 = vmatpush2.xpose.msra.mxu0 0.0
    %4568 = vmatprep.subr.mxu0 0.0
    %4569 = vmatpush2.xpose.msra.mxu0 0.0
    %4570 = vmatprep.subr.mxu0 0.0
    %4571 = vmatpush2.xpose.msra.mxu0 0.0
    %4572 = vmatprep.subr.mxu0 0.0
    %4573 = vmatpush2.xpose.msra.mxu0 0.0
    %4574 = vmatprep.subr.mxu0 0.0
    %4575 = vmatpush2.xpose.msra.mxu0 0.0
    %4576 = vmatprep.subr.mxu0 0.0
    %4577 = vmatpush2.xpose.msra.mxu0 0.0
    %4578 = vmatprep.subr.mxu0 0.0
    %4579 = vmatpush2.xpose.msra.mxu0 0.0
    %4580 = vmatprep.subr.mxu0 0.0
    %4581 = vmatpush2.xpose.msra.mxu0 0.0
    %4582 = vmatprep.subr.mxu0 0.0
    %4583 = vmatpush2.xpose.msra.mxu0 0.0
    %4584 = vmatprep.subr.mxu0 0.0
    %4585 = vmatpush2.xpose.msra.mxu0 0.0
    %4586 = vmatprep.subr.mxu0 0.0
    %4587 = vmatpush2.xpose.msra.mxu0 0.0
    %4588 = vmatprep.subr.mxu0 0.0
    %4589 = vmatpush2.xpose.msra.mxu0 0.0
    %4590 = vmatprep.mubr.f32.mxu0 0.0
    %4591 = vmatmul.mubr.f32.gmra.mxu0 %v4518
    %v4592 = vpop.f32.mrf.mxu0
    %v4593 = vadd.f32 %v4502, %v4592
    %v4594 = vpop.f32.mrf.mxu0
    %4595 = vmatprep.mubr.f32.mxu0 0.0
    %4596 = vmatmul.mubr.f32.gmra.mxu0 %v4520
    %v4597 = vpop.f32.mrf.mxu0
    %v4598 = vadd.f32 %v4503, %v4597
    %v4599 = vpop.f32.mrf.mxu0
    %4600 = vdwg.mxu0
    %4601 = vrot.lane.b32.xlu0 %v354, 96
    %v4602 = vpop.permute.xlu0 %4601
    %4603 = vrot.lane.b32.xlu0 %v360, 96
    %v4604 = vpop.permute.xlu0 %4603
    %4605 = vrot.lane.b32.xlu0 %v354, 32
    %v4606 = vpop.permute.xlu0 %4605
    %4607 = vrot.lane.b32.xlu0 %v360, 32
    %v4608 = vpop.permute.xlu0 %4607
    %v4609 = vsel %vm978, %v4602, 0
    %v4611 = vsel %vm978, %v4604, 0
    %v4613 = vsel %vm978, %v4606, 0
    %v4615 = vsel %vm978, %v4608, 0
    %4617 = vmatprep.subr.mxu0 0.0
    %4618 = vmatpush1.xpose.msra.mxu0 0.0
    %4619 = vmatprep.subr.mxu0 0.0
    %4620 = vmatpush1.xpose.msra.mxu0 0.0
    %4621 = vmatprep.subr.mxu0 0.0
    %4622 = vmatpush1.xpose.msra.mxu0 0.0
    %4623 = vmatprep.subr.mxu0 0.0
    %4624 = vmatpush1.xpose.msra.mxu0 0.0
    %4625 = vmatprep.subr.mxu0 0.0
    %4626 = vmatpush1.xpose.msra.mxu0 0.0
    %4627 = vmatprep.subr.mxu0 0.0
    %4628 = vmatpush1.xpose.msra.mxu0 0.0
    %4629 = vmatprep.subr.mxu0 0.0
    %4630 = vmatpush1.xpose.msra.mxu0 0.0
    %4631 = vmatprep.subr.mxu0 0.0
    %4632 = vmatpush1.xpose.msra.mxu0 0.0
    %4633 = vmatprep.subr.mxu0 0.0
    %4634 = vmatpush1.xpose.msra.mxu0 0.0
    %4635 = vmatprep.subr.mxu0 0.0
    %4636 = vmatpush1.xpose.msra.mxu0 0.0
    %4637 = vmatprep.subr.mxu0 0.0
    %4638 = vmatpush1.xpose.msra.mxu0 0.0
    %4639 = vmatprep.subr.mxu0 0.0
    %4640 = vmatpush1.xpose.msra.mxu0 0.0
    %4641 = vmatprep.subr.mxu0 0.0
    %4642 = vmatpush1.xpose.msra.mxu0 0.0
    %4643 = vmatprep.subr.mxu0 0.0
    %4644 = vmatpush1.xpose.msra.mxu0 0.0
    %4645 = vmatprep.subr.mxu0 0.0
    %4646 = vmatpush1.xpose.msra.mxu0 %v4615
    %4647 = vmatprep.subr.mxu0 0.0
    %4648 = vmatpush1.xpose.msra.mxu0 %v4613
    %4649 = vmatprep.subr.mxu0 0.0
    %4650 = vmatpush2.xpose.msra.mxu0 0.0
    %4651 = vmatprep.subr.mxu0 0.0
    %4652 = vmatpush2.xpose.msra.mxu0 0.0
    %4653 = vmatprep.subr.mxu0 0.0
    %4654 = vmatpush2.xpose.msra.mxu0 0.0
    %4655 = vmatprep.subr.mxu0 0.0
    %4656 = vmatpush2.xpose.msra.mxu0 0.0
    %4657 = vmatprep.subr.mxu0 0.0
    %4658 = vmatpush2.xpose.msra.mxu0 0.0
    %4659 = vmatprep.subr.mxu0 0.0
    %4660 = vmatpush2.xpose.msra.mxu0 0.0
    %4661 = vmatprep.subr.mxu0 0.0
    %4662 = vmatpush2.xpose.msra.mxu0 0.0
    %4663 = vmatprep.subr.mxu0 0.0
    %4664 = vmatpush2.xpose.msra.mxu0 0.0
    %4665 = vmatprep.subr.mxu0 0.0
    %4666 = vmatpush2.xpose.msra.mxu0 0.0
    %4667 = vmatprep.subr.mxu0 0.0
    %4668 = vmatpush2.xpose.msra.mxu0 0.0
    %4669 = vmatprep.subr.mxu0 0.0
    %4670 = vmatpush2.xpose.msra.mxu0 0.0
    %4671 = vmatprep.subr.mxu0 0.0
    %4672 = vmatpush2.xpose.msra.mxu0 0.0
    %4673 = vmatprep.subr.mxu0 0.0
    %4674 = vmatpush2.xpose.msra.mxu0 0.0
    %4675 = vmatprep.subr.mxu0 0.0
    %4676 = vmatpush2.xpose.msra.mxu0 0.0
    %4677 = vmatprep.subr.mxu0 0.0
    %4678 = vmatpush2.xpose.msra.mxu0 0.0
    %4679 = vmatprep.subr.mxu0 0.0
    %4680 = vmatpush2.xpose.msra.mxu0 0.0
    %4681 = vmatprep.mubr.f32.mxu0 0.0
    %4682 = vmatmul.mubr.f32.gmra.mxu0 %v4609
    %v4683 = vpop.f32.mrf.mxu0
    %v4684 = vadd.f32 %v4504, %v4683
    %v4685 = vpop.f32.mrf.mxu0
    %4686 = vmatprep.mubr.f32.mxu0 0.0
    %4687 = vmatmul.mubr.f32.gmra.mxu0 %v4611
    %v4688 = vpop.f32.mrf.mxu0
    %v4689 = vadd.f32 %v4505, %v4688
    %v4690 = vpop.f32.mrf.mxu0
    %4691 = vdwg.mxu0
    %4692 = vrot.lane.b32.xlu0 %v366, 96
    %v4693 = vpop.permute.xlu0 %4692
    %4694 = vrot.lane.b32.xlu0 %v372, 96
    %v4695 = vpop.permute.xlu0 %4694
    %4696 = vrot.lane.b32.xlu0 %v366, 32
    %v4697 = vpop.permute.xlu0 %4696
    %4698 = vrot.lane.b32.xlu0 %v372, 32
    %v4699 = vpop.permute.xlu0 %4698
    %v4700 = vsel %vm978, %v4693, 0
    %v4702 = vsel %vm978, %v4695, 0
    %v4704 = vsel %vm978, %v4697, 0
    %v4706 = vsel %vm978, %v4699, 0
    %4708 = vmatprep.subr.mxu0 0.0
    %4709 = vmatpush1.xpose.msra.mxu0 0.0
    %4710 = vmatprep.subr.mxu0 0.0
    %4711 = vmatpush1.xpose.msra.mxu0 0.0
    %4712 = vmatprep.subr.mxu0 0.0
    %4713 = vmatpush1.xpose.msra.mxu0 0.0
    %4714 = vmatprep.subr.mxu0 0.0
    %4715 = vmatpush1.xpose.msra.mxu0 0.0
    %4716 = vmatprep.subr.mxu0 0.0
    %4717 = vmatpush1.xpose.msra.mxu0 0.0
    %4718 = vmatprep.subr.mxu0 0.0
    %4719 = vmatpush1.xpose.msra.mxu0 0.0
    %4720 = vmatprep.subr.mxu0 0.0
    %4721 = vmatpush1.xpose.msra.mxu0 0.0
    %4722 = vmatprep.subr.mxu0 0.0
    %4723 = vmatpush1.xpose.msra.mxu0 0.0
    %4724 = vmatprep.subr.mxu0 0.0
    %4725 = vmatpush1.xpose.msra.mxu0 0.0
    %4726 = vmatprep.subr.mxu0 0.0
    %4727 = vmatpush1.xpose.msra.mxu0 0.0
    %4728 = vmatprep.subr.mxu0 0.0
    %4729 = vmatpush1.xpose.msra.mxu0 0.0
    %4730 = vmatprep.subr.mxu0 0.0
    %4731 = vmatpush1.xpose.msra.mxu0 0.0
    %4732 = vmatprep.subr.mxu0 0.0
    %4733 = vmatpush1.xpose.msra.mxu0 0.0
    %4734 = vmatprep.subr.mxu0 0.0
    %4735 = vmatpush1.xpose.msra.mxu0 0.0
    %4736 = vmatprep.subr.mxu0 0.0
    %4737 = vmatpush1.xpose.msra.mxu0 %v4706
    %4738 = vmatprep.subr.mxu0 0.0
    %4739 = vmatpush1.xpose.msra.mxu0 %v4704
    %4740 = vmatprep.subr.mxu0 0.0
    %4741 = vmatpush2.xpose.msra.mxu0 0.0
    %4742 = vmatprep.subr.mxu0 0.0
    %4743 = vmatpush2.xpose.msra.mxu0 0.0
    %4744 = vmatprep.subr.mxu0 0.0
    %4745 = vmatpush2.xpose.msra.mxu0 0.0
    %4746 = vmatprep.subr.mxu0 0.0
    %4747 = vmatpush2.xpose.msra.mxu0 0.0
    %4748 = vmatprep.subr.mxu0 0.0
    %4749 = vmatpush2.xpose.msra.mxu0 0.0
    %4750 = vmatprep.subr.mxu0 0.0
    %4751 = vmatpush2.xpose.msra.mxu0 0.0
    %4752 = vmatprep.subr.mxu0 0.0
    %4753 = vmatpush2.xpose.msra.mxu0 0.0
    %4754 = vmatprep.subr.mxu0 0.0
    %4755 = vmatpush2.xpose.msra.mxu0 0.0
    %4756 = vmatprep.subr.mxu0 0.0
    %4757 = vmatpush2.xpose.msra.mxu0 0.0
    %4758 = vmatprep.subr.mxu0 0.0
    %4759 = vmatpush2.xpose.msra.mxu0 0.0
    %4760 = vmatprep.subr.mxu0 0.0
    %4761 = vmatpush2.xpose.msra.mxu0 0.0
    %4762 = vmatprep.subr.mxu0 0.0
    %4763 = vmatpush2.xpose.msra.mxu0 0.0
    %4764 = vmatprep.subr.mxu0 0.0
    %4765 = vmatpush2.xpose.msra.mxu0 0.0
    %4766 = vmatprep.subr.mxu0 0.0
    %4767 = vmatpush2.xpose.msra.mxu0 0.0
    %4768 = vmatprep.subr.mxu0 0.0
    %4769 = vmatpush2.xpose.msra.mxu0 0.0
    %4770 = vmatprep.subr.mxu0 0.0
    %4771 = vmatpush2.xpose.msra.mxu0 0.0
    %4772 = vmatprep.mubr.f32.mxu0 0.0
    %4773 = vmatmul.mubr.f32.gmra.mxu0 %v4700
    %v4774 = vpop.f32.mrf.mxu0
    %v4775 = vadd.f32 %v4506, %v4774
    %v4776 = vpop.f32.mrf.mxu0
    %4777 = vmatprep.mubr.f32.mxu0 0.0
    %4778 = vmatmul.mubr.f32.gmra.mxu0 %v4702
    %v4779 = vpop.f32.mrf.mxu0
    %v4780 = vadd.f32 %v4507, %v4779
    %v4781 = vpop.f32.mrf.mxu0
    %4782 = vdwg.mxu0
    %4783 = vrot.lane.b32.xlu0 %v378, 96
    %v4784 = vpop.permute.xlu0 %4783
    %4785 = vrot.lane.b32.xlu0 %v384, 96
    %v4786 = vpop.permute.xlu0 %4785
    %4787 = vrot.lane.b32.xlu0 %v378, 32
    %v4788 = vpop.permute.xlu0 %4787
    %4789 = vrot.lane.b32.xlu0 %v384, 32
    %v4790 = vpop.permute.xlu0 %4789
    %v4791 = vsel %vm978, %v4784, 0
    %v4793 = vsel %vm978, %v4786, 0
    %v4795 = vsel %vm978, %v4788, 0
    %v4797 = vsel %vm978, %v4790, 0
    %4799 = vmatprep.subr.mxu0 0.0
    %4800 = vmatpush1.xpose.msra.mxu0 0.0
    %4801 = vmatprep.subr.mxu0 0.0
    %4802 = vmatpush1.xpose.msra.mxu0 0.0
    %4803 = vmatprep.subr.mxu0 0.0
    %4804 = vmatpush1.xpose.msra.mxu0 0.0
    %4805 = vmatprep.subr.mxu0 0.0
    %4806 = vmatpush1.xpose.msra.mxu0 0.0
    %4807 = vmatprep.subr.mxu0 0.0
    %4808 = vmatpush1.xpose.msra.mxu0 0.0
    %4809 = vmatprep.subr.mxu0 0.0
    %4810 = vmatpush1.xpose.msra.mxu0 0.0
    %4811 = vmatprep.subr.mxu0 0.0
    %4812 = vmatpush1.xpose.msra.mxu0 0.0
    %4813 = vmatprep.subr.mxu0 0.0
    %4814 = vmatpush1.xpose.msra.mxu0 0.0
    %4815 = vmatprep.subr.mxu0 0.0
    %4816 = vmatpush1.xpose.msra.mxu0 0.0
    %4817 = vmatprep.subr.mxu0 0.0
    %4818 = vmatpush1.xpose.msra.mxu0 0.0
    %4819 = vmatprep.subr.mxu0 0.0
    %4820 = vmatpush1.xpose.msra.mxu0 0.0
    %4821 = vmatprep.subr.mxu0 0.0
    %4822 = vmatpush1.xpose.msra.mxu0 0.0
    %4823 = vmatprep.subr.mxu0 0.0
    %4824 = vmatpush1.xpose.msra.mxu0 0.0
    %4825 = vmatprep.subr.mxu0 0.0
    %4826 = vmatpush1.xpose.msra.mxu0 0.0
    %4827 = vmatprep.subr.mxu0 0.0
    %4828 = vmatpush1.xpose.msra.mxu0 %v4797
    %4829 = vmatprep.subr.mxu0 0.0
    %4830 = vmatpush1.xpose.msra.mxu0 %v4795
    %4831 = vmatprep.subr.mxu0 0.0
    %4832 = vmatpush2.xpose.msra.mxu0 0.0
    %4833 = vmatprep.subr.mxu0 0.0
    %4834 = vmatpush2.xpose.msra.mxu0 0.0
    %4835 = vmatprep.subr.mxu0 0.0
    %4836 = vmatpush2.xpose.msra.mxu0 0.0
    %4837 = vmatprep.subr.mxu0 0.0
    %4838 = vmatpush2.xpose.msra.mxu0 0.0
    %4839 = vmatprep.subr.mxu0 0.0
    %4840 = vmatpush2.xpose.msra.mxu0 0.0
    %4841 = vmatprep.subr.mxu0 0.0
    %4842 = vmatpush2.xpose.msra.mxu0 0.0
    %4843 = vmatprep.subr.mxu0 0.0
    %4844 = vmatpush2.xpose.msra.mxu0 0.0
    %4845 = vmatprep.subr.mxu0 0.0
    %4846 = vmatpush2.xpose.msra.mxu0 0.0
    %4847 = vmatprep.subr.mxu0 0.0
    %4848 = vmatpush2.xpose.msra.mxu0 0.0
    %4849 = vmatprep.subr.mxu0 0.0
    %4850 = vmatpush2.xpose.msra.mxu0 0.0
    %4851 = vmatprep.subr.mxu0 0.0
    %4852 = vmatpush2.xpose.msra.mxu0 0.0
    %4853 = vmatprep.subr.mxu0 0.0
    %4854 = vmatpush2.xpose.msra.mxu0 0.0
    %4855 = vmatprep.subr.mxu0 0.0
    %4856 = vmatpush2.xpose.msra.mxu0 0.0
    %4857 = vmatprep.subr.mxu0 0.0
    %4858 = vmatpush2.xpose.msra.mxu0 0.0
    %4859 = vmatprep.subr.mxu0 0.0
    %4860 = vmatpush2.xpose.msra.mxu0 0.0
    %4861 = vmatprep.subr.mxu0 0.0
    %4862 = vmatpush2.xpose.msra.mxu0 0.0
    %4863 = vmatprep.mubr.f32.mxu0 0.0
    %4864 = vmatmul.mubr.f32.gmra.mxu0 %v4791
    %v4865 = vpop.f32.mrf.mxu0
    %v4866 = vadd.f32 %v4508, %v4865
    %v4867 = vpop.f32.mrf.mxu0
    %4868 = vmatprep.mubr.f32.mxu0 0.0
    %4869 = vmatmul.mubr.f32.gmra.mxu0 %v4793
    %v4870 = vpop.f32.mrf.mxu0
    %v4871 = vadd.f32 %v4509, %v4870
    %v4872 = vpop.f32.mrf.mxu0
    %4873 = vdwg.mxu0
    %v4874 = vsel %vm1329, %v4593, -inf
    %4875 = vmax.xlane.f32.xlu0 %v4874
    %v4876 = vpop.xlane.xlu0 %4875
    %v4877 = vsel %vm1329, %v4598, -inf
    %4878 = vmax.xlane.f32.xlu0 %v4877
    %v4879 = vpop.xlane.xlu0 %4878
    %v4880 = vsel %vm1329, %v4684, -inf
    %4881 = vmax.xlane.f32.xlu0 %v4880
    %v4882 = vpop.xlane.xlu0 %4881
    %v4883 = vsel %vm1329, %v4689, -inf
    %4884 = vmax.xlane.f32.xlu0 %v4883
    %v4885 = vpop.xlane.xlu0 %4884
    %v4886 = vsel %vm1329, %v4775, -inf
    %4887 = vmax.xlane.f32.xlu0 %v4886
    %v4888 = vpop.xlane.xlu0 %4887
    %v4889 = vsel %vm1329, %v4780, -inf
    %4890 = vmax.xlane.f32.xlu0 %v4889
    %v4891 = vpop.xlane.xlu0 %4890
    %v4892 = vsel %vm1329, %v4866, -inf
    %4893 = vmax.xlane.f32.xlu0 %v4892
    %v4894 = vpop.xlane.xlu0 %4893
    %v4895 = vsel %vm1329, %v4871, -inf
    %4896 = vmax.xlane.f32.xlu0 %v4895
    %v4897 = vpop.xlane.xlu0 %4896
    %v4898 = vsub.f32 %v4593, %v4876
    %v4899 = vsub.f32 %v4598, %v4879
    %v4900 = vsub.f32 %v4684, %v4882
    %v4901 = vsub.f32 %v4689, %v4885
    %v4902 = vsub.f32 %v4775, %v4888
    %v4903 = vsub.f32 %v4780, %v4891
    %v4904 = vsub.f32 %v4866, %v4894
    %v4905 = vsub.f32 %v4871, %v4897
    %v4906 = vmul.f32 %v4898, 1.442695
    %v4907 = vpow.pop %v4906
    %v4908 = vmul.f32 %v4899, 1.442695
    %v4909 = vpow.pop %v4908
    %v4910 = vmul.f32 %v4900, 1.442695
    %v4911 = vpow.pop %v4910
    %v4912 = vmul.f32 %v4901, 1.442695
    %v4913 = vpow.pop %v4912
    %v4914 = vmul.f32 %v4902, 1.442695
    %v4915 = vpow.pop %v4914
    %v4916 = vmul.f32 %v4903, 1.442695
    %v4917 = vpow.pop %v4916
    %v4918 = vmul.f32 %v4904, 1.442695
    %v4919 = vpow.pop %v4918
    %v4920 = vmul.f32 %v4905, 1.442695
    %v4921 = vpow.pop %v4920
    %v4922 = vsel %vm1329, %v4907, 0.0
    %4923 = vadd.xlane.f32.xlu0 %v4922
    %v4924 = vpop.xlane.xlu0 %4923
    %v4925 = vsel %vm1329, %v4909, 0.0
    %4926 = vadd.xlane.f32.xlu0 %v4925
    %v4927 = vpop.xlane.xlu0 %4926
    %v4928 = vsel %vm1329, %v4911, 0.0
    %4929 = vadd.xlane.f32.xlu0 %v4928
    %v4930 = vpop.xlane.xlu0 %4929
    %v4931 = vsel %vm1329, %v4913, 0.0
    %4932 = vadd.xlane.f32.xlu0 %v4931
    %v4933 = vpop.xlane.xlu0 %4932
    %v4934 = vsel %vm1329, %v4915, 0.0
    %4935 = vadd.xlane.f32.xlu0 %v4934
    %v4936 = vpop.xlane.xlu0 %4935
    %v4937 = vsel %vm1329, %v4917, 0.0
    %4938 = vadd.xlane.f32.xlu0 %v4937
    %v4939 = vpop.xlane.xlu0 %4938
    %v4940 = vsel %vm1329, %v4919, 0.0
    %4941 = vadd.xlane.f32.xlu0 %v4940
    %v4942 = vpop.xlane.xlu0 %4941
    %v4943 = vsel %vm1329, %v4921, 0.0
    %4944 = vadd.xlane.f32.xlu0 %v4943
    %v4945 = vpop.xlane.xlu0 %4944
    %v4946 = vrcp.pop %v4924
    %v4947 = vrcp.pop %v4927
    %v4948 = vrcp.pop %v4930
    %v4949 = vrcp.pop %v4933
    %v4950 = vrcp.pop %v4936
    %v4951 = vrcp.pop %v4939
    %v4952 = vrcp.pop %v4942
    %v4953 = vrcp.pop %v4945
    %v4954 = vmul.f32 %v4907, %v4946
    %v4955 = vmul.f32 %v4909, %v4947
    %v4956 = vmul.f32 %v4911, %v4948
    %v4957 = vmul.f32 %v4913, %v4949
    %v4958 = vmul.f32 %v4915, %v4950
    %v4959 = vmul.f32 %v4917, %v4951
    %v4960 = vmul.f32 %v4919, %v4952
    %v4961 = vmul.f32 %v4921, %v4953
    %4962 = vrot.lane.b32.xlu0 %v344, 96
    %v4963 = vpop.permute.xlu0 %4962
    %4964 = vrot.lane.b32.xlu0 %v350, 96
    %v4965 = vpop.permute.xlu0 %4964
    %v4969 = vsel %vm1329, %v4954, 0
    %v4972 = vsel %vm1329, %v4955, 0
    %4974 = vmatprep.subr.mxu0 0.0
    %4975 = vmatpush1.msra.mxu0 0.0
    %4976 = vmatprep.subr.mxu0 0.0
    %4977 = vmatpush1.msra.mxu0 0.0
    %4978 = vmatprep.subr.mxu0 0.0
    %4979 = vmatpush1.msra.mxu0 0.0
    %4980 = vmatprep.subr.mxu0 0.0
    %4981 = vmatpush1.msra.mxu0 0.0
    %4982 = vmatprep.subr.mxu0 0.0
    %4983 = vmatpush1.msra.mxu0 0.0
    %4984 = vmatprep.subr.mxu0 0.0
    %4985 = vmatpush1.msra.mxu0 0.0
    %4986 = vmatprep.subr.mxu0 0.0
    %4987 = vmatpush1.msra.mxu0 0.0
    %4988 = vmatprep.subr.mxu0 0.0
    %4989 = vmatpush1.msra.mxu0 0.0
    %4990 = vmatprep.subr.mxu0 0.0
    %4991 = vmatpush1.msra.mxu0 0.0
    %4992 = vmatprep.subr.mxu0 0.0
    %4993 = vmatpush1.msra.mxu0 0.0
    %4994 = vmatprep.subr.mxu0 0.0
    %4995 = vmatpush1.msra.mxu0 0.0
    %4996 = vmatprep.subr.mxu0 0.0
    %4997 = vmatpush1.msra.mxu0 0.0
    %4998 = vmatprep.subr.mxu0 0.0
    %4999 = vmatpush1.msra.mxu0 0.0
    %5000 = vmatprep.subr.mxu0 0.0
    %5001 = vmatpush1.msra.mxu0 0.0
    %5002 = vmatprep.subr.mxu0 0.0
    %5003 = vmatpush1.msra.mxu0 %v4965
    %5004 = vmatprep.subr.mxu0 0.0
    %5005 = vmatpush1.msra.mxu0 %v4963
    %5006 = vmatprep.subr.mxu0 0.0
    %5007 = vmatpush2.msra.mxu0 0.0
    %5008 = vmatprep.subr.mxu0 0.0
    %5009 = vmatpush2.msra.mxu0 0.0
    %5010 = vmatprep.subr.mxu0 0.0
    %5011 = vmatpush2.msra.mxu0 0.0
    %5012 = vmatprep.subr.mxu0 0.0
    %5013 = vmatpush2.msra.mxu0 0.0
    %5014 = vmatprep.subr.mxu0 0.0
    %5015 = vmatpush2.msra.mxu0 0.0
    %5016 = vmatprep.subr.mxu0 0.0
    %5017 = vmatpush2.msra.mxu0 0.0
    %5018 = vmatprep.subr.mxu0 0.0
    %5019 = vmatpush2.msra.mxu0 0.0
    %5020 = vmatprep.subr.mxu0 0.0
    %5021 = vmatpush2.msra.mxu0 0.0
    %5022 = vmatprep.subr.mxu0 0.0
    %5023 = vmatpush2.msra.mxu0 0.0
    %5024 = vmatprep.subr.mxu0 0.0
    %5025 = vmatpush2.msra.mxu0 0.0
    %5026 = vmatprep.subr.mxu0 0.0
    %5027 = vmatpush2.msra.mxu0 0.0
    %5028 = vmatprep.subr.mxu0 0.0
    %5029 = vmatpush2.msra.mxu0 0.0
    %5030 = vmatprep.subr.mxu0 0.0
    %5031 = vmatpush2.msra.mxu0 0.0
    %5032 = vmatprep.subr.mxu0 0.0
    %5033 = vmatpush2.msra.mxu0 0.0
    %5034 = vmatprep.subr.mxu0 0.0
    %5035 = vmatpush2.msra.mxu0 0.0
    %5036 = vmatprep.subr.mxu0 0.0
    %5037 = vmatpush2.msra.mxu0 0.0
    %5038 = vmatprep.mubr.f32.mxu0 0.0
    %5039 = vmatmul.mubr.f32.gmra.mxu0 %v4969
    %v5040 = vpop.f32.mrf.mxu0
    %v5041 = vadd.f32 0.0, %v5040
    %v5042 = vpop.f32.mrf.mxu0
    %5043 = vmatprep.mubr.f32.mxu0 0.0
    %5044 = vmatmul.mubr.f32.gmra.mxu0 %v4972
    %v5045 = vpop.f32.mrf.mxu0
    %v5046 = vadd.f32 0.0, %v5045
    %v5047 = vpop.f32.mrf.mxu0
    %5048 = vdwg.mxu0
    %5049 = vrot.lane.b32.xlu0 %v356, 96
    %v5050 = vpop.permute.xlu0 %5049
    %5051 = vrot.lane.b32.xlu0 %v362, 96
    %v5052 = vpop.permute.xlu0 %5051
    %v5056 = vsel %vm1329, %v4956, 0
    %v5059 = vsel %vm1329, %v4957, 0
    %5061 = vmatprep.subr.mxu0 0.0
    %5062 = vmatpush1.msra.mxu0 0.0
    %5063 = vmatprep.subr.mxu0 0.0
    %5064 = vmatpush1.msra.mxu0 0.0
    %5065 = vmatprep.subr.mxu0 0.0
    %5066 = vmatpush1.msra.mxu0 0.0
    %5067 = vmatprep.subr.mxu0 0.0
    %5068 = vmatpush1.msra.mxu0 0.0
    %5069 = vmatprep.subr.mxu0 0.0
    %5070 = vmatpush1.msra.mxu0 0.0
    %5071 = vmatprep.subr.mxu0 0.0
    %5072 = vmatpush1.msra.mxu0 0.0
    %5073 = vmatprep.subr.mxu0 0.0
    %5074 = vmatpush1.msra.mxu0 0.0
    %5075 = vmatprep.subr.mxu0 0.0
    %5076 = vmatpush1.msra.mxu0 0.0
    %5077 = vmatprep.subr.mxu0 0.0
    %5078 = vmatpush1.msra.mxu0 0.0
    %5079 = vmatprep.subr.mxu0 0.0
    %5080 = vmatpush1.msra.mxu0 0.0
    %5081 = vmatprep.subr.mxu0 0.0
    %5082 = vmatpush1.msra.mxu0 0.0
    %5083 = vmatprep.subr.mxu0 0.0
    %5084 = vmatpush1.msra.mxu0 0.0
    %5085 = vmatprep.subr.mxu0 0.0
    %5086 = vmatpush1.msra.mxu0 0.0
    %5087 = vmatprep.subr.mxu0 0.0
    %5088 = vmatpush1.msra.mxu0 0.0
    %5089 = vmatprep.subr.mxu0 0.0
    %5090 = vmatpush1.msra.mxu0 %v5052
    %5091 = vmatprep.subr.mxu0 0.0
    %5092 = vmatpush1.msra.mxu0 %v5050
    %5093 = vmatprep.subr.mxu0 0.0
    %5094 = vmatpush2.msra.mxu0 0.0
    %5095 = vmatprep.subr.mxu0 0.0
    %5096 = vmatpush2.msra.mxu0 0.0
    %5097 = vmatprep.subr.mxu0 0.0
    %5098 = vmatpush2.msra.mxu0 0.0
    %5099 = vmatprep.subr.mxu0 0.0
    %5100 = vmatpush2.msra.mxu0 0.0
    %5101 = vmatprep.subr.mxu0 0.0
    %5102 = vmatpush2.msra.mxu0 0.0
    %5103 = vmatprep.subr.mxu0 0.0
    %5104 = vmatpush2.msra.mxu0 0.0
    %5105 = vmatprep.subr.mxu0 0.0
    %5106 = vmatpush2.msra.mxu0 0.0
    %5107 = vmatprep.subr.mxu0 0.0
    %5108 = vmatpush2.msra.mxu0 0.0
    %5109 = vmatprep.subr.mxu0 0.0
    %5110 = vmatpush2.msra.mxu0 0.0
    %5111 = vmatprep.subr.mxu0 0.0
    %5112 = vmatpush2.msra.mxu0 0.0
    %5113 = vmatprep.subr.mxu0 0.0
    %5114 = vmatpush2.msra.mxu0 0.0
    %5115 = vmatprep.subr.mxu0 0.0
    %5116 = vmatpush2.msra.mxu0 0.0
    %5117 = vmatprep.subr.mxu0 0.0
    %5118 = vmatpush2.msra.mxu0 0.0
    %5119 = vmatprep.subr.mxu0 0.0
    %5120 = vmatpush2.msra.mxu0 0.0
    %5121 = vmatprep.subr.mxu0 0.0
    %5122 = vmatpush2.msra.mxu0 0.0
    %5123 = vmatprep.subr.mxu0 0.0
    %5124 = vmatpush2.msra.mxu0 0.0
    %5125 = vmatprep.mubr.f32.mxu0 0.0
    %5126 = vmatmul.mubr.f32.gmra.mxu0 %v5056
    %v5127 = vpop.f32.mrf.mxu0
    %v5128 = vadd.f32 0.0, %v5127
    %v5129 = vpop.f32.mrf.mxu0
    %5130 = vmatprep.mubr.f32.mxu0 0.0
    %5131 = vmatmul.mubr.f32.gmra.mxu0 %v5059
    %v5132 = vpop.f32.mrf.mxu0
    %v5133 = vadd.f32 0.0, %v5132
    %v5134 = vpop.f32.mrf.mxu0
    %5135 = vdwg.mxu0
    %5136 = vrot.lane.b32.xlu0 %v368, 96
    %v5137 = vpop.permute.xlu0 %5136
    %5138 = vrot.lane.b32.xlu0 %v374, 96
    %v5139 = vpop.permute.xlu0 %5138
    %v5143 = vsel %vm1329, %v4958, 0
    %v5146 = vsel %vm1329, %v4959, 0
    %5148 = vmatprep.subr.mxu0 0.0
    %5149 = vmatpush1.msra.mxu0 0.0
    %5150 = vmatprep.subr.mxu0 0.0
    %5151 = vmatpush1.msra.mxu0 0.0
    %5152 = vmatprep.subr.mxu0 0.0
    %5153 = vmatpush1.msra.mxu0 0.0
    %5154 = vmatprep.subr.mxu0 0.0
    %5155 = vmatpush1.msra.mxu0 0.0
    %5156 = vmatprep.subr.mxu0 0.0
    %5157 = vmatpush1.msra.mxu0 0.0
    %5158 = vmatprep.subr.mxu0 0.0
    %5159 = vmatpush1.msra.mxu0 0.0
    %5160 = vmatprep.subr.mxu0 0.0
    %5161 = vmatpush1.msra.mxu0 0.0
    %5162 = vmatprep.subr.mxu0 0.0
    %5163 = vmatpush1.msra.mxu0 0.0
    %5164 = vmatprep.subr.mxu0 0.0
    %5165 = vmatpush1.msra.mxu0 0.0
    %5166 = vmatprep.subr.mxu0 0.0
    %5167 = vmatpush1.msra.mxu0 0.0
    %5168 = vmatprep.subr.mxu0 0.0
    %5169 = vmatpush1.msra.mxu0 0.0
    %5170 = vmatprep.subr.mxu0 0.0
    %5171 = vmatpush1.msra.mxu0 0.0
    %5172 = vmatprep.subr.mxu0 0.0
    %5173 = vmatpush1.msra.mxu0 0.0
    %5174 = vmatprep.subr.mxu0 0.0
    %5175 = vmatpush1.msra.mxu0 0.0
    %5176 = vmatprep.subr.mxu0 0.0
    %5177 = vmatpush1.msra.mxu0 %v5139
    %5178 = vmatprep.subr.mxu0 0.0
    %5179 = vmatpush1.msra.mxu0 %v5137
    %5180 = vmatprep.subr.mxu0 0.0
    %5181 = vmatpush2.msra.mxu0 0.0
    %5182 = vmatprep.subr.mxu0 0.0
    %5183 = vmatpush2.msra.mxu0 0.0
    %5184 = vmatprep.subr.mxu0 0.0
    %5185 = vmatpush2.msra.mxu0 0.0
    %5186 = vmatprep.subr.mxu0 0.0
    %5187 = vmatpush2.msra.mxu0 0.0
    %5188 = vmatprep.subr.mxu0 0.0
    %5189 = vmatpush2.msra.mxu0 0.0
    %5190 = vmatprep.subr.mxu0 0.0
    %5191 = vmatpush2.msra.mxu0 0.0
    %5192 = vmatprep.subr.mxu0 0.0
    %5193 = vmatpush2.msra.mxu0 0.0
    %5194 = vmatprep.subr.mxu0 0.0
    %5195 = vmatpush2.msra.mxu0 0.0
    %5196 = vmatprep.subr.mxu0 0.0
    %5197 = vmatpush2.msra.mxu0 0.0
    %5198 = vmatprep.subr.mxu0 0.0
    %5199 = vmatpush2.msra.mxu0 0.0
    %5200 = vmatprep.subr.mxu0 0.0
    %5201 = vmatpush2.msra.mxu0 0.0
    %5202 = vmatprep.subr.mxu0 0.0
    %5203 = vmatpush2.msra.mxu0 0.0
    %5204 = vmatprep.subr.mxu0 0.0
    %5205 = vmatpush2.msra.mxu0 0.0
    %5206 = vmatprep.subr.mxu0 0.0
    %5207 = vmatpush2.msra.mxu0 0.0
    %5208 = vmatprep.subr.mxu0 0.0
    %5209 = vmatpush2.msra.mxu0 0.0
    %5210 = vmatprep.subr.mxu0 0.0
    %5211 = vmatpush2.msra.mxu0 0.0
    %5212 = vmatprep.mubr.f32.mxu0 0.0
    %5213 = vmatmul.mubr.f32.gmra.mxu0 %v5143
    %v5214 = vpop.f32.mrf.mxu0
    %v5215 = vadd.f32 0.0, %v5214
    %v5216 = vpop.f32.mrf.mxu0
    %5217 = vmatprep.mubr.f32.mxu0 0.0
    %5218 = vmatmul.mubr.f32.gmra.mxu0 %v5146
    %v5219 = vpop.f32.mrf.mxu0
    %v5220 = vadd.f32 0.0, %v5219
    %v5221 = vpop.f32.mrf.mxu0
    %5222 = vdwg.mxu0
    %5223 = vrot.lane.b32.xlu0 %v380, 96
    %v5224 = vpop.permute.xlu0 %5223
    %5225 = vrot.lane.b32.xlu0 %v386, 96
    %v5226 = vpop.permute.xlu0 %5225
    %v5230 = vsel %vm1329, %v4960, 0
    %v5233 = vsel %vm1329, %v4961, 0
    %5235 = vmatprep.subr.mxu0 0.0
    %5236 = vmatpush1.msra.mxu0 0.0
    %5237 = vmatprep.subr.mxu0 0.0
    %5238 = vmatpush1.msra.mxu0 0.0
    %5239 = vmatprep.subr.mxu0 0.0
    %5240 = vmatpush1.msra.mxu0 0.0
    %5241 = vmatprep.subr.mxu0 0.0
    %5242 = vmatpush1.msra.mxu0 0.0
    %5243 = vmatprep.subr.mxu0 0.0
    %5244 = vmatpush1.msra.mxu0 0.0
    %5245 = vmatprep.subr.mxu0 0.0
    %5246 = vmatpush1.msra.mxu0 0.0
    %5247 = vmatprep.subr.mxu0 0.0
    %5248 = vmatpush1.msra.mxu0 0.0
    %5249 = vmatprep.subr.mxu0 0.0
    %5250 = vmatpush1.msra.mxu0 0.0
    %5251 = vmatprep.subr.mxu0 0.0
    %5252 = vmatpush1.msra.mxu0 0.0
    %5253 = vmatprep.subr.mxu0 0.0
    %5254 = vmatpush1.msra.mxu0 0.0
    %5255 = vmatprep.subr.mxu0 0.0
    %5256 = vmatpush1.msra.mxu0 0.0
    %5257 = vmatprep.subr.mxu0 0.0
    %5258 = vmatpush1.msra.mxu0 0.0
    %5259 = vmatprep.subr.mxu0 0.0
    %5260 = vmatpush1.msra.mxu0 0.0
    %5261 = vmatprep.subr.mxu0 0.0
    %5262 = vmatpush1.msra.mxu0 0.0
    %5263 = vmatprep.subr.mxu0 0.0
    %5264 = vmatpush1.msra.mxu0 %v5226
    %5265 = vmatprep.subr.mxu0 0.0
    %5266 = vmatpush1.msra.mxu0 %v5224
    %5267 = vmatprep.subr.mxu0 0.0
    %5268 = vmatpush2.msra.mxu0 0.0
    %5269 = vmatprep.subr.mxu0 0.0
    %5270 = vmatpush2.msra.mxu0 0.0
    %5271 = vmatprep.subr.mxu0 0.0
    %5272 = vmatpush2.msra.mxu0 0.0
    %5273 = vmatprep.subr.mxu0 0.0
    %5274 = vmatpush2.msra.mxu0 0.0
    %5275 = vmatprep.subr.mxu0 0.0
    %5276 = vmatpush2.msra.mxu0 0.0
    %5277 = vmatprep.subr.mxu0 0.0
    %5278 = vmatpush2.msra.mxu0 0.0
    %5279 = vmatprep.subr.mxu0 0.0
    %5280 = vmatpush2.msra.mxu0 0.0
    %5281 = vmatprep.subr.mxu0 0.0
    %5282 = vmatpush2.msra.mxu0 0.0
    %5283 = vmatprep.subr.mxu0 0.0
    %5284 = vmatpush2.msra.mxu0 0.0
    %5285 = vmatprep.subr.mxu0 0.0
    %5286 = vmatpush2.msra.mxu0 0.0
    %5287 = vmatprep.subr.mxu0 0.0
    %5288 = vmatpush2.msra.mxu0 0.0
    %5289 = vmatprep.subr.mxu0 0.0
    %5290 = vmatpush2.msra.mxu0 0.0
    %5291 = vmatprep.subr.mxu0 0.0
    %5292 = vmatpush2.msra.mxu0 0.0
    %5293 = vmatprep.subr.mxu0 0.0
    %5294 = vmatpush2.msra.mxu0 0.0
    %5295 = vmatprep.subr.mxu0 0.0
    %5296 = vmatpush2.msra.mxu0 0.0
    %5297 = vmatprep.subr.mxu0 0.0
    %5298 = vmatpush2.msra.mxu0 0.0
    %5299 = vmatprep.mubr.f32.mxu0 0.0
    %5300 = vmatmul.mubr.f32.gmra.mxu0 %v5230
    %v5301 = vpop.f32.mrf.mxu0
    %v5302 = vadd.f32 0.0, %v5301
    %v5303 = vpop.f32.mrf.mxu0
    %5304 = vmatprep.mubr.f32.mxu0 0.0
    %5305 = vmatmul.mubr.f32.gmra.mxu0 %v5233
    %v5306 = vpop.f32.mrf.mxu0
    %v5307 = vadd.f32 0.0, %v5306
    %v5308 = vpop.f32.mrf.mxu0
    %5309 = vdwg.mxu0
    %s5310 = sld [smem:[#allocation8 + $0x5]]
    %v5311 = vstv %s5310
    %v5312 = vsel %vm810, %v5311, 0.0
    %v5313 = vsel %vm811, %v5311, 0.0
    %v5314 = vsel %vm812, %v5311, 0.0
    %v5315 = vsel %vm813, %v5311, 0.0
    %v5316 = vsel %vm814, %v5311, 0.0
    %v5317 = vsel %vm815, %v5311, 0.0
    %v5318 = vsel %vm816, %v5311, 0.0
    %v5319 = vsel %vm817, %v5311, 0.0
    %s5320 = sld [smem:[#allocation8 + $0x85]]
    %v5321 = vstv %s5320
    %v5322 = vsel %vm818, %v5321, %v5312
    %v5323 = vsel %vm819, %v5321, %v5313
    %v5324 = vsel %vm820, %v5321, %v5314
    %v5325 = vsel %vm821, %v5321, %v5315
    %v5326 = vsel %vm822, %v5321, %v5316
    %v5327 = vsel %vm823, %v5321, %v5317
    %v5328 = vsel %vm824, %v5321, %v5318
    %v5329 = vsel %vm825, %v5321, %v5319
    %s5330 = sld [smem:[#allocation8 + $0x105]]
    %v5331 = vstv %s5330
    %v5332 = vsel %vm826, %v5331, %v5322
    %v5333 = vsel %vm827, %v5331, %v5323
    %v5334 = vsel %vm828, %v5331, %v5324
    %v5335 = vsel %vm829, %v5331, %v5325
    %v5336 = vsel %vm830, %v5331, %v5326
    %v5337 = vsel %vm831, %v5331, %v5327
    %v5338 = vsel %vm832, %v5331, %v5328
    %v5339 = vsel %vm833, %v5331, %v5329
    %s5340 = sld [smem:[#allocation8 + $0x185]]
    %v5341 = vstv %s5340
    %v5342 = vsel %vm834, %v5341, %v5332
    %v5343 = vsel %vm835, %v5341, %v5333
    %v5344 = vsel %vm836, %v5341, %v5334
    %v5345 = vsel %vm837, %v5341, %v5335
    %v5346 = vsel %vm838, %v5341, %v5336
    %v5347 = vsel %vm839, %v5341, %v5337
    %v5348 = vsel %vm840, %v5341, %v5338
    %v5349 = vsel %vm841, %v5341, %v5339
    %s5350 = sld [smem:[#allocation8 + $0x205]]
    %v5351 = vstv %s5350
    %v5352 = vsel %vm842, %v5351, %v5342
    %v5353 = vsel %vm843, %v5351, %v5343
    %v5354 = vsel %vm844, %v5351, %v5344
    %v5355 = vsel %vm845, %v5351, %v5345
    %v5356 = vsel %vm846, %v5351, %v5346
    %v5357 = vsel %vm847, %v5351, %v5347
    %v5358 = vsel %vm848, %v5351, %v5348
    %v5359 = vsel %vm849, %v5351, %v5349
    %s5360 = sld [smem:[#allocation8 + $0x285]]
    %v5361 = vstv %s5360
    %v5362 = vsel %vm850, %v5361, %v5352
    %v5363 = vsel %vm851, %v5361, %v5353
    %v5364 = vsel %vm852, %v5361, %v5354
    %v5365 = vsel %vm853, %v5361, %v5355
    %v5366 = vsel %vm854, %v5361, %v5356
    %v5367 = vsel %vm855, %v5361, %v5357
    %v5368 = vsel %vm856, %v5361, %v5358
    %v5369 = vsel %vm857, %v5361, %v5359
    %s5370 = sld [smem:[#allocation8 + $0x305]]
    %v5371 = vstv %s5370
    %v5372 = vsel %vm858, %v5371, %v5362
    %v5373 = vsel %vm859, %v5371, %v5363
    %v5374 = vsel %vm860, %v5371, %v5364
    %v5375 = vsel %vm861, %v5371, %v5365
    %v5376 = vsel %vm862, %v5371, %v5366
    %v5377 = vsel %vm863, %v5371, %v5367
    %v5378 = vsel %vm864, %v5371, %v5368
    %v5379 = vsel %vm865, %v5371, %v5369
    %s5380 = sld [smem:[#allocation8 + $0x385]]
    %v5381 = vstv %s5380
    %v5382 = vsel %vm866, %v5381, %v5372
    %v5383 = vsel %vm867, %v5381, %v5373
    %v5384 = vsel %vm868, %v5381, %v5374
    %v5385 = vsel %vm869, %v5381, %v5375
    %v5386 = vsel %vm870, %v5381, %v5376
    %v5387 = vsel %vm871, %v5381, %v5377
    %v5388 = vsel %vm872, %v5381, %v5378
    %v5389 = vsel %vm873, %v5381, %v5379
    %s5390 = sld [smem:[#allocation8 + $0x405]]
    %v5391 = vstv %s5390
    %v5392 = vsel %vm874, %v5391, %v5382
    %v5393 = vsel %vm875, %v5391, %v5383
    %v5394 = vsel %vm876, %v5391, %v5384
    %v5395 = vsel %vm877, %v5391, %v5385
    %v5396 = vsel %vm878, %v5391, %v5386
    %v5397 = vsel %vm879, %v5391, %v5387
    %v5398 = vsel %vm880, %v5391, %v5388
    %v5399 = vsel %vm881, %v5391, %v5389
    %5400 = vrot.lane.b32.xlu0 %v342, 88
    %v5401 = vpop.permute.xlu0 %5400
    %5402 = vrot.lane.b32.xlu0 %v348, 88
    %v5403 = vpop.permute.xlu0 %5402
    %5404 = vrot.lane.b32.xlu0 %v342, 24
    %v5405 = vpop.permute.xlu0 %5404
    %5406 = vrot.lane.b32.xlu0 %v348, 24
    %v5407 = vpop.permute.xlu0 %5406
    %v5408 = vsel %vm978, %v5401, 0
    %v5410 = vsel %vm978, %v5403, 0
    %v5412 = vsel %vm978, %v5405, 0
    %v5414 = vsel %vm978, %v5407, 0
    %5416 = vmatprep.subr.mxu0 0.0
    %5417 = vmatpush1.xpose.msra.mxu0 0.0
    %5418 = vmatprep.subr.mxu0 0.0
    %5419 = vmatpush1.xpose.msra.mxu0 0.0
    %5420 = vmatprep.subr.mxu0 0.0
    %5421 = vmatpush1.xpose.msra.mxu0 0.0
    %5422 = vmatprep.subr.mxu0 0.0
    %5423 = vmatpush1.xpose.msra.mxu0 0.0
    %5424 = vmatprep.subr.mxu0 0.0
    %5425 = vmatpush1.xpose.msra.mxu0 0.0
    %5426 = vmatprep.subr.mxu0 0.0
    %5427 = vmatpush1.xpose.msra.mxu0 0.0
    %5428 = vmatprep.subr.mxu0 0.0
    %5429 = vmatpush1.xpose.msra.mxu0 0.0
    %5430 = vmatprep.subr.mxu0 0.0
    %5431 = vmatpush1.xpose.msra.mxu0 0.0
    %5432 = vmatprep.subr.mxu0 0.0
    %5433 = vmatpush1.xpose.msra.mxu0 0.0
    %5434 = vmatprep.subr.mxu0 0.0
    %5435 = vmatpush1.xpose.msra.mxu0 0.0
    %5436 = vmatprep.subr.mxu0 0.0
    %5437 = vmatpush1.xpose.msra.mxu0 0.0
    %5438 = vmatprep.subr.mxu0 0.0
    %5439 = vmatpush1.xpose.msra.mxu0 0.0
    %5440 = vmatprep.subr.mxu0 0.0
    %5441 = vmatpush1.xpose.msra.mxu0 0.0
    %5442 = vmatprep.subr.mxu0 0.0
    %5443 = vmatpush1.xpose.msra.mxu0 0.0
    %5444 = vmatprep.subr.mxu0 0.0
    %5445 = vmatpush1.xpose.msra.mxu0 %v5414
    %5446 = vmatprep.subr.mxu0 0.0
    %5447 = vmatpush1.xpose.msra.mxu0 %v5412
    %5448 = vmatprep.subr.mxu0 0.0
    %5449 = vmatpush2.xpose.msra.mxu0 0.0
    %5450 = vmatprep.subr.mxu0 0.0
    %5451 = vmatpush2.xpose.msra.mxu0 0.0
    %5452 = vmatprep.subr.mxu0 0.0
    %5453 = vmatpush2.xpose.msra.mxu0 0.0
    %5454 = vmatprep.subr.mxu0 0.0
    %5455 = vmatpush2.xpose.msra.mxu0 0.0
    %5456 = vmatprep.subr.mxu0 0.0
    %5457 = vmatpush2.xpose.msra.mxu0 0.0
    %5458 = vmatprep.subr.mxu0 0.0
    %5459 = vmatpush2.xpose.msra.mxu0 0.0
    %5460 = vmatprep.subr.mxu0 0.0
    %5461 = vmatpush2.xpose.msra.mxu0 0.0
    %5462 = vmatprep.subr.mxu0 0.0
    %5463 = vmatpush2.xpose.msra.mxu0 0.0
    %5464 = vmatprep.subr.mxu0 0.0
    %5465 = vmatpush2.xpose.msra.mxu0 0.0
    %5466 = vmatprep.subr.mxu0 0.0
    %5467 = vmatpush2.xpose.msra.mxu0 0.0
    %5468 = vmatprep.subr.mxu0 0.0
    %5469 = vmatpush2.xpose.msra.mxu0 0.0
    %5470 = vmatprep.subr.mxu0 0.0
    %5471 = vmatpush2.xpose.msra.mxu0 0.0
    %5472 = vmatprep.subr.mxu0 0.0
    %5473 = vmatpush2.xpose.msra.mxu0 0.0
    %5474 = vmatprep.subr.mxu0 0.0
    %5475 = vmatpush2.xpose.msra.mxu0 0.0
    %5476 = vmatprep.subr.mxu0 0.0
    %5477 = vmatpush2.xpose.msra.mxu0 0.0
    %5478 = vmatprep.subr.mxu0 0.0
    %5479 = vmatpush2.xpose.msra.mxu0 0.0
    %5480 = vmatprep.mubr.f32.mxu0 0.0
    %5481 = vmatmul.mubr.f32.gmra.mxu0 %v5408
    %v5482 = vpop.f32.mrf.mxu0
    %v5483 = vadd.f32 %v5392, %v5482
    %v5484 = vpop.f32.mrf.mxu0
    %5485 = vmatprep.mubr.f32.mxu0 0.0
    %5486 = vmatmul.mubr.f32.gmra.mxu0 %v5410
    %v5487 = vpop.f32.mrf.mxu0
    %v5488 = vadd.f32 %v5393, %v5487
    %v5489 = vpop.f32.mrf.mxu0
    %5490 = vdwg.mxu0
    %5491 = vrot.lane.b32.xlu0 %v354, 88
    %v5492 = vpop.permute.xlu0 %5491
    %5493 = vrot.lane.b32.xlu0 %v360, 88
    %v5494 = vpop.permute.xlu0 %5493
    %5495 = vrot.lane.b32.xlu0 %v354, 24
    %v5496 = vpop.permute.xlu0 %5495
    %5497 = vrot.lane.b32.xlu0 %v360, 24
    %v5498 = vpop.permute.xlu0 %5497
    %v5499 = vsel %vm978, %v5492, 0
    %v5501 = vsel %vm978, %v5494, 0
    %v5503 = vsel %vm978, %v5496, 0
    %v5505 = vsel %vm978, %v5498, 0
    %5507 = vmatprep.subr.mxu0 0.0
    %5508 = vmatpush1.xpose.msra.mxu0 0.0
    %5509 = vmatprep.subr.mxu0 0.0
    %5510 = vmatpush1.xpose.msra.mxu0 0.0
    %5511 = vmatprep.subr.mxu0 0.0
    %5512 = vmatpush1.xpose.msra.mxu0 0.0
    %5513 = vmatprep.subr.mxu0 0.0
    %5514 = vmatpush1.xpose.msra.mxu0 0.0
    %5515 = vmatprep.subr.mxu0 0.0
    %5516 = vmatpush1.xpose.msra.mxu0 0.0
    %5517 = vmatprep.subr.mxu0 0.0
    %5518 = vmatpush1.xpose.msra.mxu0 0.0
    %5519 = vmatprep.subr.mxu0 0.0
    %5520 = vmatpush1.xpose.msra.mxu0 0.0
    %5521 = vmatprep.subr.mxu0 0.0
    %5522 = vmatpush1.xpose.msra.mxu0 0.0
    %5523 = vmatprep.subr.mxu0 0.0
    %5524 = vmatpush1.xpose.msra.mxu0 0.0
    %5525 = vmatprep.subr.mxu0 0.0
    %5526 = vmatpush1.xpose.msra.mxu0 0.0
    %5527 = vmatprep.subr.mxu0 0.0
    %5528 = vmatpush1.xpose.msra.mxu0 0.0
    %5529 = vmatprep.subr.mxu0 0.0
    %5530 = vmatpush1.xpose.msra.mxu0 0.0
    %5531 = vmatprep.subr.mxu0 0.0
    %5532 = vmatpush1.xpose.msra.mxu0 0.0
    %5533 = vmatprep.subr.mxu0 0.0
    %5534 = vmatpush1.xpose.msra.mxu0 0.0
    %5535 = vmatprep.subr.mxu0 0.0
    %5536 = vmatpush1.xpose.msra.mxu0 %v5505
    %5537 = vmatprep.subr.mxu0 0.0
    %5538 = vmatpush1.xpose.msra.mxu0 %v5503
    %5539 = vmatprep.subr.mxu0 0.0
    %5540 = vmatpush2.xpose.msra.mxu0 0.0
    %5541 = vmatprep.subr.mxu0 0.0
    %5542 = vmatpush2.xpose.msra.mxu0 0.0
    %5543 = vmatprep.subr.mxu0 0.0
    %5544 = vmatpush2.xpose.msra.mxu0 0.0
    %5545 = vmatprep.subr.mxu0 0.0
    %5546 = vmatpush2.xpose.msra.mxu0 0.0
    %5547 = vmatprep.subr.mxu0 0.0
    %5548 = vmatpush2.xpose.msra.mxu0 0.0
    %5549 = vmatprep.subr.mxu0 0.0
    %5550 = vmatpush2.xpose.msra.mxu0 0.0
    %5551 = vmatprep.subr.mxu0 0.0
    %5552 = vmatpush2.xpose.msra.mxu0 0.0
    %5553 = vmatprep.subr.mxu0 0.0
    %5554 = vmatpush2.xpose.msra.mxu0 0.0
    %5555 = vmatprep.subr.mxu0 0.0
    %5556 = vmatpush2.xpose.msra.mxu0 0.0
    %5557 = vmatprep.subr.mxu0 0.0
    %5558 = vmatpush2.xpose.msra.mxu0 0.0
    %5559 = vmatprep.subr.mxu0 0.0
    %5560 = vmatpush2.xpose.msra.mxu0 0.0
    %5561 = vmatprep.subr.mxu0 0.0
    %5562 = vmatpush2.xpose.msra.mxu0 0.0
    %5563 = vmatprep.subr.mxu0 0.0
    %5564 = vmatpush2.xpose.msra.mxu0 0.0
    %5565 = vmatprep.subr.mxu0 0.0
    %5566 = vmatpush2.xpose.msra.mxu0 0.0
    %5567 = vmatprep.subr.mxu0 0.0
    %5568 = vmatpush2.xpose.msra.mxu0 0.0
    %5569 = vmatprep.subr.mxu0 0.0
    %5570 = vmatpush2.xpose.msra.mxu0 0.0
    %5571 = vmatprep.mubr.f32.mxu0 0.0
    %5572 = vmatmul.mubr.f32.gmra.mxu0 %v5499
    %v5573 = vpop.f32.mrf.mxu0
    %v5574 = vadd.f32 %v5394, %v5573
    %v5575 = vpop.f32.mrf.mxu0
    %5576 = vmatprep.mubr.f32.mxu0 0.0
    %5577 = vmatmul.mubr.f32.gmra.mxu0 %v5501
    %v5578 = vpop.f32.mrf.mxu0
    %v5579 = vadd.f32 %v5395, %v5578
    %v5580 = vpop.f32.mrf.mxu0
    %5581 = vdwg.mxu0
    %5582 = vrot.lane.b32.xlu0 %v366, 88
    %v5583 = vpop.permute.xlu0 %5582
    %5584 = vrot.lane.b32.xlu0 %v372, 88
    %v5585 = vpop.permute.xlu0 %5584
    %5586 = vrot.lane.b32.xlu0 %v366, 24
    %v5587 = vpop.permute.xlu0 %5586
    %5588 = vrot.lane.b32.xlu0 %v372, 24
    %v5589 = vpop.permute.xlu0 %5588
    %v5590 = vsel %vm978, %v5583, 0
    %v5592 = vsel %vm978, %v5585, 0
    %v5594 = vsel %vm978, %v5587, 0
    %v5596 = vsel %vm978, %v5589, 0
    %5598 = vmatprep.subr.mxu0 0.0
    %5599 = vmatpush1.xpose.msra.mxu0 0.0
    %5600 = vmatprep.subr.mxu0 0.0
    %5601 = vmatpush1.xpose.msra.mxu0 0.0
    %5602 = vmatprep.subr.mxu0 0.0
    %5603 = vmatpush1.xpose.msra.mxu0 0.0
    %5604 = vmatprep.subr.mxu0 0.0
    %5605 = vmatpush1.xpose.msra.mxu0 0.0
    %5606 = vmatprep.subr.mxu0 0.0
    %5607 = vmatpush1.xpose.msra.mxu0 0.0
    %5608 = vmatprep.subr.mxu0 0.0
    %5609 = vmatpush1.xpose.msra.mxu0 0.0
    %5610 = vmatprep.subr.mxu0 0.0
    %5611 = vmatpush1.xpose.msra.mxu0 0.0
    %5612 = vmatprep.subr.mxu0 0.0
    %5613 = vmatpush1.xpose.msra.mxu0 0.0
    %5614 = vmatprep.subr.mxu0 0.0
    %5615 = vmatpush1.xpose.msra.mxu0 0.0
    %5616 = vmatprep.subr.mxu0 0.0
    %5617 = vmatpush1.xpose.msra.mxu0 0.0
    %5618 = vmatprep.subr.mxu0 0.0
    %5619 = vmatpush1.xpose.msra.mxu0 0.0
    %5620 = vmatprep.subr.mxu0 0.0
    %5621 = vmatpush1.xpose.msra.mxu0 0.0
    %5622 = vmatprep.subr.mxu0 0.0
    %5623 = vmatpush1.xpose.msra.mxu0 0.0
    %5624 = vmatprep.subr.mxu0 0.0
    %5625 = vmatpush1.xpose.msra.mxu0 0.0
    %5626 = vmatprep.subr.mxu0 0.0
    %5627 = vmatpush1.xpose.msra.mxu0 %v5596
    %5628 = vmatprep.subr.mxu0 0.0
    %5629 = vmatpush1.xpose.msra.mxu0 %v5594
    %5630 = vmatprep.subr.mxu0 0.0
    %5631 = vmatpush2.xpose.msra.mxu0 0.0
    %5632 = vmatprep.subr.mxu0 0.0
    %5633 = vmatpush2.xpose.msra.mxu0 0.0
    %5634 = vmatprep.subr.mxu0 0.0
    %5635 = vmatpush2.xpose.msra.mxu0 0.0
    %5636 = vmatprep.subr.mxu0 0.0
    %5637 = vmatpush2.xpose.msra.mxu0 0.0
    %5638 = vmatprep.subr.mxu0 0.0
    %5639 = vmatpush2.xpose.msra.mxu0 0.0
    %5640 = vmatprep.subr.mxu0 0.0
    %5641 = vmatpush2.xpose.msra.mxu0 0.0
    %5642 = vmatprep.subr.mxu0 0.0
    %5643 = vmatpush2.xpose.msra.mxu0 0.0
    %5644 = vmatprep.subr.mxu0 0.0
    %5645 = vmatpush2.xpose.msra.mxu0 0.0
    %5646 = vmatprep.subr.mxu0 0.0
    %5647 = vmatpush2.xpose.msra.mxu0 0.0
    %5648 = vmatprep.subr.mxu0 0.0
    %5649 = vmatpush2.xpose.msra.mxu0 0.0
    %5650 = vmatprep.subr.mxu0 0.0
    %5651 = vmatpush2.xpose.msra.mxu0 0.0
    %5652 = vmatprep.subr.mxu0 0.0
    %5653 = vmatpush2.xpose.msra.mxu0 0.0
    %5654 = vmatprep.subr.mxu0 0.0
    %5655 = vmatpush2.xpose.msra.mxu0 0.0
    %5656 = vmatprep.subr.mxu0 0.0
    %5657 = vmatpush2.xpose.msra.mxu0 0.0
    %5658 = vmatprep.subr.mxu0 0.0
    %5659 = vmatpush2.xpose.msra.mxu0 0.0
    %5660 = vmatprep.subr.mxu0 0.0
    %5661 = vmatpush2.xpose.msra.mxu0 0.0
    %5662 = vmatprep.mubr.f32.mxu0 0.0
    %5663 = vmatmul.mubr.f32.gmra.mxu0 %v5590
    %v5664 = vpop.f32.mrf.mxu0
    %v5665 = vadd.f32 %v5396, %v5664
    %v5666 = vpop.f32.mrf.mxu0
    %5667 = vmatprep.mubr.f32.mxu0 0.0
    %5668 = vmatmul.mubr.f32.gmra.mxu0 %v5592
    %v5669 = vpop.f32.mrf.mxu0
    %v5670 = vadd.f32 %v5397, %v5669
    %v5671 = vpop.f32.mrf.mxu0
    %5672 = vdwg.mxu0
    %5673 = vrot.lane.b32.xlu0 %v378, 88
    %v5674 = vpop.permute.xlu0 %5673
    %5675 = vrot.lane.b32.xlu0 %v384, 88
    %v5676 = vpop.permute.xlu0 %5675
    %5677 = vrot.lane.b32.xlu0 %v378, 24
    %v5678 = vpop.permute.xlu0 %5677
    %5679 = vrot.lane.b32.xlu0 %v384, 24
    %v5680 = vpop.permute.xlu0 %5679
    %v5681 = vsel %vm978, %v5674, 0
    %v5683 = vsel %vm978, %v5676, 0
    %v5685 = vsel %vm978, %v5678, 0
    %v5687 = vsel %vm978, %v5680, 0
    %5689 = vmatprep.subr.mxu0 0.0
    %5690 = vmatpush1.xpose.msra.mxu0 0.0
    %5691 = vmatprep.subr.mxu0 0.0
    %5692 = vmatpush1.xpose.msra.mxu0 0.0
    %5693 = vmatprep.subr.mxu0 0.0
    %5694 = vmatpush1.xpose.msra.mxu0 0.0
    %5695 = vmatprep.subr.mxu0 0.0
    %5696 = vmatpush1.xpose.msra.mxu0 0.0
    %5697 = vmatprep.subr.mxu0 0.0
    %5698 = vmatpush1.xpose.msra.mxu0 0.0
    %5699 = vmatprep.subr.mxu0 0.0
    %5700 = vmatpush1.xpose.msra.mxu0 0.0
    %5701 = vmatprep.subr.mxu0 0.0
    %5702 = vmatpush1.xpose.msra.mxu0 0.0
    %5703 = vmatprep.subr.mxu0 0.0
    %5704 = vmatpush1.xpose.msra.mxu0 0.0
    %5705 = vmatprep.subr.mxu0 0.0
    %5706 = vmatpush1.xpose.msra.mxu0 0.0
    %5707 = vmatprep.subr.mxu0 0.0
    %5708 = vmatpush1.xpose.msra.mxu0 0.0
    %5709 = vmatprep.subr.mxu0 0.0
    %5710 = vmatpush1.xpose.msra.mxu0 0.0
    %5711 = vmatprep.subr.mxu0 0.0
    %5712 = vmatpush1.xpose.msra.mxu0 0.0
    %5713 = vmatprep.subr.mxu0 0.0
    %5714 = vmatpush1.xpose.msra.mxu0 0.0
    %5715 = vmatprep.subr.mxu0 0.0
    %5716 = vmatpush1.xpose.msra.mxu0 0.0
    %5717 = vmatprep.subr.mxu0 0.0
    %5718 = vmatpush1.xpose.msra.mxu0 %v5687
    %5719 = vmatprep.subr.mxu0 0.0
    %5720 = vmatpush1.xpose.msra.mxu0 %v5685
    %5721 = vmatprep.subr.mxu0 0.0
    %5722 = vmatpush2.xpose.msra.mxu0 0.0
    %5723 = vmatprep.subr.mxu0 0.0
    %5724 = vmatpush2.xpose.msra.mxu0 0.0
    %5725 = vmatprep.subr.mxu0 0.0
    %5726 = vmatpush2.xpose.msra.mxu0 0.0
    %5727 = vmatprep.subr.mxu0 0.0
    %5728 = vmatpush2.xpose.msra.mxu0 0.0
    %5729 = vmatprep.subr.mxu0 0.0
    %5730 = vmatpush2.xpose.msra.mxu0 0.0
    %5731 = vmatprep.subr.mxu0 0.0
    %5732 = vmatpush2.xpose.msra.mxu0 0.0
    %5733 = vmatprep.subr.mxu0 0.0
    %5734 = vmatpush2.xpose.msra.mxu0 0.0
    %5735 = vmatprep.subr.mxu0 0.0
    %5736 = vmatpush2.xpose.msra.mxu0 0.0
    %5737 = vmatprep.subr.mxu0 0.0
    %5738 = vmatpush2.xpose.msra.mxu0 0.0
    %5739 = vmatprep.subr.mxu0 0.0
    %5740 = vmatpush2.xpose.msra.mxu0 0.0
    %5741 = vmatprep.subr.mxu0 0.0
    %5742 = vmatpush2.xpose.msra.mxu0 0.0
    %5743 = vmatprep.subr.mxu0 0.0
    %5744 = vmatpush2.xpose.msra.mxu0 0.0
    %5745 = vmatprep.subr.mxu0 0.0
    %5746 = vmatpush2.xpose.msra.mxu0 0.0
    %5747 = vmatprep.subr.mxu0 0.0
    %5748 = vmatpush2.xpose.msra.mxu0 0.0
    %5749 = vmatprep.subr.mxu0 0.0
    %5750 = vmatpush2.xpose.msra.mxu0 0.0
    %5751 = vmatprep.subr.mxu0 0.0
    %5752 = vmatpush2.xpose.msra.mxu0 0.0
    %5753 = vmatprep.mubr.f32.mxu0 0.0
    %5754 = vmatmul.mubr.f32.gmra.mxu0 %v5681
    %v5755 = vpop.f32.mrf.mxu0
    %v5756 = vadd.f32 %v5398, %v5755
    %v5757 = vpop.f32.mrf.mxu0
    %5758 = vmatprep.mubr.f32.mxu0 0.0
    %5759 = vmatmul.mubr.f32.gmra.mxu0 %v5683
    %v5760 = vpop.f32.mrf.mxu0
    %v5761 = vadd.f32 %v5399, %v5760
    %v5762 = vpop.f32.mrf.mxu0
    %5763 = vdwg.mxu0
    %v5764 = vsel %vm1329, %v5483, -inf
    %5765 = vmax.xlane.f32.xlu0 %v5764
    %v5766 = vpop.xlane.xlu0 %5765
    %v5767 = vsel %vm1329, %v5488, -inf
    %5768 = vmax.xlane.f32.xlu0 %v5767
    %v5769 = vpop.xlane.xlu0 %5768
    %v5770 = vsel %vm1329, %v5574, -inf
    %5771 = vmax.xlane.f32.xlu0 %v5770
    %v5772 = vpop.xlane.xlu0 %5771
    %v5773 = vsel %vm1329, %v5579, -inf
    %5774 = vmax.xlane.f32.xlu0 %v5773
    %v5775 = vpop.xlane.xlu0 %5774
    %v5776 = vsel %vm1329, %v5665, -inf
    %5777 = vmax.xlane.f32.xlu0 %v5776
    %v5778 = vpop.xlane.xlu0 %5777
    %v5779 = vsel %vm1329, %v5670, -inf
    %5780 = vmax.xlane.f32.xlu0 %v5779
    %v5781 = vpop.xlane.xlu0 %5780
    %v5782 = vsel %vm1329, %v5756, -inf
    %5783 = vmax.xlane.f32.xlu0 %v5782
    %v5784 = vpop.xlane.xlu0 %5783
    %v5785 = vsel %vm1329, %v5761, -inf
    %5786 = vmax.xlane.f32.xlu0 %v5785
    %v5787 = vpop.xlane.xlu0 %5786
    %v5788 = vsub.f32 %v5483, %v5766
    %v5789 = vsub.f32 %v5488, %v5769
    %v5790 = vsub.f32 %v5574, %v5772
    %v5791 = vsub.f32 %v5579, %v5775
    %v5792 = vsub.f32 %v5665, %v5778
    %v5793 = vsub.f32 %v5670, %v5781
    %v5794 = vsub.f32 %v5756, %v5784
    %v5795 = vsub.f32 %v5761, %v5787
    %v5796 = vmul.f32 %v5788, 1.442695
    %v5797 = vpow.pop %v5796
    %v5798 = vmul.f32 %v5789, 1.442695
    %v5799 = vpow.pop %v5798
    %v5800 = vmul.f32 %v5790, 1.442695
    %v5801 = vpow.pop %v5800
    %v5802 = vmul.f32 %v5791, 1.442695
    %v5803 = vpow.pop %v5802
    %v5804 = vmul.f32 %v5792, 1.442695
    %v5805 = vpow.pop %v5804
    %v5806 = vmul.f32 %v5793, 1.442695
    %v5807 = vpow.pop %v5806
    %v5808 = vmul.f32 %v5794, 1.442695
    %v5809 = vpow.pop %v5808
    %v5810 = vmul.f32 %v5795, 1.442695
    %v5811 = vpow.pop %v5810
    %v5812 = vsel %vm1329, %v5797, 0.0
    %5813 = vadd.xlane.f32.xlu0 %v5812
    %v5814 = vpop.xlane.xlu0 %5813
    %v5815 = vsel %vm1329, %v5799, 0.0
    %5816 = vadd.xlane.f32.xlu0 %v5815
    %v5817 = vpop.xlane.xlu0 %5816
    %v5818 = vsel %vm1329, %v5801, 0.0
    %5819 = vadd.xlane.f32.xlu0 %v5818
    %v5820 = vpop.xlane.xlu0 %5819
    %v5821 = vsel %vm1329, %v5803, 0.0
    %5822 = vadd.xlane.f32.xlu0 %v5821
    %v5823 = vpop.xlane.xlu0 %5822
    %v5824 = vsel %vm1329, %v5805, 0.0
    %5825 = vadd.xlane.f32.xlu0 %v5824
    %v5826 = vpop.xlane.xlu0 %5825
    %v5827 = vsel %vm1329, %v5807, 0.0
    %5828 = vadd.xlane.f32.xlu0 %v5827
    %v5829 = vpop.xlane.xlu0 %5828
    %v5830 = vsel %vm1329, %v5809, 0.0
    %5831 = vadd.xlane.f32.xlu0 %v5830
    %v5832 = vpop.xlane.xlu0 %5831
    %v5833 = vsel %vm1329, %v5811, 0.0
    %5834 = vadd.xlane.f32.xlu0 %v5833
    %v5835 = vpop.xlane.xlu0 %5834
    %v5836 = vrcp.pop %v5814
    %v5837 = vrcp.pop %v5817
    %v5838 = vrcp.pop %v5820
    %v5839 = vrcp.pop %v5823
    %v5840 = vrcp.pop %v5826
    %v5841 = vrcp.pop %v5829
    %v5842 = vrcp.pop %v5832
    %v5843 = vrcp.pop %v5835
    %v5844 = vmul.f32 %v5797, %v5836
    %v5845 = vmul.f32 %v5799, %v5837
    %v5846 = vmul.f32 %v5801, %v5838
    %v5847 = vmul.f32 %v5803, %v5839
    %v5848 = vmul.f32 %v5805, %v5840
    %v5849 = vmul.f32 %v5807, %v5841
    %v5850 = vmul.f32 %v5809, %v5842
    %v5851 = vmul.f32 %v5811, %v5843
    %5852 = vrot.lane.b32.xlu0 %v344, 88
    %v5853 = vpop.permute.xlu0 %5852
    %5854 = vrot.lane.b32.xlu0 %v350, 88
    %v5855 = vpop.permute.xlu0 %5854
    %v5859 = vsel %vm1329, %v5844, 0
    %v5862 = vsel %vm1329, %v5845, 0
    %5864 = vmatprep.subr.mxu0 0.0
    %5865 = vmatpush1.msra.mxu0 0.0
    %5866 = vmatprep.subr.mxu0 0.0
    %5867 = vmatpush1.msra.mxu0 0.0
    %5868 = vmatprep.subr.mxu0 0.0
    %5869 = vmatpush1.msra.mxu0 0.0
    %5870 = vmatprep.subr.mxu0 0.0
    %5871 = vmatpush1.msra.mxu0 0.0
    %5872 = vmatprep.subr.mxu0 0.0
    %5873 = vmatpush1.msra.mxu0 0.0
    %5874 = vmatprep.subr.mxu0 0.0
    %5875 = vmatpush1.msra.mxu0 0.0
    %5876 = vmatprep.subr.mxu0 0.0
    %5877 = vmatpush1.msra.mxu0 0.0
    %5878 = vmatprep.subr.mxu0 0.0
    %5879 = vmatpush1.msra.mxu0 0.0
    %5880 = vmatprep.subr.mxu0 0.0
    %5881 = vmatpush1.msra.mxu0 0.0
    %5882 = vmatprep.subr.mxu0 0.0
    %5883 = vmatpush1.msra.mxu0 0.0
    %5884 = vmatprep.subr.mxu0 0.0
    %5885 = vmatpush1.msra.mxu0 0.0
    %5886 = vmatprep.subr.mxu0 0.0
    %5887 = vmatpush1.msra.mxu0 0.0
    %5888 = vmatprep.subr.mxu0 0.0
    %5889 = vmatpush1.msra.mxu0 0.0
    %5890 = vmatprep.subr.mxu0 0.0
    %5891 = vmatpush1.msra.mxu0 0.0
    %5892 = vmatprep.subr.mxu0 0.0
    %5893 = vmatpush1.msra.mxu0 %v5855
    %5894 = vmatprep.subr.mxu0 0.0
    %5895 = vmatpush1.msra.mxu0 %v5853
    %5896 = vmatprep.subr.mxu0 0.0
    %5897 = vmatpush2.msra.mxu0 0.0
    %5898 = vmatprep.subr.mxu0 0.0
    %5899 = vmatpush2.msra.mxu0 0.0
    %5900 = vmatprep.subr.mxu0 0.0
    %5901 = vmatpush2.msra.mxu0 0.0
    %5902 = vmatprep.subr.mxu0 0.0
    %5903 = vmatpush2.msra.mxu0 0.0
    %5904 = vmatprep.subr.mxu0 0.0
    %5905 = vmatpush2.msra.mxu0 0.0
    %5906 = vmatprep.subr.mxu0 0.0
    %5907 = vmatpush2.msra.mxu0 0.0
    %5908 = vmatprep.subr.mxu0 0.0
    %5909 = vmatpush2.msra.mxu0 0.0
    %5910 = vmatprep.subr.mxu0 0.0
    %5911 = vmatpush2.msra.mxu0 0.0
    %5912 = vmatprep.subr.mxu0 0.0
    %5913 = vmatpush2.msra.mxu0 0.0
    %5914 = vmatprep.subr.mxu0 0.0
    %5915 = vmatpush2.msra.mxu0 0.0
    %5916 = vmatprep.subr.mxu0 0.0
    %5917 = vmatpush2.msra.mxu0 0.0
    %5918 = vmatprep.subr.mxu0 0.0
    %5919 = vmatpush2.msra.mxu0 0.0
    %5920 = vmatprep.subr.mxu0 0.0
    %5921 = vmatpush2.msra.mxu0 0.0
    %5922 = vmatprep.subr.mxu0 0.0
    %5923 = vmatpush2.msra.mxu0 0.0
    %5924 = vmatprep.subr.mxu0 0.0
    %5925 = vmatpush2.msra.mxu0 0.0
    %5926 = vmatprep.subr.mxu0 0.0
    %5927 = vmatpush2.msra.mxu0 0.0
    %5928 = vmatprep.mubr.f32.mxu0 0.0
    %5929 = vmatmul.mubr.f32.gmra.mxu0 %v5859
    %v5930 = vpop.f32.mrf.mxu0
    %v5931 = vadd.f32 0.0, %v5930
    %v5932 = vpop.f32.mrf.mxu0
    %5933 = vmatprep.mubr.f32.mxu0 0.0
    %5934 = vmatmul.mubr.f32.gmra.mxu0 %v5862
    %v5935 = vpop.f32.mrf.mxu0
    %v5936 = vadd.f32 0.0, %v5935
    %v5937 = vpop.f32.mrf.mxu0
    %5938 = vdwg.mxu0
    %5939 = vrot.lane.b32.xlu0 %v356, 88
    %v5940 = vpop.permute.xlu0 %5939
    %5941 = vrot.lane.b32.xlu0 %v362, 88
    %v5942 = vpop.permute.xlu0 %5941
    %v5946 = vsel %vm1329, %v5846, 0
    %v5949 = vsel %vm1329, %v5847, 0
    %5951 = vmatprep.subr.mxu0 0.0
    %5952 = vmatpush1.msra.mxu0 0.0
    %5953 = vmatprep.subr.mxu0 0.0
    %5954 = vmatpush1.msra.mxu0 0.0
    %5955 = vmatprep.subr.mxu0 0.0
    %5956 = vmatpush1.msra.mxu0 0.0
    %5957 = vmatprep.subr.mxu0 0.0
    %5958 = vmatpush1.msra.mxu0 0.0
    %5959 = vmatprep.subr.mxu0 0.0
    %5960 = vmatpush1.msra.mxu0 0.0
    %5961 = vmatprep.subr.mxu0 0.0
    %5962 = vmatpush1.msra.mxu0 0.0
    %5963 = vmatprep.subr.mxu0 0.0
    %5964 = vmatpush1.msra.mxu0 0.0
    %5965 = vmatprep.subr.mxu0 0.0
    %5966 = vmatpush1.msra.mxu0 0.0
    %5967 = vmatprep.subr.mxu0 0.0
    %5968 = vmatpush1.msra.mxu0 0.0
    %5969 = vmatprep.subr.mxu0 0.0
    %5970 = vmatpush1.msra.mxu0 0.0
    %5971 = vmatprep.subr.mxu0 0.0
    %5972 = vmatpush1.msra.mxu0 0.0
    %5973 = vmatprep.subr.mxu0 0.0
    %5974 = vmatpush1.msra.mxu0 0.0
    %5975 = vmatprep.subr.mxu0 0.0
    %5976 = vmatpush1.msra.mxu0 0.0
    %5977 = vmatprep.subr.mxu0 0.0
    %5978 = vmatpush1.msra.mxu0 0.0
    %5979 = vmatprep.subr.mxu0 0.0
    %5980 = vmatpush1.msra.mxu0 %v5942
    %5981 = vmatprep.subr.mxu0 0.0
    %5982 = vmatpush1.msra.mxu0 %v5940
    %5983 = vmatprep.subr.mxu0 0.0
    %5984 = vmatpush2.msra.mxu0 0.0
    %5985 = vmatprep.subr.mxu0 0.0
    %5986 = vmatpush2.msra.mxu0 0.0
    %5987 = vmatprep.subr.mxu0 0.0
    %5988 = vmatpush2.msra.mxu0 0.0
    %5989 = vmatprep.subr.mxu0 0.0
    %5990 = vmatpush2.msra.mxu0 0.0
    %5991 = vmatprep.subr.mxu0 0.0
    %5992 = vmatpush2.msra.mxu0 0.0
    %5993 = vmatprep.subr.mxu0 0.0
    %5994 = vmatpush2.msra.mxu0 0.0
    %5995 = vmatprep.subr.mxu0 0.0
    %5996 = vmatpush2.msra.mxu0 0.0
    %5997 = vmatprep.subr.mxu0 0.0
    %5998 = vmatpush2.msra.mxu0 0.0
    %5999 = vmatprep.subr.mxu0 0.0
    %6000 = vmatpush2.msra.mxu0 0.0
    %6001 = vmatprep.subr.mxu0 0.0
    %6002 = vmatpush2.msra.mxu0 0.0
    %6003 = vmatprep.subr.mxu0 0.0
    %6004 = vmatpush2.msra.mxu0 0.0
    %6005 = vmatprep.subr.mxu0 0.0
    %6006 = vmatpush2.msra.mxu0 0.0
    %6007 = vmatprep.subr.mxu0 0.0
    %6008 = vmatpush2.msra.mxu0 0.0
    %6009 = vmatprep.subr.mxu0 0.0
    %6010 = vmatpush2.msra.mxu0 0.0
    %6011 = vmatprep.subr.mxu0 0.0
    %6012 = vmatpush2.msra.mxu0 0.0
    %6013 = vmatprep.subr.mxu0 0.0
    %6014 = vmatpush2.msra.mxu0 0.0
    %6015 = vmatprep.mubr.f32.mxu0 0.0
    %6016 = vmatmul.mubr.f32.gmra.mxu0 %v5946
    %v6017 = vpop.f32.mrf.mxu0
    %v6018 = vadd.f32 0.0, %v6017
    %v6019 = vpop.f32.mrf.mxu0
    %6020 = vmatprep.mubr.f32.mxu0 0.0
    %6021 = vmatmul.mubr.f32.gmra.mxu0 %v5949
    %v6022 = vpop.f32.mrf.mxu0
    %v6023 = vadd.f32 0.0, %v6022
    %v6024 = vpop.f32.mrf.mxu0
    %6025 = vdwg.mxu0
    %6026 = vrot.lane.b32.xlu0 %v368, 88
    %v6027 = vpop.permute.xlu0 %6026
    %6028 = vrot.lane.b32.xlu0 %v374, 88
    %v6029 = vpop.permute.xlu0 %6028
    %v6033 = vsel %vm1329, %v5848, 0
    %v6036 = vsel %vm1329, %v5849, 0
    %6038 = vmatprep.subr.mxu0 0.0
    %6039 = vmatpush1.msra.mxu0 0.0
    %6040 = vmatprep.subr.mxu0 0.0
    %6041 = vmatpush1.msra.mxu0 0.0
    %6042 = vmatprep.subr.mxu0 0.0
    %6043 = vmatpush1.msra.mxu0 0.0
    %6044 = vmatprep.subr.mxu0 0.0
    %6045 = vmatpush1.msra.mxu0 0.0
    %6046 = vmatprep.subr.mxu0 0.0
    %6047 = vmatpush1.msra.mxu0 0.0
    %6048 = vmatprep.subr.mxu0 0.0
    %6049 = vmatpush1.msra.mxu0 0.0
    %6050 = vmatprep.subr.mxu0 0.0
    %6051 = vmatpush1.msra.mxu0 0.0
    %6052 = vmatprep.subr.mxu0 0.0
    %6053 = vmatpush1.msra.mxu0 0.0
    %6054 = vmatprep.subr.mxu0 0.0
    %6055 = vmatpush1.msra.mxu0 0.0
    %6056 = vmatprep.subr.mxu0 0.0
    %6057 = vmatpush1.msra.mxu0 0.0
    %6058 = vmatprep.subr.mxu0 0.0
    %6059 = vmatpush1.msra.mxu0 0.0
    %6060 = vmatprep.subr.mxu0 0.0
    %6061 = vmatpush1.msra.mxu0 0.0
    %6062 = vmatprep.subr.mxu0 0.0
    %6063 = vmatpush1.msra.mxu0 0.0
    %6064 = vmatprep.subr.mxu0 0.0
    %6065 = vmatpush1.msra.mxu0 0.0
    %6066 = vmatprep.subr.mxu0 0.0
    %6067 = vmatpush1.msra.mxu0 %v6029
    %6068 = vmatprep.subr.mxu0 0.0
    %6069 = vmatpush1.msra.mxu0 %v6027
    %6070 = vmatprep.subr.mxu0 0.0
    %6071 = vmatpush2.msra.mxu0 0.0
    %6072 = vmatprep.subr.mxu0 0.0
    %6073 = vmatpush2.msra.mxu0 0.0
    %6074 = vmatprep.subr.mxu0 0.0
    %6075 = vmatpush2.msra.mxu0 0.0
    %6076 = vmatprep.subr.mxu0 0.0
    %6077 = vmatpush2.msra.mxu0 0.0
    %6078 = vmatprep.subr.mxu0 0.0
    %6079 = vmatpush2.msra.mxu0 0.0
    %6080 = vmatprep.subr.mxu0 0.0
    %6081 = vmatpush2.msra.mxu0 0.0
    %6082 = vmatprep.subr.mxu0 0.0
    %6083 = vmatpush2.msra.mxu0 0.0
    %6084 = vmatprep.subr.mxu0 0.0
    %6085 = vmatpush2.msra.mxu0 0.0
    %6086 = vmatprep.subr.mxu0 0.0
    %6087 = vmatpush2.msra.mxu0 0.0
    %6088 = vmatprep.subr.mxu0 0.0
    %6089 = vmatpush2.msra.mxu0 0.0
    %6090 = vmatprep.subr.mxu0 0.0
    %6091 = vmatpush2.msra.mxu0 0.0
    %6092 = vmatprep.subr.mxu0 0.0
    %6093 = vmatpush2.msra.mxu0 0.0
    %6094 = vmatprep.subr.mxu0 0.0
    %6095 = vmatpush2.msra.mxu0 0.0
    %6096 = vmatprep.subr.mxu0 0.0
    %6097 = vmatpush2.msra.mxu0 0.0
    %6098 = vmatprep.subr.mxu0 0.0
    %6099 = vmatpush2.msra.mxu0 0.0
    %6100 = vmatprep.subr.mxu0 0.0
    %6101 = vmatpush2.msra.mxu0 0.0
    %6102 = vmatprep.mubr.f32.mxu0 0.0
    %6103 = vmatmul.mubr.f32.gmra.mxu0 %v6033
    %v6104 = vpop.f32.mrf.mxu0
    %v6105 = vadd.f32 0.0, %v6104
    %v6106 = vpop.f32.mrf.mxu0
    %6107 = vmatprep.mubr.f32.mxu0 0.0
    %6108 = vmatmul.mubr.f32.gmra.mxu0 %v6036
    %v6109 = vpop.f32.mrf.mxu0
    %v6110 = vadd.f32 0.0, %v6109
    %v6111 = vpop.f32.mrf.mxu0
    %6112 = vdwg.mxu0
    %6113 = vrot.lane.b32.xlu0 %v380, 88
    %v6114 = vpop.permute.xlu0 %6113
    %6115 = vrot.lane.b32.xlu0 %v386, 88
    %v6116 = vpop.permute.xlu0 %6115
    %v6120 = vsel %vm1329, %v5850, 0
    %v6123 = vsel %vm1329, %v5851, 0
    %6125 = vmatprep.subr.mxu0 0.0
    %6126 = vmatpush1.msra.mxu0 0.0
    %6127 = vmatprep.subr.mxu0 0.0
    %6128 = vmatpush1.msra.mxu0 0.0
    %6129 = vmatprep.subr.mxu0 0.0
    %6130 = vmatpush1.msra.mxu0 0.0
    %6131 = vmatprep.subr.mxu0 0.0
    %6132 = vmatpush1.msra.mxu0 0.0
    %6133 = vmatprep.subr.mxu0 0.0
    %6134 = vmatpush1.msra.mxu0 0.0
    %6135 = vmatprep.subr.mxu0 0.0
    %6136 = vmatpush1.msra.mxu0 0.0
    %6137 = vmatprep.subr.mxu0 0.0
    %6138 = vmatpush1.msra.mxu0 0.0
    %6139 = vmatprep.subr.mxu0 0.0
    %6140 = vmatpush1.msra.mxu0 0.0
    %6141 = vmatprep.subr.mxu0 0.0
    %6142 = vmatpush1.msra.mxu0 0.0
    %6143 = vmatprep.subr.mxu0 0.0
    %6144 = vmatpush1.msra.mxu0 0.0
    %6145 = vmatprep.subr.mxu0 0.0
    %6146 = vmatpush1.msra.mxu0 0.0
    %6147 = vmatprep.subr.mxu0 0.0
    %6148 = vmatpush1.msra.mxu0 0.0
    %6149 = vmatprep.subr.mxu0 0.0
    %6150 = vmatpush1.msra.mxu0 0.0
    %6151 = vmatprep.subr.mxu0 0.0
    %6152 = vmatpush1.msra.mxu0 0.0
    %6153 = vmatprep.subr.mxu0 0.0
    %6154 = vmatpush1.msra.mxu0 %v6116
    %6155 = vmatprep.subr.mxu0 0.0
    %6156 = vmatpush1.msra.mxu0 %v6114
    %6157 = vmatprep.subr.mxu0 0.0
    %6158 = vmatpush2.msra.mxu0 0.0
    %6159 = vmatprep.subr.mxu0 0.0
    %6160 = vmatpush2.msra.mxu0 0.0
    %6161 = vmatprep.subr.mxu0 0.0
    %6162 = vmatpush2.msra.mxu0 0.0
    %6163 = vmatprep.subr.mxu0 0.0
    %6164 = vmatpush2.msra.mxu0 0.0
    %6165 = vmatprep.subr.mxu0 0.0
    %6166 = vmatpush2.msra.mxu0 0.0
    %6167 = vmatprep.subr.mxu0 0.0
    %6168 = vmatpush2.msra.mxu0 0.0
    %6169 = vmatprep.subr.mxu0 0.0
    %6170 = vmatpush2.msra.mxu0 0.0
    %6171 = vmatprep.subr.mxu0 0.0
    %6172 = vmatpush2.msra.mxu0 0.0
    %6173 = vmatprep.subr.mxu0 0.0
    %6174 = vmatpush2.msra.mxu0 0.0
    %6175 = vmatprep.subr.mxu0 0.0
    %6176 = vmatpush2.msra.mxu0 0.0
    %6177 = vmatprep.subr.mxu0 0.0
    %6178 = vmatpush2.msra.mxu0 0.0
    %6179 = vmatprep.subr.mxu0 0.0
    %6180 = vmatpush2.msra.mxu0 0.0
    %6181 = vmatprep.subr.mxu0 0.0
    %6182 = vmatpush2.msra.mxu0 0.0
    %6183 = vmatprep.subr.mxu0 0.0
    %6184 = vmatpush2.msra.mxu0 0.0
    %6185 = vmatprep.subr.mxu0 0.0
    %6186 = vmatpush2.msra.mxu0 0.0
    %6187 = vmatprep.subr.mxu0 0.0
    %6188 = vmatpush2.msra.mxu0 0.0
    %6189 = vmatprep.mubr.f32.mxu0 0.0
    %6190 = vmatmul.mubr.f32.gmra.mxu0 %v6120
    %v6191 = vpop.f32.mrf.mxu0
    %v6192 = vadd.f32 0.0, %v6191
    %v6193 = vpop.f32.mrf.mxu0
    %6194 = vmatprep.mubr.f32.mxu0 0.0
    %6195 = vmatmul.mubr.f32.gmra.mxu0 %v6123
    %v6196 = vpop.f32.mrf.mxu0
    %v6197 = vadd.f32 0.0, %v6196
    %v6198 = vpop.f32.mrf.mxu0
    %6199 = vdwg.mxu0
    %s6200 = sld [smem:[#allocation8 + $0x6]]
    %v6201 = vstv %s6200
    %v6202 = vsel %vm810, %v6201, 0.0
    %v6203 = vsel %vm811, %v6201, 0.0
    %v6204 = vsel %vm812, %v6201, 0.0
    %v6205 = vsel %vm813, %v6201, 0.0
    %v6206 = vsel %vm814, %v6201, 0.0
    %v6207 = vsel %vm815, %v6201, 0.0
    %v6208 = vsel %vm816, %v6201, 0.0
    %v6209 = vsel %vm817, %v6201, 0.0
    %s6210 = sld [smem:[#allocation8 + $0x86]]
    %v6211 = vstv %s6210
    %v6212 = vsel %vm818, %v6211, %v6202
    %v6213 = vsel %vm819, %v6211, %v6203
    %v6214 = vsel %vm820, %v6211, %v6204
    %v6215 = vsel %vm821, %v6211, %v6205
    %v6216 = vsel %vm822, %v6211, %v6206
    %v6217 = vsel %vm823, %v6211, %v6207
    %v6218 = vsel %vm824, %v6211, %v6208
    %v6219 = vsel %vm825, %v6211, %v6209
    %s6220 = sld [smem:[#allocation8 + $0x106]]
    %v6221 = vstv %s6220
    %v6222 = vsel %vm826, %v6221, %v6212
    %v6223 = vsel %vm827, %v6221, %v6213
    %v6224 = vsel %vm828, %v6221, %v6214
    %v6225 = vsel %vm829, %v6221, %v6215
    %v6226 = vsel %vm830, %v6221, %v6216
    %v6227 = vsel %vm831, %v6221, %v6217
    %v6228 = vsel %vm832, %v6221, %v6218
    %v6229 = vsel %vm833, %v6221, %v6219
    %s6230 = sld [smem:[#allocation8 + $0x186]]
    %v6231 = vstv %s6230
    %v6232 = vsel %vm834, %v6231, %v6222
    %v6233 = vsel %vm835, %v6231, %v6223
    %v6234 = vsel %vm836, %v6231, %v6224
    %v6235 = vsel %vm837, %v6231, %v6225
    %v6236 = vsel %vm838, %v6231, %v6226
    %v6237 = vsel %vm839, %v6231, %v6227
    %v6238 = vsel %vm840, %v6231, %v6228
    %v6239 = vsel %vm841, %v6231, %v6229
    %s6240 = sld [smem:[#allocation8 + $0x206]]
    %v6241 = vstv %s6240
    %v6242 = vsel %vm842, %v6241, %v6232
    %v6243 = vsel %vm843, %v6241, %v6233
    %v6244 = vsel %vm844, %v6241, %v6234
    %v6245 = vsel %vm845, %v6241, %v6235
    %v6246 = vsel %vm846, %v6241, %v6236
    %v6247 = vsel %vm847, %v6241, %v6237
    %v6248 = vsel %vm848, %v6241, %v6238
    %v6249 = vsel %vm849, %v6241, %v6239
    %s6250 = sld [smem:[#allocation8 + $0x286]]
    %v6251 = vstv %s6250
    %v6252 = vsel %vm850, %v6251, %v6242
    %v6253 = vsel %vm851, %v6251, %v6243
    %v6254 = vsel %vm852, %v6251, %v6244
    %v6255 = vsel %vm853, %v6251, %v6245
    %v6256 = vsel %vm854, %v6251, %v6246
    %v6257 = vsel %vm855, %v6251, %v6247
    %v6258 = vsel %vm856, %v6251, %v6248
    %v6259 = vsel %vm857, %v6251, %v6249
    %s6260 = sld [smem:[#allocation8 + $0x306]]
    %v6261 = vstv %s6260
    %v6262 = vsel %vm858, %v6261, %v6252
    %v6263 = vsel %vm859, %v6261, %v6253
    %v6264 = vsel %vm860, %v6261, %v6254
    %v6265 = vsel %vm861, %v6261, %v6255
    %v6266 = vsel %vm862, %v6261, %v6256
    %v6267 = vsel %vm863, %v6261, %v6257
    %v6268 = vsel %vm864, %v6261, %v6258
    %v6269 = vsel %vm865, %v6261, %v6259
    %s6270 = sld [smem:[#allocation8 + $0x386]]
    %v6271 = vstv %s6270
    %v6272 = vsel %vm866, %v6271, %v6262
    %v6273 = vsel %vm867, %v6271, %v6263
    %v6274 = vsel %vm868, %v6271, %v6264
    %v6275 = vsel %vm869, %v6271, %v6265
    %v6276 = vsel %vm870, %v6271, %v6266
    %v6277 = vsel %vm871, %v6271, %v6267
    %v6278 = vsel %vm872, %v6271, %v6268
    %v6279 = vsel %vm873, %v6271, %v6269
    %s6280 = sld [smem:[#allocation8 + $0x406]]
    %v6281 = vstv %s6280
    %v6282 = vsel %vm874, %v6281, %v6272
    %v6283 = vsel %vm875, %v6281, %v6273
    %v6284 = vsel %vm876, %v6281, %v6274
    %v6285 = vsel %vm877, %v6281, %v6275
    %v6286 = vsel %vm878, %v6281, %v6276
    %v6287 = vsel %vm879, %v6281, %v6277
    %v6288 = vsel %vm880, %v6281, %v6278
    %v6289 = vsel %vm881, %v6281, %v6279
    %6290 = vrot.lane.b32.xlu0 %v342, 80
    %v6291 = vpop.permute.xlu0 %6290
    %6292 = vrot.lane.b32.xlu0 %v348, 80
    %v6293 = vpop.permute.xlu0 %6292
    %6294 = vrot.lane.b32.xlu0 %v342, 16
    %v6295 = vpop.permute.xlu0 %6294
    %6296 = vrot.lane.b32.xlu0 %v348, 16
    %v6297 = vpop.permute.xlu0 %6296
    %v6298 = vsel %vm978, %v6291, 0
    %v6300 = vsel %vm978, %v6293, 0
    %v6302 = vsel %vm978, %v6295, 0
    %v6304 = vsel %vm978, %v6297, 0
    %6306 = vmatprep.subr.mxu0 0.0
    %6307 = vmatpush1.xpose.msra.mxu0 0.0
    %6308 = vmatprep.subr.mxu0 0.0
    %6309 = vmatpush1.xpose.msra.mxu0 0.0
    %6310 = vmatprep.subr.mxu0 0.0
    %6311 = vmatpush1.xpose.msra.mxu0 0.0
    %6312 = vmatprep.subr.mxu0 0.0
    %6313 = vmatpush1.xpose.msra.mxu0 0.0
    %6314 = vmatprep.subr.mxu0 0.0
    %6315 = vmatpush1.xpose.msra.mxu0 0.0
    %6316 = vmatprep.subr.mxu0 0.0
    %6317 = vmatpush1.xpose.msra.mxu0 0.0
    %6318 = vmatprep.subr.mxu0 0.0
    %6319 = vmatpush1.xpose.msra.mxu0 0.0
    %6320 = vmatprep.subr.mxu0 0.0
    %6321 = vmatpush1.xpose.msra.mxu0 0.0
    %6322 = vmatprep.subr.mxu0 0.0
    %6323 = vmatpush1.xpose.msra.mxu0 0.0
    %6324 = vmatprep.subr.mxu0 0.0
    %6325 = vmatpush1.xpose.msra.mxu0 0.0
    %6326 = vmatprep.subr.mxu0 0.0
    %6327 = vmatpush1.xpose.msra.mxu0 0.0
    %6328 = vmatprep.subr.mxu0 0.0
    %6329 = vmatpush1.xpose.msra.mxu0 0.0
    %6330 = vmatprep.subr.mxu0 0.0
    %6331 = vmatpush1.xpose.msra.mxu0 0.0
    %6332 = vmatprep.subr.mxu0 0.0
    %6333 = vmatpush1.xpose.msra.mxu0 0.0
    %6334 = vmatprep.subr.mxu0 0.0
    %6335 = vmatpush1.xpose.msra.mxu0 %v6304
    %6336 = vmatprep.subr.mxu0 0.0
    %6337 = vmatpush1.xpose.msra.mxu0 %v6302
    %6338 = vmatprep.subr.mxu0 0.0
    %6339 = vmatpush2.xpose.msra.mxu0 0.0
    %6340 = vmatprep.subr.mxu0 0.0
    %6341 = vmatpush2.xpose.msra.mxu0 0.0
    %6342 = vmatprep.subr.mxu0 0.0
    %6343 = vmatpush2.xpose.msra.mxu0 0.0
    %6344 = vmatprep.subr.mxu0 0.0
    %6345 = vmatpush2.xpose.msra.mxu0 0.0
    %6346 = vmatprep.subr.mxu0 0.0
    %6347 = vmatpush2.xpose.msra.mxu0 0.0
    %6348 = vmatprep.subr.mxu0 0.0
    %6349 = vmatpush2.xpose.msra.mxu0 0.0
    %6350 = vmatprep.subr.mxu0 0.0
    %6351 = vmatpush2.xpose.msra.mxu0 0.0
    %6352 = vmatprep.subr.mxu0 0.0
    %6353 = vmatpush2.xpose.msra.mxu0 0.0
    %6354 = vmatprep.subr.mxu0 0.0
    %6355 = vmatpush2.xpose.msra.mxu0 0.0
    %6356 = vmatprep.subr.mxu0 0.0
    %6357 = vmatpush2.xpose.msra.mxu0 0.0
    %6358 = vmatprep.subr.mxu0 0.0
    %6359 = vmatpush2.xpose.msra.mxu0 0.0
    %6360 = vmatprep.subr.mxu0 0.0
    %6361 = vmatpush2.xpose.msra.mxu0 0.0
    %6362 = vmatprep.subr.mxu0 0.0
    %6363 = vmatpush2.xpose.msra.mxu0 0.0
    %6364 = vmatprep.subr.mxu0 0.0
    %6365 = vmatpush2.xpose.msra.mxu0 0.0
    %6366 = vmatprep.subr.mxu0 0.0
    %6367 = vmatpush2.xpose.msra.mxu0 0.0
    %6368 = vmatprep.subr.mxu0 0.0
    %6369 = vmatpush2.xpose.msra.mxu0 0.0
    %6370 = vmatprep.mubr.f32.mxu0 0.0
    %6371 = vmatmul.mubr.f32.gmra.mxu0 %v6298
    %v6372 = vpop.f32.mrf.mxu0
    %v6373 = vadd.f32 %v6282, %v6372
    %v6374 = vpop.f32.mrf.mxu0
    %6375 = vmatprep.mubr.f32.mxu0 0.0
    %6376 = vmatmul.mubr.f32.gmra.mxu0 %v6300
    %v6377 = vpop.f32.mrf.mxu0
    %v6378 = vadd.f32 %v6283, %v6377
    %v6379 = vpop.f32.mrf.mxu0
    %6380 = vdwg.mxu0
    %6381 = vrot.lane.b32.xlu0 %v354, 80
    %v6382 = vpop.permute.xlu0 %6381
    %6383 = vrot.lane.b32.xlu0 %v360, 80
    %v6384 = vpop.permute.xlu0 %6383
    %6385 = vrot.lane.b32.xlu0 %v354, 16
    %v6386 = vpop.permute.xlu0 %6385
    %6387 = vrot.lane.b32.xlu0 %v360, 16
    %v6388 = vpop.permute.xlu0 %6387
    %v6389 = vsel %vm978, %v6382, 0
    %v6391 = vsel %vm978, %v6384, 0
    %v6393 = vsel %vm978, %v6386, 0
    %v6395 = vsel %vm978, %v6388, 0
    %6397 = vmatprep.subr.mxu0 0.0
    %6398 = vmatpush1.xpose.msra.mxu0 0.0
    %6399 = vmatprep.subr.mxu0 0.0
    %6400 = vmatpush1.xpose.msra.mxu0 0.0
    %6401 = vmatprep.subr.mxu0 0.0
    %6402 = vmatpush1.xpose.msra.mxu0 0.0
    %6403 = vmatprep.subr.mxu0 0.0
    %6404 = vmatpush1.xpose.msra.mxu0 0.0
    %6405 = vmatprep.subr.mxu0 0.0
    %6406 = vmatpush1.xpose.msra.mxu0 0.0
    %6407 = vmatprep.subr.mxu0 0.0
    %6408 = vmatpush1.xpose.msra.mxu0 0.0
    %6409 = vmatprep.subr.mxu0 0.0
    %6410 = vmatpush1.xpose.msra.mxu0 0.0
    %6411 = vmatprep.subr.mxu0 0.0
    %6412 = vmatpush1.xpose.msra.mxu0 0.0
    %6413 = vmatprep.subr.mxu0 0.0
    %6414 = vmatpush1.xpose.msra.mxu0 0.0
    %6415 = vmatprep.subr.mxu0 0.0
    %6416 = vmatpush1.xpose.msra.mxu0 0.0
    %6417 = vmatprep.subr.mxu0 0.0
    %6418 = vmatpush1.xpose.msra.mxu0 0.0
    %6419 = vmatprep.subr.mxu0 0.0
    %6420 = vmatpush1.xpose.msra.mxu0 0.0
    %6421 = vmatprep.subr.mxu0 0.0
    %6422 = vmatpush1.xpose.msra.mxu0 0.0
    %6423 = vmatprep.subr.mxu0 0.0
    %6424 = vmatpush1.xpose.msra.mxu0 0.0
    %6425 = vmatprep.subr.mxu0 0.0
    %6426 = vmatpush1.xpose.msra.mxu0 %v6395
    %6427 = vmatprep.subr.mxu0 0.0
    %6428 = vmatpush1.xpose.msra.mxu0 %v6393
    %6429 = vmatprep.subr.mxu0 0.0
    %6430 = vmatpush2.xpose.msra.mxu0 0.0
    %6431 = vmatprep.subr.mxu0 0.0
    %6432 = vmatpush2.xpose.msra.mxu0 0.0
    %6433 = vmatprep.subr.mxu0 0.0
    %6434 = vmatpush2.xpose.msra.mxu0 0.0
    %6435 = vmatprep.subr.mxu0 0.0
    %6436 = vmatpush2.xpose.msra.mxu0 0.0
    %6437 = vmatprep.subr.mxu0 0.0
    %6438 = vmatpush2.xpose.msra.mxu0 0.0
    %6439 = vmatprep.subr.mxu0 0.0
    %6440 = vmatpush2.xpose.msra.mxu0 0.0
    %6441 = vmatprep.subr.mxu0 0.0
    %6442 = vmatpush2.xpose.msra.mxu0 0.0
    %6443 = vmatprep.subr.mxu0 0.0
    %6444 = vmatpush2.xpose.msra.mxu0 0.0
    %6445 = vmatprep.subr.mxu0 0.0
    %6446 = vmatpush2.xpose.msra.mxu0 0.0
    %6447 = vmatprep.subr.mxu0 0.0
    %6448 = vmatpush2.xpose.msra.mxu0 0.0
    %6449 = vmatprep.subr.mxu0 0.0
    %6450 = vmatpush2.xpose.msra.mxu0 0.0
    %6451 = vmatprep.subr.mxu0 0.0
    %6452 = vmatpush2.xpose.msra.mxu0 0.0
    %6453 = vmatprep.subr.mxu0 0.0
    %6454 = vmatpush2.xpose.msra.mxu0 0.0
    %6455 = vmatprep.subr.mxu0 0.0
    %6456 = vmatpush2.xpose.msra.mxu0 0.0
    %6457 = vmatprep.subr.mxu0 0.0
    %6458 = vmatpush2.xpose.msra.mxu0 0.0
    %6459 = vmatprep.subr.mxu0 0.0
    %6460 = vmatpush2.xpose.msra.mxu0 0.0
    %6461 = vmatprep.mubr.f32.mxu0 0.0
    %6462 = vmatmul.mubr.f32.gmra.mxu0 %v6389
    %v6463 = vpop.f32.mrf.mxu0
    %v6464 = vadd.f32 %v6284, %v6463
    %v6465 = vpop.f32.mrf.mxu0
    %6466 = vmatprep.mubr.f32.mxu0 0.0
    %6467 = vmatmul.mubr.f32.gmra.mxu0 %v6391
    %v6468 = vpop.f32.mrf.mxu0
    %v6469 = vadd.f32 %v6285, %v6468
    %v6470 = vpop.f32.mrf.mxu0
    %6471 = vdwg.mxu0
    %6472 = vrot.lane.b32.xlu0 %v366, 80
    %v6473 = vpop.permute.xlu0 %6472
    %6474 = vrot.lane.b32.xlu0 %v372, 80
    %v6475 = vpop.permute.xlu0 %6474
    %6476 = vrot.lane.b32.xlu0 %v366, 16
    %v6477 = vpop.permute.xlu0 %6476
    %6478 = vrot.lane.b32.xlu0 %v372, 16
    %v6479 = vpop.permute.xlu0 %6478
    %v6480 = vsel %vm978, %v6473, 0
    %v6482 = vsel %vm978, %v6475, 0
    %v6484 = vsel %vm978, %v6477, 0
    %v6486 = vsel %vm978, %v6479, 0
    %6488 = vmatprep.subr.mxu0 0.0
    %6489 = vmatpush1.xpose.msra.mxu0 0.0
    %6490 = vmatprep.subr.mxu0 0.0
    %6491 = vmatpush1.xpose.msra.mxu0 0.0
    %6492 = vmatprep.subr.mxu0 0.0
    %6493 = vmatpush1.xpose.msra.mxu0 0.0
    %6494 = vmatprep.subr.mxu0 0.0
    %6495 = vmatpush1.xpose.msra.mxu0 0.0
    %6496 = vmatprep.subr.mxu0 0.0
    %6497 = vmatpush1.xpose.msra.mxu0 0.0
    %6498 = vmatprep.subr.mxu0 0.0
    %6499 = vmatpush1.xpose.msra.mxu0 0.0
    %6500 = vmatprep.subr.mxu0 0.0
    %6501 = vmatpush1.xpose.msra.mxu0 0.0
    %6502 = vmatprep.subr.mxu0 0.0
    %6503 = vmatpush1.xpose.msra.mxu0 0.0
    %6504 = vmatprep.subr.mxu0 0.0
    %6505 = vmatpush1.xpose.msra.mxu0 0.0
    %6506 = vmatprep.subr.mxu0 0.0
    %6507 = vmatpush1.xpose.msra.mxu0 0.0
    %6508 = vmatprep.subr.mxu0 0.0
    %6509 = vmatpush1.xpose.msra.mxu0 0.0
    %6510 = vmatprep.subr.mxu0 0.0
    %6511 = vmatpush1.xpose.msra.mxu0 0.0
    %6512 = vmatprep.subr.mxu0 0.0
    %6513 = vmatpush1.xpose.msra.mxu0 0.0
    %6514 = vmatprep.subr.mxu0 0.0
    %6515 = vmatpush1.xpose.msra.mxu0 0.0
    %6516 = vmatprep.subr.mxu0 0.0
    %6517 = vmatpush1.xpose.msra.mxu0 %v6486
    %6518 = vmatprep.subr.mxu0 0.0
    %6519 = vmatpush1.xpose.msra.mxu0 %v6484
    %6520 = vmatprep.subr.mxu0 0.0
    %6521 = vmatpush2.xpose.msra.mxu0 0.0
    %6522 = vmatprep.subr.mxu0 0.0
    %6523 = vmatpush2.xpose.msra.mxu0 0.0
    %6524 = vmatprep.subr.mxu0 0.0
    %6525 = vmatpush2.xpose.msra.mxu0 0.0
    %6526 = vmatprep.subr.mxu0 0.0
    %6527 = vmatpush2.xpose.msra.mxu0 0.0
    %6528 = vmatprep.subr.mxu0 0.0
    %6529 = vmatpush2.xpose.msra.mxu0 0.0
    %6530 = vmatprep.subr.mxu0 0.0
    %6531 = vmatpush2.xpose.msra.mxu0 0.0
    %6532 = vmatprep.subr.mxu0 0.0
    %6533 = vmatpush2.xpose.msra.mxu0 0.0
    %6534 = vmatprep.subr.mxu0 0.0
    %6535 = vmatpush2.xpose.msra.mxu0 0.0
    %6536 = vmatprep.subr.mxu0 0.0
    %6537 = vmatpush2.xpose.msra.mxu0 0.0
    %6538 = vmatprep.subr.mxu0 0.0
    %6539 = vmatpush2.xpose.msra.mxu0 0.0
    %6540 = vmatprep.subr.mxu0 0.0
    %6541 = vmatpush2.xpose.msra.mxu0 0.0
    %6542 = vmatprep.subr.mxu0 0.0
    %6543 = vmatpush2.xpose.msra.mxu0 0.0
    %6544 = vmatprep.subr.mxu0 0.0
    %6545 = vmatpush2.xpose.msra.mxu0 0.0
    %6546 = vmatprep.subr.mxu0 0.0
    %6547 = vmatpush2.xpose.msra.mxu0 0.0
    %6548 = vmatprep.subr.mxu0 0.0
    %6549 = vmatpush2.xpose.msra.mxu0 0.0
    %6550 = vmatprep.subr.mxu0 0.0
    %6551 = vmatpush2.xpose.msra.mxu0 0.0
    %6552 = vmatprep.mubr.f32.mxu0 0.0
    %6553 = vmatmul.mubr.f32.gmra.mxu0 %v6480
    %v6554 = vpop.f32.mrf.mxu0
    %v6555 = vadd.f32 %v6286, %v6554
    %v6556 = vpop.f32.mrf.mxu0
    %6557 = vmatprep.mubr.f32.mxu0 0.0
    %6558 = vmatmul.mubr.f32.gmra.mxu0 %v6482
    %v6559 = vpop.f32.mrf.mxu0
    %v6560 = vadd.f32 %v6287, %v6559
    %v6561 = vpop.f32.mrf.mxu0
    %6562 = vdwg.mxu0
    %6563 = vrot.lane.b32.xlu0 %v378, 80
    %v6564 = vpop.permute.xlu0 %6563
    %6565 = vrot.lane.b32.xlu0 %v384, 80
    %v6566 = vpop.permute.xlu0 %6565
    %6567 = vrot.lane.b32.xlu0 %v378, 16
    %v6568 = vpop.permute.xlu0 %6567
    %6569 = vrot.lane.b32.xlu0 %v384, 16
    %v6570 = vpop.permute.xlu0 %6569
    %v6571 = vsel %vm978, %v6564, 0
    %v6573 = vsel %vm978, %v6566, 0
    %v6575 = vsel %vm978, %v6568, 0
    %v6577 = vsel %vm978, %v6570, 0
    %6579 = vmatprep.subr.mxu0 0.0
    %6580 = vmatpush1.xpose.msra.mxu0 0.0
    %6581 = vmatprep.subr.mxu0 0.0
    %6582 = vmatpush1.xpose.msra.mxu0 0.0
    %6583 = vmatprep.subr.mxu0 0.0
    %6584 = vmatpush1.xpose.msra.mxu0 0.0
    %6585 = vmatprep.subr.mxu0 0.0
    %6586 = vmatpush1.xpose.msra.mxu0 0.0
    %6587 = vmatprep.subr.mxu0 0.0
    %6588 = vmatpush1.xpose.msra.mxu0 0.0
    %6589 = vmatprep.subr.mxu0 0.0
    %6590 = vmatpush1.xpose.msra.mxu0 0.0
    %6591 = vmatprep.subr.mxu0 0.0
    %6592 = vmatpush1.xpose.msra.mxu0 0.0
    %6593 = vmatprep.subr.mxu0 0.0
    %6594 = vmatpush1.xpose.msra.mxu0 0.0
    %6595 = vmatprep.subr.mxu0 0.0
    %6596 = vmatpush1.xpose.msra.mxu0 0.0
    %6597 = vmatprep.subr.mxu0 0.0
    %6598 = vmatpush1.xpose.msra.mxu0 0.0
    %6599 = vmatprep.subr.mxu0 0.0
    %6600 = vmatpush1.xpose.msra.mxu0 0.0
    %6601 = vmatprep.subr.mxu0 0.0
    %6602 = vmatpush1.xpose.msra.mxu0 0.0
    %6603 = vmatprep.subr.mxu0 0.0
    %6604 = vmatpush1.xpose.msra.mxu0 0.0
    %6605 = vmatprep.subr.mxu0 0.0
    %6606 = vmatpush1.xpose.msra.mxu0 0.0
    %6607 = vmatprep.subr.mxu0 0.0
    %6608 = vmatpush1.xpose.msra.mxu0 %v6577
    %6609 = vmatprep.subr.mxu0 0.0
    %6610 = vmatpush1.xpose.msra.mxu0 %v6575
    %6611 = vmatprep.subr.mxu0 0.0
    %6612 = vmatpush2.xpose.msra.mxu0 0.0
    %6613 = vmatprep.subr.mxu0 0.0
    %6614 = vmatpush2.xpose.msra.mxu0 0.0
    %6615 = vmatprep.subr.mxu0 0.0
    %6616 = vmatpush2.xpose.msra.mxu0 0.0
    %6617 = vmatprep.subr.mxu0 0.0
    %6618 = vmatpush2.xpose.msra.mxu0 0.0
    %6619 = vmatprep.subr.mxu0 0.0
    %6620 = vmatpush2.xpose.msra.mxu0 0.0
    %6621 = vmatprep.subr.mxu0 0.0
    %6622 = vmatpush2.xpose.msra.mxu0 0.0
    %6623 = vmatprep.subr.mxu0 0.0
    %6624 = vmatpush2.xpose.msra.mxu0 0.0
    %6625 = vmatprep.subr.mxu0 0.0
    %6626 = vmatpush2.xpose.msra.mxu0 0.0
    %6627 = vmatprep.subr.mxu0 0.0
    %6628 = vmatpush2.xpose.msra.mxu0 0.0
    %6629 = vmatprep.subr.mxu0 0.0
    %6630 = vmatpush2.xpose.msra.mxu0 0.0
    %6631 = vmatprep.subr.mxu0 0.0
    %6632 = vmatpush2.xpose.msra.mxu0 0.0
    %6633 = vmatprep.subr.mxu0 0.0
    %6634 = vmatpush2.xpose.msra.mxu0 0.0
    %6635 = vmatprep.subr.mxu0 0.0
    %6636 = vmatpush2.xpose.msra.mxu0 0.0
    %6637 = vmatprep.subr.mxu0 0.0
    %6638 = vmatpush2.xpose.msra.mxu0 0.0
    %6639 = vmatprep.subr.mxu0 0.0
    %6640 = vmatpush2.xpose.msra.mxu0 0.0
    %6641 = vmatprep.subr.mxu0 0.0
    %6642 = vmatpush2.xpose.msra.mxu0 0.0
    %6643 = vmatprep.mubr.f32.mxu0 0.0
    %6644 = vmatmul.mubr.f32.gmra.mxu0 %v6571
    %v6645 = vpop.f32.mrf.mxu0
    %v6646 = vadd.f32 %v6288, %v6645
    %v6647 = vpop.f32.mrf.mxu0
    %6648 = vmatprep.mubr.f32.mxu0 0.0
    %6649 = vmatmul.mubr.f32.gmra.mxu0 %v6573
    %v6650 = vpop.f32.mrf.mxu0
    %v6651 = vadd.f32 %v6289, %v6650
    %v6652 = vpop.f32.mrf.mxu0
    %6653 = vdwg.mxu0
    %v6654 = vsel %vm1329, %v6373, -inf
    %6655 = vmax.xlane.f32.xlu0 %v6654
    %v6656 = vpop.xlane.xlu0 %6655
    %v6657 = vsel %vm1329, %v6378, -inf
    %6658 = vmax.xlane.f32.xlu0 %v6657
    %v6659 = vpop.xlane.xlu0 %6658
    %v6660 = vsel %vm1329, %v6464, -inf
    %6661 = vmax.xlane.f32.xlu0 %v6660
    %v6662 = vpop.xlane.xlu0 %6661
    %v6663 = vsel %vm1329, %v6469, -inf
    %6664 = vmax.xlane.f32.xlu0 %v6663
    %v6665 = vpop.xlane.xlu0 %6664
    %v6666 = vsel %vm1329, %v6555, -inf
    %6667 = vmax.xlane.f32.xlu0 %v6666
    %v6668 = vpop.xlane.xlu0 %6667
    %v6669 = vsel %vm1329, %v6560, -inf
    %6670 = vmax.xlane.f32.xlu0 %v6669
    %v6671 = vpop.xlane.xlu0 %6670
    %v6672 = vsel %vm1329, %v6646, -inf
    %6673 = vmax.xlane.f32.xlu0 %v6672
    %v6674 = vpop.xlane.xlu0 %6673
    %v6675 = vsel %vm1329, %v6651, -inf
    %6676 = vmax.xlane.f32.xlu0 %v6675
    %v6677 = vpop.xlane.xlu0 %6676
    %v6678 = vsub.f32 %v6373, %v6656
    %v6679 = vsub.f32 %v6378, %v6659
    %v6680 = vsub.f32 %v6464, %v6662
    %v6681 = vsub.f32 %v6469, %v6665
    %v6682 = vsub.f32 %v6555, %v6668
    %v6683 = vsub.f32 %v6560, %v6671
    %v6684 = vsub.f32 %v6646, %v6674
    %v6685 = vsub.f32 %v6651, %v6677
    %v6686 = vmul.f32 %v6678, 1.442695
    %v6687 = vpow.pop %v6686
    %v6688 = vmul.f32 %v6679, 1.442695
    %v6689 = vpow.pop %v6688
    %v6690 = vmul.f32 %v6680, 1.442695
    %v6691 = vpow.pop %v6690
    %v6692 = vmul.f32 %v6681, 1.442695
    %v6693 = vpow.pop %v6692
    %v6694 = vmul.f32 %v6682, 1.442695
    %v6695 = vpow.pop %v6694
    %v6696 = vmul.f32 %v6683, 1.442695
    %v6697 = vpow.pop %v6696
    %v6698 = vmul.f32 %v6684, 1.442695
    %v6699 = vpow.pop %v6698
    %v6700 = vmul.f32 %v6685, 1.442695
    %v6701 = vpow.pop %v6700
    %v6702 = vsel %vm1329, %v6687, 0.0
    %6703 = vadd.xlane.f32.xlu0 %v6702
    %v6704 = vpop.xlane.xlu0 %6703
    %v6705 = vsel %vm1329, %v6689, 0.0
    %6706 = vadd.xlane.f32.xlu0 %v6705
    %v6707 = vpop.xlane.xlu0 %6706
    %v6708 = vsel %vm1329, %v6691, 0.0
    %6709 = vadd.xlane.f32.xlu0 %v6708
    %v6710 = vpop.xlane.xlu0 %6709
    %v6711 = vsel %vm1329, %v6693, 0.0
    %6712 = vadd.xlane.f32.xlu0 %v6711
    %v6713 = vpop.xlane.xlu0 %6712
    %v6714 = vsel %vm1329, %v6695, 0.0
    %6715 = vadd.xlane.f32.xlu0 %v6714
    %v6716 = vpop.xlane.xlu0 %6715
    %v6717 = vsel %vm1329, %v6697, 0.0
    %6718 = vadd.xlane.f32.xlu0 %v6717
    %v6719 = vpop.xlane.xlu0 %6718
    %v6720 = vsel %vm1329, %v6699, 0.0
    %6721 = vadd.xlane.f32.xlu0 %v6720
    %v6722 = vpop.xlane.xlu0 %6721
    %v6723 = vsel %vm1329, %v6701, 0.0
    %6724 = vadd.xlane.f32.xlu0 %v6723
    %v6725 = vpop.xlane.xlu0 %6724
    %v6726 = vrcp.pop %v6704
    %v6727 = vrcp.pop %v6707
    %v6728 = vrcp.pop %v6710
    %v6729 = vrcp.pop %v6713
    %v6730 = vrcp.pop %v6716
    %v6731 = vrcp.pop %v6719
    %v6732 = vrcp.pop %v6722
    %v6733 = vrcp.pop %v6725
    %v6734 = vmul.f32 %v6687, %v6726
    %v6735 = vmul.f32 %v6689, %v6727
    %v6736 = vmul.f32 %v6691, %v6728
    %v6737 = vmul.f32 %v6693, %v6729
    %v6738 = vmul.f32 %v6695, %v6730
    %v6739 = vmul.f32 %v6697, %v6731
    %v6740 = vmul.f32 %v6699, %v6732
    %v6741 = vmul.f32 %v6701, %v6733
    %6742 = vrot.lane.b32.xlu0 %v344, 80
    %v6743 = vpop.permute.xlu0 %6742
    %6744 = vrot.lane.b32.xlu0 %v350, 80
    %v6745 = vpop.permute.xlu0 %6744
    %v6749 = vsel %vm1329, %v6734, 0
    %v6752 = vsel %vm1329, %v6735, 0
    %6754 = vmatprep.subr.mxu0 0.0
    %6755 = vmatpush1.msra.mxu0 0.0
    %6756 = vmatprep.subr.mxu0 0.0
    %6757 = vmatpush1.msra.mxu0 0.0
    %6758 = vmatprep.subr.mxu0 0.0
    %6759 = vmatpush1.msra.mxu0 0.0
    %6760 = vmatprep.subr.mxu0 0.0
    %6761 = vmatpush1.msra.mxu0 0.0
    %6762 = vmatprep.subr.mxu0 0.0
    %6763 = vmatpush1.msra.mxu0 0.0
    %6764 = vmatprep.subr.mxu0 0.0
    %6765 = vmatpush1.msra.mxu0 0.0
    %6766 = vmatprep.subr.mxu0 0.0
    %6767 = vmatpush1.msra.mxu0 0.0
    %6768 = vmatprep.subr.mxu0 0.0
    %6769 = vmatpush1.msra.mxu0 0.0
    %6770 = vmatprep.subr.mxu0 0.0
    %6771 = vmatpush1.msra.mxu0 0.0
    %6772 = vmatprep.subr.mxu0 0.0
    %6773 = vmatpush1.msra.mxu0 0.0
    %6774 = vmatprep.subr.mxu0 0.0
    %6775 = vmatpush1.msra.mxu0 0.0
    %6776 = vmatprep.subr.mxu0 0.0
    %6777 = vmatpush1.msra.mxu0 0.0
    %6778 = vmatprep.subr.mxu0 0.0
    %6779 = vmatpush1.msra.mxu0 0.0
    %6780 = vmatprep.subr.mxu0 0.0
    %6781 = vmatpush1.msra.mxu0 0.0
    %6782 = vmatprep.subr.mxu0 0.0
    %6783 = vmatpush1.msra.mxu0 %v6745
    %6784 = vmatprep.subr.mxu0 0.0
    %6785 = vmatpush1.msra.mxu0 %v6743
    %6786 = vmatprep.subr.mxu0 0.0
    %6787 = vmatpush2.msra.mxu0 0.0
    %6788 = vmatprep.subr.mxu0 0.0
    %6789 = vmatpush2.msra.mxu0 0.0
    %6790 = vmatprep.subr.mxu0 0.0
    %6791 = vmatpush2.msra.mxu0 0.0
    %6792 = vmatprep.subr.mxu0 0.0
    %6793 = vmatpush2.msra.mxu0 0.0
    %6794 = vmatprep.subr.mxu0 0.0
    %6795 = vmatpush2.msra.mxu0 0.0
    %6796 = vmatprep.subr.mxu0 0.0
    %6797 = vmatpush2.msra.mxu0 0.0
    %6798 = vmatprep.subr.mxu0 0.0
    %6799 = vmatpush2.msra.mxu0 0.0
    %6800 = vmatprep.subr.mxu0 0.0
    %6801 = vmatpush2.msra.mxu0 0.0
    %6802 = vmatprep.subr.mxu0 0.0
    %6803 = vmatpush2.msra.mxu0 0.0
    %6804 = vmatprep.subr.mxu0 0.0
    %6805 = vmatpush2.msra.mxu0 0.0
    %6806 = vmatprep.subr.mxu0 0.0
    %6807 = vmatpush2.msra.mxu0 0.0
    %6808 = vmatprep.subr.mxu0 0.0
    %6809 = vmatpush2.msra.mxu0 0.0
    %6810 = vmatprep.subr.mxu0 0.0
    %6811 = vmatpush2.msra.mxu0 0.0
    %6812 = vmatprep.subr.mxu0 0.0
    %6813 = vmatpush2.msra.mxu0 0.0
    %6814 = vmatprep.subr.mxu0 0.0
    %6815 = vmatpush2.msra.mxu0 0.0
    %6816 = vmatprep.subr.mxu0 0.0
    %6817 = vmatpush2.msra.mxu0 0.0
    %6818 = vmatprep.mubr.f32.mxu0 0.0
    %6819 = vmatmul.mubr.f32.gmra.mxu0 %v6749
    %v6820 = vpop.f32.mrf.mxu0
    %v6821 = vadd.f32 0.0, %v6820
    %v6822 = vpop.f32.mrf.mxu0
    %6823 = vmatprep.mubr.f32.mxu0 0.0
    %6824 = vmatmul.mubr.f32.gmra.mxu0 %v6752
    %v6825 = vpop.f32.mrf.mxu0
    %v6826 = vadd.f32 0.0, %v6825
    %v6827 = vpop.f32.mrf.mxu0
    %6828 = vdwg.mxu0
    %6829 = vrot.lane.b32.xlu0 %v356, 80
    %v6830 = vpop.permute.xlu0 %6829
    %6831 = vrot.lane.b32.xlu0 %v362, 80
    %v6832 = vpop.permute.xlu0 %6831
    %v6836 = vsel %vm1329, %v6736, 0
    %v6839 = vsel %vm1329, %v6737, 0
    %6841 = vmatprep.subr.mxu0 0.0
    %6842 = vmatpush1.msra.mxu0 0.0
    %6843 = vmatprep.subr.mxu0 0.0
    %6844 = vmatpush1.msra.mxu0 0.0
    %6845 = vmatprep.subr.mxu0 0.0
    %6846 = vmatpush1.msra.mxu0 0.0
    %6847 = vmatprep.subr.mxu0 0.0
    %6848 = vmatpush1.msra.mxu0 0.0
    %6849 = vmatprep.subr.mxu0 0.0
    %6850 = vmatpush1.msra.mxu0 0.0
    %6851 = vmatprep.subr.mxu0 0.0
    %6852 = vmatpush1.msra.mxu0 0.0
    %6853 = vmatprep.subr.mxu0 0.0
    %6854 = vmatpush1.msra.mxu0 0.0
    %6855 = vmatprep.subr.mxu0 0.0
    %6856 = vmatpush1.msra.mxu0 0.0
    %6857 = vmatprep.subr.mxu0 0.0
    %6858 = vmatpush1.msra.mxu0 0.0
    %6859 = vmatprep.subr.mxu0 0.0
    %6860 = vmatpush1.msra.mxu0 0.0
    %6861 = vmatprep.subr.mxu0 0.0
    %6862 = vmatpush1.msra.mxu0 0.0
    %6863 = vmatprep.subr.mxu0 0.0
    %6864 = vmatpush1.msra.mxu0 0.0
    %6865 = vmatprep.subr.mxu0 0.0
    %6866 = vmatpush1.msra.mxu0 0.0
    %6867 = vmatprep.subr.mxu0 0.0
    %6868 = vmatpush1.msra.mxu0 0.0
    %6869 = vmatprep.subr.mxu0 0.0
    %6870 = vmatpush1.msra.mxu0 %v6832
    %6871 = vmatprep.subr.mxu0 0.0
    %6872 = vmatpush1.msra.mxu0 %v6830
    %6873 = vmatprep.subr.mxu0 0.0
    %6874 = vmatpush2.msra.mxu0 0.0
    %6875 = vmatprep.subr.mxu0 0.0
    %6876 = vmatpush2.msra.mxu0 0.0
    %6877 = vmatprep.subr.mxu0 0.0
    %6878 = vmatpush2.msra.mxu0 0.0
    %6879 = vmatprep.subr.mxu0 0.0
    %6880 = vmatpush2.msra.mxu0 0.0
    %6881 = vmatprep.subr.mxu0 0.0
    %6882 = vmatpush2.msra.mxu0 0.0
    %6883 = vmatprep.subr.mxu0 0.0
    %6884 = vmatpush2.msra.mxu0 0.0
    %6885 = vmatprep.subr.mxu0 0.0
    %6886 = vmatpush2.msra.mxu0 0.0
    %6887 = vmatprep.subr.mxu0 0.0
    %6888 = vmatpush2.msra.mxu0 0.0
    %6889 = vmatprep.subr.mxu0 0.0
    %6890 = vmatpush2.msra.mxu0 0.0
    %6891 = vmatprep.subr.mxu0 0.0
    %6892 = vmatpush2.msra.mxu0 0.0
    %6893 = vmatprep.subr.mxu0 0.0
    %6894 = vmatpush2.msra.mxu0 0.0
    %6895 = vmatprep.subr.mxu0 0.0
    %6896 = vmatpush2.msra.mxu0 0.0
    %6897 = vmatprep.subr.mxu0 0.0
    %6898 = vmatpush2.msra.mxu0 0.0
    %6899 = vmatprep.subr.mxu0 0.0
    %6900 = vmatpush2.msra.mxu0 0.0
    %6901 = vmatprep.subr.mxu0 0.0
    %6902 = vmatpush2.msra.mxu0 0.0
    %6903 = vmatprep.subr.mxu0 0.0
    %6904 = vmatpush2.msra.mxu0 0.0
    %6905 = vmatprep.mubr.f32.mxu0 0.0
    %6906 = vmatmul.mubr.f32.gmra.mxu0 %v6836
    %v6907 = vpop.f32.mrf.mxu0
    %v6908 = vadd.f32 0.0, %v6907
    %v6909 = vpop.f32.mrf.mxu0
    %6910 = vmatprep.mubr.f32.mxu0 0.0
    %6911 = vmatmul.mubr.f32.gmra.mxu0 %v6839
    %v6912 = vpop.f32.mrf.mxu0
    %v6913 = vadd.f32 0.0, %v6912
    %v6914 = vpop.f32.mrf.mxu0
    %6915 = vdwg.mxu0
    %6916 = vrot.lane.b32.xlu0 %v368, 80
    %v6917 = vpop.permute.xlu0 %6916
    %6918 = vrot.lane.b32.xlu0 %v374, 80
    %v6919 = vpop.permute.xlu0 %6918
    %v6923 = vsel %vm1329, %v6738, 0
    %v6926 = vsel %vm1329, %v6739, 0
    %6928 = vmatprep.subr.mxu0 0.0
    %6929 = vmatpush1.msra.mxu0 0.0
    %6930 = vmatprep.subr.mxu0 0.0
    %6931 = vmatpush1.msra.mxu0 0.0
    %6932 = vmatprep.subr.mxu0 0.0
    %6933 = vmatpush1.msra.mxu0 0.0
    %6934 = vmatprep.subr.mxu0 0.0
    %6935 = vmatpush1.msra.mxu0 0.0
    %6936 = vmatprep.subr.mxu0 0.0
    %6937 = vmatpush1.msra.mxu0 0.0
    %6938 = vmatprep.subr.mxu0 0.0
    %6939 = vmatpush1.msra.mxu0 0.0
    %6940 = vmatprep.subr.mxu0 0.0
    %6941 = vmatpush1.msra.mxu0 0.0
    %6942 = vmatprep.subr.mxu0 0.0
    %6943 = vmatpush1.msra.mxu0 0.0
    %6944 = vmatprep.subr.mxu0 0.0
    %6945 = vmatpush1.msra.mxu0 0.0
    %6946 = vmatprep.subr.mxu0 0.0
    %6947 = vmatpush1.msra.mxu0 0.0
    %6948 = vmatprep.subr.mxu0 0.0
    %6949 = vmatpush1.msra.mxu0 0.0
    %6950 = vmatprep.subr.mxu0 0.0
    %6951 = vmatpush1.msra.mxu0 0.0
    %6952 = vmatprep.subr.mxu0 0.0
    %6953 = vmatpush1.msra.mxu0 0.0
    %6954 = vmatprep.subr.mxu0 0.0
    %6955 = vmatpush1.msra.mxu0 0.0
    %6956 = vmatprep.subr.mxu0 0.0
    %6957 = vmatpush1.msra.mxu0 %v6919
    %6958 = vmatprep.subr.mxu0 0.0
    %6959 = vmatpush1.msra.mxu0 %v6917
    %6960 = vmatprep.subr.mxu0 0.0
    %6961 = vmatpush2.msra.mxu0 0.0
    %6962 = vmatprep.subr.mxu0 0.0
    %6963 = vmatpush2.msra.mxu0 0.0
    %6964 = vmatprep.subr.mxu0 0.0
    %6965 = vmatpush2.msra.mxu0 0.0
    %6966 = vmatprep.subr.mxu0 0.0
    %6967 = vmatpush2.msra.mxu0 0.0
    %6968 = vmatprep.subr.mxu0 0.0
    %6969 = vmatpush2.msra.mxu0 0.0
    %6970 = vmatprep.subr.mxu0 0.0
    %6971 = vmatpush2.msra.mxu0 0.0
    %6972 = vmatprep.subr.mxu0 0.0
    %6973 = vmatpush2.msra.mxu0 0.0
    %6974 = vmatprep.subr.mxu0 0.0
    %6975 = vmatpush2.msra.mxu0 0.0
    %6976 = vmatprep.subr.mxu0 0.0
    %6977 = vmatpush2.msra.mxu0 0.0
    %6978 = vmatprep.subr.mxu0 0.0
    %6979 = vmatpush2.msra.mxu0 0.0
    %6980 = vmatprep.subr.mxu0 0.0
    %6981 = vmatpush2.msra.mxu0 0.0
    %6982 = vmatprep.subr.mxu0 0.0
    %6983 = vmatpush2.msra.mxu0 0.0
    %6984 = vmatprep.subr.mxu0 0.0
    %6985 = vmatpush2.msra.mxu0 0.0
    %6986 = vmatprep.subr.mxu0 0.0
    %6987 = vmatpush2.msra.mxu0 0.0
    %6988 = vmatprep.subr.mxu0 0.0
    %6989 = vmatpush2.msra.mxu0 0.0
    %6990 = vmatprep.subr.mxu0 0.0
    %6991 = vmatpush2.msra.mxu0 0.0
    %6992 = vmatprep.mubr.f32.mxu0 0.0
    %6993 = vmatmul.mubr.f32.gmra.mxu0 %v6923
    %v6994 = vpop.f32.mrf.mxu0
    %v6995 = vadd.f32 0.0, %v6994
    %v6996 = vpop.f32.mrf.mxu0
    %6997 = vmatprep.mubr.f32.mxu0 0.0
    %6998 = vmatmul.mubr.f32.gmra.mxu0 %v6926
    %v6999 = vpop.f32.mrf.mxu0
    %v7000 = vadd.f32 0.0, %v6999
    %v7001 = vpop.f32.mrf.mxu0
    %7002 = vdwg.mxu0
    %7003 = vrot.lane.b32.xlu0 %v380, 80
    %v7004 = vpop.permute.xlu0 %7003
    %7005 = vrot.lane.b32.xlu0 %v386, 80
    %v7006 = vpop.permute.xlu0 %7005
    %v7010 = vsel %vm1329, %v6740, 0
    %v7013 = vsel %vm1329, %v6741, 0
    %7015 = vmatprep.subr.mxu0 0.0
    %7016 = vmatpush1.msra.mxu0 0.0
    %7017 = vmatprep.subr.mxu0 0.0
    %7018 = vmatpush1.msra.mxu0 0.0
    %7019 = vmatprep.subr.mxu0 0.0
    %7020 = vmatpush1.msra.mxu0 0.0
    %7021 = vmatprep.subr.mxu0 0.0
    %7022 = vmatpush1.msra.mxu0 0.0
    %7023 = vmatprep.subr.mxu0 0.0
    %7024 = vmatpush1.msra.mxu0 0.0
    %7025 = vmatprep.subr.mxu0 0.0
    %7026 = vmatpush1.msra.mxu0 0.0
    %7027 = vmatprep.subr.mxu0 0.0
    %7028 = vmatpush1.msra.mxu0 0.0
    %7029 = vmatprep.subr.mxu0 0.0
    %7030 = vmatpush1.msra.mxu0 0.0
    %7031 = vmatprep.subr.mxu0 0.0
    %7032 = vmatpush1.msra.mxu0 0.0
    %7033 = vmatprep.subr.mxu0 0.0
    %7034 = vmatpush1.msra.mxu0 0.0
    %7035 = vmatprep.subr.mxu0 0.0
    %7036 = vmatpush1.msra.mxu0 0.0
    %7037 = vmatprep.subr.mxu0 0.0
    %7038 = vmatpush1.msra.mxu0 0.0
    %7039 = vmatprep.subr.mxu0 0.0
    %7040 = vmatpush1.msra.mxu0 0.0
    %7041 = vmatprep.subr.mxu0 0.0
    %7042 = vmatpush1.msra.mxu0 0.0
    %7043 = vmatprep.subr.mxu0 0.0
    %7044 = vmatpush1.msra.mxu0 %v7006
    %7045 = vmatprep.subr.mxu0 0.0
    %7046 = vmatpush1.msra.mxu0 %v7004
    %7047 = vmatprep.subr.mxu0 0.0
    %7048 = vmatpush2.msra.mxu0 0.0
    %7049 = vmatprep.subr.mxu0 0.0
    %7050 = vmatpush2.msra.mxu0 0.0
    %7051 = vmatprep.subr.mxu0 0.0
    %7052 = vmatpush2.msra.mxu0 0.0
    %7053 = vmatprep.subr.mxu0 0.0
    %7054 = vmatpush2.msra.mxu0 0.0
    %7055 = vmatprep.subr.mxu0 0.0
    %7056 = vmatpush2.msra.mxu0 0.0
    %7057 = vmatprep.subr.mxu0 0.0
    %7058 = vmatpush2.msra.mxu0 0.0
    %7059 = vmatprep.subr.mxu0 0.0
    %7060 = vmatpush2.msra.mxu0 0.0
    %7061 = vmatprep.subr.mxu0 0.0
    %7062 = vmatpush2.msra.mxu0 0.0
    %7063 = vmatprep.subr.mxu0 0.0
    %7064 = vmatpush2.msra.mxu0 0.0
    %7065 = vmatprep.subr.mxu0 0.0
    %7066 = vmatpush2.msra.mxu0 0.0
    %7067 = vmatprep.subr.mxu0 0.0
    %7068 = vmatpush2.msra.mxu0 0.0
    %7069 = vmatprep.subr.mxu0 0.0
    %7070 = vmatpush2.msra.mxu0 0.0
    %7071 = vmatprep.subr.mxu0 0.0
    %7072 = vmatpush2.msra.mxu0 0.0
    %7073 = vmatprep.subr.mxu0 0.0
    %7074 = vmatpush2.msra.mxu0 0.0
    %7075 = vmatprep.subr.mxu0 0.0
    %7076 = vmatpush2.msra.mxu0 0.0
    %7077 = vmatprep.subr.mxu0 0.0
    %7078 = vmatpush2.msra.mxu0 0.0
    %7079 = vmatprep.mubr.f32.mxu0 0.0
    %7080 = vmatmul.mubr.f32.gmra.mxu0 %v7010
    %v7081 = vpop.f32.mrf.mxu0
    %v7082 = vadd.f32 0.0, %v7081
    %v7083 = vpop.f32.mrf.mxu0
    %7084 = vmatprep.mubr.f32.mxu0 0.0
    %7085 = vmatmul.mubr.f32.gmra.mxu0 %v7013
    %v7086 = vpop.f32.mrf.mxu0
    %v7087 = vadd.f32 0.0, %v7086
    %v7088 = vpop.f32.mrf.mxu0
    %7089 = vdwg.mxu0
    %s7090 = sld [smem:[#allocation8 + $0x7]]
    %v7091 = vstv %s7090
    %v7092 = vsel %vm810, %v7091, 0.0
    %v7093 = vsel %vm811, %v7091, 0.0
    %v7094 = vsel %vm812, %v7091, 0.0
    %v7095 = vsel %vm813, %v7091, 0.0
    %v7096 = vsel %vm814, %v7091, 0.0
    %v7097 = vsel %vm815, %v7091, 0.0
    %v7098 = vsel %vm816, %v7091, 0.0
    %v7099 = vsel %vm817, %v7091, 0.0
    %s7100 = sld [smem:[#allocation8 + $0x87]]
    %v7101 = vstv %s7100
    %v7102 = vsel %vm818, %v7101, %v7092
    %v7103 = vsel %vm819, %v7101, %v7093
    %v7104 = vsel %vm820, %v7101, %v7094
    %v7105 = vsel %vm821, %v7101, %v7095
    %v7106 = vsel %vm822, %v7101, %v7096
    %v7107 = vsel %vm823, %v7101, %v7097
    %v7108 = vsel %vm824, %v7101, %v7098
    %v7109 = vsel %vm825, %v7101, %v7099
    %s7110 = sld [smem:[#allocation8 + $0x107]]
    %v7111 = vstv %s7110
    %v7112 = vsel %vm826, %v7111, %v7102
    %v7113 = vsel %vm827, %v7111, %v7103
    %v7114 = vsel %vm828, %v7111, %v7104
    %v7115 = vsel %vm829, %v7111, %v7105
    %v7116 = vsel %vm830, %v7111, %v7106
    %v7117 = vsel %vm831, %v7111, %v7107
    %v7118 = vsel %vm832, %v7111, %v7108
    %v7119 = vsel %vm833, %v7111, %v7109
    %s7120 = sld [smem:[#allocation8 + $0x187]]
    %v7121 = vstv %s7120
    %v7122 = vsel %vm834, %v7121, %v7112
    %v7123 = vsel %vm835, %v7121, %v7113
    %v7124 = vsel %vm836, %v7121, %v7114
    %v7125 = vsel %vm837, %v7121, %v7115
    %v7126 = vsel %vm838, %v7121, %v7116
    %v7127 = vsel %vm839, %v7121, %v7117
    %v7128 = vsel %vm840, %v7121, %v7118
    %v7129 = vsel %vm841, %v7121, %v7119
    %s7130 = sld [smem:[#allocation8 + $0x207]]
    %v7131 = vstv %s7130
    %v7132 = vsel %vm842, %v7131, %v7122
    %v7133 = vsel %vm843, %v7131, %v7123
    %v7134 = vsel %vm844, %v7131, %v7124
    %v7135 = vsel %vm845, %v7131, %v7125
    %v7136 = vsel %vm846, %v7131, %v7126
    %v7137 = vsel %vm847, %v7131, %v7127
    %v7138 = vsel %vm848, %v7131, %v7128
    %v7139 = vsel %vm849, %v7131, %v7129
    %s7140 = sld [smem:[#allocation8 + $0x287]]
    %v7141 = vstv %s7140
    %v7142 = vsel %vm850, %v7141, %v7132
    %v7143 = vsel %vm851, %v7141, %v7133
    %v7144 = vsel %vm852, %v7141, %v7134
    %v7145 = vsel %vm853, %v7141, %v7135
    %v7146 = vsel %vm854, %v7141, %v7136
    %v7147 = vsel %vm855, %v7141, %v7137
    %v7148 = vsel %vm856, %v7141, %v7138
    %v7149 = vsel %vm857, %v7141, %v7139
    %s7150 = sld [smem:[#allocation8 + $0x307]]
    %v7151 = vstv %s7150
    %v7152 = vsel %vm858, %v7151, %v7142
    %v7153 = vsel %vm859, %v7151, %v7143
    %v7154 = vsel %vm860, %v7151, %v7144
    %v7155 = vsel %vm861, %v7151, %v7145
    %v7156 = vsel %vm862, %v7151, %v7146
    %v7157 = vsel %vm863, %v7151, %v7147
    %v7158 = vsel %vm864, %v7151, %v7148
    %v7159 = vsel %vm865, %v7151, %v7149
    %s7160 = sld [smem:[#allocation8 + $0x387]]
    %v7161 = vstv %s7160
    %v7162 = vsel %vm866, %v7161, %v7152
    %v7163 = vsel %vm867, %v7161, %v7153
    %v7164 = vsel %vm868, %v7161, %v7154
    %v7165 = vsel %vm869, %v7161, %v7155
    %v7166 = vsel %vm870, %v7161, %v7156
    %v7167 = vsel %vm871, %v7161, %v7157
    %v7168 = vsel %vm872, %v7161, %v7158
    %v7169 = vsel %vm873, %v7161, %v7159
    %s7170 = sld [smem:[#allocation8 + $0x407]]
    %v7171 = vstv %s7170
    %v7172 = vsel %vm874, %v7171, %v7162
    %v7173 = vsel %vm875, %v7171, %v7163
    %v7174 = vsel %vm876, %v7171, %v7164
    %v7175 = vsel %vm877, %v7171, %v7165
    %v7176 = vsel %vm878, %v7171, %v7166
    %v7177 = vsel %vm879, %v7171, %v7167
    %v7178 = vsel %vm880, %v7171, %v7168
    %v7179 = vsel %vm881, %v7171, %v7169
    %7180 = vrot.lane.b32.xlu0 %v342, 72
    %v7181 = vpop.permute.xlu0 %7180
    %7182 = vrot.lane.b32.xlu0 %v348, 72
    %v7183 = vpop.permute.xlu0 %7182
    %7184 = vrot.lane.b32.xlu0 %v342, 8
    %v7185 = vpop.permute.xlu0 %7184
    %7186 = vrot.lane.b32.xlu0 %v348, 8
    %v7187 = vpop.permute.xlu0 %7186
    %v7188 = vsel %vm978, %v7181, 0
    %v7190 = vsel %vm978, %v7183, 0
    %v7192 = vsel %vm978, %v7185, 0
    %v7194 = vsel %vm978, %v7187, 0
    %7196 = vmatprep.subr.mxu0 0.0
    %7197 = vmatpush1.xpose.msra.mxu0 0.0
    %7198 = vmatprep.subr.mxu0 0.0
    %7199 = vmatpush1.xpose.msra.mxu0 0.0
    %7200 = vmatprep.subr.mxu0 0.0
    %7201 = vmatpush1.xpose.msra.mxu0 0.0
    %7202 = vmatprep.subr.mxu0 0.0
    %7203 = vmatpush1.xpose.msra.mxu0 0.0
    %7204 = vmatprep.subr.mxu0 0.0
    %7205 = vmatpush1.xpose.msra.mxu0 0.0
    %7206 = vmatprep.subr.mxu0 0.0
    %7207 = vmatpush1.xpose.msra.mxu0 0.0
    %7208 = vmatprep.subr.mxu0 0.0
    %7209 = vmatpush1.xpose.msra.mxu0 0.0
    %7210 = vmatprep.subr.mxu0 0.0
    %7211 = vmatpush1.xpose.msra.mxu0 0.0
    %7212 = vmatprep.subr.mxu0 0.0
    %7213 = vmatpush1.xpose.msra.mxu0 0.0
    %7214 = vmatprep.subr.mxu0 0.0
    %7215 = vmatpush1.xpose.msra.mxu0 0.0
    %7216 = vmatprep.subr.mxu0 0.0
    %7217 = vmatpush1.xpose.msra.mxu0 0.0
    %7218 = vmatprep.subr.mxu0 0.0
    %7219 = vmatpush1.xpose.msra.mxu0 0.0
    %7220 = vmatprep.subr.mxu0 0.0
    %7221 = vmatpush1.xpose.msra.mxu0 0.0
    %7222 = vmatprep.subr.mxu0 0.0
    %7223 = vmatpush1.xpose.msra.mxu0 0.0
    %7224 = vmatprep.subr.mxu0 0.0
    %7225 = vmatpush1.xpose.msra.mxu0 %v7194
    %7226 = vmatprep.subr.mxu0 0.0
    %7227 = vmatpush1.xpose.msra.mxu0 %v7192
    %7228 = vmatprep.subr.mxu0 0.0
    %7229 = vmatpush2.xpose.msra.mxu0 0.0
    %7230 = vmatprep.subr.mxu0 0.0
    %7231 = vmatpush2.xpose.msra.mxu0 0.0
    %7232 = vmatprep.subr.mxu0 0.0
    %7233 = vmatpush2.xpose.msra.mxu0 0.0
    %7234 = vmatprep.subr.mxu0 0.0
    %7235 = vmatpush2.xpose.msra.mxu0 0.0
    %7236 = vmatprep.subr.mxu0 0.0
    %7237 = vmatpush2.xpose.msra.mxu0 0.0
    %7238 = vmatprep.subr.mxu0 0.0
    %7239 = vmatpush2.xpose.msra.mxu0 0.0
    %7240 = vmatprep.subr.mxu0 0.0
    %7241 = vmatpush2.xpose.msra.mxu0 0.0
    %7242 = vmatprep.subr.mxu0 0.0
    %7243 = vmatpush2.xpose.msra.mxu0 0.0
    %7244 = vmatprep.subr.mxu0 0.0
    %7245 = vmatpush2.xpose.msra.mxu0 0.0
    %7246 = vmatprep.subr.mxu0 0.0
    %7247 = vmatpush2.xpose.msra.mxu0 0.0
    %7248 = vmatprep.subr.mxu0 0.0
    %7249 = vmatpush2.xpose.msra.mxu0 0.0
    %7250 = vmatprep.subr.mxu0 0.0
    %7251 = vmatpush2.xpose.msra.mxu0 0.0
    %7252 = vmatprep.subr.mxu0 0.0
    %7253 = vmatpush2.xpose.msra.mxu0 0.0
    %7254 = vmatprep.subr.mxu0 0.0
    %7255 = vmatpush2.xpose.msra.mxu0 0.0
    %7256 = vmatprep.subr.mxu0 0.0
    %7257 = vmatpush2.xpose.msra.mxu0 0.0
    %7258 = vmatprep.subr.mxu0 0.0
    %7259 = vmatpush2.xpose.msra.mxu0 0.0
    %7260 = vmatprep.mubr.f32.mxu0 0.0
    %7261 = vmatmul.mubr.f32.gmra.mxu0 %v7188
    %v7262 = vpop.f32.mrf.mxu0
    %v7263 = vadd.f32 %v7172, %v7262
    %v7264 = vpop.f32.mrf.mxu0
    %7265 = vmatprep.mubr.f32.mxu0 0.0
    %7266 = vmatmul.mubr.f32.gmra.mxu0 %v7190
    %v7267 = vpop.f32.mrf.mxu0
    %v7268 = vadd.f32 %v7173, %v7267
    %v7269 = vpop.f32.mrf.mxu0
    %7270 = vdwg.mxu0
    %7271 = vrot.lane.b32.xlu0 %v354, 72
    %v7272 = vpop.permute.xlu0 %7271
    %7273 = vrot.lane.b32.xlu0 %v360, 72
    %v7274 = vpop.permute.xlu0 %7273
    %7275 = vrot.lane.b32.xlu0 %v354, 8
    %v7276 = vpop.permute.xlu0 %7275
    %7277 = vrot.lane.b32.xlu0 %v360, 8
    %v7278 = vpop.permute.xlu0 %7277
    %v7279 = vsel %vm978, %v7272, 0
    %v7281 = vsel %vm978, %v7274, 0
    %v7283 = vsel %vm978, %v7276, 0
    %v7285 = vsel %vm978, %v7278, 0
    %7287 = vmatprep.subr.mxu0 0.0
    %7288 = vmatpush1.xpose.msra.mxu0 0.0
    %7289 = vmatprep.subr.mxu0 0.0
    %7290 = vmatpush1.xpose.msra.mxu0 0.0
    %7291 = vmatprep.subr.mxu0 0.0
    %7292 = vmatpush1.xpose.msra.mxu0 0.0
    %7293 = vmatprep.subr.mxu0 0.0
    %7294 = vmatpush1.xpose.msra.mxu0 0.0
    %7295 = vmatprep.subr.mxu0 0.0
    %7296 = vmatpush1.xpose.msra.mxu0 0.0
    %7297 = vmatprep.subr.mxu0 0.0
    %7298 = vmatpush1.xpose.msra.mxu0 0.0
    %7299 = vmatprep.subr.mxu0 0.0
    %7300 = vmatpush1.xpose.msra.mxu0 0.0
    %7301 = vmatprep.subr.mxu0 0.0
    %7302 = vmatpush1.xpose.msra.mxu0 0.0
    %7303 = vmatprep.subr.mxu0 0.0
    %7304 = vmatpush1.xpose.msra.mxu0 0.0
    %7305 = vmatprep.subr.mxu0 0.0
    %7306 = vmatpush1.xpose.msra.mxu0 0.0
    %7307 = vmatprep.subr.mxu0 0.0
    %7308 = vmatpush1.xpose.msra.mxu0 0.0
    %7309 = vmatprep.subr.mxu0 0.0
    %7310 = vmatpush1.xpose.msra.mxu0 0.0
    %7311 = vmatprep.subr.mxu0 0.0
    %7312 = vmatpush1.xpose.msra.mxu0 0.0
    %7313 = vmatprep.subr.mxu0 0.0
    %7314 = vmatpush1.xpose.msra.mxu0 0.0
    %7315 = vmatprep.subr.mxu0 0.0
    %7316 = vmatpush1.xpose.msra.mxu0 %v7285
    %7317 = vmatprep.subr.mxu0 0.0
    %7318 = vmatpush1.xpose.msra.mxu0 %v7283
    %7319 = vmatprep.subr.mxu0 0.0
    %7320 = vmatpush2.xpose.msra.mxu0 0.0
    %7321 = vmatprep.subr.mxu0 0.0
    %7322 = vmatpush2.xpose.msra.mxu0 0.0
    %7323 = vmatprep.subr.mxu0 0.0
    %7324 = vmatpush2.xpose.msra.mxu0 0.0
    %7325 = vmatprep.subr.mxu0 0.0
    %7326 = vmatpush2.xpose.msra.mxu0 0.0
    %7327 = vmatprep.subr.mxu0 0.0
    %7328 = vmatpush2.xpose.msra.mxu0 0.0
    %7329 = vmatprep.subr.mxu0 0.0
    %7330 = vmatpush2.xpose.msra.mxu0 0.0
    %7331 = vmatprep.subr.mxu0 0.0
    %7332 = vmatpush2.xpose.msra.mxu0 0.0
    %7333 = vmatprep.subr.mxu0 0.0
    %7334 = vmatpush2.xpose.msra.mxu0 0.0
    %7335 = vmatprep.subr.mxu0 0.0
    %7336 = vmatpush2.xpose.msra.mxu0 0.0
    %7337 = vmatprep.subr.mxu0 0.0
    %7338 = vmatpush2.xpose.msra.mxu0 0.0
    %7339 = vmatprep.subr.mxu0 0.0
    %7340 = vmatpush2.xpose.msra.mxu0 0.0
    %7341 = vmatprep.subr.mxu0 0.0
    %7342 = vmatpush2.xpose.msra.mxu0 0.0
    %7343 = vmatprep.subr.mxu0 0.0
    %7344 = vmatpush2.xpose.msra.mxu0 0.0
    %7345 = vmatprep.subr.mxu0 0.0
    %7346 = vmatpush2.xpose.msra.mxu0 0.0
    %7347 = vmatprep.subr.mxu0 0.0
    %7348 = vmatpush2.xpose.msra.mxu0 0.0
    %7349 = vmatprep.subr.mxu0 0.0
    %7350 = vmatpush2.xpose.msra.mxu0 0.0
    %7351 = vmatprep.mubr.f32.mxu0 0.0
    %7352 = vmatmul.mubr.f32.gmra.mxu0 %v7279
    %v7353 = vpop.f32.mrf.mxu0
    %v7354 = vadd.f32 %v7174, %v7353
    %v7355 = vpop.f32.mrf.mxu0
    %7356 = vmatprep.mubr.f32.mxu0 0.0
    %7357 = vmatmul.mubr.f32.gmra.mxu0 %v7281
    %v7358 = vpop.f32.mrf.mxu0
    %v7359 = vadd.f32 %v7175, %v7358
    %v7360 = vpop.f32.mrf.mxu0
    %7361 = vdwg.mxu0
    %7362 = vrot.lane.b32.xlu0 %v366, 72
    %v7363 = vpop.permute.xlu0 %7362
    %7364 = vrot.lane.b32.xlu0 %v372, 72
    %v7365 = vpop.permute.xlu0 %7364
    %7366 = vrot.lane.b32.xlu0 %v366, 8
    %v7367 = vpop.permute.xlu0 %7366
    %7368 = vrot.lane.b32.xlu0 %v372, 8
    %v7369 = vpop.permute.xlu0 %7368
    %v7370 = vsel %vm978, %v7363, 0
    %v7372 = vsel %vm978, %v7365, 0
    %v7374 = vsel %vm978, %v7367, 0
    %v7376 = vsel %vm978, %v7369, 0
    %7378 = vmatprep.subr.mxu0 0.0
    %7379 = vmatpush1.xpose.msra.mxu0 0.0
    %7380 = vmatprep.subr.mxu0 0.0
    %7381 = vmatpush1.xpose.msra.mxu0 0.0
    %7382 = vmatprep.subr.mxu0 0.0
    %7383 = vmatpush1.xpose.msra.mxu0 0.0
    %7384 = vmatprep.subr.mxu0 0.0
    %7385 = vmatpush1.xpose.msra.mxu0 0.0
    %7386 = vmatprep.subr.mxu0 0.0
    %7387 = vmatpush1.xpose.msra.mxu0 0.0
    %7388 = vmatprep.subr.mxu0 0.0
    %7389 = vmatpush1.xpose.msra.mxu0 0.0
    %7390 = vmatprep.subr.mxu0 0.0
    %7391 = vmatpush1.xpose.msra.mxu0 0.0
    %7392 = vmatprep.subr.mxu0 0.0
    %7393 = vmatpush1.xpose.msra.mxu0 0.0
    %7394 = vmatprep.subr.mxu0 0.0
    %7395 = vmatpush1.xpose.msra.mxu0 0.0
    %7396 = vmatprep.subr.mxu0 0.0
    %7397 = vmatpush1.xpose.msra.mxu0 0.0
    %7398 = vmatprep.subr.mxu0 0.0
    %7399 = vmatpush1.xpose.msra.mxu0 0.0
    %7400 = vmatprep.subr.mxu0 0.0
    %7401 = vmatpush1.xpose.msra.mxu0 0.0
    %7402 = vmatprep.subr.mxu0 0.0
    %7403 = vmatpush1.xpose.msra.mxu0 0.0
    %7404 = vmatprep.subr.mxu0 0.0
    %7405 = vmatpush1.xpose.msra.mxu0 0.0
    %7406 = vmatprep.subr.mxu0 0.0
    %7407 = vmatpush1.xpose.msra.mxu0 %v7376
    %7408 = vmatprep.subr.mxu0 0.0
    %7409 = vmatpush1.xpose.msra.mxu0 %v7374
    %7410 = vmatprep.subr.mxu0 0.0
    %7411 = vmatpush2.xpose.msra.mxu0 0.0
    %7412 = vmatprep.subr.mxu0 0.0
    %7413 = vmatpush2.xpose.msra.mxu0 0.0
    %7414 = vmatprep.subr.mxu0 0.0
    %7415 = vmatpush2.xpose.msra.mxu0 0.0
    %7416 = vmatprep.subr.mxu0 0.0
    %7417 = vmatpush2.xpose.msra.mxu0 0.0
    %7418 = vmatprep.subr.mxu0 0.0
    %7419 = vmatpush2.xpose.msra.mxu0 0.0
    %7420 = vmatprep.subr.mxu0 0.0
    %7421 = vmatpush2.xpose.msra.mxu0 0.0
    %7422 = vmatprep.subr.mxu0 0.0
    %7423 = vmatpush2.xpose.msra.mxu0 0.0
    %7424 = vmatprep.subr.mxu0 0.0
    %7425 = vmatpush2.xpose.msra.mxu0 0.0
    %7426 = vmatprep.subr.mxu0 0.0
    %7427 = vmatpush2.xpose.msra.mxu0 0.0
    %7428 = vmatprep.subr.mxu0 0.0
    %7429 = vmatpush2.xpose.msra.mxu0 0.0
    %7430 = vmatprep.subr.mxu0 0.0
    %7431 = vmatpush2.xpose.msra.mxu0 0.0
    %7432 = vmatprep.subr.mxu0 0.0
    %7433 = vmatpush2.xpose.msra.mxu0 0.0
    %7434 = vmatprep.subr.mxu0 0.0
    %7435 = vmatpush2.xpose.msra.mxu0 0.0
    %7436 = vmatprep.subr.mxu0 0.0
    %7437 = vmatpush2.xpose.msra.mxu0 0.0
    %7438 = vmatprep.subr.mxu0 0.0
    %7439 = vmatpush2.xpose.msra.mxu0 0.0
    %7440 = vmatprep.subr.mxu0 0.0
    %7441 = vmatpush2.xpose.msra.mxu0 0.0
    %7442 = vmatprep.mubr.f32.mxu0 0.0
    %7443 = vmatmul.mubr.f32.gmra.mxu0 %v7370
    %v7444 = vpop.f32.mrf.mxu0
    %v7445 = vadd.f32 %v7176, %v7444
    %v7446 = vpop.f32.mrf.mxu0
    %7447 = vmatprep.mubr.f32.mxu0 0.0
    %7448 = vmatmul.mubr.f32.gmra.mxu0 %v7372
    %v7449 = vpop.f32.mrf.mxu0
    %v7450 = vadd.f32 %v7177, %v7449
    %v7451 = vpop.f32.mrf.mxu0
    %7452 = vdwg.mxu0
    %7453 = vrot.lane.b32.xlu0 %v378, 72
    %v7454 = vpop.permute.xlu0 %7453
    %7455 = vrot.lane.b32.xlu0 %v384, 72
    %v7456 = vpop.permute.xlu0 %7455
    %7457 = vrot.lane.b32.xlu0 %v378, 8
    %v7458 = vpop.permute.xlu0 %7457
    %7459 = vrot.lane.b32.xlu0 %v384, 8
    %v7460 = vpop.permute.xlu0 %7459
    %v7461 = vsel %vm978, %v7454, 0
    %v7463 = vsel %vm978, %v7456, 0
    %v7465 = vsel %vm978, %v7458, 0
    %v7467 = vsel %vm978, %v7460, 0
    %7469 = vmatprep.subr.mxu0 0.0
    %7470 = vmatpush1.xpose.msra.mxu0 0.0
    %7471 = vmatprep.subr.mxu0 0.0
    %7472 = vmatpush1.xpose.msra.mxu0 0.0
    %7473 = vmatprep.subr.mxu0 0.0
    %7474 = vmatpush1.xpose.msra.mxu0 0.0
    %7475 = vmatprep.subr.mxu0 0.0
    %7476 = vmatpush1.xpose.msra.mxu0 0.0
    %7477 = vmatprep.subr.mxu0 0.0
    %7478 = vmatpush1.xpose.msra.mxu0 0.0
    %7479 = vmatprep.subr.mxu0 0.0
    %7480 = vmatpush1.xpose.msra.mxu0 0.0
    %7481 = vmatprep.subr.mxu0 0.0
    %7482 = vmatpush1.xpose.msra.mxu0 0.0
    %7483 = vmatprep.subr.mxu0 0.0
    %7484 = vmatpush1.xpose.msra.mxu0 0.0
    %7485 = vmatprep.subr.mxu0 0.0
    %7486 = vmatpush1.xpose.msra.mxu0 0.0
    %7487 = vmatprep.subr.mxu0 0.0
    %7488 = vmatpush1.xpose.msra.mxu0 0.0
    %7489 = vmatprep.subr.mxu0 0.0
    %7490 = vmatpush1.xpose.msra.mxu0 0.0
    %7491 = vmatprep.subr.mxu0 0.0
    %7492 = vmatpush1.xpose.msra.mxu0 0.0
    %7493 = vmatprep.subr.mxu0 0.0
    %7494 = vmatpush1.xpose.msra.mxu0 0.0
    %7495 = vmatprep.subr.mxu0 0.0
    %7496 = vmatpush1.xpose.msra.mxu0 0.0
    %7497 = vmatprep.subr.mxu0 0.0
    %7498 = vmatpush1.xpose.msra.mxu0 %v7467
    %7499 = vmatprep.subr.mxu0 0.0
    %7500 = vmatpush1.xpose.msra.mxu0 %v7465
    %7501 = vmatprep.subr.mxu0 0.0
    %7502 = vmatpush2.xpose.msra.mxu0 0.0
    %7503 = vmatprep.subr.mxu0 0.0
    %7504 = vmatpush2.xpose.msra.mxu0 0.0
    %7505 = vmatprep.subr.mxu0 0.0
    %7506 = vmatpush2.xpose.msra.mxu0 0.0
    %7507 = vmatprep.subr.mxu0 0.0
    %7508 = vmatpush2.xpose.msra.mxu0 0.0
    %7509 = vmatprep.subr.mxu0 0.0
    %7510 = vmatpush2.xpose.msra.mxu0 0.0
    %7511 = vmatprep.subr.mxu0 0.0
    %7512 = vmatpush2.xpose.msra.mxu0 0.0
    %7513 = vmatprep.subr.mxu0 0.0
    %7514 = vmatpush2.xpose.msra.mxu0 0.0
    %7515 = vmatprep.subr.mxu0 0.0
    %7516 = vmatpush2.xpose.msra.mxu0 0.0
    %7517 = vmatprep.subr.mxu0 0.0
    %7518 = vmatpush2.xpose.msra.mxu0 0.0
    %7519 = vmatprep.subr.mxu0 0.0
    %7520 = vmatpush2.xpose.msra.mxu0 0.0
    %7521 = vmatprep.subr.mxu0 0.0
    %7522 = vmatpush2.xpose.msra.mxu0 0.0
    %7523 = vmatprep.subr.mxu0 0.0
    %7524 = vmatpush2.xpose.msra.mxu0 0.0
    %7525 = vmatprep.subr.mxu0 0.0
    %7526 = vmatpush2.xpose.msra.mxu0 0.0
    %7527 = vmatprep.subr.mxu0 0.0
    %7528 = vmatpush2.xpose.msra.mxu0 0.0
    %7529 = vmatprep.subr.mxu0 0.0
    %7530 = vmatpush2.xpose.msra.mxu0 0.0
    %7531 = vmatprep.subr.mxu0 0.0
    %7532 = vmatpush2.xpose.msra.mxu0 0.0
    %7533 = vmatprep.mubr.f32.mxu0 0.0
    %7534 = vmatmul.mubr.f32.gmra.mxu0 %v7461
    %v7535 = vpop.f32.mrf.mxu0
    %v7536 = vadd.f32 %v7178, %v7535
    %v7537 = vpop.f32.mrf.mxu0
    %7538 = vmatprep.mubr.f32.mxu0 0.0
    %7539 = vmatmul.mubr.f32.gmra.mxu0 %v7463
    %v7540 = vpop.f32.mrf.mxu0
    %v7541 = vadd.f32 %v7179, %v7540
    %v7542 = vpop.f32.mrf.mxu0
    %7543 = vdwg.mxu0
    %v7544 = vsel %vm1329, %v7263, -inf
    %7545 = vmax.xlane.f32.xlu0 %v7544
    %v7546 = vpop.xlane.xlu0 %7545
    %v7547 = vsel %vm1329, %v7268, -inf
    %7548 = vmax.xlane.f32.xlu0 %v7547
    %v7549 = vpop.xlane.xlu0 %7548
    %v7550 = vsel %vm1329, %v7354, -inf
    %7551 = vmax.xlane.f32.xlu0 %v7550
    %v7552 = vpop.xlane.xlu0 %7551
    %v7553 = vsel %vm1329, %v7359, -inf
    %7554 = vmax.xlane.f32.xlu0 %v7553
    %v7555 = vpop.xlane.xlu0 %7554
    %v7556 = vsel %vm1329, %v7445, -inf
    %7557 = vmax.xlane.f32.xlu0 %v7556
    %v7558 = vpop.xlane.xlu0 %7557
    %v7559 = vsel %vm1329, %v7450, -inf
    %7560 = vmax.xlane.f32.xlu0 %v7559
    %v7561 = vpop.xlane.xlu0 %7560
    %v7562 = vsel %vm1329, %v7536, -inf
    %7563 = vmax.xlane.f32.xlu0 %v7562
    %v7564 = vpop.xlane.xlu0 %7563
    %v7565 = vsel %vm1329, %v7541, -inf
    %7566 = vmax.xlane.f32.xlu0 %v7565
    %v7567 = vpop.xlane.xlu0 %7566
    %v7568 = vsub.f32 %v7263, %v7546
    %v7569 = vsub.f32 %v7268, %v7549
    %v7570 = vsub.f32 %v7354, %v7552
    %v7571 = vsub.f32 %v7359, %v7555
    %v7572 = vsub.f32 %v7445, %v7558
    %v7573 = vsub.f32 %v7450, %v7561
    %v7574 = vsub.f32 %v7536, %v7564
    %v7575 = vsub.f32 %v7541, %v7567
    %v7576 = vmul.f32 %v7568, 1.442695
    %v7577 = vpow.pop %v7576
    %v7578 = vmul.f32 %v7569, 1.442695
    %v7579 = vpow.pop %v7578
    %v7580 = vmul.f32 %v7570, 1.442695
    %v7581 = vpow.pop %v7580
    %v7582 = vmul.f32 %v7571, 1.442695
    %v7583 = vpow.pop %v7582
    %v7584 = vmul.f32 %v7572, 1.442695
    %v7585 = vpow.pop %v7584
    %v7586 = vmul.f32 %v7573, 1.442695
    %v7587 = vpow.pop %v7586
    %v7588 = vmul.f32 %v7574, 1.442695
    %v7589 = vpow.pop %v7588
    %v7590 = vmul.f32 %v7575, 1.442695
    %v7591 = vpow.pop %v7590
    %v7592 = vsel %vm1329, %v7577, 0.0
    %7593 = vadd.xlane.f32.xlu0 %v7592
    %v7594 = vpop.xlane.xlu0 %7593
    %v7595 = vsel %vm1329, %v7579, 0.0
    %7596 = vadd.xlane.f32.xlu0 %v7595
    %v7597 = vpop.xlane.xlu0 %7596
    %v7598 = vsel %vm1329, %v7581, 0.0
    %7599 = vadd.xlane.f32.xlu0 %v7598
    %v7600 = vpop.xlane.xlu0 %7599
    %v7601 = vsel %vm1329, %v7583, 0.0
    %7602 = vadd.xlane.f32.xlu0 %v7601
    %v7603 = vpop.xlane.xlu0 %7602
    %v7604 = vsel %vm1329, %v7585, 0.0
    %7605 = vadd.xlane.f32.xlu0 %v7604
    %v7606 = vpop.xlane.xlu0 %7605
    %v7607 = vsel %vm1329, %v7587, 0.0
    %7608 = vadd.xlane.f32.xlu0 %v7607
    %v7609 = vpop.xlane.xlu0 %7608
    %v7610 = vsel %vm1329, %v7589, 0.0
    %7611 = vadd.xlane.f32.xlu0 %v7610
    %v7612 = vpop.xlane.xlu0 %7611
    %v7613 = vsel %vm1329, %v7591, 0.0
    %7614 = vadd.xlane.f32.xlu0 %v7613
    %v7615 = vpop.xlane.xlu0 %7614
    %v7616 = vrcp.pop %v7594
    %v7617 = vrcp.pop %v7597
    %v7618 = vrcp.pop %v7600
    %v7619 = vrcp.pop %v7603
    %v7620 = vrcp.pop %v7606
    %v7621 = vrcp.pop %v7609
    %v7622 = vrcp.pop %v7612
    %v7623 = vrcp.pop %v7615
    %v7624 = vmul.f32 %v7577, %v7616
    %v7625 = vmul.f32 %v7579, %v7617
    %v7626 = vmul.f32 %v7581, %v7618
    %v7627 = vmul.f32 %v7583, %v7619
    %v7628 = vmul.f32 %v7585, %v7620
    %v7629 = vmul.f32 %v7587, %v7621
    %v7630 = vmul.f32 %v7589, %v7622
    %v7631 = vmul.f32 %v7591, %v7623
    %7632 = vrot.lane.b32.xlu0 %v344, 72
    %v7633 = vpop.permute.xlu0 %7632
    %7634 = vrot.lane.b32.xlu0 %v350, 72
    %v7635 = vpop.permute.xlu0 %7634
    %v7639 = vsel %vm1329, %v7624, 0
    %v7642 = vsel %vm1329, %v7625, 0
    %7644 = vmatprep.subr.mxu0 0.0
    %7645 = vmatpush1.msra.mxu0 0.0
    %7646 = vmatprep.subr.mxu0 0.0
    %7647 = vmatpush1.msra.mxu0 0.0
    %7648 = vmatprep.subr.mxu0 0.0
    %7649 = vmatpush1.msra.mxu0 0.0
    %7650 = vmatprep.subr.mxu0 0.0
    %7651 = vmatpush1.msra.mxu0 0.0
    %7652 = vmatprep.subr.mxu0 0.0
    %7653 = vmatpush1.msra.mxu0 0.0
    %7654 = vmatprep.subr.mxu0 0.0
    %7655 = vmatpush1.msra.mxu0 0.0
    %7656 = vmatprep.subr.mxu0 0.0
    %7657 = vmatpush1.msra.mxu0 0.0
    %7658 = vmatprep.subr.mxu0 0.0
    %7659 = vmatpush1.msra.mxu0 0.0
    %7660 = vmatprep.subr.mxu0 0.0
    %7661 = vmatpush1.msra.mxu0 0.0
    %7662 = vmatprep.subr.mxu0 0.0
    %7663 = vmatpush1.msra.mxu0 0.0
    %7664 = vmatprep.subr.mxu0 0.0
    %7665 = vmatpush1.msra.mxu0 0.0
    %7666 = vmatprep.subr.mxu0 0.0
    %7667 = vmatpush1.msra.mxu0 0.0
    %7668 = vmatprep.subr.mxu0 0.0
    %7669 = vmatpush1.msra.mxu0 0.0
    %7670 = vmatprep.subr.mxu0 0.0
    %7671 = vmatpush1.msra.mxu0 0.0
    %7672 = vmatprep.subr.mxu0 0.0
    %7673 = vmatpush1.msra.mxu0 %v7635
    %7674 = vmatprep.subr.mxu0 0.0
    %7675 = vmatpush1.msra.mxu0 %v7633
    %7676 = vmatprep.subr.mxu0 0.0
    %7677 = vmatpush2.msra.mxu0 0.0
    %7678 = vmatprep.subr.mxu0 0.0
    %7679 = vmatpush2.msra.mxu0 0.0
    %7680 = vmatprep.subr.mxu0 0.0
    %7681 = vmatpush2.msra.mxu0 0.0
    %7682 = vmatprep.subr.mxu0 0.0
    %7683 = vmatpush2.msra.mxu0 0.0
    %7684 = vmatprep.subr.mxu0 0.0
    %7685 = vmatpush2.msra.mxu0 0.0
    %7686 = vmatprep.subr.mxu0 0.0
    %7687 = vmatpush2.msra.mxu0 0.0
    %7688 = vmatprep.subr.mxu0 0.0
    %7689 = vmatpush2.msra.mxu0 0.0
    %7690 = vmatprep.subr.mxu0 0.0
    %7691 = vmatpush2.msra.mxu0 0.0
    %7692 = vmatprep.subr.mxu0 0.0
    %7693 = vmatpush2.msra.mxu0 0.0
    %7694 = vmatprep.subr.mxu0 0.0
    %7695 = vmatpush2.msra.mxu0 0.0
    %7696 = vmatprep.subr.mxu0 0.0
    %7697 = vmatpush2.msra.mxu0 0.0
    %7698 = vmatprep.subr.mxu0 0.0
    %7699 = vmatpush2.msra.mxu0 0.0
    %7700 = vmatprep.subr.mxu0 0.0
    %7701 = vmatpush2.msra.mxu0 0.0
    %7702 = vmatprep.subr.mxu0 0.0
    %7703 = vmatpush2.msra.mxu0 0.0
    %7704 = vmatprep.subr.mxu0 0.0
    %7705 = vmatpush2.msra.mxu0 0.0
    %7706 = vmatprep.subr.mxu0 0.0
    %7707 = vmatpush2.msra.mxu0 0.0
    %7708 = vmatprep.mubr.f32.mxu0 0.0
    %7709 = vmatmul.mubr.f32.gmra.mxu0 %v7639
    %v7710 = vpop.f32.mrf.mxu0
    %v7711 = vadd.f32 0.0, %v7710
    %v7712 = vpop.f32.mrf.mxu0
    %7713 = vmatprep.mubr.f32.mxu0 0.0
    %7714 = vmatmul.mubr.f32.gmra.mxu0 %v7642
    %v7715 = vpop.f32.mrf.mxu0
    %v7716 = vadd.f32 0.0, %v7715
    %v7717 = vpop.f32.mrf.mxu0
    %7718 = vdwg.mxu0
    %7719 = vrot.lane.b32.xlu0 %v356, 72
    %v7720 = vpop.permute.xlu0 %7719
    %7721 = vrot.lane.b32.xlu0 %v362, 72
    %v7722 = vpop.permute.xlu0 %7721
    %v7726 = vsel %vm1329, %v7626, 0
    %v7729 = vsel %vm1329, %v7627, 0
    %7731 = vmatprep.subr.mxu0 0.0
    %7732 = vmatpush1.msra.mxu0 0.0
    %7733 = vmatprep.subr.mxu0 0.0
    %7734 = vmatpush1.msra.mxu0 0.0
    %7735 = vmatprep.subr.mxu0 0.0
    %7736 = vmatpush1.msra.mxu0 0.0
    %7737 = vmatprep.subr.mxu0 0.0
    %7738 = vmatpush1.msra.mxu0 0.0
    %7739 = vmatprep.subr.mxu0 0.0
    %7740 = vmatpush1.msra.mxu0 0.0
    %7741 = vmatprep.subr.mxu0 0.0
    %7742 = vmatpush1.msra.mxu0 0.0
    %7743 = vmatprep.subr.mxu0 0.0
    %7744 = vmatpush1.msra.mxu0 0.0
    %7745 = vmatprep.subr.mxu0 0.0
    %7746 = vmatpush1.msra.mxu0 0.0
    %7747 = vmatprep.subr.mxu0 0.0
    %7748 = vmatpush1.msra.mxu0 0.0
    %7749 = vmatprep.subr.mxu0 0.0
    %7750 = vmatpush1.msra.mxu0 0.0
    %7751 = vmatprep.subr.mxu0 0.0
    %7752 = vmatpush1.msra.mxu0 0.0
    %7753 = vmatprep.subr.mxu0 0.0
    %7754 = vmatpush1.msra.mxu0 0.0
    %7755 = vmatprep.subr.mxu0 0.0
    %7756 = vmatpush1.msra.mxu0 0.0
    %7757 = vmatprep.subr.mxu0 0.0
    %7758 = vmatpush1.msra.mxu0 0.0
    %7759 = vmatprep.subr.mxu0 0.0
    %7760 = vmatpush1.msra.mxu0 %v7722
    %7761 = vmatprep.subr.mxu0 0.0
    %7762 = vmatpush1.msra.mxu0 %v7720
    %7763 = vmatprep.subr.mxu0 0.0
    %7764 = vmatpush2.msra.mxu0 0.0
    %7765 = vmatprep.subr.mxu0 0.0
    %7766 = vmatpush2.msra.mxu0 0.0
    %7767 = vmatprep.subr.mxu0 0.0
    %7768 = vmatpush2.msra.mxu0 0.0
    %7769 = vmatprep.subr.mxu0 0.0
    %7770 = vmatpush2.msra.mxu0 0.0
    %7771 = vmatprep.subr.mxu0 0.0
    %7772 = vmatpush2.msra.mxu0 0.0
    %7773 = vmatprep.subr.mxu0 0.0
    %7774 = vmatpush2.msra.mxu0 0.0
    %7775 = vmatprep.subr.mxu0 0.0
    %7776 = vmatpush2.msra.mxu0 0.0
    %7777 = vmatprep.subr.mxu0 0.0
    %7778 = vmatpush2.msra.mxu0 0.0
    %7779 = vmatprep.subr.mxu0 0.0
    %7780 = vmatpush2.msra.mxu0 0.0
    %7781 = vmatprep.subr.mxu0 0.0
    %7782 = vmatpush2.msra.mxu0 0.0
    %7783 = vmatprep.subr.mxu0 0.0
    %7784 = vmatpush2.msra.mxu0 0.0
    %7785 = vmatprep.subr.mxu0 0.0
    %7786 = vmatpush2.msra.mxu0 0.0
    %7787 = vmatprep.subr.mxu0 0.0
    %7788 = vmatpush2.msra.mxu0 0.0
    %7789 = vmatprep.subr.mxu0 0.0
    %7790 = vmatpush2.msra.mxu0 0.0
    %7791 = vmatprep.subr.mxu0 0.0
    %7792 = vmatpush2.msra.mxu0 0.0
    %7793 = vmatprep.subr.mxu0 0.0
    %7794 = vmatpush2.msra.mxu0 0.0
    %7795 = vmatprep.mubr.f32.mxu0 0.0
    %7796 = vmatmul.mubr.f32.gmra.mxu0 %v7726
    %v7797 = vpop.f32.mrf.mxu0
    %v7798 = vadd.f32 0.0, %v7797
    %v7799 = vpop.f32.mrf.mxu0
    %7800 = vmatprep.mubr.f32.mxu0 0.0
    %7801 = vmatmul.mubr.f32.gmra.mxu0 %v7729
    %v7802 = vpop.f32.mrf.mxu0
    %v7803 = vadd.f32 0.0, %v7802
    %v7804 = vpop.f32.mrf.mxu0
    %7805 = vdwg.mxu0
    %7806 = vrot.lane.b32.xlu0 %v368, 72
    %v7807 = vpop.permute.xlu0 %7806
    %7808 = vrot.lane.b32.xlu0 %v374, 72
    %v7809 = vpop.permute.xlu0 %7808
    %v7813 = vsel %vm1329, %v7628, 0
    %v7816 = vsel %vm1329, %v7629, 0
    %7818 = vmatprep.subr.mxu0 0.0
    %7819 = vmatpush1.msra.mxu0 0.0
    %7820 = vmatprep.subr.mxu0 0.0
    %7821 = vmatpush1.msra.mxu0 0.0
    %7822 = vmatprep.subr.mxu0 0.0
    %7823 = vmatpush1.msra.mxu0 0.0
    %7824 = vmatprep.subr.mxu0 0.0
    %7825 = vmatpush1.msra.mxu0 0.0
    %7826 = vmatprep.subr.mxu0 0.0
    %7827 = vmatpush1.msra.mxu0 0.0
    %7828 = vmatprep.subr.mxu0 0.0
    %7829 = vmatpush1.msra.mxu0 0.0
    %7830 = vmatprep.subr.mxu0 0.0
    %7831 = vmatpush1.msra.mxu0 0.0
    %7832 = vmatprep.subr.mxu0 0.0
    %7833 = vmatpush1.msra.mxu0 0.0
    %7834 = vmatprep.subr.mxu0 0.0
    %7835 = vmatpush1.msra.mxu0 0.0
    %7836 = vmatprep.subr.mxu0 0.0
    %7837 = vmatpush1.msra.mxu0 0.0
    %7838 = vmatprep.subr.mxu0 0.0
    %7839 = vmatpush1.msra.mxu0 0.0
    %7840 = vmatprep.subr.mxu0 0.0
    %7841 = vmatpush1.msra.mxu0 0.0
    %7842 = vmatprep.subr.mxu0 0.0
    %7843 = vmatpush1.msra.mxu0 0.0
    %7844 = vmatprep.subr.mxu0 0.0
    %7845 = vmatpush1.msra.mxu0 0.0
    %7846 = vmatprep.subr.mxu0 0.0
    %7847 = vmatpush1.msra.mxu0 %v7809
    %7848 = vmatprep.subr.mxu0 0.0
    %7849 = vmatpush1.msra.mxu0 %v7807
    %7850 = vmatprep.subr.mxu0 0.0
    %7851 = vmatpush2.msra.mxu0 0.0
    %7852 = vmatprep.subr.mxu0 0.0
    %7853 = vmatpush2.msra.mxu0 0.0
    %7854 = vmatprep.subr.mxu0 0.0
    %7855 = vmatpush2.msra.mxu0 0.0
    %7856 = vmatprep.subr.mxu0 0.0
    %7857 = vmatpush2.msra.mxu0 0.0
    %7858 = vmatprep.subr.mxu0 0.0
    %7859 = vmatpush2.msra.mxu0 0.0
    %7860 = vmatprep.subr.mxu0 0.0
    %7861 = vmatpush2.msra.mxu0 0.0
    %7862 = vmatprep.subr.mxu0 0.0
    %7863 = vmatpush2.msra.mxu0 0.0
    %7864 = vmatprep.subr.mxu0 0.0
    %7865 = vmatpush2.msra.mxu0 0.0
    %7866 = vmatprep.subr.mxu0 0.0
    %7867 = vmatpush2.msra.mxu0 0.0
    %7868 = vmatprep.subr.mxu0 0.0
    %7869 = vmatpush2.msra.mxu0 0.0
    %7870 = vmatprep.subr.mxu0 0.0
    %7871 = vmatpush2.msra.mxu0 0.0
    %7872 = vmatprep.subr.mxu0 0.0
    %7873 = vmatpush2.msra.mxu0 0.0
    %7874 = vmatprep.subr.mxu0 0.0
    %7875 = vmatpush2.msra.mxu0 0.0
    %7876 = vmatprep.subr.mxu0 0.0
    %7877 = vmatpush2.msra.mxu0 0.0
    %7878 = vmatprep.subr.mxu0 0.0
    %7879 = vmatpush2.msra.mxu0 0.0
    %7880 = vmatprep.subr.mxu0 0.0
    %7881 = vmatpush2.msra.mxu0 0.0
    %7882 = vmatprep.mubr.f32.mxu0 0.0
    %7883 = vmatmul.mubr.f32.gmra.mxu0 %v7813
    %v7884 = vpop.f32.mrf.mxu0
    %v7885 = vadd.f32 0.0, %v7884
    %v7886 = vpop.f32.mrf.mxu0
    %7887 = vmatprep.mubr.f32.mxu0 0.0
    %7888 = vmatmul.mubr.f32.gmra.mxu0 %v7816
    %v7889 = vpop.f32.mrf.mxu0
    %v7890 = vadd.f32 0.0, %v7889
    %v7891 = vpop.f32.mrf.mxu0
    %7892 = vdwg.mxu0
    %7893 = vrot.lane.b32.xlu0 %v380, 72
    %v7894 = vpop.permute.xlu0 %7893
    %7895 = vrot.lane.b32.xlu0 %v386, 72
    %v7896 = vpop.permute.xlu0 %7895
    %v7900 = vsel %vm1329, %v7630, 0
    %v7903 = vsel %vm1329, %v7631, 0
    %7905 = vmatprep.subr.mxu0 0.0
    %7906 = vmatpush1.msra.mxu0 0.0
    %7907 = vmatprep.subr.mxu0 0.0
    %7908 = vmatpush1.msra.mxu0 0.0
    %7909 = vmatprep.subr.mxu0 0.0
    %7910 = vmatpush1.msra.mxu0 0.0
    %7911 = vmatprep.subr.mxu0 0.0
    %7912 = vmatpush1.msra.mxu0 0.0
    %7913 = vmatprep.subr.mxu0 0.0
    %7914 = vmatpush1.msra.mxu0 0.0
    %7915 = vmatprep.subr.mxu0 0.0
    %7916 = vmatpush1.msra.mxu0 0.0
    %7917 = vmatprep.subr.mxu0 0.0
    %7918 = vmatpush1.msra.mxu0 0.0
    %7919 = vmatprep.subr.mxu0 0.0
    %7920 = vmatpush1.msra.mxu0 0.0
    %7921 = vmatprep.subr.mxu0 0.0
    %7922 = vmatpush1.msra.mxu0 0.0
    %7923 = vmatprep.subr.mxu0 0.0
    %7924 = vmatpush1.msra.mxu0 0.0
    %7925 = vmatprep.subr.mxu0 0.0
    %7926 = vmatpush1.msra.mxu0 0.0
    %7927 = vmatprep.subr.mxu0 0.0
    %7928 = vmatpush1.msra.mxu0 0.0
    %7929 = vmatprep.subr.mxu0 0.0
    %7930 = vmatpush1.msra.mxu0 0.0
    %7931 = vmatprep.subr.mxu0 0.0
    %7932 = vmatpush1.msra.mxu0 0.0
    %7933 = vmatprep.subr.mxu0 0.0
    %7934 = vmatpush1.msra.mxu0 %v7896
    %7935 = vmatprep.subr.mxu0 0.0
    %7936 = vmatpush1.msra.mxu0 %v7894
    %7937 = vmatprep.subr.mxu0 0.0
    %7938 = vmatpush2.msra.mxu0 0.0
    %7939 = vmatprep.subr.mxu0 0.0
    %7940 = vmatpush2.msra.mxu0 0.0
    %7941 = vmatprep.subr.mxu0 0.0
    %7942 = vmatpush2.msra.mxu0 0.0
    %7943 = vmatprep.subr.mxu0 0.0
    %7944 = vmatpush2.msra.mxu0 0.0
    %7945 = vmatprep.subr.mxu0 0.0
    %7946 = vmatpush2.msra.mxu0 0.0
    %7947 = vmatprep.subr.mxu0 0.0
    %7948 = vmatpush2.msra.mxu0 0.0
    %7949 = vmatprep.subr.mxu0 0.0
    %7950 = vmatpush2.msra.mxu0 0.0
    %7951 = vmatprep.subr.mxu0 0.0
    %7952 = vmatpush2.msra.mxu0 0.0
    %7953 = vmatprep.subr.mxu0 0.0
    %7954 = vmatpush2.msra.mxu0 0.0
    %7955 = vmatprep.subr.mxu0 0.0
    %7956 = vmatpush2.msra.mxu0 0.0
    %7957 = vmatprep.subr.mxu0 0.0
    %7958 = vmatpush2.msra.mxu0 0.0
    %7959 = vmatprep.subr.mxu0 0.0
    %7960 = vmatpush2.msra.mxu0 0.0
    %7961 = vmatprep.subr.mxu0 0.0
    %7962 = vmatpush2.msra.mxu0 0.0
    %7963 = vmatprep.subr.mxu0 0.0
    %7964 = vmatpush2.msra.mxu0 0.0
    %7965 = vmatprep.subr.mxu0 0.0
    %7966 = vmatpush2.msra.mxu0 0.0
    %7967 = vmatprep.subr.mxu0 0.0
    %7968 = vmatpush2.msra.mxu0 0.0
    %7969 = vmatprep.mubr.f32.mxu0 0.0
    %7970 = vmatmul.mubr.f32.gmra.mxu0 %v7900
    %v7971 = vpop.f32.mrf.mxu0
    %v7972 = vadd.f32 0.0, %v7971
    %v7973 = vpop.f32.mrf.mxu0
    %7974 = vmatprep.mubr.f32.mxu0 0.0
    %7975 = vmatmul.mubr.f32.gmra.mxu0 %v7903
    %v7976 = vpop.f32.mrf.mxu0
    %v7977 = vadd.f32 0.0, %v7976
    %v7978 = vpop.f32.mrf.mxu0
    %7979 = vdwg.mxu0
    %7988 = vrot.lane.b32.xlu0 %v2365, 8
    %v7989 = vpop.permute.xlu0 %7988
    %7990 = vrot.lane.b32.xlu0 %v2370, 8
    %v7991 = vpop.permute.xlu0 %7990
    %7992 = vrot.lane.b32.xlu0 %v2454, 8
    %v7993 = vpop.permute.xlu0 %7992
    %7994 = vrot.lane.b32.xlu0 %v2459, 8
    %v7995 = vpop.permute.xlu0 %7994
    %7996 = vrot.lane.b32.xlu0 %v2543, 8
    %v7997 = vpop.permute.xlu0 %7996
    %7998 = vrot.lane.b32.xlu0 %v2548, 8
    %v7999 = vpop.permute.xlu0 %7998
    %8000 = vrot.lane.b32.xlu0 %v2632, 8
    %v8001 = vpop.permute.xlu0 %8000
    %8002 = vrot.lane.b32.xlu0 %v2637, 8
    %v8003 = vpop.permute.xlu0 %8002
    %8020 = vrot.lane.b32.xlu0 %v3261, 16
    %v8021 = vpop.permute.xlu0 %8020
    %8022 = vrot.lane.b32.xlu0 %v3266, 16
    %v8023 = vpop.permute.xlu0 %8022
    %8024 = vrot.lane.b32.xlu0 %v3348, 16
    %v8025 = vpop.permute.xlu0 %8024
    %8026 = vrot.lane.b32.xlu0 %v3353, 16
    %v8027 = vpop.permute.xlu0 %8026
    %8028 = vrot.lane.b32.xlu0 %v3435, 16
    %v8029 = vpop.permute.xlu0 %8028
    %8030 = vrot.lane.b32.xlu0 %v3440, 16
    %v8031 = vpop.permute.xlu0 %8030
    %8032 = vrot.lane.b32.xlu0 %v3522, 16
    %v8033 = vpop.permute.xlu0 %8032
    %8034 = vrot.lane.b32.xlu0 %v3527, 16
    %v8035 = vpop.permute.xlu0 %8034
    %8052 = vrot.lane.b32.xlu0 %v4151, 24
    %v8053 = vpop.permute.xlu0 %8052
    %8054 = vrot.lane.b32.xlu0 %v4156, 24
    %v8055 = vpop.permute.xlu0 %8054
    %8056 = vrot.lane.b32.xlu0 %v4238, 24
    %v8057 = vpop.permute.xlu0 %8056
    %8058 = vrot.lane.b32.xlu0 %v4243, 24
    %v8059 = vpop.permute.xlu0 %8058
    %8060 = vrot.lane.b32.xlu0 %v4325, 24
    %v8061 = vpop.permute.xlu0 %8060
    %8062 = vrot.lane.b32.xlu0 %v4330, 24
    %v8063 = vpop.permute.xlu0 %8062
    %8064 = vrot.lane.b32.xlu0 %v4412, 24
    %v8065 = vpop.permute.xlu0 %8064
    %8066 = vrot.lane.b32.xlu0 %v4417, 24
    %v8067 = vpop.permute.xlu0 %8066
    %8084 = vrot.lane.b32.xlu0 %v5041, 32
    %v8085 = vpop.permute.xlu0 %8084
    %8086 = vrot.lane.b32.xlu0 %v5046, 32
    %v8087 = vpop.permute.xlu0 %8086
    %8088 = vrot.lane.b32.xlu0 %v5128, 32
    %v8089 = vpop.permute.xlu0 %8088
    %8090 = vrot.lane.b32.xlu0 %v5133, 32
    %v8091 = vpop.permute.xlu0 %8090
    %8092 = vrot.lane.b32.xlu0 %v5215, 32
    %v8093 = vpop.permute.xlu0 %8092
    %8094 = vrot.lane.b32.xlu0 %v5220, 32
    %v8095 = vpop.permute.xlu0 %8094
    %8096 = vrot.lane.b32.xlu0 %v5302, 32
    %v8097 = vpop.permute.xlu0 %8096
    %8098 = vrot.lane.b32.xlu0 %v5307, 32
    %v8099 = vpop.permute.xlu0 %8098
    %8116 = vrot.lane.b32.xlu0 %v5931, 40
    %v8117 = vpop.permute.xlu0 %8116
    %8118 = vrot.lane.b32.xlu0 %v5936, 40
    %v8119 = vpop.permute.xlu0 %8118
    %8120 = vrot.lane.b32.xlu0 %v6018, 40
    %v8121 = vpop.permute.xlu0 %8120
    %8122 = vrot.lane.b32.xlu0 %v6023, 40
    %v8123 = vpop.permute.xlu0 %8122
    %8124 = vrot.lane.b32.xlu0 %v6105, 40
    %v8125 = vpop.permute.xlu0 %8124
    %8126 = vrot.lane.b32.xlu0 %v6110, 40
    %v8127 = vpop.permute.xlu0 %8126
    %8128 = vrot.lane.b32.xlu0 %v6192, 40
    %v8129 = vpop.permute.xlu0 %8128
    %8130 = vrot.lane.b32.xlu0 %v6197, 40
    %v8131 = vpop.permute.xlu0 %8130
    %8148 = vrot.lane.b32.xlu0 %v6821, 48
    %v8149 = vpop.permute.xlu0 %8148
    %8150 = vrot.lane.b32.xlu0 %v6826, 48
    %v8151 = vpop.permute.xlu0 %8150
    %8152 = vrot.lane.b32.xlu0 %v6908, 48
    %v8153 = vpop.permute.xlu0 %8152
    %8154 = vrot.lane.b32.xlu0 %v6913, 48
    %v8155 = vpop.permute.xlu0 %8154
    %8156 = vrot.lane.b32.xlu0 %v6995, 48
    %v8157 = vpop.permute.xlu0 %8156
    %8158 = vrot.lane.b32.xlu0 %v7000, 48
    %v8159 = vpop.permute.xlu0 %8158
    %8160 = vrot.lane.b32.xlu0 %v7082, 48
    %v8161 = vpop.permute.xlu0 %8160
    %8162 = vrot.lane.b32.xlu0 %v7087, 48
    %v8163 = vpop.permute.xlu0 %8162
    %8180 = vrot.lane.b32.xlu0 %v7711, 56
    %v8181 = vpop.permute.xlu0 %8180
    %8182 = vrot.lane.b32.xlu0 %v7716, 56
    %v8183 = vpop.permute.xlu0 %8182
    %8184 = vrot.lane.b32.xlu0 %v7798, 56
    %v8185 = vpop.permute.xlu0 %8184
    %8186 = vrot.lane.b32.xlu0 %v7803, 56
    %v8187 = vpop.permute.xlu0 %8186
    %8188 = vrot.lane.b32.xlu0 %v7885, 56
    %v8189 = vpop.permute.xlu0 %8188
    %8190 = vrot.lane.b32.xlu0 %v7890, 56
    %v8191 = vpop.permute.xlu0 %8190
    %8192 = vrot.lane.b32.xlu0 %v7972, 56
    %v8193 = vpop.permute.xlu0 %8192
    %8194 = vrot.lane.b32.xlu0 %v7977, 56
    %v8195 = vpop.permute.xlu0 %8194
    %v8204 = vsel %vm978, %v1491, %v7989
    %v8205 = vsel %vm978, %v1496, %v7991
    %v8206 = vsel %vm978, %v1572, %v7993
    %v8207 = vsel %vm978, %v1577, %v7995
    %v8208 = vsel %vm978, %v1653, %v7997
    %v8209 = vsel %vm978, %v1658, %v7999
    %v8210 = vsel %vm978, %v1734, %v8001
    %v8211 = vsel %vm978, %v1739, %v8003
    %v8212 = vsel %vm1329, %v8204, %v8021
    %v8213 = vsel %vm1329, %v8205, %v8023
    %v8214 = vsel %vm1329, %v8206, %v8025
    %v8215 = vsel %vm1329, %v8207, %v8027
    %v8216 = vsel %vm1329, %v8208, %v8029
    %v8217 = vsel %vm1329, %v8209, %v8031
    %v8218 = vsel %vm1329, %v8210, %v8033
    %v8219 = vsel %vm1329, %v8211, %v8035
    %vm8220 = vcmask 195584
    %v8221 = vsel %vm8220, %v8212, %v8053
    %v8222 = vsel %vm8220, %v8213, %v8055
    %v8223 = vsel %vm8220, %v8214, %v8057
    %v8224 = vsel %vm8220, %v8215, %v8059
    %v8225 = vsel %vm8220, %v8216, %v8061
    %v8226 = vsel %vm8220, %v8217, %v8063
    %v8227 = vsel %vm8220, %v8218, %v8065
    %v8228 = vsel %vm8220, %v8219, %v8067
    %vm8229 = vcmask 261120
    %v8230 = vsel %vm8229, %v8221, %v8085
    %v8231 = vsel %vm8229, %v8222, %v8087
    %v8232 = vsel %vm8229, %v8223, %v8089
    %v8233 = vsel %vm8229, %v8224, %v8091
    %v8234 = vsel %vm8229, %v8225, %v8093
    %v8235 = vsel %vm8229, %v8226, %v8095
    %v8236 = vsel %vm8229, %v8227, %v8097
    %v8237 = vsel %vm8229, %v8228, %v8099
    %vm8238 = vcmask 326656
    %v8239 = vsel %vm8238, %v8230, %v8117
    %v8240 = vsel %vm8238, %v8231, %v8119
    %v8241 = vsel %vm8238, %v8232, %v8121
    %v8242 = vsel %vm8238, %v8233, %v8123
    %v8243 = vsel %vm8238, %v8234, %v8125
    %v8244 = vsel %vm8238, %v8235, %v8127
    %v8245 = vsel %vm8238, %v8236, %v8129
    %v8246 = vsel %vm8238, %v8237, %v8131
    %vm8247 = vcmask 392192
    %v8248 = vsel %vm8247, %v8239, %v8149
    %v8249 = vsel %vm8247, %v8240, %v8151
    %v8250 = vsel %vm8247, %v8241, %v8153
    %v8251 = vsel %vm8247, %v8242, %v8155
    %v8252 = vsel %vm8247, %v8243, %v8157
    %v8253 = vsel %vm8247, %v8244, %v8159
    %v8254 = vsel %vm8247, %v8245, %v8161
    %v8255 = vsel %vm8247, %v8246, %v8163
    %vm8256 = vcmask 457728
    %v8257 = vsel %vm8256, %v8248, %v8181
    %v8258 = vsel %vm8256, %v8249, %v8183
    %v8259 = vsel %vm8256, %v8250, %v8185
    %v8260 = vsel %vm8256, %v8251, %v8187
    %v8261 = vsel %vm8256, %v8252, %v8189
    %v8262 = vsel %vm8256, %v8253, %v8191
    %v8263 = vsel %vm8256, %v8254, %v8193
    %v8264 = vsel %vm8256, %v8255, %v8195
    %v8265 = vld [vmem:[#allocation6] sm:$0xff]
    %v8266 = vld [vmem:[#allocation6 + $0x8] sm:$0xff]
    %v8267 = vld [vmem:[#allocation6 + $0x10] sm:$0xff]
    %v8268 = vld [vmem:[#allocation6 + $0x18] sm:$0xff]
    %v8269 = vld [vmem:[#allocation6 + $0x20] sm:$0xff]
    %v8270 = vld [vmem:[#allocation6 + $0x28] sm:$0xff]
    %v8271 = vld [vmem:[#allocation6 + $0x30] sm:$0xff]
    %v8272 = vld [vmem:[#allocation6 + $0x38] sm:$0xff]
    %v8273 = vld [vmem:[%s8] sm:$0x1]
    %v8275 = vlaneseq
    %v8276 = vshrl.u32 %v8275, 7
    %v8277 = vsub.s32 0, %v8276
    %v8278 = vrot.slane %v8273, %v8277
    %v8281 = vsel %vm87, %v8257, 0
    %v8284 = vsel %vm87, %v8258, 0
    %v8287 = vsel %vm87, %v8259, 0
    %v8290 = vsel %vm87, %v8260, 0
    %v8293 = vsel %vm87, %v8261, 0
    %v8296 = vsel %vm87, %v8262, 0
    %v8299 = vsel %vm87, %v8263, 0
    %v8302 = vsel %vm87, %v8264, 0
    %8304 = vmatprep.subr.mxu0 0.0
    %8305 = vmatpush1.msra.mxu0 0.0
    %8306 = vmatprep.subr.mxu0 0.0
    %8307 = vmatpush1.msra.mxu0 0.0
    %8308 = vmatprep.subr.mxu0 0.0
    %8309 = vmatpush1.msra.mxu0 0.0
    %8310 = vmatprep.subr.mxu0 0.0
    %8311 = vmatpush1.msra.mxu0 0.0
    %8312 = vmatprep.subr.mxu0 0.0
    %8313 = vmatpush1.msra.mxu0 0.0
    %8314 = vmatprep.subr.mxu0 0.0
    %8315 = vmatpush1.msra.mxu0 0.0
    %8316 = vmatprep.subr.mxu0 0.0
    %8317 = vmatpush1.msra.mxu0 0.0
    %8318 = vmatprep.subr.mxu0 0.0
    %8319 = vmatpush1.msra.mxu0 0.0
    %8320 = vmatprep.subr.mxu0 0.0
    %8321 = vmatpush1.msra.mxu0 %v8272
    %8322 = vmatprep.subr.mxu0 0.0
    %8323 = vmatpush1.msra.mxu0 %v8271
    %8324 = vmatprep.subr.mxu0 0.0
    %8325 = vmatpush1.msra.mxu0 %v8270
    %8326 = vmatprep.subr.mxu0 0.0
    %8327 = vmatpush1.msra.mxu0 %v8269
    %8328 = vmatprep.subr.mxu0 0.0
    %8329 = vmatpush1.msra.mxu0 %v8268
    %8330 = vmatprep.subr.mxu0 0.0
    %8331 = vmatpush1.msra.mxu0 %v8267
    %8332 = vmatprep.subr.mxu0 0.0
    %8333 = vmatpush1.msra.mxu0 %v8266
    %8334 = vmatprep.subr.mxu0 0.0
    %8335 = vmatpush1.msra.mxu0 %v8265
    %8336 = vmatprep.subr.mxu0 0.0
    %8337 = vmatpush2.msra.mxu0 0.0
    %8338 = vmatprep.subr.mxu0 0.0
    %8339 = vmatpush2.msra.mxu0 0.0
    %8340 = vmatprep.subr.mxu0 0.0
    %8341 = vmatpush2.msra.mxu0 0.0
    %8342 = vmatprep.subr.mxu0 0.0
    %8343 = vmatpush2.msra.mxu0 0.0
    %8344 = vmatprep.subr.mxu0 0.0
    %8345 = vmatpush2.msra.mxu0 0.0
    %8346 = vmatprep.subr.mxu0 0.0
    %8347 = vmatpush2.msra.mxu0 0.0
    %8348 = vmatprep.subr.mxu0 0.0
    %8349 = vmatpush2.msra.mxu0 0.0
    %8350 = vmatprep.subr.mxu0 0.0
    %8351 = vmatpush2.msra.mxu0 0.0
    %8352 = vmatprep.subr.mxu0 0.0
    %8353 = vmatpush2.msra.mxu0 0.0
    %8354 = vmatprep.subr.mxu0 0.0
    %8355 = vmatpush2.msra.mxu0 0.0
    %8356 = vmatprep.subr.mxu0 0.0
    %8357 = vmatpush2.msra.mxu0 0.0
    %8358 = vmatprep.subr.mxu0 0.0
    %8359 = vmatpush2.msra.mxu0 0.0
    %8360 = vmatprep.subr.mxu0 0.0
    %8361 = vmatpush2.msra.mxu0 0.0
    %8362 = vmatprep.subr.mxu0 0.0
    %8363 = vmatpush2.msra.mxu0 0.0
    %8364 = vmatprep.subr.mxu0 0.0
    %8365 = vmatpush2.msra.mxu0 0.0
    %8366 = vmatprep.subr.mxu0 0.0
    %8367 = vmatpush2.msra.mxu0 0.0
    %8368 = vmatprep.mubr.f32.mxu0 0.0
    %8369 = vmatmul.mubr.f32.gmra.mxu0 %v8281
    %v8370 = vpop.f32.mrf.mxu0
    %v8371 = vadd.f32 %v8278, %v8370
    %v8372 = vpop.f32.mrf.mxu0
    %8373 = vmatprep.mubr.f32.mxu0 0.0
    %8374 = vmatmul.mubr.f32.gmra.mxu0 %v8284
    %v8375 = vpop.f32.mrf.mxu0
    %v8376 = vadd.f32 %v8278, %v8375
    %v8377 = vpop.f32.mrf.mxu0
    %8378 = vmatprep.mubr.f32.mxu0 0.0
    %8379 = vmatmul.mubr.f32.gmra.mxu0 %v8287
    %v8380 = vpop.f32.mrf.mxu0
    %v8381 = vadd.f32 %v8278, %v8380
    %v8382 = vpop.f32.mrf.mxu0
    %8383 = vmatprep.mubr.f32.mxu0 0.0
    %8384 = vmatmul.mubr.f32.gmra.mxu0 %v8290
    %v8385 = vpop.f32.mrf.mxu0
    %v8386 = vadd.f32 %v8278, %v8385
    %v8387 = vpop.f32.mrf.mxu0
    %8388 = vmatprep.mubr.f32.mxu0 0.0
    %8389 = vmatmul.mubr.f32.gmra.mxu0 %v8293
    %v8390 = vpop.f32.mrf.mxu0
    %v8391 = vadd.f32 %v8278, %v8390
    %v8392 = vpop.f32.mrf.mxu0
    %8393 = vmatprep.mubr.f32.mxu0 0.0
    %8394 = vmatmul.mubr.f32.gmra.mxu0 %v8296
    %v8395 = vpop.f32.mrf.mxu0
    %v8396 = vadd.f32 %v8278, %v8395
    %v8397 = vpop.f32.mrf.mxu0
    %8398 = vmatprep.mubr.f32.mxu0 0.0
    %8399 = vmatmul.mubr.f32.gmra.mxu0 %v8299
    %v8400 = vpop.f32.mrf.mxu0
    %v8401 = vadd.f32 %v8278, %v8400
    %v8402 = vpop.f32.mrf.mxu0
    %8403 = vmatprep.mubr.f32.mxu0 0.0
    %8404 = vmatmul.mubr.f32.gmra.mxu0 %v8302
    %v8405 = vpop.f32.mrf.mxu0
    %v8406 = vadd.f32 %v8278, %v8405
    %v8407 = vpop.f32.mrf.mxu0
    %8408 = vdwg.mxu0
    %v8409 = vadd.f32 %v79, %v8371
    %v8410 = vadd.f32 %v80, %v8376
    %v8411 = vadd.f32 %v81, %v8381
    %v8412 = vadd.f32 %v82, %v8386
    %v8413 = vadd.f32 %v83, %v8391
    %v8414 = vadd.f32 %v84, %v8396
    %v8415 = vadd.f32 %v85, %v8401
    %v8416 = vadd.f32 %v86, %v8406
    %v8417 = vmul.f32 %v8409, 0.5
    %v8418 = vmul.f32 %v8410, 0.5
    %v8419 = vmul.f32 %v8411, 0.5
    %v8420 = vmul.f32 %v8412, 0.5
    %v8421 = vmul.f32 %v8413, 0.5
    %v8422 = vmul.f32 %v8414, 0.5
    %v8423 = vmul.f32 %v8415, 0.5
    %v8424 = vmul.f32 %v8416, 0.5
    %v8425 = vmul.f32 %v8409, 0.70710677
    %v8426 = vmul.f32 %v8410, 0.70710677
    %v8427 = vmul.f32 %v8411, 0.70710677
    %v8428 = vmul.f32 %v8412, 0.70710677
    %v8429 = vmul.f32 %v8413, 0.70710677
    %v8430 = vmul.f32 %v8414, 0.70710677
    %v8431 = vmul.f32 %v8415, 0.70710677
    %v8432 = vmul.f32 %v8416, 0.70710677
    %vm8433 = vcmp.ge.f32.partialorder %v8425, 0.0
    %vm8434 = vcmp.ge.f32.partialorder %v8426, 0.0
    %vm8435 = vcmp.ge.f32.partialorder %v8427, 0.0
    %vm8436 = vcmp.ge.f32.partialorder %v8428, 0.0
    %vm8437 = vcmp.ge.f32.partialorder %v8429, 0.0
    %vm8438 = vcmp.ge.f32.partialorder %v8430, 0.0
    %vm8439 = vcmp.ge.f32.partialorder %v8431, 0.0
    %vm8440 = vcmp.ge.f32.partialorder %v8432, 0.0
    %v8441 = vsel %vm8433, 1.0, -1.0
    %v8442 = vsel %vm8434, 1.0, -1.0
    %v8443 = vsel %vm8435, 1.0, -1.0
    %v8444 = vsel %vm8436, 1.0, -1.0
    %v8445 = vsel %vm8437, 1.0, -1.0
    %v8446 = vsel %vm8438, 1.0, -1.0
    %v8447 = vsel %vm8439, 1.0, -1.0
    %v8448 = vsel %vm8440, 1.0, -1.0
    %v8449 = vand.u32 2147483647, %v8425
    %v8450 = vand.u32 2147483647, %v8426
    %v8451 = vand.u32 2147483647, %v8427
    %v8452 = vand.u32 2147483647, %v8428
    %v8453 = vand.u32 2147483647, %v8429
    %v8454 = vand.u32 2147483647, %v8430
    %v8455 = vand.u32 2147483647, %v8431
    %v8456 = vand.u32 2147483647, %v8432
    %v8457 = vmul.f32 %v8449, 0.3275911
    %v8458 = vmul.f32 %v8450, 0.3275911
    %v8459 = vmul.f32 %v8451, 0.3275911
    %v8460 = vmul.f32 %v8452, 0.3275911
    %v8461 = vmul.f32 %v8453, 0.3275911
    %v8462 = vmul.f32 %v8454, 0.3275911
    %v8463 = vmul.f32 %v8455, 0.3275911
    %v8464 = vmul.f32 %v8456, 0.3275911
    %v8465 = vadd.f32 %v8457, 1.0
    %v8466 = vadd.f32 %v8458, 1.0
    %v8467 = vadd.f32 %v8459, 1.0
    %v8468 = vadd.f32 %v8460, 1.0
    %v8469 = vadd.f32 %v8461, 1.0
    %v8470 = vadd.f32 %v8462, 1.0
    %v8471 = vadd.f32 %v8463, 1.0
    %v8472 = vadd.f32 %v8464, 1.0
    %v8473 = vrcp.pop %v8465
    %v8474 = vmul.f32 1.0, %v8473
    %v8475 = vrcp.pop %v8466
    %v8476 = vmul.f32 1.0, %v8475
    %v8477 = vrcp.pop %v8467
    %v8478 = vmul.f32 1.0, %v8477
    %v8479 = vrcp.pop %v8468
    %v8480 = vmul.f32 1.0, %v8479
    %v8481 = vrcp.pop %v8469
    %v8482 = vmul.f32 1.0, %v8481
    %v8483 = vrcp.pop %v8470
    %v8484 = vmul.f32 1.0, %v8483
    %v8485 = vrcp.pop %v8471
    %v8486 = vmul.f32 1.0, %v8485
    %v8487 = vrcp.pop %v8472
    %v8488 = vmul.f32 1.0, %v8487
    %v8489 = vmul.f32 %v8474, 1.0614054
    %v8490 = vmul.f32 %v8476, 1.0614054
    %v8491 = vmul.f32 %v8478, 1.0614054
    %v8492 = vmul.f32 %v8480, 1.0614054
    %v8493 = vmul.f32 %v8482, 1.0614054
    %v8494 = vmul.f32 %v8484, 1.0614054
    %v8495 = vmul.f32 %v8486, 1.0614054
    %v8496 = vmul.f32 %v8488, 1.0614054
    %v8497 = vadd.f32 %v8489, -1.4531521
    %v8498 = vadd.f32 %v8490, -1.4531521
    %v8499 = vadd.f32 %v8491, -1.4531521
    %v8500 = vadd.f32 %v8492, -1.4531521
    %v8501 = vadd.f32 %v8493, -1.4531521
    %v8502 = vadd.f32 %v8494, -1.4531521
    %v8503 = vadd.f32 %v8495, -1.4531521
    %v8504 = vadd.f32 %v8496, -1.4531521
    %v8505 = vmul.f32 %v8497, %v8474
    %v8506 = vmul.f32 %v8498, %v8476
    %v8507 = vmul.f32 %v8499, %v8478
    %v8508 = vmul.f32 %v8500, %v8480
    %v8509 = vmul.f32 %v8501, %v8482
    %v8510 = vmul.f32 %v8502, %v8484
    %v8511 = vmul.f32 %v8503, %v8486
    %v8512 = vmul.f32 %v8504, %v8488
    %v8513 = vadd.f32 %v8505, 1.4214138
    %v8514 = vadd.f32 %v8506, 1.4214138
    %v8515 = vadd.f32 %v8507, 1.4214138
    %v8516 = vadd.f32 %v8508, 1.4214138
    %v8517 = vadd.f32 %v8509, 1.4214138
    %v8518 = vadd.f32 %v8510, 1.4214138
    %v8519 = vadd.f32 %v8511, 1.4214138
    %v8520 = vadd.f32 %v8512, 1.4214138
    %v8521 = vmul.f32 %v8513, %v8474
    %v8522 = vmul.f32 %v8514, %v8476
    %v8523 = vmul.f32 %v8515, %v8478
    %v8524 = vmul.f32 %v8516, %v8480
    %v8525 = vmul.f32 %v8517, %v8482
    %v8526 = vmul.f32 %v8518, %v8484
    %v8527 = vmul.f32 %v8519, %v8486
    %v8528 = vmul.f32 %v8520, %v8488
    %v8529 = vadd.f32 %v8521, -0.28449672
    %v8530 = vadd.f32 %v8522, -0.28449672
    %v8531 = vadd.f32 %v8523, -0.28449672
    %v8532 = vadd.f32 %v8524, -0.28449672
    %v8533 = vadd.f32 %v8525, -0.28449672
    %v8534 = vadd.f32 %v8526, -0.28449672
    %v8535 = vadd.f32 %v8527, -0.28449672
    %v8536 = vadd.f32 %v8528, -0.28449672
    %v8537 = vmul.f32 %v8529, %v8474
    %v8538 = vmul.f32 %v8530, %v8476
    %v8539 = vmul.f32 %v8531, %v8478
    %v8540 = vmul.f32 %v8532, %v8480
    %v8541 = vmul.f32 %v8533, %v8482
    %v8542 = vmul.f32 %v8534, %v8484
    %v8543 = vmul.f32 %v8535, %v8486
    %v8544 = vmul.f32 %v8536, %v8488
    %v8545 = vadd.f32 %v8537, 0.2548296
    %v8546 = vadd.f32 %v8538, 0.2548296
    %v8547 = vadd.f32 %v8539, 0.2548296
    %v8548 = vadd.f32 %v8540, 0.2548296
    %v8549 = vadd.f32 %v8541, 0.2548296
    %v8550 = vadd.f32 %v8542, 0.2548296
    %v8551 = vadd.f32 %v8543, 0.2548296
    %v8552 = vadd.f32 %v8544, 0.2548296
    %v8553 = vmul.f32 %v8545, %v8474
    %v8554 = vmul.f32 %v8546, %v8476
    %v8555 = vmul.f32 %v8547, %v8478
    %v8556 = vmul.f32 %v8548, %v8480
    %v8557 = vmul.f32 %v8549, %v8482
    %v8558 = vmul.f32 %v8550, %v8484
    %v8559 = vmul.f32 %v8551, %v8486
    %v8560 = vmul.f32 %v8552, %v8488
    %v8561 = vsub.f32 0.0, %v8449
    %v8562 = vsub.f32 0.0, %v8450
    %v8563 = vsub.f32 0.0, %v8451
    %v8564 = vsub.f32 0.0, %v8452
    %v8565 = vsub.f32 0.0, %v8453
    %v8566 = vsub.f32 0.0, %v8454
    %v8567 = vsub.f32 0.0, %v8455
    %v8568 = vsub.f32 0.0, %v8456
    %v8569 = vmul.f32 %v8561, %v8449
    %v8570 = vmul.f32 %v8562, %v8450
    %v8571 = vmul.f32 %v8563, %v8451
    %v8572 = vmul.f32 %v8564, %v8452
    %v8573 = vmul.f32 %v8565, %v8453
    %v8574 = vmul.f32 %v8566, %v8454
    %v8575 = vmul.f32 %v8567, %v8455
    %v8576 = vmul.f32 %v8568, %v8456
    %v8577 = vmul.f32 %v8569, 1.442695
    %v8578 = vpow.pop %v8577
    %v8579 = vmul.f32 %v8570, 1.442695
    %v8580 = vpow.pop %v8579
    %v8581 = vmul.f32 %v8571, 1.442695
    %v8582 = vpow.pop %v8581
    %v8583 = vmul.f32 %v8572, 1.442695
    %v8584 = vpow.pop %v8583
    %v8585 = vmul.f32 %v8573, 1.442695
    %v8586 = vpow.pop %v8585
    %v8587 = vmul.f32 %v8574, 1.442695
    %v8588 = vpow.pop %v8587
    %v8589 = vmul.f32 %v8575, 1.442695
    %v8590 = vpow.pop %v8589
    %v8591 = vmul.f32 %v8576, 1.442695
    %v8592 = vpow.pop %v8591
    %v8593 = vmul.f32 %v8553, %v8578
    %v8594 = vmul.f32 %v8554, %v8580
    %v8595 = vmul.f32 %v8555, %v8582
    %v8596 = vmul.f32 %v8556, %v8584
    %v8597 = vmul.f32 %v8557, %v8586
    %v8598 = vmul.f32 %v8558, %v8588
    %v8599 = vmul.f32 %v8559, %v8590
    %v8600 = vmul.f32 %v8560, %v8592
    %v8601 = vsub.f32 1.0, %v8593
    %v8602 = vsub.f32 1.0, %v8594
    %v8603 = vsub.f32 1.0, %v8595
    %v8604 = vsub.f32 1.0, %v8596
    %v8605 = vsub.f32 1.0, %v8597
    %v8606 = vsub.f32 1.0, %v8598
    %v8607 = vsub.f32 1.0, %v8599
    %v8608 = vsub.f32 1.0, %v8600
    %v8609 = vmul.f32 %v8441, %v8601
    %v8610 = vmul.f32 %v8442, %v8602
    %v8611 = vmul.f32 %v8443, %v8603
    %v8612 = vmul.f32 %v8444, %v8604
    %v8613 = vmul.f32 %v8445, %v8605
    %v8614 = vmul.f32 %v8446, %v8606
    %v8615 = vmul.f32 %v8447, %v8607
    %v8616 = vmul.f32 %v8448, %v8608
    %v8617 = vadd.f32 %v8609, 1.0
    %v8618 = vadd.f32 %v8610, 1.0
    %v8619 = vadd.f32 %v8611, 1.0
    %v8620 = vadd.f32 %v8612, 1.0
    %v8621 = vadd.f32 %v8613, 1.0
    %v8622 = vadd.f32 %v8614, 1.0
    %v8623 = vadd.f32 %v8615, 1.0
    %v8624 = vadd.f32 %v8616, 1.0
    %v8625 = vmul.f32 %v8417, %v8617
    %v8626 = vmul.f32 %v8418, %v8618
    %v8627 = vmul.f32 %v8419, %v8619
    %v8628 = vmul.f32 %v8420, %v8620
    %v8629 = vmul.f32 %v8421, %v8621
    %v8630 = vmul.f32 %v8422, %v8622
    %v8631 = vmul.f32 %v8423, %v8623
    %v8632 = vmul.f32 %v8424, %v8624
    %8633 = vst.msk [vmem:[#allocation9] sm:$0xff] %vm87, %v8625
    %8634 = vst.msk [vmem:[#allocation9 + $0x8] sm:$0xff] %vm87, %v8626
    %8635 = vst.msk [vmem:[#allocation9 + $0x10] sm:$0xff] %vm87, %v8627
    %8636 = vst.msk [vmem:[#allocation9 + $0x18] sm:$0xff] %vm87, %v8628
    %8637 = vst.msk [vmem:[#allocation9 + $0x20] sm:$0xff] %vm87, %v8629
    %8638 = vst.msk [vmem:[#allocation9 + $0x28] sm:$0xff] %vm87, %v8630
    %8639 = vst.msk [vmem:[#allocation9 + $0x30] sm:$0xff] %vm87, %v8631
    %8640 = vst.msk [vmem:[#allocation9 + $0x38] sm:$0xff] %vm87, %v8632
    // Predicated region
    $region54: #{tpu_custom_call.1} parent=1 // pred_check
      _
    $region55: #{tpu_custom_call.1} parent=1 // pred_check_branch
      %8642 = sbr.rel (0) target = $region57
    $region56: #{tpu_custom_call.1} parent=1 // pred_region
      %s8644 = ssub.s32 1024, 1024
      %8645 = vsyncadd [#allocation4], %s8644
      %s8646 = sshll.u32 [#allocation9], 4
      %s8647 = int_to_ptr.vmem [resolvable:$true] %s8646
      %8652 = dma.vmem_to_hbm [thread:$0]  %s8647, 1024, %s10, [#allocation4], 128, 128, 8
    $region57: #{tpu_custom_call.1} parent=1 // pred_fallthru
      _
    // Predicated region
    $region58: #{tpu_custom_call.1} parent=1 // pred_check
      _
    $region59: #{tpu_custom_call.1} parent=1 // pred_check_branch
      %8654 = sbr.rel (0) target = $region61
    $region60: #{tpu_custom_call.1} parent=1 // pred_region
      %8655 = dma.done [#allocation4], 1024
    $region61: #{tpu_custom_call.1} parent=1 // pred_fallthru
      _
    %8656 = vsyncpa [#allocation3], 1
    %8657 = vsyncpa [#allocation7], 1
    %8658 = vsyncpa [#allocation4], 1
    %8659 = vsyncpa [#allocation5], 1

</llo_original>
